<compile_context>
chip_gen: v7x
topology: tpu7x:2x2x1
jax: 0.10.0
libtpu: 0.0.40
codegen_flags: <defaults>
</compile_context>

<pallas_src>
import functools

import jax
import jax.numpy as jnp
from jax.experimental import pallas as pl
from jax.experimental.pallas import tpu as pltpu


def mhsa_kernel(x_ref, wq_ref, wkv_ref, wp_ref, bp_ref, o_ref,
                kv_ref, acc_ref, *, num_heads):
    # x_ref block:  (1, C, N)  bf16 -- one batch element, channels-first.
    # o_ref block:  (1, C, tq)      -- one query tile of the output.
    # kv_ref:       (2C, N) f32 VMEM scratch -- cached [K*scale; V] for batch b.
    # acc_ref:      (C, tq) f32 VMEM scratch -- per-head output accumulator.
    C = wq_ref.shape[0]
    tq = o_ref.shape[2]
    d = C // num_heads

    t = pl.program_id(1)
    col0 = pl.multiple_of(t * tq, tq)

    # K/V projection depends only on the batch element, not on the query
    # tile: compute it once per batch element (first query tile) and reuse
    # the VMEM-resident result for every remaining tile.  `scale` is already
    # folded into the K half of the fused weight.
    @pl.when(t == 0)
    def _():
        kv_ref[...] = jnp.dot(wkv_ref[...], x_ref[0],
                              preferred_element_type=jnp.float32)   # (2C, N)

    # Query projection for this tile only (1x1 conv == channel-mixing matmul;
    # weights are (C_out, C_in), so channels-first means simply W @ x).
    x_q = x_ref[0, :, pl.ds(col0, tq)]                               # (C, tq) bf16
    q_t = jnp.dot(wq_ref[...], x_q,
                  preferred_element_type=jnp.float32)                # (C, tq) f32

    for h in range(num_heads):
        q_h = q_t[h * d:(h + 1) * d, :].astype(jnp.bfloat16)             # (d, tq)
        k_h = kv_ref[h * d:(h + 1) * d, :].astype(jnp.bfloat16)          # (d, N)
        v_h = kv_ref[C + h * d:C + (h + 1) * d, :].astype(jnp.bfloat16)  # (d, N)

        # scores[i, j] = sum_dd q_h[dd, i] * k_h[dd, j]  (== q^T @ (k*scale))
        s = jax.lax.dot_general(q_h, k_h, (((0,), (0,)), ((), ())),
                                preferred_element_type=jnp.float32)      # (tq, N)

        # Numerically-stable softmax over keys (lane axis); EUP reciprocal.
        s = s - jnp.max(s, axis=-1, keepdims=True)
        p = jnp.exp(s)
        p = p * pl.reciprocal(jnp.sum(p, axis=-1, keepdims=True), approx=True)

        # out_h[dd, i] = sum_j v_h[dd, j] * p[i, j]       (== v @ attn^T)
        o_h = jax.lax.dot_general(v_h, p.astype(jnp.bfloat16),
                                  (((1,), (1,)), ((), ())),
                                  preferred_element_type=jnp.float32)    # (d, tq)

        # Store straight into the accumulator scratch so this head's (tq, N)
        # scores/probs are dead before the next head (bounded vreg pressure).
        acc_ref[h * d:(h + 1) * d, :] = o_h

    # Final 1x1 projection conv (with bias), still channels-first.
    out_t = acc_ref[...].astype(jnp.bfloat16)                            # (C, tq)
    y = jnp.dot(wp_ref[...], out_t, preferred_element_type=jnp.float32)
    y = y + bp_ref[...]                                                  # (C, tq)
    o_ref[0] = y.astype(o_ref.dtype)


def mhsa_forward(x_nchw, wq, wk, wv, wp, bp, *, num_heads):
    """x_nchw: (B, C, H, W). Weights wq/wk/wv/wp: (C, C) PyTorch conv1x1
    layout (C_out, C_in). bp: (C,)."""
    B, C, H, W = x_nchw.shape
    N = H * W
    assert C % num_heads == 0
    d = C // num_heads
    scale = d ** (-0.5)

    # NCHW -> (B, C, N): pure reshape; bf16 cast done here (halves the x
    # HBM->VMEM DMA traffic and removes the per-grid-step in-kernel pack).
    x = x_nchw.reshape(B, C, N).astype(jnp.bfloat16)

    # Query tile: the widest lane-dense (multiple-of-128, <=512) tile that
    # divides N, else the whole row.  Wider tiles amortize per-step overhead
    # and MXU fill/drain on v6e/v7x for small-C CMT stages.
    tq = N
    for cand in (512, 256, 128):
        if N % cand == 0 and N >= cand:
            tq = cand
            break

    # Pre-packed weights: fold `scale` into K, fuse K/V, bf16 MXU operands.
    wq_p = wq.astype(jnp.bfloat16)                                          # (C,  C)
    wkv_p = jnp.concatenate([wk * scale, wv], axis=0).astype(jnp.bfloat16)  # (2C, C)
    wp_p = wp.astype(jnp.bfloat16)                                          # (C,  C)
    bp_p = bp.reshape(C, 1).astype(jnp.float32)                             # (C,  1)

    # Generation-aware VMEM budget: ~3/4 of physical, capped at 96 MiB
    # (v7x: 64 MiB physical -> 48 MiB; v5e/v6e: 128 MiB physical -> 96 MiB).
    try:
        vmem_cap = pltpu.get_tpu_info().vmem_capacity_bytes
        vmem_limit = int(min(96 * 1024 * 1024,
                             max(32 * 1024 * 1024, (vmem_cap * 3) // 4)))
    except Exception:
        vmem_limit = 32 * 1024 * 1024

    kernel = functools.partial(mhsa_kernel, num_heads=num_heads)

    out = pl.pallas_call(
        kernel,
        out_shape=jax.ShapeDtypeStruct((B, C, N), x_nchw.dtype),
        grid_spec=pltpu.PrefetchScalarGridSpec(
            num_scalar_prefetch=0,
            grid=(B, N // tq),
            in_specs=[
                pl.BlockSpec((1, C, N), lambda b, t: (b, 0, 0)),   # x (full keys)
                pl.BlockSpec((C, C), lambda b, t: (0, 0)),         # Wq
                pl.BlockSpec((2 * C, C), lambda b, t: (0, 0)),     # [Wk*scale; Wv]
                pl.BlockSpec((C, C), lambda b, t: (0, 0)),         # Wproj
                pl.BlockSpec((C, 1), lambda b, t: (0, 0)),         # bproj
            ],
            out_specs=pl.BlockSpec((1, C, tq), lambda b, t: (b, 0, t)),
            scratch_shapes=[
                pltpu.VMEM((2 * C, N), jnp.float32),   # cached K/V for batch b
                pltpu.VMEM((C, tq), jnp.float32),      # head-output accumulator
            ],
        ),
        compiler_params=pltpu.CompilerParams(
            # Batch axis parallel (v7x megacore sharding); query-tile axis
            # sequential ("arbitrary") so the K/V scratch computed at t == 0
            # persists across all tiles of the same batch element.
            dimension_semantics=("parallel", "arbitrary"),
            vmem_limit_bytes=vmem_limit,
        ),
    )(x, wq_p, wkv_p, wp_p, bp_p)

    # (B, C, N) -> NCHW: pure reshape.
    return out.reshape(B, C, H, W)


def mhsa_reference(x_nchw, wq, wk, wv, wp, bp, *, num_heads):
    """Pure-JAX f32 reference mirroring the PyTorch forward (sr_ratio=1)."""
    B, C, H, W = x_nchw.shape
    N = H * W
    d = C // num_heads
    scale = d ** (-0.5)
    xf = x_nchw.reshape(B, C, N)                               # (B, C, N)

    def conv1x1(w, t):                                         # (C,C),(B,C,N)->(B,C,N)
        return jnp.einsum('oc,bcn->bon', w, t)

    q = conv1x1(wq, xf).reshape(B, num_heads, d, N)
    k = conv1x1(wk, xf).reshape(B, num_heads, d, N) * scale
    v = conv1x1(wv, xf).reshape(B, num_heads, d, N)
    attn = jnp.einsum('bhdi,bhdj->bhij', q, k)
    attn = jax.nn.softmax(attn, axis=-1)
    out = jnp.einsum('bhdj,bhij->bhdi', v, attn).reshape(B, C, N)
    out = conv1x1(wp, out) + bp[None, :, None]
    return out.reshape(B, C, H, W)


if __name__ == "__main__":
    B, C, H, W = 2, 64, 16, 16
    num_heads = 8

    key = jax.random.PRNGKey(0)
    kx, kq, kk, kv, kp, kb = jax.random.split(key, 6)

    x = jax.random.normal(kx, (B, C, H, W), dtype=jnp.float32)
    # Deterministic synthetic parameters (qkv_bias=False; proj has bias).
    wq = jax.random.normal(kq, (C, C), dtype=jnp.float32) * 0.1
    wk = jax.random.normal(kk, (C, C), dtype=jnp.float32) * 0.1
    wv = jax.random.normal(kv, (C, C), dtype=jnp.float32) * 0.1
    wp = jax.random.normal(kp, (C, C), dtype=jnp.float32) * 0.1
    bp = jax.random.normal(kb, (C,), dtype=jnp.float32) * 0.1

    y = mhsa_forward(x, wq, wk, wv, wp, bp, num_heads=num_heads)
    y = jax.block_until_ready(y)

    y_ref = mhsa_reference(x, wq, wk, wv, wp, bp, num_heads=num_heads)
    assert y.shape == (B, C, H, W)
    # bf16 MXU operands -> slightly looser tolerance than the pure-f32 path.
    assert jnp.allclose(y, y_ref, atol=3e-2, rtol=3e-2)

    print("KERNEL_OK")
</pallas_src>

<mosaic_0001>
module attributes {stable_mosaic.version = 11 : i64} {
  func.func @mhsa_kernel(%arg0: i32, %arg1: i32, %arg2: memref<1x64x256xbf16, #tpu.memory_space<vmem>>, %arg3: memref<64x64xbf16, #tpu.memory_space<vmem>>, %arg4: memref<128x64xbf16, #tpu.memory_space<vmem>>, %arg5: memref<64x64xbf16, #tpu.memory_space<vmem>>, %arg6: memref<64x1xf32, #tpu.memory_space<vmem>>, %arg7: memref<1x64x256xf32, #tpu.memory_space<vmem>>, %arg8: memref<128x256xf32, #tpu.memory_space<vmem>>, %arg9: memref<64x256xf32, #tpu.memory_space<vmem>>) attributes {dimension_semantics = [#tpu.dimension_semantics<parallel>, #tpu.dimension_semantics<arbitrary>], iteration_bounds = array<i64: 2, 1>, scalar_prefetch = 0 : i64, scratch_operands = 2 : i64, tpu.core_type = #tpu.core_type<tc>, window_params = [{transform_indices = @transform_0, window_bounds = array<i64: 1, 64, 256>}, {pipeline_mode = #tpu.pipeline_mode<synchronous>, transform_indices = @transform_1, window_bounds = array<i64: 64, 64>}, {pipeline_mode = #tpu.pipeline_mode<synchronous>, transform_indices = @transform_2, window_bounds = array<i64: 128, 64>}, {pipeline_mode = #tpu.pipeline_mode<synchronous>, transform_indices = @transform_3, window_bounds = array<i64: 64, 64>}, {pipeline_mode = #tpu.pipeline_mode<synchronous>, transform_indices = @transform_4, window_bounds = array<i64: 64, 1>}, {transform_indices = @transform_5, window_bounds = array<i64: 1, 64, 256>}]} {
    %c256_i32 = arith.constant 256 : i32
    %0 = arith.muli %arg1, %c256_i32 : i32
    %1 = tpu.assume_multiple %0, 256 : i32
    %c0_i32 = arith.constant 0 : i32
    %2 = arith.cmpi eq, %arg1, %c0_i32 : i32
    %3 = arith.extui %2 : i1 to i32
    %c0_i32_0 = arith.constant 0 : i32
    %4 = arith.cmpi ne, %3, %c0_i32_0 : i32
    scf.if %4 {
      %c0_79 = arith.constant 0 : index
      %c0_80 = arith.constant 0 : index
      %180 = vector.load %arg4[%c0_79, %c0_80] : memref<128x64xbf16, #tpu.memory_space<vmem>>, vector<128x64xbf16>
      %c0_81 = arith.constant 0 : index
      %c0_82 = arith.constant 0 : index
      %c0_83 = arith.constant 0 : index
      %181 = vector.load %arg2[%c0_81, %c0_82, %c0_83] : memref<1x64x256xbf16, #tpu.memory_space<vmem>>, vector<1x64x256xbf16>
      %182 = vector.shape_cast %181 : vector<1x64x256xbf16> to vector<64x256xbf16>
      %cst_84 = arith.constant dense<0.000000e+00> : vector<128x256xf32>
      %183 = tpu.matmul %180, %182, %cst_84 {dimension_numbers = #tpu.dot_dimension_numbers<[1], [0], [0], [1], [0, 0, 1, 1], [], []>} : vector<128x64xbf16>, vector<64x256xbf16>, vector<128x256xf32> -> vector<128x256xf32>
      %c0_85 = arith.constant 0 : index
      %c0_86 = arith.constant 0 : index
      %184 = vector.load %arg8[%c0_85, %c0_86] : memref<128x256xf32, #tpu.memory_space<vmem>>, vector<128x256xf32>
      tpu.vector_store %arg8[%c0_85, %c0_86], %183 {strides = array<i32>} : memref<128x256xf32, #tpu.memory_space<vmem>>, vector<128x256xf32>,
    } else {
    }
    %c0 = arith.constant 0 : index
    %c0_1 = arith.constant 0 : index
    %5 = arith.index_cast %1 : i32 to index
    %6 = vector.load %arg2[%c0, %c0_1, %5] : memref<1x64x256xbf16, #tpu.memory_space<vmem>>, vector<1x64x256xbf16>
    %7 = vector.shape_cast %6 : vector<1x64x256xbf16> to vector<64x256xbf16>
    %c0_2 = arith.constant 0 : index
    %c0_3 = arith.constant 0 : index
    %8 = vector.load %arg3[%c0_2, %c0_3] : memref<64x64xbf16, #tpu.memory_space<vmem>>, vector<64x64xbf16>
    %cst = arith.constant dense<0.000000e+00> : vector<64x256xf32>
    %9 = tpu.matmul %8, %7, %cst {dimension_numbers = #tpu.dot_dimension_numbers<[1], [0], [0], [1], [0, 0, 1, 1], [], []>} : vector<64x64xbf16>, vector<64x256xbf16>, vector<64x256xf32> -> vector<64x256xf32>
    %10 = vector.extract_strided_slice %9 {offsets = [0, 0], sizes = [8, 256], strides = [1, 1]} : vector<64x256xf32> to vector<8x256xf32>
    %11 = arith.truncf %10 : vector<8x256xf32> to vector<8x256xbf16>
    %c0_4 = arith.constant 0 : index
    %c0_5 = arith.constant 0 : index
    %12 = vector.load %arg8[%c0_4, %c0_5] : memref<128x256xf32, #tpu.memory_space<vmem>>, vector<8x256xf32>
    %13 = arith.truncf %12 : vector<8x256xf32> to vector<8x256xbf16>
    %c64 = arith.constant 64 : index
    %c0_6 = arith.constant 0 : index
    %14 = vector.load %arg8[%c64, %c0_6] : memref<128x256xf32, #tpu.memory_space<vmem>>, vector<8x256xf32>
    %15 = arith.truncf %14 : vector<8x256xf32> to vector<8x256xbf16>
    %cst_7 = arith.constant dense<0.000000e+00> : vector<256x256xf32>
    %16 = tpu.matmul %11, %13, %cst_7 {dimension_numbers = #tpu.dot_dimension_numbers<[0], [0], [1], [1], [0, 1, 1, 1], [], []>} : vector<8x256xbf16>, vector<8x256xbf16>, vector<256x256xf32> -> vector<256x256xf32>
    %cst_8 = arith.constant dense<0xFF800000> : vector<256xf32>
    %17 = vector.multi_reduction <maximumf>, %16, %cst_8 [1] : vector<256x256xf32> to vector<256xf32>
    %18 = vector.shape_cast %17 : vector<256xf32> to vector<256x1xf32>
    %19 = vector.broadcast %18 : vector<256x1xf32> to vector<256x256xf32>
    %20 = arith.subf %16, %19 : vector<256x256xf32>
    %21 = math.exp %20 : vector<256x256xf32>
    %cst_9 = arith.constant dense<0.000000e+00> : vector<256xf32>
    %22 = vector.multi_reduction <add>, %21, %cst_9 [1] : vector<256x256xf32> to vector<256xf32>
    %23 = vector.shape_cast %22 : vector<256xf32> to vector<256x1xf32>
    %24 = tpu.reciprocal %23 {approx = true} : vector<256x1xf32> -> vector<256x1xf32>
    %25 = vector.broadcast %24 : vector<256x1xf32> to vector<256x256xf32>
    %26 = arith.mulf %21, %25 : vector<256x256xf32>
    %27 = arith.truncf %26 : vector<256x256xf32> to vector<256x256xbf16>
    %cst_10 = arith.constant dense<0.000000e+00> : vector<8x256xf32>
    %28 = tpu.matmul %15, %27, %cst_10 {dimension_numbers = #tpu.dot_dimension_numbers<[1], [1], [0], [0], [0, 0, 1, 0], [], []>} : vector<8x256xbf16>, vector<256x256xbf16>, vector<8x256xf32> -> vector<8x256xf32>
    %c0_11 = arith.constant 0 : index
    %c0_12 = arith.constant 0 : index
    %29 = vector.load %arg9[%c0_11, %c0_12] : memref<64x256xf32, #tpu.memory_space<vmem>>, vector<8x256xf32>
    tpu.vector_store %arg9[%c0_11, %c0_12], %28 {strides = array<i32>} : memref<64x256xf32, #tpu.memory_space<vmem>>, vector<8x256xf32>,
    %30 = vector.extract_strided_slice %9 {offsets = [8, 0], sizes = [8, 256], strides = [1, 1]} : vector<64x256xf32> to vector<8x256xf32>
    %31 = arith.truncf %30 : vector<8x256xf32> to vector<8x256xbf16>
    %c8 = arith.constant 8 : index
    %c0_13 = arith.constant 0 : index
    %32 = vector.load %arg8[%c8, %c0_13] : memref<128x256xf32, #tpu.memory_space<vmem>>, vector<8x256xf32>
    %33 = arith.truncf %32 : vector<8x256xf32> to vector<8x256xbf16>
    %c72 = arith.constant 72 : index
    %c0_14 = arith.constant 0 : index
    %34 = vector.load %arg8[%c72, %c0_14] : memref<128x256xf32, #tpu.memory_space<vmem>>, vector<8x256xf32>
    %35 = arith.truncf %34 : vector<8x256xf32> to vector<8x256xbf16>
    %cst_15 = arith.constant dense<0.000000e+00> : vector<256x256xf32>
    %36 = tpu.matmul %31, %33, %cst_15 {dimension_numbers = #tpu.dot_dimension_numbers<[0], [0], [1], [1], [0, 1, 1, 1], [], []>} : vector<8x256xbf16>, vector<8x256xbf16>, vector<256x256xf32> -> vector<256x256xf32>
    %cst_16 = arith.constant dense<0xFF800000> : vector<256xf32>
    %37 = vector.multi_reduction <maximumf>, %36, %cst_16 [1] : vector<256x256xf32> to vector<256xf32>
    %38 = vector.shape_cast %37 : vector<256xf32> to vector<256x1xf32>
    %39 = vector.broadcast %38 : vector<256x1xf32> to vector<256x256xf32>
    %40 = arith.subf %36, %39 : vector<256x256xf32>
    %41 = math.exp %40 : vector<256x256xf32>
    %cst_17 = arith.constant dense<0.000000e+00> : vector<256xf32>
    %42 = vector.multi_reduction <add>, %41, %cst_17 [1] : vector<256x256xf32> to vector<256xf32>
    %43 = vector.shape_cast %42 : vector<256xf32> to vector<256x1xf32>
    %44 = tpu.reciprocal %43 {approx = true} : vector<256x1xf32> -> vector<256x1xf32>
    %45 = vector.broadcast %44 : vector<256x1xf32> to vector<256x256xf32>
    %46 = arith.mulf %41, %45 : vector<256x256xf32>
    %47 = arith.truncf %46 : vector<256x256xf32> to vector<256x256xbf16>
    %cst_18 = arith.constant dense<0.000000e+00> : vector<8x256xf32>
    %48 = tpu.matmul %35, %47, %cst_18 {dimension_numbers = #tpu.dot_dimension_numbers<[1], [1], [0], [0], [0, 0, 1, 0], [], []>} : vector<8x256xbf16>, vector<256x256xbf16>, vector<8x256xf32> -> vector<8x256xf32>
    %c8_19 = arith.constant 8 : index
    %c0_20 = arith.constant 0 : index
    %49 = vector.load %arg9[%c8_19, %c0_20] : memref<64x256xf32, #tpu.memory_space<vmem>>, vector<8x256xf32>
    tpu.vector_store %arg9[%c8_19, %c0_20], %48 {strides = array<i32>} : memref<64x256xf32, #tpu.memory_space<vmem>>, vector<8x256xf32>,
    %50 = vector.extract_strided_slice %9 {offsets = [16, 0], sizes = [8, 256], strides = [1, 1]} : vector<64x256xf32> to vector<8x256xf32>
    %51 = arith.truncf %50 : vector<8x256xf32> to vector<8x256xbf16>
    %c16 = arith.constant 16 : index
    %c0_21 = arith.constant 0 : index
    %52 = vector.load %arg8[%c16, %c0_21] : memref<128x256xf32, #tpu.memory_space<vmem>>, vector<8x256xf32>
    %53 = arith.truncf %52 : vector<8x256xf32> to vector<8x256xbf16>
    %c80 = arith.constant 80 : index
    %c0_22 = arith.constant 0 : index
    %54 = vector.load %arg8[%c80, %c0_22] : memref<128x256xf32, #tpu.memory_space<vmem>>, vector<8x256xf32>
    %55 = arith.truncf %54 : vector<8x256xf32> to vector<8x256xbf16>
    %cst_23 = arith.constant dense<0.000000e+00> : vector<256x256xf32>
    %56 = tpu.matmul %51, %53, %cst_23 {dimension_numbers = #tpu.dot_dimension_numbers<[0], [0], [1], [1], [0, 1, 1, 1], [], []>} : vector<8x256xbf16>, vector<8x256xbf16>, vector<256x256xf32> -> vector<256x256xf32>
    %cst_24 = arith.constant dense<0xFF800000> : vector<256xf32>
    %57 = vector.multi_reduction <maximumf>, %56, %cst_24 [1] : vector<256x256xf32> to vector<256xf32>
    %58 = vector.shape_cast %57 : vector<256xf32> to vector<256x1xf32>
    %59 = vector.broadcast %58 : vector<256x1xf32> to vector<256x256xf32>
    %60 = arith.subf %56, %59 : vector<256x256xf32>
    %61 = math.exp %60 : vector<256x256xf32>
    %cst_25 = arith.constant dense<0.000000e+00> : vector<256xf32>
    %62 = vector.multi_reduction <add>, %61, %cst_25 [1] : vector<256x256xf32> to vector<256xf32>
    %63 = vector.shape_cast %62 : vector<256xf32> to vector<256x1xf32>
    %64 = tpu.reciprocal %63 {approx = true} : vector<256x1xf32> -> vector<256x1xf32>
    %65 = vector.broadcast %64 : vector<256x1xf32> to vector<256x256xf32>
    %66 = arith.mulf %61, %65 : vector<256x256xf32>
    %67 = arith.truncf %66 : vector<256x256xf32> to vector<256x256xbf16>
    %cst_26 = arith.constant dense<0.000000e+00> : vector<8x256xf32>
    %68 = tpu.matmul %55, %67, %cst_26 {dimension_numbers = #tpu.dot_dimension_numbers<[1], [1], [0], [0], [0, 0, 1, 0], [], []>} : vector<8x256xbf16>, vector<256x256xbf16>, vector<8x256xf32> -> vector<8x256xf32>
    %c16_27 = arith.constant 16 : index
    %c0_28 = arith.constant 0 : index
    %69 = vector.load %arg9[%c16_27, %c0_28] : memref<64x256xf32, #tpu.memory_space<vmem>>, vector<8x256xf32>
    tpu.vector_store %arg9[%c16_27, %c0_28], %68 {strides = array<i32>} : memref<64x256xf32, #tpu.memory_space<vmem>>, vector<8x256xf32>,
    %70 = vector.extract_strided_slice %9 {offsets = [24, 0], sizes = [8, 256], strides = [1, 1]} : vector<64x256xf32> to vector<8x256xf32>
    %71 = arith.truncf %70 : vector<8x256xf32> to vector<8x256xbf16>
    %c24 = arith.constant 24 : index
    %c0_29 = arith.constant 0 : index
    %72 = vector.load %arg8[%c24, %c0_29] : memref<128x256xf32, #tpu.memory_space<vmem>>, vector<8x256xf32>
    %73 = arith.truncf %72 : vector<8x256xf32> to vector<8x256xbf16>
    %c88 = arith.constant 88 : index
    %c0_30 = arith.constant 0 : index
    %74 = vector.load %arg8[%c88, %c0_30] : memref<128x256xf32, #tpu.memory_space<vmem>>, vector<8x256xf32>
    %75 = arith.truncf %74 : vector<8x256xf32> to vector<8x256xbf16>
    %cst_31 = arith.constant dense<0.000000e+00> : vector<256x256xf32>
    %76 = tpu.matmul %71, %73, %cst_31 {dimension_numbers = #tpu.dot_dimension_numbers<[0], [0], [1], [1], [0, 1, 1, 1], [], []>} : vector<8x256xbf16>, vector<8x256xbf16>, vector<256x256xf32> -> vector<256x256xf32>
    %cst_32 = arith.constant dense<0xFF800000> : vector<256xf32>
    %77 = vector.multi_reduction <maximumf>, %76, %cst_32 [1] : vector<256x256xf32> to vector<256xf32>
    %78 = vector.shape_cast %77 : vector<256xf32> to vector<256x1xf32>
    %79 = vector.broadcast %78 : vector<256x1xf32> to vector<256x256xf32>
    %80 = arith.subf %76, %79 : vector<256x256xf32>
    %81 = math.exp %80 : vector<256x256xf32>
    %cst_33 = arith.constant dense<0.000000e+00> : vector<256xf32>
    %82 = vector.multi_reduction <add>, %81, %cst_33 [1] : vector<256x256xf32> to vector<256xf32>
    %83 = vector.shape_cast %82 : vector<256xf32> to vector<256x1xf32>
    %84 = tpu.reciprocal %83 {approx = true} : vector<256x1xf32> -> vector<256x1xf32>
    %85 = vector.broadcast %84 : vector<256x1xf32> to vector<256x256xf32>
    %86 = arith.mulf %81, %85 : vector<256x256xf32>
    %87 = arith.truncf %86 : vector<256x256xf32> to vector<256x256xbf16>
    %cst_34 = arith.constant dense<0.000000e+00> : vector<8x256xf32>
    %88 = tpu.matmul %75, %87, %cst_34 {dimension_numbers = #tpu.dot_dimension_numbers<[1], [1], [0], [0], [0, 0, 1, 0], [], []>} : vector<8x256xbf16>, vector<256x256xbf16>, vector<8x256xf32> -> vector<8x256xf32>
    %c24_35 = arith.constant 24 : index
    %c0_36 = arith.constant 0 : index
    %89 = vector.load %arg9[%c24_35, %c0_36] : memref<64x256xf32, #tpu.memory_space<vmem>>, vector<8x256xf32>
    tpu.vector_store %arg9[%c24_35, %c0_36], %88 {strides = array<i32>} : memref<64x256xf32, #tpu.memory_space<vmem>>, vector<8x256xf32>,
    %90 = vector.extract_strided_slice %9 {offsets = [32, 0], sizes = [8, 256], strides = [1, 1]} : vector<64x256xf32> to vector<8x256xf32>
    %91 = arith.truncf %90 : vector<8x256xf32> to vector<8x256xbf16>
    %c32 = arith.constant 32 : index
    %c0_37 = arith.constant 0 : index
    %92 = vector.load %arg8[%c32, %c0_37] : memref<128x256xf32, #tpu.memory_space<vmem>>, vector<8x256xf32>
    %93 = arith.truncf %92 : vector<8x256xf32> to vector<8x256xbf16>
    %c96 = arith.constant 96 : index
    %c0_38 = arith.constant 0 : index
    %94 = vector.load %arg8[%c96, %c0_38] : memref<128x256xf32, #tpu.memory_space<vmem>>, vector<8x256xf32>
    %95 = arith.truncf %94 : vector<8x256xf32> to vector<8x256xbf16>
    %cst_39 = arith.constant dense<0.000000e+00> : vector<256x256xf32>
    %96 = tpu.matmul %91, %93, %cst_39 {dimension_numbers = #tpu.dot_dimension_numbers<[0], [0], [1], [1], [0, 1, 1, 1], [], []>} : vector<8x256xbf16>, vector<8x256xbf16>, vector<256x256xf32> -> vector<256x256xf32>
    %cst_40 = arith.constant dense<0xFF800000> : vector<256xf32>
    %97 = vector.multi_reduction <maximumf>, %96, %cst_40 [1] : vector<256x256xf32> to vector<256xf32>
    %98 = vector.shape_cast %97 : vector<256xf32> to vector<256x1xf32>
    %99 = vector.broadcast %98 : vector<256x1xf32> to vector<256x256xf32>
    %100 = arith.subf %96, %99 : vector<256x256xf32>
    %101 = math.exp %100 : vector<256x256xf32>
    %cst_41 = arith.constant dense<0.000000e+00> : vector<256xf32>
    %102 = vector.multi_reduction <add>, %101, %cst_41 [1] : vector<256x256xf32> to vector<256xf32>
    %103 = vector.shape_cast %102 : vector<256xf32> to vector<256x1xf32>
    %104 = tpu.reciprocal %103 {approx = true} : vector<256x1xf32> -> vector<256x1xf32>
    %105 = vector.broadcast %104 : vector<256x1xf32> to vector<256x256xf32>
    %106 = arith.mulf %101, %105 : vector<256x256xf32>
    %107 = arith.truncf %106 : vector<256x256xf32> to vector<256x256xbf16>
    %cst_42 = arith.constant dense<0.000000e+00> : vector<8x256xf32>
    %108 = tpu.matmul %95, %107, %cst_42 {dimension_numbers = #tpu.dot_dimension_numbers<[1], [1], [0], [0], [0, 0, 1, 0], [], []>} : vector<8x256xbf16>, vector<256x256xbf16>, vector<8x256xf32> -> vector<8x256xf32>
    %c32_43 = arith.constant 32 : index
    %c0_44 = arith.constant 0 : index
    %109 = vector.load %arg9[%c32_43, %c0_44] : memref<64x256xf32, #tpu.memory_space<vmem>>, vector<8x256xf32>
    tpu.vector_store %arg9[%c32_43, %c0_44], %108 {strides = array<i32>} : memref<64x256xf32, #tpu.memory_space<vmem>>, vector<8x256xf32>,
    %110 = vector.extract_strided_slice %9 {offsets = [40, 0], sizes = [8, 256], strides = [1, 1]} : vector<64x256xf32> to vector<8x256xf32>
    %111 = arith.truncf %110 : vector<8x256xf32> to vector<8x256xbf16>
    %c40 = arith.constant 40 : index
    %c0_45 = arith.constant 0 : index
    %112 = vector.load %arg8[%c40, %c0_45] : memref<128x256xf32, #tpu.memory_space<vmem>>, vector<8x256xf32>
    %113 = arith.truncf %112 : vector<8x256xf32> to vector<8x256xbf16>
    %c104 = arith.constant 104 : index
    %c0_46 = arith.constant 0 : index
    %114 = vector.load %arg8[%c104, %c0_46] : memref<128x256xf32, #tpu.memory_space<vmem>>, vector<8x256xf32>
    %115 = arith.truncf %114 : vector<8x256xf32> to vector<8x256xbf16>
    %cst_47 = arith.constant dense<0.000000e+00> : vector<256x256xf32>
    %116 = tpu.matmul %111, %113, %cst_47 {dimension_numbers = #tpu.dot_dimension_numbers<[0], [0], [1], [1], [0, 1, 1, 1], [], []>} : vector<8x256xbf16>, vector<8x256xbf16>, vector<256x256xf32> -> vector<256x256xf32>
    %cst_48 = arith.constant dense<0xFF800000> : vector<256xf32>
    %117 = vector.multi_reduction <maximumf>, %116, %cst_48 [1] : vector<256x256xf32> to vector<256xf32>
    %118 = vector.shape_cast %117 : vector<256xf32> to vector<256x1xf32>
    %119 = vector.broadcast %118 : vector<256x1xf32> to vector<256x256xf32>
    %120 = arith.subf %116, %119 : vector<256x256xf32>
    %121 = math.exp %120 : vector<256x256xf32>
    %cst_49 = arith.constant dense<0.000000e+00> : vector<256xf32>
    %122 = vector.multi_reduction <add>, %121, %cst_49 [1] : vector<256x256xf32> to vector<256xf32>
    %123 = vector.shape_cast %122 : vector<256xf32> to vector<256x1xf32>
    %124 = tpu.reciprocal %123 {approx = true} : vector<256x1xf32> -> vector<256x1xf32>
    %125 = vector.broadcast %124 : vector<256x1xf32> to vector<256x256xf32>
    %126 = arith.mulf %121, %125 : vector<256x256xf32>
    %127 = arith.truncf %126 : vector<256x256xf32> to vector<256x256xbf16>
    %cst_50 = arith.constant dense<0.000000e+00> : vector<8x256xf32>
    %128 = tpu.matmul %115, %127, %cst_50 {dimension_numbers = #tpu.dot_dimension_numbers<[1], [1], [0], [0], [0, 0, 1, 0], [], []>} : vector<8x256xbf16>, vector<256x256xbf16>, vector<8x256xf32> -> vector<8x256xf32>
    %c40_51 = arith.constant 40 : index
    %c0_52 = arith.constant 0 : index
    %129 = vector.load %arg9[%c40_51, %c0_52] : memref<64x256xf32, #tpu.memory_space<vmem>>, vector<8x256xf32>
    tpu.vector_store %arg9[%c40_51, %c0_52], %128 {strides = array<i32>} : memref<64x256xf32, #tpu.memory_space<vmem>>, vector<8x256xf32>,
    %130 = vector.extract_strided_slice %9 {offsets = [48, 0], sizes = [8, 256], strides = [1, 1]} : vector<64x256xf32> to vector<8x256xf32>
    %131 = arith.truncf %130 : vector<8x256xf32> to vector<8x256xbf16>
    %c48 = arith.constant 48 : index
    %c0_53 = arith.constant 0 : index
    %132 = vector.load %arg8[%c48, %c0_53] : memref<128x256xf32, #tpu.memory_space<vmem>>, vector<8x256xf32>
    %133 = arith.truncf %132 : vector<8x256xf32> to vector<8x256xbf16>
    %c112 = arith.constant 112 : index
    %c0_54 = arith.constant 0 : index
    %134 = vector.load %arg8[%c112, %c0_54] : memref<128x256xf32, #tpu.memory_space<vmem>>, vector<8x256xf32>
    %135 = arith.truncf %134 : vector<8x256xf32> to vector<8x256xbf16>
    %cst_55 = arith.constant dense<0.000000e+00> : vector<256x256xf32>
    %136 = tpu.matmul %131, %133, %cst_55 {dimension_numbers = #tpu.dot_dimension_numbers<[0], [0], [1], [1], [0, 1, 1, 1], [], []>} : vector<8x256xbf16>, vector<8x256xbf16>, vector<256x256xf32> -> vector<256x256xf32>
    %cst_56 = arith.constant dense<0xFF800000> : vector<256xf32>
    %137 = vector.multi_reduction <maximumf>, %136, %cst_56 [1] : vector<256x256xf32> to vector<256xf32>
    %138 = vector.shape_cast %137 : vector<256xf32> to vector<256x1xf32>
    %139 = vector.broadcast %138 : vector<256x1xf32> to vector<256x256xf32>
    %140 = arith.subf %136, %139 : vector<256x256xf32>
    %141 = math.exp %140 : vector<256x256xf32>
    %cst_57 = arith.constant dense<0.000000e+00> : vector<256xf32>
    %142 = vector.multi_reduction <add>, %141, %cst_57 [1] : vector<256x256xf32> to vector<256xf32>
    %143 = vector.shape_cast %142 : vector<256xf32> to vector<256x1xf32>
    %144 = tpu.reciprocal %143 {approx = true} : vector<256x1xf32> -> vector<256x1xf32>
    %145 = vector.broadcast %144 : vector<256x1xf32> to vector<256x256xf32>
    %146 = arith.mulf %141, %145 : vector<256x256xf32>
    %147 = arith.truncf %146 : vector<256x256xf32> to vector<256x256xbf16>
    %cst_58 = arith.constant dense<0.000000e+00> : vector<8x256xf32>
    %148 = tpu.matmul %135, %147, %cst_58 {dimension_numbers = #tpu.dot_dimension_numbers<[1], [1], [0], [0], [0, 0, 1, 0], [], []>} : vector<8x256xbf16>, vector<256x256xbf16>, vector<8x256xf32> -> vector<8x256xf32>
    %c48_59 = arith.constant 48 : index
    %c0_60 = arith.constant 0 : index
    %149 = vector.load %arg9[%c48_59, %c0_60] : memref<64x256xf32, #tpu.memory_space<vmem>>, vector<8x256xf32>
    tpu.vector_store %arg9[%c48_59, %c0_60], %148 {strides = array<i32>} : memref<64x256xf32, #tpu.memory_space<vmem>>, vector<8x256xf32>,
    %150 = vector.extract_strided_slice %9 {offsets = [56, 0], sizes = [8, 256], strides = [1, 1]} : vector<64x256xf32> to vector<8x256xf32>
    %151 = arith.truncf %150 : vector<8x256xf32> to vector<8x256xbf16>
    %c56 = arith.constant 56 : index
    %c0_61 = arith.constant 0 : index
    %152 = vector.load %arg8[%c56, %c0_61] : memref<128x256xf32, #tpu.memory_space<vmem>>, vector<8x256xf32>
    %153 = arith.truncf %152 : vector<8x256xf32> to vector<8x256xbf16>
    %c120 = arith.constant 120 : index
    %c0_62 = arith.constant 0 : index
    %154 = vector.load %arg8[%c120, %c0_62] : memref<128x256xf32, #tpu.memory_space<vmem>>, vector<8x256xf32>
    %155 = arith.truncf %154 : vector<8x256xf32> to vector<8x256xbf16>
    %cst_63 = arith.constant dense<0.000000e+00> : vector<256x256xf32>
    %156 = tpu.matmul %151, %153, %cst_63 {dimension_numbers = #tpu.dot_dimension_numbers<[0], [0], [1], [1], [0, 1, 1, 1], [], []>} : vector<8x256xbf16>, vector<8x256xbf16>, vector<256x256xf32> -> vector<256x256xf32>
    %cst_64 = arith.constant dense<0xFF800000> : vector<256xf32>
    %157 = vector.multi_reduction <maximumf>, %156, %cst_64 [1] : vector<256x256xf32> to vector<256xf32>
    %158 = vector.shape_cast %157 : vector<256xf32> to vector<256x1xf32>
    %159 = vector.broadcast %158 : vector<256x1xf32> to vector<256x256xf32>
    %160 = arith.subf %156, %159 : vector<256x256xf32>
    %161 = math.exp %160 : vector<256x256xf32>
    %cst_65 = arith.constant dense<0.000000e+00> : vector<256xf32>
    %162 = vector.multi_reduction <add>, %161, %cst_65 [1] : vector<256x256xf32> to vector<256xf32>
    %163 = vector.shape_cast %162 : vector<256xf32> to vector<256x1xf32>
    %164 = tpu.reciprocal %163 {approx = true} : vector<256x1xf32> -> vector<256x1xf32>
    %165 = vector.broadcast %164 : vector<256x1xf32> to vector<256x256xf32>
    %166 = arith.mulf %161, %165 : vector<256x256xf32>
    %167 = arith.truncf %166 : vector<256x256xf32> to vector<256x256xbf16>
    %cst_66 = arith.constant dense<0.000000e+00> : vector<8x256xf32>
    %168 = tpu.matmul %155, %167, %cst_66 {dimension_numbers = #tpu.dot_dimension_numbers<[1], [1], [0], [0], [0, 0, 1, 0], [], []>} : vector<8x256xbf16>, vector<256x256xbf16>, vector<8x256xf32> -> vector<8x256xf32>
    %c56_67 = arith.constant 56 : index
    %c0_68 = arith.constant 0 : index
    %169 = vector.load %arg9[%c56_67, %c0_68] : memref<64x256xf32, #tpu.memory_space<vmem>>, vector<8x256xf32>
    tpu.vector_store %arg9[%c56_67, %c0_68], %168 {strides = array<i32>} : memref<64x256xf32, #tpu.memory_space<vmem>>, vector<8x256xf32>,
    %c0_69 = arith.constant 0 : index
    %c0_70 = arith.constant 0 : index
    %170 = vector.load %arg9[%c0_69, %c0_70] : memref<64x256xf32, #tpu.memory_space<vmem>>, vector<64x256xf32>
    %171 = arith.truncf %170 : vector<64x256xf32> to vector<64x256xbf16>
    %c0_71 = arith.constant 0 : index
    %c0_72 = arith.constant 0 : index
    %172 = vector.load %arg5[%c0_71, %c0_72] : memref<64x64xbf16, #tpu.memory_space<vmem>>, vector<64x64xbf16>
    %cst_73 = arith.constant dense<0.000000e+00> : vector<64x256xf32>
    %173 = tpu.matmul %172, %171, %cst_73 {dimension_numbers = #tpu.dot_dimension_numbers<[1], [0], [0], [1], [0, 0, 1, 1], [], []>} : vector<64x64xbf16>, vector<64x256xbf16>, vector<64x256xf32> -> vector<64x256xf32>
    %c0_74 = arith.constant 0 : index
    %c0_75 = arith.constant 0 : index
    %174 = vector.load %arg6[%c0_74, %c0_75] : memref<64x1xf32, #tpu.memory_space<vmem>>, vector<64x1xf32>
    %175 = vector.broadcast %174 : vector<64x1xf32> to vector<64x256xf32>
    %176 = arith.addf %173, %175 : vector<64x256xf32>
    %c0_76 = arith.constant 0 : index
    %c0_77 = arith.constant 0 : index
    %c0_78 = arith.constant 0 : index
    %177 = vector.load %arg7[%c0_76, %c0_77, %c0_78] : memref<1x64x256xf32, #tpu.memory_space<vmem>>, vector<1x64x256xf32>
    %178 = vector.shape_cast %177 : vector<1x64x256xf32> to vector<64x256xf32>
    %179 = vector.shape_cast %176 : vector<64x256xf32> to vector<1x64x256xf32>
    tpu.vector_store %arg7[%c0_76, %c0_77, %c0_78], %179 {strides = array<i32>} : memref<1x64x256xf32, #tpu.memory_space<vmem>>, vector<1x64x256xf32>,
    return
  }
  func.func @transform_0(%arg0: i32, %arg1: i32) -> (i32, i32, i32) {
    %c0_i32 = arith.constant 0 : i32
    %c0_i32_0 = arith.constant 0 : i32
    %c0_i32_1 = arith.constant 0 : i32
    return %arg0, %c0_i32, %c0_i32_0 : i32, i32, i32
  }
  func.func @transform_1(%arg0: i32, %arg1: i32) -> (i32, i32) {
    %c0_i32 = arith.constant 0 : i32
    %c0_i32_0 = arith.constant 0 : i32
    %c0_i32_1 = arith.constant 0 : i32
    return %c0_i32, %c0_i32_0 : i32, i32
  }
  func.func @transform_2(%arg0: i32, %arg1: i32) -> (i32, i32) {
    %c0_i32 = arith.constant 0 : i32
    %c0_i32_0 = arith.constant 0 : i32
    %c0_i32_1 = arith.constant 0 : i32
    return %c0_i32, %c0_i32_0 : i32, i32
  }
  func.func @transform_3(%arg0: i32, %arg1: i32) -> (i32, i32) {
    %c0_i32 = arith.constant 0 : i32
    %c0_i32_0 = arith.constant 0 : i32
    %c0_i32_1 = arith.constant 0 : i32
    return %c0_i32, %c0_i32_0 : i32, i32
  }
  func.func @transform_4(%arg0: i32, %arg1: i32) -> (i32, i32) {
    %c0_i32 = arith.constant 0 : i32
    %c0_i32_0 = arith.constant 0 : i32
    %c0_i32_1 = arith.constant 0 : i32
    return %c0_i32, %c0_i32_0 : i32, i32
  }
  func.func @transform_5(%arg0: i32, %arg1: i32) -> (i32, i32, i32) {
    %c0_i32 = arith.constant 0 : i32
    %c0_i32_0 = arith.constant 0 : i32
    return %arg0, %c0_i32, %arg1 : i32, i32, i32
  }
}

</mosaic_0001>

<llo_original>
// kernel: tpu_custom_call.1
$region0: #{tpu_custom_call.1}
  #allocation0 [shape = 'u32[]', space=smem, size = 0x4, offset = 0x4, fixed_abs, tag = 'smem constant byte address 0x4 - core index']
  #allocation1 [shape = 'u32[144,128]{1,0:T(1,128)}', space=vmem, size = 0x12000, scoped, tag = 'internal scratch']
  #allocation2 [shape = 'f32[128,256]{1,0:T(8,128)}', space=vmem, size = 0x20000, scoped, tag = 'scratch operand']
  #allocation3 [shape = 'f32[64,256]{1,0:T(8,128)}', space=vmem, size = 0x10000, scoped, tag = 'scratch operand']
  %s0 = inlined_call_operand.vmem [shape: bf16[2,64,256], index: 0, kind: input, shape index: {}]
  %s1 = inlined_call_operand.vmem [shape: bf16[64,64], index: 1, kind: input, shape index: {}]
  %s2 = inlined_call_operand.vmem [shape: bf16[128,64], index: 2, kind: input, shape index: {}]
  %s3 = inlined_call_operand.hbm [shape: bf16[64,64], index: 3, kind: input, shape index: {}]
  %s4 = inlined_call_operand.vmem [shape: f32[64,1], index: 4, kind: input, shape index: {}]
  %s5 = inlined_call_operand.hbm [shape: f32[2,64,256], index: 5, kind: output, shape index: {}]
  %s6 = sld [smem:[#allocation0]]
  $region61: #{tpu_custom_call.1} parent=0
    _
  %s8 = ssub.s32 1, %s6
  %s9 = scalar_select 0, %s8, %s6
  $region1: #{tpu_custom_call.1} parent=0
    #allocation4 [shape = 'u8[16384]{0}', space=vmem, size = 0x4000, scoped, tag = 'input window, operand 3, single buffered']
    #allocation5 [shape = 's32[2]{0}', space=sflag, size = 0x8, scoped, tag = 'scoped memory for tpu_custom_call.1']
    #allocation6 [shape = 's32[2]{0}', space=sflag, size = 0x8, scoped, tag = 'scoped memory for tpu_custom_call.1']
    #allocation7 [shape = 'u8[131072]{0}', space=vmem, size = 0x20000, scoped, tag = 'output window, operand 0']
    %10 = vsyncpa [#allocation5], 0
    %11 = vsyncpa [#allocation6], 0
    %s12 = scalar_lea.sflag [#allocation6], 1
    %13 = vsyncpa %s12, 0
    loop: start=0, step=1, limit=4
    $region2: #{tpu_custom_call.1} parent=1 // loop_pre_header
      _
    $region3: #{tpu_custom_call.1} parent=1 // loop_header
      %s15 = sphi 0, %s19
      %p16 = scmp.ge.s32.totalorder %s15, 4
      %s22 = sphi 0, %s34
      %s23 = sphi 0, %s30
      %s24 = sphi 0, %s22
      %s25 = sphi 0, %s23
      %s26 = sphi 0, %s24
      %s27 = sphi 0, %s25
      %s37 = sphi 0, %s39
      %s40 = sphi 0, %s37
      %s41 = sphi 0, %s40
      %s57 = sphi 0, %s41
      %s61 = sphi 0, %s61
      %s63 = sphi 0, %s61
      %s64 = sphi 0, %s63
      %s78 = sphi 0, %s64
      %s82 = sphi 0, %s82
      %s84 = sphi 0, %s82
      %s85 = sphi 0, %s84
      %s99 = sphi 0, %s85
      %s103 = sphi 0, %s103
      %s105 = sphi 0, %s103
      %s106 = sphi 0, %s105
      %s120 = sphi 0, %s106
      %s124 = sphi 0, %s124
      %s126 = sphi 0, %s124
      %s127 = sphi 0, %s126
      %s141 = sphi 0, %s127
      %s149 = sphi 0, %s151
      %s152 = sphi 0, %s149
      %s153 = sphi 0, %s152
      %s169 = sphi 0, %s153
    $region4: #{tpu_custom_call.1} parent=1 // loop_header_branch
      %18 = sbr.rel (%p16) target = $region8
    $region5: #{tpu_custom_call.1} parent=1 // loop_body
      %s20 = ssub.s32 %s15, 1
      %s21 = ssub.s32 %s15, 2
      %s28 = sadd.s32 1, %s23
      %p29 = scmp.ge.s32.totalorder %s28, 1
      %s30 = scalar_select %p29, 0, %s28
      %s31 = sadd.s32 1, %s22
      %s32 = scalar_select %p29, %s31, %s22
      %p33 = scmp.ge.s32.totalorder %s32, 2
      %s34 = scalar_select %p33, 0, %s32
      %s35 = ssub.s32 %s22, %s34
      %p36 = scmp.eq.s32.totalorder %s35, 0
      %s38 = sadd.s32 %s37, 1
      %s39 = scalar_select %p36, %s37, %s38
      %p42 = pneg %p36
      %p43 = scmp.eq.s32.totalorder %s15, 1
      %p44 = por %p42, %p43
      %p45 = scmp.ne.s32.totalorder %s37, %s40
      %p46 = scmp.eq.s32.totalorder %s15, 0
      %p47 = por %p45, %p46
      %p48 = scmp.ne.s32.totalorder %s37, %s40
      %p49 = scmp.eq.s32.totalorder %s20, 1
      %p50 = por %p48, %p49
      %p51 = scmp.ne.s32.totalorder %s40, %s41
      %p52 = scmp.eq.s32.totalorder %s20, 0
      %p53 = por %p51, %p52
      %p54 = scmp.ne.s32.totalorder %s40, %s41
      %p55 = scmp.eq.s32.totalorder %s21, 1
      %p56 = por %p54, %p55
      %p58 = scmp.ne.s32.totalorder %s41, %s57
      %p59 = scmp.eq.s32.totalorder %s21, 0
      %p60 = por %p58, %p59
      %s62 = sadd.s32 %s61, 1
      %p65 = scmp.eq.s32.totalorder %s15, 1
      %p66 = scmp.ne.s32.totalorder %s61, %s63
      %p67 = scmp.eq.s32.totalorder %s15, 0
      %p68 = por %p66, %p67
      %p69 = scmp.ne.s32.totalorder %s61, %s63
      %p70 = scmp.eq.s32.totalorder %s20, 1
      %p71 = por %p69, %p70
      %p72 = scmp.ne.s32.totalorder %s63, %s64
      %p73 = scmp.eq.s32.totalorder %s20, 0
      %p74 = por %p72, %p73
      %p75 = scmp.ne.s32.totalorder %s63, %s64
      %p76 = scmp.eq.s32.totalorder %s21, 1
      %p77 = por %p75, %p76
      %p79 = scmp.ne.s32.totalorder %s64, %s78
      %p80 = scmp.eq.s32.totalorder %s21, 0
      %p81 = por %p79, %p80
      %s83 = sadd.s32 %s82, 1
      %p86 = scmp.eq.s32.totalorder %s15, 1
      %p87 = scmp.ne.s32.totalorder %s82, %s84
      %p88 = scmp.eq.s32.totalorder %s15, 0
      %p89 = por %p87, %p88
      %p90 = scmp.ne.s32.totalorder %s82, %s84
      %p91 = scmp.eq.s32.totalorder %s20, 1
      %p92 = por %p90, %p91
      %p93 = scmp.ne.s32.totalorder %s84, %s85
      %p94 = scmp.eq.s32.totalorder %s20, 0
      %p95 = por %p93, %p94
      %p96 = scmp.ne.s32.totalorder %s84, %s85
      %p97 = scmp.eq.s32.totalorder %s21, 1
      %p98 = por %p96, %p97
      %p100 = scmp.ne.s32.totalorder %s85, %s99
      %p101 = scmp.eq.s32.totalorder %s21, 0
      %p102 = por %p100, %p101
      %s104 = sadd.s32 %s103, 1
      %p107 = scmp.eq.s32.totalorder %s15, 1
      %p108 = scmp.ne.s32.totalorder %s103, %s105
      %p109 = scmp.eq.s32.totalorder %s15, 0
      %p110 = por %p108, %p109
      %p111 = scmp.ne.s32.totalorder %s103, %s105
      %p112 = scmp.eq.s32.totalorder %s20, 1
      %p113 = por %p111, %p112
      %p114 = scmp.ne.s32.totalorder %s105, %s106
      %p115 = scmp.eq.s32.totalorder %s20, 0
      %p116 = por %p114, %p115
      %p117 = scmp.ne.s32.totalorder %s105, %s106
      %p118 = scmp.eq.s32.totalorder %s21, 1
      %p119 = por %p117, %p118
      %p121 = scmp.ne.s32.totalorder %s106, %s120
      %p122 = scmp.eq.s32.totalorder %s21, 0
      %p123 = por %p121, %p122
      %s125 = sadd.s32 %s124, 1
      %p128 = scmp.eq.s32.totalorder %s15, 1
      %p129 = scmp.ne.s32.totalorder %s124, %s126
      %p130 = scmp.eq.s32.totalorder %s15, 0
      %p131 = por %p129, %p130
      %p132 = scmp.ne.s32.totalorder %s124, %s126
      %p133 = scmp.eq.s32.totalorder %s20, 1
      %p134 = por %p132, %p133
      %p135 = scmp.ne.s32.totalorder %s126, %s127
      %p136 = scmp.eq.s32.totalorder %s20, 0
      %p137 = por %p135, %p136
      %p138 = scmp.ne.s32.totalorder %s126, %s127
      %p139 = scmp.eq.s32.totalorder %s21, 1
      %p140 = por %p138, %p139
      %p142 = scmp.ne.s32.totalorder %s127, %s141
      %p143 = scmp.eq.s32.totalorder %s21, 0
      %p144 = por %p142, %p143
      %s145 = ssub.s32 %s22, %s34
      %s146 = ssub.s32 %s23, %s30
      %s147 = sor.u32 %s145, %s146
      %p148 = scmp.eq.s32.totalorder %s147, 0
      %s150 = sadd.s32 %s149, 1
      %s151 = scalar_select %p148, %s149, %s150
      %p154 = pneg %p148
      %p155 = scmp.eq.s32.totalorder %s15, 1
      %p156 = por %p154, %p155
      %p157 = scmp.ne.s32.totalorder %s149, %s152
      %p158 = scmp.eq.s32.totalorder %s15, 0
      %p159 = por %p157, %p158
      %p160 = scmp.ne.s32.totalorder %s149, %s152
      %p161 = scmp.eq.s32.totalorder %s20, 1
      %p162 = por %p160, %p161
      %p163 = scmp.ne.s32.totalorder %s152, %s153
      %p164 = scmp.eq.s32.totalorder %s20, 0
      %p165 = por %p163, %p164
      %p166 = scmp.ne.s32.totalorder %s152, %s153
      %p167 = scmp.eq.s32.totalorder %s21, 1
      %p168 = por %p166, %p167
      %p170 = scmp.ne.s32.totalorder %s153, %s169
      %p171 = scmp.eq.s32.totalorder %s21, 0
      %p172 = por %p170, %p171
      %p173 = scmp.le.s32.totalorder 1, %s15
      %p174 = scmp.lt.s32.totalorder %s15, 3
      %p175 = pnand %p173, %p174
      %p176 = pneg %p175
      // Predicated region
      $region9: #{tpu_custom_call.1} parent=5 // pred_check
        _
      $region10: #{tpu_custom_call.1} parent=5 // pred_check_branch
        %178 = sbr.rel (%p175) target = $region12
      $region11: #{tpu_custom_call.1} parent=5 // pred_region
        %s179 = ssub.s32 %s15, 1
        // Predicated region
        $region13: #{tpu_custom_call.1} parent=11 // pred_check
          %p180 = pneg %p74
        $region14: #{tpu_custom_call.1} parent=11 // pred_check_branch
          %182 = sbr.rel (%p180) target = $region16
        $region15: #{tpu_custom_call.1} parent=11 // pred_region
          _
        $region16: #{tpu_custom_call.1} parent=11 // pred_fallthru
          _
        // Predicated region
        $region17: #{tpu_custom_call.1} parent=11 // pred_check
          %p183 = pneg %p95
        $region18: #{tpu_custom_call.1} parent=11 // pred_check_branch
          %185 = sbr.rel (%p183) target = $region20
        $region19: #{tpu_custom_call.1} parent=11 // pred_region
          _
        $region20: #{tpu_custom_call.1} parent=11 // pred_fallthru
          _
        // Predicated region
        $region21: #{tpu_custom_call.1} parent=11 // pred_check
          %p186 = pneg %p116
        $region22: #{tpu_custom_call.1} parent=11 // pred_check_branch
          %188 = sbr.rel (%p186) target = $region24
        $region23: #{tpu_custom_call.1} parent=11 // pred_region
          %s190 = ssub.s32 512, 512
          %191 = vsyncadd [#allocation5], %s190
          %s192 = sshll.u32 [#allocation4], 4
          %s193 = int_to_ptr.vmem [resolvable:$true] %s192
          %198 = dma.hbm_to_vmem [thread:$0]  %s3, 512, %s193, [#allocation5], 64, 64, 4
        $region24: #{tpu_custom_call.1} parent=11 // pred_fallthru
          _
        // Predicated region
        $region25: #{tpu_custom_call.1} parent=11 // pred_check
          %p199 = pneg %p137
        $region26: #{tpu_custom_call.1} parent=11 // pred_check_branch
          %201 = sbr.rel (%p199) target = $region28
        $region27: #{tpu_custom_call.1} parent=11 // pred_region
          _
        $region28: #{tpu_custom_call.1} parent=11 // pred_fallthru
          _
      $region12: #{tpu_custom_call.1} parent=5 // pred_fallthru
        _
      %p202 = scmp.lt.s32.totalorder %s15, 2
      // Predicated region
      $region29: #{tpu_custom_call.1} parent=5 // pred_check
        %p203 = pneg %p202
      $region30: #{tpu_custom_call.1} parent=5 // pred_check_branch
        %205 = sbr.rel (%p203) target = $region32
      $region31: #{tpu_custom_call.1} parent=5 // pred_region
        // Predicated region
        $region33: #{tpu_custom_call.1} parent=31 // pred_check
          %p206 = pneg %p47
        $region34: #{tpu_custom_call.1} parent=31 // pred_check_branch
          %208 = sbr.rel (%p206) target = $region36
        $region35: #{tpu_custom_call.1} parent=31 // pred_region
          %p209 = scmp.lt.s32.totalorder %s22, 1
          %s210 = scalar_select %p209, %s22, 1
          %s211 = smul.addr %s210, 16
          %s212 = smul.addr %s211, 4
          %s213 = scalar_lea.vmem %s0, %s212
        $region36: #{tpu_custom_call.1} parent=31 // pred_fallthru
          _
      $region32: #{tpu_custom_call.1} parent=5 // pred_fallthru
        _
      %p214 = scmp.le.s32.totalorder 1, %s15
      %p215 = scmp.lt.s32.totalorder %s15, 3
      %p216 = pnand %p214, %p215
      %p217 = pneg %p216
      // Predicated region
      $region37: #{tpu_custom_call.1} parent=5 // pred_check
        _
      $region38: #{tpu_custom_call.1} parent=5 // pred_check_branch
        %219 = sbr.rel (%p216) target = $region40
      $region39: #{tpu_custom_call.1} parent=5 // pred_region
        %s220 = ssub.s32 %s15, 1
        // Predicated region
        $region41: #{tpu_custom_call.1} parent=39 // pred_check
          %p221 = pneg %p116
        $region42: #{tpu_custom_call.1} parent=39 // pred_check_branch
          %223 = sbr.rel (%p221) target = $region44
        $region43: #{tpu_custom_call.1} parent=39 // pred_region
          %224 = dma.done [#allocation5], 512
        $region44: #{tpu_custom_call.1} parent=39 // pred_fallthru
          _
        %p225 = scmp.lt.s32.totalorder %s24, 1
        %s226 = scalar_select %p225, %s24, 1
        %s227 = smul.addr %s226, 16
        %s228 = smul.addr %s227, 4
        %s229 = scalar_lea.vmem %s0, %s228
        %p230 = pneg %p53
        %p231 = pneg %p50
        %p232 = pneg %p74
        %p233 = pneg %p71
        %p234 = pneg %p95
        %p235 = pneg %p92
        %p236 = pneg %p116
        %p237 = pneg %p113
        %p238 = pneg %p137
        %p239 = pneg %p134
        %p240 = pneg %p165
        %p241 = pneg %p162
        %s242 = sand.u32 %s152, 1
        %s243 = scalar_lea.sflag [#allocation6], %s242
        %s244 = sand.u32 %s152, 1
        %s245 = smul.addr %s244, 128
        %s246 = scalar_lea.vmem [#allocation7], %s245
        %p247 = scmp.lt.s32.totalorder %s24, 1
        %s248 = scalar_select %p247, %s24, 1
        %s249 = smul.addr %s248, 16
        %s250 = smul.addr %s249, 4
        %s251 = scalar_lea.vmem %s0, %s250
        %s252 = smul.u32 2, %s25
        %s254 = smul.u32 %s25, 256
        %p255 = scmp.eq.s32.totalorder %s25, 0
        // Predicated region
        $region45: #{tpu_custom_call.1} parent=39 // pred_check
          %p256 = pneg %p255
        $region46: #{tpu_custom_call.1} parent=39 // pred_check_branch
          %258 = sbr.rel (%p256) target = $region48
        $region47: #{tpu_custom_call.1} parent=39 // pred_region
          %v259 = vld [vmem:[%s2] sm:$0xf]
          %v260 = vld [vmem:[%s2 + $0x4] sm:$0xf]
          %v261 = vld [vmem:[%s2 + $0x8] sm:$0xf]
          %v262 = vld [vmem:[%s2 + $0xc] sm:$0xf]
          %v263 = vld [vmem:[%s2 + $0x10] sm:$0xf]
          %v264 = vld [vmem:[%s2 + $0x14] sm:$0xf]
          %v265 = vld [vmem:[%s2 + $0x18] sm:$0xf]
          %v266 = vld [vmem:[%s2 + $0x1c] sm:$0xf]
          %v267 = vld [vmem:[%s2 + $0x20] sm:$0xf]
          %v268 = vld [vmem:[%s2 + $0x24] sm:$0xf]
          %v269 = vld [vmem:[%s2 + $0x28] sm:$0xf]
          %v270 = vld [vmem:[%s2 + $0x2c] sm:$0xf]
          %v271 = vld [vmem:[%s2 + $0x30] sm:$0xf]
          %v272 = vld [vmem:[%s2 + $0x34] sm:$0xf]
          %v273 = vld [vmem:[%s2 + $0x38] sm:$0xf]
          %v274 = vld [vmem:[%s2 + $0x3c] sm:$0xf]
          %v275 = vld [vmem:[%s251] sm:$0xff]
          %v276 = vld [vmem:[%s251 + $0x8] sm:$0xff]
          %v277 = vld [vmem:[%s251 + $0x10] sm:$0xff]
          %v278 = vld [vmem:[%s251 + $0x18] sm:$0xff]
          %v279 = vld [vmem:[%s251 + $0x20] sm:$0xff]
          %v280 = vld [vmem:[%s251 + $0x28] sm:$0xff]
          %v281 = vld [vmem:[%s251 + $0x30] sm:$0xff]
          %v282 = vld [vmem:[%s251 + $0x38] sm:$0xff]
          %v299 = vunpack.c.l.b16 %v259
          %v300 = vunpack.c.l.b16 %v260
          %v301 = vunpack.c.l.b16 %v261
          %v302 = vunpack.c.l.b16 %v262
          %v303 = vunpack.c.l.b16 %v263
          %v304 = vunpack.c.l.b16 %v264
          %v305 = vunpack.c.l.b16 %v265
          %v306 = vunpack.c.l.b16 %v266
          %v307 = vunpack.c.l.b16 %v267
          %v308 = vunpack.c.l.b16 %v268
          %v309 = vunpack.c.l.b16 %v269
          %v310 = vunpack.c.l.b16 %v270
          %v311 = vunpack.c.l.b16 %v271
          %v312 = vunpack.c.l.b16 %v272
          %v313 = vunpack.c.l.b16 %v273
          %v314 = vunpack.c.l.b16 %v274
          %v315 = vpack.c.b16 %v300, %v299
          %v316 = vpack.c.b16 %v302, %v301
          %v317 = vpack.c.b16 %v304, %v303
          %v318 = vpack.c.b16 %v306, %v305
          %v319 = vpack.c.b16 %v308, %v307
          %v320 = vpack.c.b16 %v310, %v309
          %v321 = vpack.c.b16 %v312, %v311
          %v322 = vpack.c.b16 %v314, %v313
          %v331 = vunpack.c.l.b16 %v275
          %v332 = vunpack.c.h.b16 %v275
          %v333 = vunpack.c.l.b16 %v276
          %v334 = vunpack.c.h.b16 %v276
          %v335 = vunpack.c.l.b16 %v277
          %v336 = vunpack.c.h.b16 %v277
          %v337 = vunpack.c.l.b16 %v278
          %v338 = vunpack.c.h.b16 %v278
          %v339 = vunpack.c.l.b16 %v279
          %v340 = vunpack.c.h.b16 %v279
          %v341 = vunpack.c.l.b16 %v280
          %v342 = vunpack.c.h.b16 %v280
          %v343 = vunpack.c.l.b16 %v281
          %v344 = vunpack.c.h.b16 %v281
          %v345 = vunpack.c.l.b16 %v282
          %v346 = vunpack.c.h.b16 %v282
          %v347 = vpack.c.b16 %v333, %v331
          %v348 = vpack.c.b16 %v334, %v332
          %v349 = vpack.c.b16 %v337, %v335
          %v350 = vpack.c.b16 %v338, %v336
          %v351 = vpack.c.b16 %v341, %v339
          %v352 = vpack.c.b16 %v342, %v340
          %v353 = vpack.c.b16 %v345, %v343
          %v354 = vpack.c.b16 %v346, %v344
          %vm363 = vcmask 523264
          %v365 = vsel %vm363, %v315, 0
          %v368 = vsel %vm363, %v316, 0
          %v371 = vsel %vm363, %v317, 0
          %v374 = vsel %vm363, %v318, 0
          %v377 = vsel %vm363, %v319, 0
          %v380 = vsel %vm363, %v320, 0
          %v383 = vsel %vm363, %v321, 0
          %v386 = vsel %vm363, %v322, 0
          %388 = vmatprep.subr.bf16.mxu0 %v348
          %389 = vmatpush1.bf16.msra.mxu0 %v347
          %390 = vmatprep.subr.bf16.mxu0 %v350
          %391 = vmatpush1.bf16.msra.mxu0 %v349
          %392 = vmatprep.subr.bf16.mxu0 %v352
          %393 = vmatpush1.bf16.msra.mxu0 %v351
          %394 = vmatprep.subr.bf16.mxu0 %v354
          %395 = vmatpush1.bf16.msra.mxu0 %v353
          %396 = vmatprep.subr.bf16.mxu0 0
          %397 = vmatpush1.bf16.msra.mxu0 0
          %398 = vmatprep.subr.bf16.mxu0 0
          %399 = vmatpush1.bf16.msra.mxu0 0
          %400 = vmatprep.subr.bf16.mxu0 0
          %401 = vmatpush1.bf16.msra.mxu0 0
          %402 = vmatprep.subr.bf16.mxu0 0
          %403 = vmatpush1.bf16.msra.mxu0 0
          %404 = vmatprep.subr.bf16.mxu0 0
          %405 = vmatpush1.bf16.msra.mxu0 0
          %406 = vmatprep.subr.bf16.mxu0 0
          %407 = vmatpush1.bf16.msra.mxu0 0
          %408 = vmatprep.subr.bf16.mxu0 0
          %409 = vmatpush1.bf16.msra.mxu0 0
          %410 = vmatprep.subr.bf16.mxu0 0
          %411 = vmatpush1.bf16.msra.mxu0 0
          %412 = vmatprep.subr.bf16.mxu0 0
          %413 = vmatpush1.bf16.msra.mxu0 0
          %414 = vmatprep.subr.bf16.mxu0 0
          %415 = vmatpush1.bf16.msra.mxu0 0
          %416 = vmatprep.subr.bf16.mxu0 0
          %417 = vmatpush1.bf16.msra.mxu0 0
          %418 = vmatprep.subr.bf16.mxu0 0
          %419 = vmatpush1.bf16.msra.mxu0 0
          %420 = vmatprep.mubr.bf16.mxu0 0
          %421 = vmatmul.mubr.bf16.gmra.mrb[0].mxu0 %v365
          %v422 = vpop.f32.mrb[0].mxu0
          %v423 = vadd.f32 0.0, %v422
          %v424 = vpop.f32.mrb[0].mxu0
          %v425 = vadd.f32 0.0, %v424
          %v426 = vpop.f32.mrb[0].mxu0
          %v427 = vadd.f32 0.0, %v426
          %v428 = vpop.f32.mrb[0].mxu0
          %v429 = vadd.f32 0.0, %v428
          %430 = vmatprep.mubr.bf16.mxu0 0
          %431 = vmatmul.mubr.bf16.gmra.mrb[0].mxu0 %v368
          %v432 = vpop.f32.mrb[0].mxu0
          %v433 = vadd.f32 0.0, %v432
          %v434 = vpop.f32.mrb[0].mxu0
          %v435 = vadd.f32 0.0, %v434
          %v436 = vpop.f32.mrb[0].mxu0
          %v437 = vadd.f32 0.0, %v436
          %v438 = vpop.f32.mrb[0].mxu0
          %v439 = vadd.f32 0.0, %v438
          %440 = vmatprep.mubr.bf16.mxu0 0
          %441 = vmatmul.mubr.bf16.gmra.mrb[0].mxu0 %v371
          %v442 = vpop.f32.mrb[0].mxu0
          %v443 = vadd.f32 0.0, %v442
          %v444 = vpop.f32.mrb[0].mxu0
          %v445 = vadd.f32 0.0, %v444
          %v446 = vpop.f32.mrb[0].mxu0
          %v447 = vadd.f32 0.0, %v446
          %v448 = vpop.f32.mrb[0].mxu0
          %v449 = vadd.f32 0.0, %v448
          %450 = vmatprep.mubr.bf16.mxu0 0
          %451 = vmatmul.mubr.bf16.gmra.mrb[0].mxu0 %v374
          %v452 = vpop.f32.mrb[0].mxu0
          %v453 = vadd.f32 0.0, %v452
          %v454 = vpop.f32.mrb[0].mxu0
          %v455 = vadd.f32 0.0, %v454
          %v456 = vpop.f32.mrb[0].mxu0
          %v457 = vadd.f32 0.0, %v456
          %v458 = vpop.f32.mrb[0].mxu0
          %v459 = vadd.f32 0.0, %v458
          %460 = vmatprep.mubr.bf16.mxu0 0
          %461 = vmatmul.mubr.bf16.gmra.mrb[0].mxu0 %v377
          %v462 = vpop.f32.mrb[0].mxu0
          %v463 = vadd.f32 0.0, %v462
          %v464 = vpop.f32.mrb[0].mxu0
          %v465 = vadd.f32 0.0, %v464
          %v466 = vpop.f32.mrb[0].mxu0
          %v467 = vadd.f32 0.0, %v466
          %v468 = vpop.f32.mrb[0].mxu0
          %v469 = vadd.f32 0.0, %v468
          %470 = vmatprep.mubr.bf16.mxu0 0
          %471 = vmatmul.mubr.bf16.gmra.mrb[0].mxu0 %v380
          %v472 = vpop.f32.mrb[0].mxu0
          %v473 = vadd.f32 0.0, %v472
          %v474 = vpop.f32.mrb[0].mxu0
          %v475 = vadd.f32 0.0, %v474
          %v476 = vpop.f32.mrb[0].mxu0
          %v477 = vadd.f32 0.0, %v476
          %v478 = vpop.f32.mrb[0].mxu0
          %v479 = vadd.f32 0.0, %v478
          %480 = vmatprep.mubr.bf16.mxu0 0
          %481 = vmatmul.mubr.bf16.gmra.mrb[0].mxu0 %v383
          %v482 = vpop.f32.mrb[0].mxu0
          %v483 = vadd.f32 0.0, %v482
          %v484 = vpop.f32.mrb[0].mxu0
          %v485 = vadd.f32 0.0, %v484
          %v486 = vpop.f32.mrb[0].mxu0
          %v487 = vadd.f32 0.0, %v486
          %v488 = vpop.f32.mrb[0].mxu0
          %v489 = vadd.f32 0.0, %v488
          %490 = vmatprep.mubr.bf16.mxu0 0
          %491 = vmatmul.mubr.bf16.gmra.mrb[0].mxu0 %v386
          %v492 = vpop.f32.mrb[0].mxu0
          %v493 = vadd.f32 0.0, %v492
          %v494 = vpop.f32.mrb[0].mxu0
          %v495 = vadd.f32 0.0, %v494
          %v496 = vpop.f32.mrb[0].mxu0
          %v497 = vadd.f32 0.0, %v496
          %v498 = vpop.f32.mrb[0].mxu0
          %v499 = vadd.f32 0.0, %v498
          %500 = vdwg.mxu0
          %501 = vst [vmem:[#allocation2] sm:$0xff] %v423
          %502 = vst [vmem:[#allocation2 + $0x8] sm:$0xff] %v425
          %503 = vst [vmem:[#allocation2 + $0x10] sm:$0xff] %v427
          %504 = vst [vmem:[#allocation2 + $0x18] sm:$0xff] %v429
          %505 = vst [vmem:[#allocation2 + $0x20] sm:$0xff] %v433
          %506 = vst [vmem:[#allocation2 + $0x28] sm:$0xff] %v435
          %507 = vst [vmem:[#allocation2 + $0x30] sm:$0xff] %v437
          %508 = vst [vmem:[#allocation2 + $0x38] sm:$0xff] %v439
          %509 = vst [vmem:[#allocation2 + $0x40] sm:$0xff] %v443
          %510 = vst [vmem:[#allocation2 + $0x48] sm:$0xff] %v445
          %511 = vst [vmem:[#allocation2 + $0x50] sm:$0xff] %v447
          %512 = vst [vmem:[#allocation2 + $0x58] sm:$0xff] %v449
          %513 = vst [vmem:[#allocation2 + $0x60] sm:$0xff] %v453
          %514 = vst [vmem:[#allocation2 + $0x68] sm:$0xff] %v455
          %515 = vst [vmem:[#allocation2 + $0x70] sm:$0xff] %v457
          %516 = vst [vmem:[#allocation2 + $0x78] sm:$0xff] %v459
          %517 = vst [vmem:[#allocation2 + $0x80] sm:$0xff] %v463
          %518 = vst [vmem:[#allocation2 + $0x88] sm:$0xff] %v465
          %519 = vst [vmem:[#allocation2 + $0x90] sm:$0xff] %v467
          %520 = vst [vmem:[#allocation2 + $0x98] sm:$0xff] %v469
          %521 = vst [vmem:[#allocation2 + $0xa0] sm:$0xff] %v473
          %522 = vst [vmem:[#allocation2 + $0xa8] sm:$0xff] %v475
          %523 = vst [vmem:[#allocation2 + $0xb0] sm:$0xff] %v477
          %524 = vst [vmem:[#allocation2 + $0xb8] sm:$0xff] %v479
          %525 = vst [vmem:[#allocation2 + $0xc0] sm:$0xff] %v483
          %526 = vst [vmem:[#allocation2 + $0xc8] sm:$0xff] %v485
          %527 = vst [vmem:[#allocation2 + $0xd0] sm:$0xff] %v487
          %528 = vst [vmem:[#allocation2 + $0xd8] sm:$0xff] %v489
          %529 = vst [vmem:[#allocation2 + $0xe0] sm:$0xff] %v493
          %530 = vst [vmem:[#allocation2 + $0xe8] sm:$0xff] %v495
          %531 = vst [vmem:[#allocation2 + $0xf0] sm:$0xff] %v497
          %532 = vst [vmem:[#allocation2 + $0xf8] sm:$0xff] %v499
        $region48: #{tpu_custom_call.1} parent=39 // pred_fallthru
          _
        %s533 = sshra.s32 %s254, 7
        %s534 = sand.u32 %s254, 127
        %s535 = smul.addr %s533, 4
        %s536 = scalar_lea.vmem %s251, %s535
        %v537 = vld [vmem:[%s536] sm:$0xff]
        %v538 = vld [vmem:[%s536 + $0x8] sm:$0xff]
        %v539 = vld [vmem:[%s536 + $0x10] sm:$0xff]
        %v540 = vld [vmem:[%s536 + $0x18] sm:$0xff]
        %v541 = vld [vmem:[%s536 + $0x20] sm:$0xff]
        %v542 = vld [vmem:[%s536 + $0x28] sm:$0xff]
        %v543 = vld [vmem:[%s536 + $0x30] sm:$0xff]
        %v544 = vld [vmem:[%s536 + $0x38] sm:$0xff]
        %v545 = vld [vmem:[%s1] sm:$0xf]
        %v546 = vld [vmem:[%s1 + $0x4] sm:$0xf]
        %v547 = vld [vmem:[%s1 + $0x8] sm:$0xf]
        %v548 = vld [vmem:[%s1 + $0xc] sm:$0xf]
        %v549 = vld [vmem:[%s1 + $0x10] sm:$0xf]
        %v550 = vld [vmem:[%s1 + $0x14] sm:$0xf]
        %v551 = vld [vmem:[%s1 + $0x18] sm:$0xf]
        %v552 = vld [vmem:[%s1 + $0x1c] sm:$0xf]
        %v561 = vunpack.c.l.b16 %v545
        %v562 = vunpack.c.l.b16 %v546
        %v563 = vunpack.c.l.b16 %v547
        %v564 = vunpack.c.l.b16 %v548
        %v565 = vunpack.c.l.b16 %v549
        %v566 = vunpack.c.l.b16 %v550
        %v567 = vunpack.c.l.b16 %v551
        %v568 = vunpack.c.l.b16 %v552
        %v569 = vpack.c.b16 %v562, %v561
        %v570 = vpack.c.b16 %v564, %v563
        %v571 = vpack.c.b16 %v566, %v565
        %v572 = vpack.c.b16 %v568, %v567
        %v581 = vunpack.c.l.b16 %v537
        %v582 = vunpack.c.h.b16 %v537
        %v583 = vunpack.c.l.b16 %v538
        %v584 = vunpack.c.h.b16 %v538
        %v585 = vunpack.c.l.b16 %v539
        %v586 = vunpack.c.h.b16 %v539
        %v587 = vunpack.c.l.b16 %v540
        %v588 = vunpack.c.h.b16 %v540
        %v589 = vunpack.c.l.b16 %v541
        %v590 = vunpack.c.h.b16 %v541
        %v591 = vunpack.c.l.b16 %v542
        %v592 = vunpack.c.h.b16 %v542
        %v593 = vunpack.c.l.b16 %v543
        %v594 = vunpack.c.h.b16 %v543
        %v595 = vunpack.c.l.b16 %v544
        %v596 = vunpack.c.h.b16 %v544
        %v597 = vpack.c.b16 %v583, %v581
        %v598 = vpack.c.b16 %v584, %v582
        %v599 = vpack.c.b16 %v587, %v585
        %v600 = vpack.c.b16 %v588, %v586
        %v601 = vpack.c.b16 %v591, %v589
        %v602 = vpack.c.b16 %v592, %v590
        %v603 = vpack.c.b16 %v595, %v593
        %v604 = vpack.c.b16 %v596, %v594
        %vm613 = vcmask 523264
        %v615 = vsel %vm613, %v569, 0
        %v618 = vsel %vm613, %v570, 0
        %v621 = vsel %vm613, %v571, 0
        %v624 = vsel %vm613, %v572, 0
        %626 = vmatprep.subr.bf16.mxu0 %v598
        %627 = vmatpush1.bf16.msra.mxu0 %v597
        %628 = vmatprep.subr.bf16.mxu0 %v600
        %629 = vmatpush1.bf16.msra.mxu0 %v599
        %630 = vmatprep.subr.bf16.mxu0 %v602
        %631 = vmatpush1.bf16.msra.mxu0 %v601
        %632 = vmatprep.subr.bf16.mxu0 %v604
        %633 = vmatpush1.bf16.msra.mxu0 %v603
        %634 = vmatprep.subr.bf16.mxu0 0
        %635 = vmatpush1.bf16.msra.mxu0 0
        %636 = vmatprep.subr.bf16.mxu0 0
        %637 = vmatpush1.bf16.msra.mxu0 0
        %638 = vmatprep.subr.bf16.mxu0 0
        %639 = vmatpush1.bf16.msra.mxu0 0
        %640 = vmatprep.subr.bf16.mxu0 0
        %641 = vmatpush1.bf16.msra.mxu0 0
        %642 = vmatprep.subr.bf16.mxu0 0
        %643 = vmatpush1.bf16.msra.mxu0 0
        %644 = vmatprep.subr.bf16.mxu0 0
        %645 = vmatpush1.bf16.msra.mxu0 0
        %646 = vmatprep.subr.bf16.mxu0 0
        %647 = vmatpush1.bf16.msra.mxu0 0
        %648 = vmatprep.subr.bf16.mxu0 0
        %649 = vmatpush1.bf16.msra.mxu0 0
        %650 = vmatprep.subr.bf16.mxu0 0
        %651 = vmatpush1.bf16.msra.mxu0 0
        %652 = vmatprep.subr.bf16.mxu0 0
        %653 = vmatpush1.bf16.msra.mxu0 0
        %654 = vmatprep.subr.bf16.mxu0 0
        %655 = vmatpush1.bf16.msra.mxu0 0
        %656 = vmatprep.subr.bf16.mxu0 0
        %657 = vmatpush1.bf16.msra.mxu0 0
        %658 = vmatprep.mubr.bf16.mxu0 0
        %659 = vmatmul.mubr.bf16.gmra.mrb[0].mxu0 %v615
        %v660 = vpop.f32.mrb[0].mxu0
        %v661 = vadd.f32 0.0, %v660
        %v662 = vpop.f32.mrb[0].mxu0
        %v663 = vadd.f32 0.0, %v662
        %v664 = vpop.f32.mrb[0].mxu0
        %v665 = vadd.f32 0.0, %v664
        %v666 = vpop.f32.mrb[0].mxu0
        %v667 = vadd.f32 0.0, %v666
        %668 = vmatprep.mubr.bf16.mxu0 0
        %669 = vmatmul.mubr.bf16.gmra.mrb[0].mxu0 %v618
        %v670 = vpop.f32.mrb[0].mxu0
        %v671 = vadd.f32 0.0, %v670
        %v672 = vpop.f32.mrb[0].mxu0
        %v673 = vadd.f32 0.0, %v672
        %v674 = vpop.f32.mrb[0].mxu0
        %v675 = vadd.f32 0.0, %v674
        %v676 = vpop.f32.mrb[0].mxu0
        %v677 = vadd.f32 0.0, %v676
        %678 = vmatprep.mubr.bf16.mxu0 0
        %679 = vmatmul.mubr.bf16.gmra.mrb[0].mxu0 %v621
        %v680 = vpop.f32.mrb[0].mxu0
        %v681 = vadd.f32 0.0, %v680
        %v682 = vpop.f32.mrb[0].mxu0
        %v683 = vadd.f32 0.0, %v682
        %v684 = vpop.f32.mrb[0].mxu0
        %v685 = vadd.f32 0.0, %v684
        %v686 = vpop.f32.mrb[0].mxu0
        %v687 = vadd.f32 0.0, %v686
        %688 = vmatprep.mubr.bf16.mxu0 0
        %689 = vmatmul.mubr.bf16.gmra.mrb[0].mxu0 %v624
        %v690 = vpop.f32.mrb[0].mxu0
        %v691 = vadd.f32 0.0, %v690
        %v692 = vpop.f32.mrb[0].mxu0
        %v693 = vadd.f32 0.0, %v692
        %v694 = vpop.f32.mrb[0].mxu0
        %v695 = vadd.f32 0.0, %v694
        %v696 = vpop.f32.mrb[0].mxu0
        %v697 = vadd.f32 0.0, %v696
        %698 = vdwg.mxu0
        %v699 = vpack.c.bf16 %v661, %v661
        %v700 = vpack.c.bf16 %v663, %v663
        %v701 = vld [vmem:[#allocation2] sm:$0xff]
        %v702 = vld [vmem:[#allocation2 + $0x8] sm:$0xff]
        %v703 = vpack.c.bf16 %v701, %v701
        %v704 = vpack.c.bf16 %v702, %v702
        %v705 = vld [vmem:[#allocation2 + $0x80] sm:$0xff]
        %v706 = vld [vmem:[#allocation2 + $0x88] sm:$0xff]
        %v707 = vpack.c.bf16 %v705, %v705
        %v708 = vpack.c.bf16 %v706, %v706
        %709 = vxpose.xlu0.c.b16.start [1/8] %v699, 128
        %710 = vxpose.xlu0.c.b16.cont [2/8] 0, 128
        %711 = vxpose.xlu0.c.b16.cont [3/8] 0, 128
        %712 = vxpose.xlu0.c.b16.cont [4/8] 0, 128
        %713 = vxpose.xlu0.c.b16.cont [5/8] 0, 128
        %714 = vxpose.xlu0.c.b16.cont [6/8] 0, 128
        %715 = vxpose.xlu0.c.b16.cont [7/8] 0, 128
        %716 = vxpose.xlu0.c.b16.end [8/8] 0, 128
        %v717 = vpop.trf.xlu0
        %v718 = vpop.trf.xlu0
        %v719 = vpop.trf.xlu0
        %v720 = vpop.trf.xlu0
        %v721 = vpop.trf.xlu0
        %v722 = vpop.trf.xlu0
        %v723 = vpop.trf.xlu0
        %v724 = vpop.trf.xlu0
        %725 = vxpose.xlu0.c.b16.start [1/8] %v700, 128
        %726 = vxpose.xlu0.c.b16.cont [2/8] 0, 128
        %727 = vxpose.xlu0.c.b16.cont [3/8] 0, 128
        %728 = vxpose.xlu0.c.b16.cont [4/8] 0, 128
        %729 = vxpose.xlu0.c.b16.cont [5/8] 0, 128
        %730 = vxpose.xlu0.c.b16.cont [6/8] 0, 128
        %731 = vxpose.xlu0.c.b16.cont [7/8] 0, 128
        %732 = vxpose.xlu0.c.b16.end [8/8] 0, 128
        %v733 = vpop.trf.xlu0
        %v734 = vpop.trf.xlu0
        %v735 = vpop.trf.xlu0
        %v736 = vpop.trf.xlu0
        %v737 = vpop.trf.xlu0
        %v738 = vpop.trf.xlu0
        %v739 = vpop.trf.xlu0
        %v740 = vpop.trf.xlu0
        %vm741 = vcmask 64512
        %v743 = vsel %vm741, %v717, 0
        %v746 = vsel %vm741, %v718, 0
        %v749 = vsel %vm741, %v719, 0
        %v752 = vsel %vm741, %v720, 0
        %v755 = vsel %vm741, %v721, 0
        %v758 = vsel %vm741, %v722, 0
        %v761 = vsel %vm741, %v723, 0
        %v764 = vsel %vm741, %v724, 0
        %v767 = vsel %vm741, %v733, 0
        %v770 = vsel %vm741, %v734, 0
        %v773 = vsel %vm741, %v735, 0
        %v776 = vsel %vm741, %v736, 0
        %v779 = vsel %vm741, %v737, 0
        %v782 = vsel %vm741, %v738, 0
        %v785 = vsel %vm741, %v739, 0
        %v788 = vsel %vm741, %v740, 0
        %vm790 = vcmask 1043456
        %v792 = vsel %vm790, %v703, 0
        %v795 = vsel %vm790, %v704, 0
        %797 = vmatprep.subr.bf16.mxu0 %v795
        %798 = vmatpush1.bf16.msra.mxu0 %v792
        %799 = vmatprep.subr.bf16.mxu0 0
        %800 = vmatpush1.bf16.msra.mxu0 0
        %801 = vmatprep.subr.bf16.mxu0 0
        %802 = vmatpush1.bf16.msra.mxu0 0
        %803 = vmatprep.subr.bf16.mxu0 0
        %804 = vmatpush1.bf16.msra.mxu0 0
        %805 = vmatprep.subr.bf16.mxu0 0
        %806 = vmatpush1.bf16.msra.mxu0 0
        %807 = vmatprep.subr.bf16.mxu0 0
        %808 = vmatpush1.bf16.msra.mxu0 0
        %809 = vmatprep.subr.bf16.mxu0 0
        %810 = vmatpush1.bf16.msra.mxu0 0
        %811 = vmatprep.subr.bf16.mxu0 0
        %812 = vmatpush1.bf16.msra.mxu0 0
        %813 = vmatprep.subr.bf16.mxu0 0
        %814 = vmatpush1.bf16.msra.mxu0 0
        %815 = vmatprep.subr.bf16.mxu0 0
        %816 = vmatpush1.bf16.msra.mxu0 0
        %817 = vmatprep.subr.bf16.mxu0 0
        %818 = vmatpush1.bf16.msra.mxu0 0
        %819 = vmatprep.subr.bf16.mxu0 0
        %820 = vmatpush1.bf16.msra.mxu0 0
        %821 = vmatprep.subr.bf16.mxu0 0
        %822 = vmatpush1.bf16.msra.mxu0 0
        %823 = vmatprep.subr.bf16.mxu0 0
        %824 = vmatpush1.bf16.msra.mxu0 0
        %825 = vmatprep.subr.bf16.mxu0 0
        %826 = vmatpush1.bf16.msra.mxu0 0
        %827 = vmatprep.subr.bf16.mxu0 0
        %828 = vmatpush1.bf16.msra.mxu0 0
        %829 = vmatprep.mubr.bf16.mxu0 0
        %830 = vmatmul.mubr.bf16.gmra.mrb[0].mxu0 %v743
        %v831 = vpop.f32.mrb[0].mxu0
        %v832 = vadd.f32 0.0, %v831
        %v833 = vpop.f32.mrb[0].mxu0
        %v834 = vadd.f32 0.0, %v833
        %v835 = vpop.f32.mrb[0].mxu0
        %v836 = vadd.f32 0.0, %v835
        %v837 = vpop.f32.mrb[0].mxu0
        %v838 = vadd.f32 0.0, %v837
        %839 = vmatprep.mubr.bf16.mxu0 0
        %840 = vmatmul.mubr.bf16.gmra.mrb[0].mxu0 %v746
        %v841 = vpop.f32.mrb[0].mxu0
        %v842 = vadd.f32 0.0, %v841
        %v843 = vpop.f32.mrb[0].mxu0
        %v844 = vadd.f32 0.0, %v843
        %v845 = vpop.f32.mrb[0].mxu0
        %v846 = vadd.f32 0.0, %v845
        %v847 = vpop.f32.mrb[0].mxu0
        %v848 = vadd.f32 0.0, %v847
        %849 = vmatprep.mubr.bf16.mxu0 0
        %850 = vmatmul.mubr.bf16.gmra.mrb[0].mxu0 %v749
        %v851 = vpop.f32.mrb[0].mxu0
        %v852 = vadd.f32 0.0, %v851
        %v853 = vpop.f32.mrb[0].mxu0
        %v854 = vadd.f32 0.0, %v853
        %v855 = vpop.f32.mrb[0].mxu0
        %v856 = vadd.f32 0.0, %v855
        %v857 = vpop.f32.mrb[0].mxu0
        %v858 = vadd.f32 0.0, %v857
        %859 = vmatprep.mubr.bf16.mxu0 0
        %860 = vmatmul.mubr.bf16.gmra.mrb[0].mxu0 %v752
        %v861 = vpop.f32.mrb[0].mxu0
        %v862 = vadd.f32 0.0, %v861
        %v863 = vpop.f32.mrb[0].mxu0
        %v864 = vadd.f32 0.0, %v863
        %v865 = vpop.f32.mrb[0].mxu0
        %v866 = vadd.f32 0.0, %v865
        %v867 = vpop.f32.mrb[0].mxu0
        %v868 = vadd.f32 0.0, %v867
        %869 = vmatprep.mubr.bf16.mxu0 0
        %870 = vmatmul.mubr.bf16.gmra.mrb[0].mxu0 %v755
        %v871 = vpop.f32.mrb[0].mxu0
        %v872 = vadd.f32 0.0, %v871
        %v873 = vpop.f32.mrb[0].mxu0
        %v874 = vadd.f32 0.0, %v873
        %v875 = vpop.f32.mrb[0].mxu0
        %v876 = vadd.f32 0.0, %v875
        %v877 = vpop.f32.mrb[0].mxu0
        %v878 = vadd.f32 0.0, %v877
        %879 = vmatprep.mubr.bf16.mxu0 0
        %880 = vmatmul.mubr.bf16.gmra.mrb[0].mxu0 %v758
        %v881 = vpop.f32.mrb[0].mxu0
        %v882 = vadd.f32 0.0, %v881
        %v883 = vpop.f32.mrb[0].mxu0
        %v884 = vadd.f32 0.0, %v883
        %v885 = vpop.f32.mrb[0].mxu0
        %v886 = vadd.f32 0.0, %v885
        %v887 = vpop.f32.mrb[0].mxu0
        %v888 = vadd.f32 0.0, %v887
        %889 = vmatprep.mubr.bf16.mxu0 0
        %890 = vmatmul.mubr.bf16.gmra.mrb[0].mxu0 %v761
        %v891 = vpop.f32.mrb[0].mxu0
        %v892 = vadd.f32 0.0, %v891
        %v893 = vpop.f32.mrb[0].mxu0
        %v894 = vadd.f32 0.0, %v893
        %v895 = vpop.f32.mrb[0].mxu0
        %v896 = vadd.f32 0.0, %v895
        %v897 = vpop.f32.mrb[0].mxu0
        %v898 = vadd.f32 0.0, %v897
        %899 = vmatprep.mubr.bf16.mxu0 0
        %900 = vmatmul.mubr.bf16.gmra.mrb[0].mxu0 %v764
        %v901 = vpop.f32.mrb[0].mxu0
        %v902 = vadd.f32 0.0, %v901
        %v903 = vpop.f32.mrb[0].mxu0
        %v904 = vadd.f32 0.0, %v903
        %v905 = vpop.f32.mrb[0].mxu0
        %v906 = vadd.f32 0.0, %v905
        %v907 = vpop.f32.mrb[0].mxu0
        %v908 = vadd.f32 0.0, %v907
        %909 = vmatprep.mubr.bf16.mxu0 0
        %910 = vmatmul.mubr.bf16.gmra.mrb[0].mxu0 %v767
        %v911 = vpop.f32.mrb[0].mxu0
        %v912 = vadd.f32 0.0, %v911
        %v913 = vpop.f32.mrb[0].mxu0
        %v914 = vadd.f32 0.0, %v913
        %v915 = vpop.f32.mrb[0].mxu0
        %v916 = vadd.f32 0.0, %v915
        %v917 = vpop.f32.mrb[0].mxu0
        %v918 = vadd.f32 0.0, %v917
        %919 = vmatprep.mubr.bf16.mxu0 0
        %920 = vmatmul.mubr.bf16.gmra.mrb[0].mxu0 %v770
        %v921 = vpop.f32.mrb[0].mxu0
        %v922 = vadd.f32 0.0, %v921
        %v923 = vpop.f32.mrb[0].mxu0
        %v924 = vadd.f32 0.0, %v923
        %v925 = vpop.f32.mrb[0].mxu0
        %v926 = vadd.f32 0.0, %v925
        %v927 = vpop.f32.mrb[0].mxu0
        %v928 = vadd.f32 0.0, %v927
        %929 = vmatprep.mubr.bf16.mxu0 0
        %930 = vmatmul.mubr.bf16.gmra.mrb[0].mxu0 %v773
        %v931 = vpop.f32.mrb[0].mxu0
        %v932 = vadd.f32 0.0, %v931
        %v933 = vpop.f32.mrb[0].mxu0
        %v934 = vadd.f32 0.0, %v933
        %v935 = vpop.f32.mrb[0].mxu0
        %v936 = vadd.f32 0.0, %v935
        %v937 = vpop.f32.mrb[0].mxu0
        %v938 = vadd.f32 0.0, %v937
        %939 = vmatprep.mubr.bf16.mxu0 0
        %940 = vmatmul.mubr.bf16.gmra.mrb[0].mxu0 %v776
        %v941 = vpop.f32.mrb[0].mxu0
        %v942 = vadd.f32 0.0, %v941
        %v943 = vpop.f32.mrb[0].mxu0
        %v944 = vadd.f32 0.0, %v943
        %v945 = vpop.f32.mrb[0].mxu0
        %v946 = vadd.f32 0.0, %v945
        %v947 = vpop.f32.mrb[0].mxu0
        %v948 = vadd.f32 0.0, %v947
        %949 = vmatprep.mubr.bf16.mxu0 0
        %950 = vmatmul.mubr.bf16.gmra.mrb[0].mxu0 %v779
        %v951 = vpop.f32.mrb[0].mxu0
        %v952 = vadd.f32 0.0, %v951
        %v953 = vpop.f32.mrb[0].mxu0
        %v954 = vadd.f32 0.0, %v953
        %v955 = vpop.f32.mrb[0].mxu0
        %v956 = vadd.f32 0.0, %v955
        %v957 = vpop.f32.mrb[0].mxu0
        %v958 = vadd.f32 0.0, %v957
        %959 = vmatprep.mubr.bf16.mxu0 0
        %960 = vmatmul.mubr.bf16.gmra.mrb[0].mxu0 %v782
        %v961 = vpop.f32.mrb[0].mxu0
        %v962 = vadd.f32 0.0, %v961
        %v963 = vpop.f32.mrb[0].mxu0
        %v964 = vadd.f32 0.0, %v963
        %v965 = vpop.f32.mrb[0].mxu0
        %v966 = vadd.f32 0.0, %v965
        %v967 = vpop.f32.mrb[0].mxu0
        %v968 = vadd.f32 0.0, %v967
        %969 = vmatprep.mubr.bf16.mxu0 0
        %970 = vmatmul.mubr.bf16.gmra.mrb[0].mxu0 %v785
        %v971 = vpop.f32.mrb[0].mxu0
        %v972 = vadd.f32 0.0, %v971
        %v973 = vpop.f32.mrb[0].mxu0
        %v974 = vadd.f32 0.0, %v973
        %v975 = vpop.f32.mrb[0].mxu0
        %v976 = vadd.f32 0.0, %v975
        %v977 = vpop.f32.mrb[0].mxu0
        %v978 = vadd.f32 0.0, %v977
        %979 = vmatprep.mubr.bf16.mxu0 0
        %980 = vmatmul.mubr.bf16.gmra.mrb[0].mxu0 %v788
        %v981 = vpop.f32.mrb[0].mxu0
        %v982 = vadd.f32 0.0, %v981
        %v983 = vpop.f32.mrb[0].mxu0
        %v984 = vadd.f32 0.0, %v983
        %v985 = vpop.f32.mrb[0].mxu0
        %v986 = vadd.f32 0.0, %v985
        %v987 = vpop.f32.mrb[0].mxu0
        %v988 = vadd.f32 0.0, %v987
        %989 = vdwg.mxu0
        %v990 = vmax.f32 %v832, %v834
        %991 = vmax.xlane.f32.xlu0 %v990
        %v992 = vpop.xlane.xlu0 %991
        %v993 = vmax.f32 %v836, %v838
        %994 = vmax.xlane.f32.xlu0 %v993
        %v995 = vpop.xlane.xlu0 %994
        %v996 = vmax.f32 %v842, %v844
        %997 = vmax.xlane.f32.xlu0 %v996
        %v998 = vpop.xlane.xlu0 %997
        %v999 = vmax.f32 %v846, %v848
        %1000 = vmax.xlane.f32.xlu0 %v999
        %v1001 = vpop.xlane.xlu0 %1000
        %v1002 = vmax.f32 %v852, %v854
        %1003 = vmax.xlane.f32.xlu0 %v1002
        %v1004 = vpop.xlane.xlu0 %1003
        %v1005 = vmax.f32 %v856, %v858
        %1006 = vmax.xlane.f32.xlu0 %v1005
        %v1007 = vpop.xlane.xlu0 %1006
        %v1008 = vmax.f32 %v862, %v864
        %1009 = vmax.xlane.f32.xlu0 %v1008
        %v1010 = vpop.xlane.xlu0 %1009
        %v1011 = vmax.f32 %v866, %v868
        %1012 = vmax.xlane.f32.xlu0 %v1011
        %v1013 = vpop.xlane.xlu0 %1012
        %v1014 = vmax.f32 %v872, %v874
        %1015 = vmax.xlane.f32.xlu0 %v1014
        %v1016 = vpop.xlane.xlu0 %1015
        %v1017 = vmax.f32 %v876, %v878
        %1018 = vmax.xlane.f32.xlu0 %v1017
        %v1019 = vpop.xlane.xlu0 %1018
        %v1020 = vmax.f32 %v882, %v884
        %1021 = vmax.xlane.f32.xlu0 %v1020
        %v1022 = vpop.xlane.xlu0 %1021
        %v1023 = vmax.f32 %v886, %v888
        %1024 = vmax.xlane.f32.xlu0 %v1023
        %v1025 = vpop.xlane.xlu0 %1024
        %v1026 = vmax.f32 %v892, %v894
        %1027 = vmax.xlane.f32.xlu0 %v1026
        %v1028 = vpop.xlane.xlu0 %1027
        %v1029 = vmax.f32 %v896, %v898
        %1030 = vmax.xlane.f32.xlu0 %v1029
        %v1031 = vpop.xlane.xlu0 %1030
        %v1032 = vmax.f32 %v902, %v904
        %1033 = vmax.xlane.f32.xlu0 %v1032
        %v1034 = vpop.xlane.xlu0 %1033
        %v1035 = vmax.f32 %v906, %v908
        %1036 = vmax.xlane.f32.xlu0 %v1035
        %v1037 = vpop.xlane.xlu0 %1036
        %v1038 = vmax.f32 %v912, %v914
        %1039 = vmax.xlane.f32.xlu0 %v1038
        %v1040 = vpop.xlane.xlu0 %1039
        %v1041 = vmax.f32 %v916, %v918
        %1042 = vmax.xlane.f32.xlu0 %v1041
        %v1043 = vpop.xlane.xlu0 %1042
        %v1044 = vmax.f32 %v922, %v924
        %1045 = vmax.xlane.f32.xlu0 %v1044
        %v1046 = vpop.xlane.xlu0 %1045
        %v1047 = vmax.f32 %v926, %v928
        %1048 = vmax.xlane.f32.xlu0 %v1047
        %v1049 = vpop.xlane.xlu0 %1048
        %v1050 = vmax.f32 %v932, %v934
        %1051 = vmax.xlane.f32.xlu0 %v1050
        %v1052 = vpop.xlane.xlu0 %1051
        %v1053 = vmax.f32 %v936, %v938
        %1054 = vmax.xlane.f32.xlu0 %v1053
        %v1055 = vpop.xlane.xlu0 %1054
        %v1056 = vmax.f32 %v942, %v944
        %1057 = vmax.xlane.f32.xlu0 %v1056
        %v1058 = vpop.xlane.xlu0 %1057
        %v1059 = vmax.f32 %v946, %v948
        %1060 = vmax.xlane.f32.xlu0 %v1059
        %v1061 = vpop.xlane.xlu0 %1060
        %v1062 = vmax.f32 %v952, %v954
        %1063 = vmax.xlane.f32.xlu0 %v1062
        %v1064 = vpop.xlane.xlu0 %1063
        %v1065 = vmax.f32 %v956, %v958
        %1066 = vmax.xlane.f32.xlu0 %v1065
        %v1067 = vpop.xlane.xlu0 %1066
        %v1068 = vmax.f32 %v962, %v964
        %1069 = vmax.xlane.f32.xlu0 %v1068
        %v1070 = vpop.xlane.xlu0 %1069
        %v1071 = vmax.f32 %v966, %v968
        %1072 = vmax.xlane.f32.xlu0 %v1071
        %v1073 = vpop.xlane.xlu0 %1072
        %v1074 = vmax.f32 %v972, %v974
        %1075 = vmax.xlane.f32.xlu0 %v1074
        %v1076 = vpop.xlane.xlu0 %1075
        %v1077 = vmax.f32 %v976, %v978
        %1078 = vmax.xlane.f32.xlu0 %v1077
        %v1079 = vpop.xlane.xlu0 %1078
        %v1080 = vmax.f32 %v982, %v984
        %1081 = vmax.xlane.f32.xlu0 %v1080
        %v1082 = vpop.xlane.xlu0 %1081
        %v1083 = vmax.f32 %v986, %v988
        %1084 = vmax.xlane.f32.xlu0 %v1083
        %v1085 = vpop.xlane.xlu0 %1084
        %v1086 = vsub.f32 %v832, %v992
        %v1087 = vsub.f32 %v834, %v992
        %v1088 = vsub.f32 %v836, %v995
        %v1089 = vsub.f32 %v838, %v995
        %v1090 = vsub.f32 %v842, %v998
        %v1091 = vsub.f32 %v844, %v998
        %v1092 = vsub.f32 %v846, %v1001
        %v1093 = vsub.f32 %v848, %v1001
        %v1094 = vsub.f32 %v852, %v1004
        %v1095 = vsub.f32 %v854, %v1004
        %v1096 = vsub.f32 %v856, %v1007
        %v1097 = vsub.f32 %v858, %v1007
        %v1098 = vsub.f32 %v862, %v1010
        %v1099 = vsub.f32 %v864, %v1010
        %v1100 = vsub.f32 %v866, %v1013
        %v1101 = vsub.f32 %v868, %v1013
        %v1102 = vsub.f32 %v872, %v1016
        %v1103 = vsub.f32 %v874, %v1016
        %v1104 = vsub.f32 %v876, %v1019
        %v1105 = vsub.f32 %v878, %v1019
        %v1106 = vsub.f32 %v882, %v1022
        %v1107 = vsub.f32 %v884, %v1022
        %v1108 = vsub.f32 %v886, %v1025
        %v1109 = vsub.f32 %v888, %v1025
        %v1110 = vsub.f32 %v892, %v1028
        %v1111 = vsub.f32 %v894, %v1028
        %v1112 = vsub.f32 %v896, %v1031
        %v1113 = vsub.f32 %v898, %v1031
        %v1114 = vsub.f32 %v902, %v1034
        %v1115 = vsub.f32 %v904, %v1034
        %v1116 = vsub.f32 %v906, %v1037
        %v1117 = vsub.f32 %v908, %v1037
        %v1118 = vsub.f32 %v912, %v1040
        %v1119 = vsub.f32 %v914, %v1040
        %v1120 = vsub.f32 %v916, %v1043
        %v1121 = vsub.f32 %v918, %v1043
        %v1122 = vsub.f32 %v922, %v1046
        %v1123 = vsub.f32 %v924, %v1046
        %v1124 = vsub.f32 %v926, %v1049
        %v1125 = vsub.f32 %v928, %v1049
        %v1126 = vsub.f32 %v932, %v1052
        %v1127 = vsub.f32 %v934, %v1052
        %v1128 = vsub.f32 %v936, %v1055
        %v1129 = vsub.f32 %v938, %v1055
        %v1130 = vsub.f32 %v942, %v1058
        %v1131 = vsub.f32 %v944, %v1058
        %v1132 = vsub.f32 %v946, %v1061
        %v1133 = vsub.f32 %v948, %v1061
        %v1134 = vsub.f32 %v952, %v1064
        %v1135 = vsub.f32 %v954, %v1064
        %v1136 = vsub.f32 %v956, %v1067
        %v1137 = vsub.f32 %v958, %v1067
        %v1138 = vsub.f32 %v962, %v1070
        %v1139 = vsub.f32 %v964, %v1070
        %v1140 = vsub.f32 %v966, %v1073
        %v1141 = vsub.f32 %v968, %v1073
        %v1142 = vsub.f32 %v972, %v1076
        %v1143 = vsub.f32 %v974, %v1076
        %v1144 = vsub.f32 %v976, %v1079
        %v1145 = vsub.f32 %v978, %v1079
        %v1146 = vsub.f32 %v982, %v1082
        %v1147 = vsub.f32 %v984, %v1082
        %v1148 = vsub.f32 %v986, %v1085
        %v1149 = vsub.f32 %v988, %v1085
        %v1150 = vmul.f32 %v1086, 1.442695
        %v1151 = vpow.pop %v1150
        %v1152 = vmul.f32 %v1087, 1.442695
        %v1153 = vpow.pop %v1152
        %v1154 = vmul.f32 %v1088, 1.442695
        %v1155 = vpow.pop %v1154
        %v1156 = vmul.f32 %v1089, 1.442695
        %v1157 = vpow.pop %v1156
        %v1158 = vmul.f32 %v1090, 1.442695
        %v1159 = vpow.pop %v1158
        %v1160 = vmul.f32 %v1091, 1.442695
        %v1161 = vpow.pop %v1160
        %v1162 = vmul.f32 %v1092, 1.442695
        %v1163 = vpow.pop %v1162
        %v1164 = vmul.f32 %v1093, 1.442695
        %v1165 = vpow.pop %v1164
        %v1166 = vmul.f32 %v1094, 1.442695
        %v1167 = vpow.pop %v1166
        %v1168 = vmul.f32 %v1095, 1.442695
        %v1169 = vpow.pop %v1168
        %v1170 = vmul.f32 %v1096, 1.442695
        %v1171 = vpow.pop %v1170
        %v1172 = vmul.f32 %v1097, 1.442695
        %v1173 = vpow.pop %v1172
        %v1174 = vmul.f32 %v1098, 1.442695
        %v1175 = vpow.pop %v1174
        %v1176 = vmul.f32 %v1099, 1.442695
        %v1177 = vpow.pop %v1176
        %v1178 = vmul.f32 %v1100, 1.442695
        %v1179 = vpow.pop %v1178
        %v1180 = vmul.f32 %v1101, 1.442695
        %v1181 = vpow.pop %v1180
        %v1182 = vmul.f32 %v1102, 1.442695
        %v1183 = vpow.pop %v1182
        %v1184 = vmul.f32 %v1103, 1.442695
        %v1185 = vpow.pop %v1184
        %v1186 = vmul.f32 %v1104, 1.442695
        %v1187 = vpow.pop %v1186
        %v1188 = vmul.f32 %v1105, 1.442695
        %v1189 = vpow.pop %v1188
        %v1190 = vmul.f32 %v1106, 1.442695
        %v1191 = vpow.pop %v1190
        %v1192 = vmul.f32 %v1107, 1.442695
        %v1193 = vpow.pop %v1192
        %v1194 = vmul.f32 %v1108, 1.442695
        %v1195 = vpow.pop %v1194
        %v1196 = vmul.f32 %v1109, 1.442695
        %v1197 = vpow.pop %v1196
        %v1198 = vmul.f32 %v1110, 1.442695
        %v1199 = vpow.pop %v1198
        %v1200 = vmul.f32 %v1111, 1.442695
        %v1201 = vpow.pop %v1200
        %v1202 = vmul.f32 %v1112, 1.442695
        %v1203 = vpow.pop %v1202
        %v1204 = vmul.f32 %v1113, 1.442695
        %v1205 = vpow.pop %v1204
        %v1206 = vmul.f32 %v1114, 1.442695
        %v1207 = vpow.pop %v1206
        %v1208 = vmul.f32 %v1115, 1.442695
        %v1209 = vpow.pop %v1208
        %v1210 = vmul.f32 %v1116, 1.442695
        %v1211 = vpow.pop %v1210
        %v1212 = vmul.f32 %v1117, 1.442695
        %v1213 = vpow.pop %v1212
        %v1214 = vmul.f32 %v1118, 1.442695
        %v1215 = vpow.pop %v1214
        %v1216 = vmul.f32 %v1119, 1.442695
        %v1217 = vpow.pop %v1216
        %v1218 = vmul.f32 %v1120, 1.442695
        %v1219 = vpow.pop %v1218
        %v1220 = vmul.f32 %v1121, 1.442695
        %v1221 = vpow.pop %v1220
        %v1222 = vmul.f32 %v1122, 1.442695
        %v1223 = vpow.pop %v1222
        %v1224 = vmul.f32 %v1123, 1.442695
        %v1225 = vpow.pop %v1224
        %v1226 = vmul.f32 %v1124, 1.442695
        %v1227 = vpow.pop %v1226
        %v1228 = vmul.f32 %v1125, 1.442695
        %v1229 = vpow.pop %v1228
        %v1230 = vmul.f32 %v1126, 1.442695
        %v1231 = vpow.pop %v1230
        %v1232 = vmul.f32 %v1127, 1.442695
        %v1233 = vpow.pop %v1232
        %v1234 = vmul.f32 %v1128, 1.442695
        %v1235 = vpow.pop %v1234
        %v1236 = vmul.f32 %v1129, 1.442695
        %v1237 = vpow.pop %v1236
        %v1238 = vmul.f32 %v1130, 1.442695
        %v1239 = vpow.pop %v1238
        %v1240 = vmul.f32 %v1131, 1.442695
        %v1241 = vpow.pop %v1240
        %v1242 = vmul.f32 %v1132, 1.442695
        %v1243 = vpow.pop %v1242
        %v1244 = vmul.f32 %v1133, 1.442695
        %v1245 = vpow.pop %v1244
        %v1246 = vmul.f32 %v1134, 1.442695
        %v1247 = vpow.pop %v1246
        %v1248 = vmul.f32 %v1135, 1.442695
        %v1249 = vpow.pop %v1248
        %v1250 = vmul.f32 %v1136, 1.442695
        %v1251 = vpow.pop %v1250
        %v1252 = vmul.f32 %v1137, 1.442695
        %v1253 = vpow.pop %v1252
        %v1254 = vmul.f32 %v1138, 1.442695
        %v1255 = vpow.pop %v1254
        %v1256 = vmul.f32 %v1139, 1.442695
        %v1257 = vpow.pop %v1256
        %v1258 = vmul.f32 %v1140, 1.442695
        %v1259 = vpow.pop %v1258
        %v1260 = vmul.f32 %v1141, 1.442695
        %v1261 = vpow.pop %v1260
        %v1262 = vmul.f32 %v1142, 1.442695
        %v1263 = vpow.pop %v1262
        %v1264 = vmul.f32 %v1143, 1.442695
        %v1265 = vpow.pop %v1264
        %v1266 = vmul.f32 %v1144, 1.442695
        %v1267 = vpow.pop %v1266
        %v1268 = vmul.f32 %v1145, 1.442695
        %v1269 = vpow.pop %v1268
        %v1270 = vmul.f32 %v1146, 1.442695
        %v1271 = vpow.pop %v1270
        %v1272 = vmul.f32 %v1147, 1.442695
        %v1273 = vpow.pop %v1272
        %v1274 = vmul.f32 %v1148, 1.442695
        %v1275 = vpow.pop %v1274
        %v1276 = vmul.f32 %v1149, 1.442695
        %v1277 = vpow.pop %v1276
        %v1278 = vadd.f32 %v1151, %v1153
        %1279 = vadd.xlane.f32.xlu0 %v1278
        %v1280 = vpop.xlane.xlu0 %1279
        %v1281 = vadd.f32 %v1155, %v1157
        %1282 = vadd.xlane.f32.xlu0 %v1281
        %v1283 = vpop.xlane.xlu0 %1282
        %v1284 = vadd.f32 %v1159, %v1161
        %1285 = vadd.xlane.f32.xlu0 %v1284
        %v1286 = vpop.xlane.xlu0 %1285
        %v1287 = vadd.f32 %v1163, %v1165
        %1288 = vadd.xlane.f32.xlu0 %v1287
        %v1289 = vpop.xlane.xlu0 %1288
        %v1290 = vadd.f32 %v1167, %v1169
        %1291 = vadd.xlane.f32.xlu0 %v1290
        %v1292 = vpop.xlane.xlu0 %1291
        %v1293 = vadd.f32 %v1171, %v1173
        %1294 = vadd.xlane.f32.xlu0 %v1293
        %v1295 = vpop.xlane.xlu0 %1294
        %v1296 = vadd.f32 %v1175, %v1177
        %1297 = vadd.xlane.f32.xlu0 %v1296
        %v1298 = vpop.xlane.xlu0 %1297
        %v1299 = vadd.f32 %v1179, %v1181
        %1300 = vadd.xlane.f32.xlu0 %v1299
        %v1301 = vpop.xlane.xlu0 %1300
        %v1302 = vadd.f32 %v1183, %v1185
        %1303 = vadd.xlane.f32.xlu0 %v1302
        %v1304 = vpop.xlane.xlu0 %1303
        %v1305 = vadd.f32 %v1187, %v1189
        %1306 = vadd.xlane.f32.xlu0 %v1305
        %v1307 = vpop.xlane.xlu0 %1306
        %v1308 = vadd.f32 %v1191, %v1193
        %1309 = vadd.xlane.f32.xlu0 %v1308
        %v1310 = vpop.xlane.xlu0 %1309
        %v1311 = vadd.f32 %v1195, %v1197
        %1312 = vadd.xlane.f32.xlu0 %v1311
        %v1313 = vpop.xlane.xlu0 %1312
        %v1314 = vadd.f32 %v1199, %v1201
        %1315 = vadd.xlane.f32.xlu0 %v1314
        %v1316 = vpop.xlane.xlu0 %1315
        %v1317 = vadd.f32 %v1203, %v1205
        %1318 = vadd.xlane.f32.xlu0 %v1317
        %v1319 = vpop.xlane.xlu0 %1318
        %v1320 = vadd.f32 %v1207, %v1209
        %1321 = vadd.xlane.f32.xlu0 %v1320
        %v1322 = vpop.xlane.xlu0 %1321
        %v1323 = vadd.f32 %v1211, %v1213
        %1324 = vadd.xlane.f32.xlu0 %v1323
        %v1325 = vpop.xlane.xlu0 %1324
        %v1326 = vadd.f32 %v1215, %v1217
        %1327 = vadd.xlane.f32.xlu0 %v1326
        %v1328 = vpop.xlane.xlu0 %1327
        %v1329 = vadd.f32 %v1219, %v1221
        %1330 = vadd.xlane.f32.xlu0 %v1329
        %v1331 = vpop.xlane.xlu0 %1330
        %v1332 = vadd.f32 %v1223, %v1225
        %1333 = vadd.xlane.f32.xlu0 %v1332
        %v1334 = vpop.xlane.xlu0 %1333
        %v1335 = vadd.f32 %v1227, %v1229
        %1336 = vadd.xlane.f32.xlu0 %v1335
        %v1337 = vpop.xlane.xlu0 %1336
        %v1338 = vadd.f32 %v1231, %v1233
        %1339 = vadd.xlane.f32.xlu0 %v1338
        %v1340 = vpop.xlane.xlu0 %1339
        %v1341 = vadd.f32 %v1235, %v1237
        %1342 = vadd.xlane.f32.xlu0 %v1341
        %v1343 = vpop.xlane.xlu0 %1342
        %v1344 = vadd.f32 %v1239, %v1241
        %1345 = vadd.xlane.f32.xlu0 %v1344
        %v1346 = vpop.xlane.xlu0 %1345
        %v1347 = vadd.f32 %v1243, %v1245
        %1348 = vadd.xlane.f32.xlu0 %v1347
        %v1349 = vpop.xlane.xlu0 %1348
        %v1350 = vadd.f32 %v1247, %v1249
        %1351 = vadd.xlane.f32.xlu0 %v1350
        %v1352 = vpop.xlane.xlu0 %1351
        %v1353 = vadd.f32 %v1251, %v1253
        %1354 = vadd.xlane.f32.xlu0 %v1353
        %v1355 = vpop.xlane.xlu0 %1354
        %v1356 = vadd.f32 %v1255, %v1257
        %1357 = vadd.xlane.f32.xlu0 %v1356
        %v1358 = vpop.xlane.xlu0 %1357
        %v1359 = vadd.f32 %v1259, %v1261
        %1360 = vadd.xlane.f32.xlu0 %v1359
        %v1361 = vpop.xlane.xlu0 %1360
        %v1362 = vadd.f32 %v1263, %v1265
        %1363 = vadd.xlane.f32.xlu0 %v1362
        %v1364 = vpop.xlane.xlu0 %1363
        %v1365 = vadd.f32 %v1267, %v1269
        %1366 = vadd.xlane.f32.xlu0 %v1365
        %v1367 = vpop.xlane.xlu0 %1366
        %v1368 = vadd.f32 %v1271, %v1273
        %1369 = vadd.xlane.f32.xlu0 %v1368
        %v1370 = vpop.xlane.xlu0 %1369
        %v1371 = vadd.f32 %v1275, %v1277
        %1372 = vadd.xlane.f32.xlu0 %v1371
        %v1373 = vpop.xlane.xlu0 %1372
        %v1374 = vrcp.pop %v1280
        %v1375 = vrcp.pop %v1283
        %v1376 = vrcp.pop %v1286
        %v1377 = vrcp.pop %v1289
        %v1378 = vrcp.pop %v1292
        %v1379 = vrcp.pop %v1295
        %v1380 = vrcp.pop %v1298
        %v1381 = vrcp.pop %v1301
        %v1382 = vrcp.pop %v1304
        %v1383 = vrcp.pop %v1307
        %v1384 = vrcp.pop %v1310
        %v1385 = vrcp.pop %v1313
        %v1386 = vrcp.pop %v1316
        %v1387 = vrcp.pop %v1319
        %v1388 = vrcp.pop %v1322
        %v1389 = vrcp.pop %v1325
        %v1390 = vrcp.pop %v1328
        %v1391 = vrcp.pop %v1331
        %v1392 = vrcp.pop %v1334
        %v1393 = vrcp.pop %v1337
        %v1394 = vrcp.pop %v1340
        %v1395 = vrcp.pop %v1343
        %v1396 = vrcp.pop %v1346
        %v1397 = vrcp.pop %v1349
        %v1398 = vrcp.pop %v1352
        %v1399 = vrcp.pop %v1355
        %v1400 = vrcp.pop %v1358
        %v1401 = vrcp.pop %v1361
        %v1402 = vrcp.pop %v1364
        %v1403 = vrcp.pop %v1367
        %v1404 = vrcp.pop %v1370
        %v1405 = vrcp.pop %v1373
        %v1406 = vmul.f32 %v1151, %v1374
        %v1407 = vmul.f32 %v1153, %v1374
        %v1408 = vmul.f32 %v1155, %v1375
        %v1409 = vmul.f32 %v1157, %v1375
        %v1410 = vmul.f32 %v1159, %v1376
        %v1411 = vmul.f32 %v1161, %v1376
        %v1412 = vmul.f32 %v1163, %v1377
        %v1413 = vmul.f32 %v1165, %v1377
        %v1414 = vmul.f32 %v1167, %v1378
        %v1415 = vmul.f32 %v1169, %v1378
        %v1416 = vmul.f32 %v1171, %v1379
        %v1417 = vmul.f32 %v1173, %v1379
        %v1418 = vmul.f32 %v1175, %v1380
        %v1419 = vmul.f32 %v1177, %v1380
        %v1420 = vmul.f32 %v1179, %v1381
        %v1421 = vmul.f32 %v1181, %v1381
        %v1422 = vmul.f32 %v1183, %v1382
        %v1423 = vmul.f32 %v1185, %v1382
        %v1424 = vmul.f32 %v1187, %v1383
        %v1425 = vmul.f32 %v1189, %v1383
        %v1426 = vmul.f32 %v1191, %v1384
        %v1427 = vmul.f32 %v1193, %v1384
        %v1428 = vmul.f32 %v1195, %v1385
        %v1429 = vmul.f32 %v1197, %v1385
        %v1430 = vmul.f32 %v1199, %v1386
        %v1431 = vmul.f32 %v1201, %v1386
        %v1432 = vmul.f32 %v1203, %v1387
        %v1433 = vmul.f32 %v1205, %v1387
        %v1434 = vmul.f32 %v1207, %v1388
        %v1435 = vmul.f32 %v1209, %v1388
        %v1436 = vmul.f32 %v1211, %v1389
        %v1437 = vmul.f32 %v1213, %v1389
        %v1438 = vmul.f32 %v1215, %v1390
        %v1439 = vmul.f32 %v1217, %v1390
        %v1440 = vmul.f32 %v1219, %v1391
        %v1441 = vmul.f32 %v1221, %v1391
        %v1442 = vmul.f32 %v1223, %v1392
        %v1443 = vmul.f32 %v1225, %v1392
        %v1444 = vmul.f32 %v1227, %v1393
        %v1445 = vmul.f32 %v1229, %v1393
        %v1446 = vmul.f32 %v1231, %v1394
        %v1447 = vmul.f32 %v1233, %v1394
        %v1448 = vmul.f32 %v1235, %v1395
        %v1449 = vmul.f32 %v1237, %v1395
        %v1450 = vmul.f32 %v1239, %v1396
        %v1451 = vmul.f32 %v1241, %v1396
        %v1452 = vmul.f32 %v1243, %v1397
        %v1453 = vmul.f32 %v1245, %v1397
        %v1454 = vmul.f32 %v1247, %v1398
        %v1455 = vmul.f32 %v1249, %v1398
        %v1456 = vmul.f32 %v1251, %v1399
        %v1457 = vmul.f32 %v1253, %v1399
        %v1458 = vmul.f32 %v1255, %v1400
        %v1459 = vmul.f32 %v1257, %v1400
        %v1460 = vmul.f32 %v1259, %v1401
        %v1461 = vmul.f32 %v1261, %v1401
        %v1462 = vmul.f32 %v1263, %v1402
        %v1463 = vmul.f32 %v1265, %v1402
        %v1464 = vmul.f32 %v1267, %v1403
        %v1465 = vmul.f32 %v1269, %v1403
        %v1466 = vmul.f32 %v1271, %v1404
        %v1467 = vmul.f32 %v1273, %v1404
        %v1468 = vmul.f32 %v1275, %v1405
        %v1469 = vmul.f32 %v1277, %v1405
        %v1470 = vpack.c.bf16 %v1408, %v1406
        %v1471 = vpack.c.bf16 %v1409, %v1407
        %v1472 = vpack.c.bf16 %v1412, %v1410
        %v1473 = vpack.c.bf16 %v1413, %v1411
        %v1474 = vpack.c.bf16 %v1416, %v1414
        %v1475 = vpack.c.bf16 %v1417, %v1415
        %v1476 = vpack.c.bf16 %v1420, %v1418
        %v1477 = vpack.c.bf16 %v1421, %v1419
        %v1478 = vpack.c.bf16 %v1424, %v1422
        %v1479 = vpack.c.bf16 %v1425, %v1423
        %v1480 = vpack.c.bf16 %v1428, %v1426
        %v1481 = vpack.c.bf16 %v1429, %v1427
        %v1482 = vpack.c.bf16 %v1432, %v1430
        %v1483 = vpack.c.bf16 %v1433, %v1431
        %v1484 = vpack.c.bf16 %v1436, %v1434
        %v1485 = vpack.c.bf16 %v1437, %v1435
        %v1486 = vpack.c.bf16 %v1440, %v1438
        %v1487 = vpack.c.bf16 %v1441, %v1439
        %v1488 = vpack.c.bf16 %v1444, %v1442
        %v1489 = vpack.c.bf16 %v1445, %v1443
        %v1490 = vpack.c.bf16 %v1448, %v1446
        %v1491 = vpack.c.bf16 %v1449, %v1447
        %v1492 = vpack.c.bf16 %v1452, %v1450
        %v1493 = vpack.c.bf16 %v1453, %v1451
        %v1494 = vpack.c.bf16 %v1456, %v1454
        %v1495 = vpack.c.bf16 %v1457, %v1455
        %v1496 = vpack.c.bf16 %v1460, %v1458
        %v1497 = vpack.c.bf16 %v1461, %v1459
        %v1498 = vpack.c.bf16 %v1464, %v1462
        %v1499 = vpack.c.bf16 %v1465, %v1463
        %v1500 = vpack.c.bf16 %v1468, %v1466
        %v1501 = vpack.c.bf16 %v1469, %v1467
        %1502 = vmatprep.subr.bf16.mxu0 %v1471
        %1503 = vmatpush1.bf16.xpose.msra.mxu0 %v1470
        %1504 = vmatprep.subr.bf16.mxu0 %v1473
        %1505 = vmatpush1.bf16.xpose.msra.mxu0 %v1472
        %1506 = vmatprep.subr.bf16.mxu0 %v1475
        %1507 = vmatpush1.bf16.xpose.msra.mxu0 %v1474
        %1508 = vmatprep.subr.bf16.mxu0 %v1477
        %1509 = vmatpush1.bf16.xpose.msra.mxu0 %v1476
        %1510 = vmatprep.subr.bf16.mxu0 %v1479
        %1511 = vmatpush1.bf16.xpose.msra.mxu0 %v1478
        %1512 = vmatprep.subr.bf16.mxu0 %v1481
        %1513 = vmatpush1.bf16.xpose.msra.mxu0 %v1480
        %1514 = vmatprep.subr.bf16.mxu0 %v1483
        %1515 = vmatpush1.bf16.xpose.msra.mxu0 %v1482
        %1516 = vmatprep.subr.bf16.mxu0 %v1485
        %1517 = vmatpush1.bf16.xpose.msra.mxu0 %v1484
        %1518 = vmatprep.subr.bf16.mxu0 %v1487
        %1519 = vmatpush1.bf16.xpose.msra.mxu0 %v1486
        %1520 = vmatprep.subr.bf16.mxu0 %v1489
        %1521 = vmatpush1.bf16.xpose.msra.mxu0 %v1488
        %1522 = vmatprep.subr.bf16.mxu0 %v1491
        %1523 = vmatpush1.bf16.xpose.msra.mxu0 %v1490
        %1524 = vmatprep.subr.bf16.mxu0 %v1493
        %1525 = vmatpush1.bf16.xpose.msra.mxu0 %v1492
        %1526 = vmatprep.subr.bf16.mxu0 %v1495
        %1527 = vmatpush1.bf16.xpose.msra.mxu0 %v1494
        %1528 = vmatprep.subr.bf16.mxu0 %v1497
        %1529 = vmatpush1.bf16.xpose.msra.mxu0 %v1496
        %1530 = vmatprep.subr.bf16.mxu0 %v1499
        %1531 = vmatpush1.bf16.xpose.msra.mxu0 %v1498
        %1532 = vmatprep.subr.bf16.mxu0 %v1501
        %1533 = vmatpush1.bf16.xpose.msra.mxu0 %v1500
        %1534 = vmatprep.mubr.bf16.mxu0 %v708
        %1535 = vmatmul.mubr.bf16.gmra.mrb[0].mxu0 %v707
        %v1536 = vpop.f32.mrb[0].mxu0
        %v1537 = vadd.f32 0.0, %v1536
        %v1538 = vpop.f32.mrb[0].mxu0
        %v1539 = vadd.f32 0.0, %v1538
        %v1540 = vpop.f32.mrb[0].mxu0
        %v1541 = vpop.f32.mrb[0].mxu0
        %1542 = vdwg.mxu0
        %1543 = vst [vmem:[#allocation3] sm:$0xff] %v1537
        %1544 = vst [vmem:[#allocation3 + $0x8] sm:$0xff] %v1539
        %v1545 = vpack.c.bf16 %v665, %v665
        %v1546 = vpack.c.bf16 %v667, %v667
        %v1547 = vld [vmem:[#allocation2 + $0x10] sm:$0xff]
        %v1548 = vld [vmem:[#allocation2 + $0x18] sm:$0xff]
        %v1549 = vpack.c.bf16 %v1547, %v1547
        %v1550 = vpack.c.bf16 %v1548, %v1548
        %v1551 = vld [vmem:[#allocation2 + $0x90] sm:$0xff]
        %v1552 = vld [vmem:[#allocation2 + $0x98] sm:$0xff]
        %v1553 = vpack.c.bf16 %v1551, %v1551
        %v1554 = vpack.c.bf16 %v1552, %v1552
        %1555 = vxpose.xlu0.c.b16.start [1/8] %v1545, 128
        %1556 = vxpose.xlu0.c.b16.cont [2/8] 0, 128
        %1557 = vxpose.xlu0.c.b16.cont [3/8] 0, 128
        %1558 = vxpose.xlu0.c.b16.cont [4/8] 0, 128
        %1559 = vxpose.xlu0.c.b16.cont [5/8] 0, 128
        %1560 = vxpose.xlu0.c.b16.cont [6/8] 0, 128
        %1561 = vxpose.xlu0.c.b16.cont [7/8] 0, 128
        %1562 = vxpose.xlu0.c.b16.end [8/8] 0, 128
        %v1563 = vpop.trf.xlu0
        %v1564 = vpop.trf.xlu0
        %v1565 = vpop.trf.xlu0
        %v1566 = vpop.trf.xlu0
        %v1567 = vpop.trf.xlu0
        %v1568 = vpop.trf.xlu0
        %v1569 = vpop.trf.xlu0
        %v1570 = vpop.trf.xlu0
        %1571 = vxpose.xlu0.c.b16.start [1/8] %v1546, 128
        %1572 = vxpose.xlu0.c.b16.cont [2/8] 0, 128
        %1573 = vxpose.xlu0.c.b16.cont [3/8] 0, 128
        %1574 = vxpose.xlu0.c.b16.cont [4/8] 0, 128
        %1575 = vxpose.xlu0.c.b16.cont [5/8] 0, 128
        %1576 = vxpose.xlu0.c.b16.cont [6/8] 0, 128
        %1577 = vxpose.xlu0.c.b16.cont [7/8] 0, 128
        %1578 = vxpose.xlu0.c.b16.end [8/8] 0, 128
        %v1579 = vpop.trf.xlu0
        %v1580 = vpop.trf.xlu0
        %v1581 = vpop.trf.xlu0
        %v1582 = vpop.trf.xlu0
        %v1583 = vpop.trf.xlu0
        %v1584 = vpop.trf.xlu0
        %v1585 = vpop.trf.xlu0
        %v1586 = vpop.trf.xlu0
        %v1588 = vsel %vm741, %v1563, 0
        %v1591 = vsel %vm741, %v1564, 0
        %v1594 = vsel %vm741, %v1565, 0
        %v1597 = vsel %vm741, %v1566, 0
        %v1600 = vsel %vm741, %v1567, 0
        %v1603 = vsel %vm741, %v1568, 0
        %v1606 = vsel %vm741, %v1569, 0
        %v1609 = vsel %vm741, %v1570, 0
        %v1612 = vsel %vm741, %v1579, 0
        %v1615 = vsel %vm741, %v1580, 0
        %v1618 = vsel %vm741, %v1581, 0
        %v1621 = vsel %vm741, %v1582, 0
        %v1624 = vsel %vm741, %v1583, 0
        %v1627 = vsel %vm741, %v1584, 0
        %v1630 = vsel %vm741, %v1585, 0
        %v1633 = vsel %vm741, %v1586, 0
        %v1636 = vsel %vm790, %v1549, 0
        %v1639 = vsel %vm790, %v1550, 0
        %1641 = vmatprep.subr.bf16.mxu0 %v1639
        %1642 = vmatpush1.bf16.msra.mxu0 %v1636
        %1643 = vmatprep.subr.bf16.mxu0 0
        %1644 = vmatpush1.bf16.msra.mxu0 0
        %1645 = vmatprep.subr.bf16.mxu0 0
        %1646 = vmatpush1.bf16.msra.mxu0 0
        %1647 = vmatprep.subr.bf16.mxu0 0
        %1648 = vmatpush1.bf16.msra.mxu0 0
        %1649 = vmatprep.subr.bf16.mxu0 0
        %1650 = vmatpush1.bf16.msra.mxu0 0
        %1651 = vmatprep.subr.bf16.mxu0 0
        %1652 = vmatpush1.bf16.msra.mxu0 0
        %1653 = vmatprep.subr.bf16.mxu0 0
        %1654 = vmatpush1.bf16.msra.mxu0 0
        %1655 = vmatprep.subr.bf16.mxu0 0
        %1656 = vmatpush1.bf16.msra.mxu0 0
        %1657 = vmatprep.subr.bf16.mxu0 0
        %1658 = vmatpush1.bf16.msra.mxu0 0
        %1659 = vmatprep.subr.bf16.mxu0 0
        %1660 = vmatpush1.bf16.msra.mxu0 0
        %1661 = vmatprep.subr.bf16.mxu0 0
        %1662 = vmatpush1.bf16.msra.mxu0 0
        %1663 = vmatprep.subr.bf16.mxu0 0
        %1664 = vmatpush1.bf16.msra.mxu0 0
        %1665 = vmatprep.subr.bf16.mxu0 0
        %1666 = vmatpush1.bf16.msra.mxu0 0
        %1667 = vmatprep.subr.bf16.mxu0 0
        %1668 = vmatpush1.bf16.msra.mxu0 0
        %1669 = vmatprep.subr.bf16.mxu0 0
        %1670 = vmatpush1.bf16.msra.mxu0 0
        %1671 = vmatprep.subr.bf16.mxu0 0
        %1672 = vmatpush1.bf16.msra.mxu0 0
        %1673 = vmatprep.mubr.bf16.mxu0 0
        %1674 = vmatmul.mubr.bf16.gmra.mrb[0].mxu0 %v1588
        %v1675 = vpop.f32.mrb[0].mxu0
        %v1676 = vadd.f32 0.0, %v1675
        %v1677 = vpop.f32.mrb[0].mxu0
        %v1678 = vadd.f32 0.0, %v1677
        %v1679 = vpop.f32.mrb[0].mxu0
        %v1680 = vadd.f32 0.0, %v1679
        %v1681 = vpop.f32.mrb[0].mxu0
        %v1682 = vadd.f32 0.0, %v1681
        %1683 = vmatprep.mubr.bf16.mxu0 0
        %1684 = vmatmul.mubr.bf16.gmra.mrb[0].mxu0 %v1591
        %v1685 = vpop.f32.mrb[0].mxu0
        %v1686 = vadd.f32 0.0, %v1685
        %v1687 = vpop.f32.mrb[0].mxu0
        %v1688 = vadd.f32 0.0, %v1687
        %v1689 = vpop.f32.mrb[0].mxu0
        %v1690 = vadd.f32 0.0, %v1689
        %v1691 = vpop.f32.mrb[0].mxu0
        %v1692 = vadd.f32 0.0, %v1691
        %1693 = vmatprep.mubr.bf16.mxu0 0
        %1694 = vmatmul.mubr.bf16.gmra.mrb[0].mxu0 %v1594
        %v1695 = vpop.f32.mrb[0].mxu0
        %v1696 = vadd.f32 0.0, %v1695
        %v1697 = vpop.f32.mrb[0].mxu0
        %v1698 = vadd.f32 0.0, %v1697
        %v1699 = vpop.f32.mrb[0].mxu0
        %v1700 = vadd.f32 0.0, %v1699
        %v1701 = vpop.f32.mrb[0].mxu0
        %v1702 = vadd.f32 0.0, %v1701
        %1703 = vmatprep.mubr.bf16.mxu0 0
        %1704 = vmatmul.mubr.bf16.gmra.mrb[0].mxu0 %v1597
        %v1705 = vpop.f32.mrb[0].mxu0
        %v1706 = vadd.f32 0.0, %v1705
        %v1707 = vpop.f32.mrb[0].mxu0
        %v1708 = vadd.f32 0.0, %v1707
        %v1709 = vpop.f32.mrb[0].mxu0
        %v1710 = vadd.f32 0.0, %v1709
        %v1711 = vpop.f32.mrb[0].mxu0
        %v1712 = vadd.f32 0.0, %v1711
        %1713 = vmatprep.mubr.bf16.mxu0 0
        %1714 = vmatmul.mubr.bf16.gmra.mrb[0].mxu0 %v1600
        %v1715 = vpop.f32.mrb[0].mxu0
        %v1716 = vadd.f32 0.0, %v1715
        %v1717 = vpop.f32.mrb[0].mxu0
        %v1718 = vadd.f32 0.0, %v1717
        %v1719 = vpop.f32.mrb[0].mxu0
        %v1720 = vadd.f32 0.0, %v1719
        %v1721 = vpop.f32.mrb[0].mxu0
        %v1722 = vadd.f32 0.0, %v1721
        %1723 = vmatprep.mubr.bf16.mxu0 0
        %1724 = vmatmul.mubr.bf16.gmra.mrb[0].mxu0 %v1603
        %v1725 = vpop.f32.mrb[0].mxu0
        %v1726 = vadd.f32 0.0, %v1725
        %v1727 = vpop.f32.mrb[0].mxu0
        %v1728 = vadd.f32 0.0, %v1727
        %v1729 = vpop.f32.mrb[0].mxu0
        %v1730 = vadd.f32 0.0, %v1729
        %v1731 = vpop.f32.mrb[0].mxu0
        %v1732 = vadd.f32 0.0, %v1731
        %1733 = vmatprep.mubr.bf16.mxu0 0
        %1734 = vmatmul.mubr.bf16.gmra.mrb[0].mxu0 %v1606
        %v1735 = vpop.f32.mrb[0].mxu0
        %v1736 = vadd.f32 0.0, %v1735
        %v1737 = vpop.f32.mrb[0].mxu0
        %v1738 = vadd.f32 0.0, %v1737
        %v1739 = vpop.f32.mrb[0].mxu0
        %v1740 = vadd.f32 0.0, %v1739
        %v1741 = vpop.f32.mrb[0].mxu0
        %v1742 = vadd.f32 0.0, %v1741
        %1743 = vmatprep.mubr.bf16.mxu0 0
        %1744 = vmatmul.mubr.bf16.gmra.mrb[0].mxu0 %v1609
        %v1745 = vpop.f32.mrb[0].mxu0
        %v1746 = vadd.f32 0.0, %v1745
        %v1747 = vpop.f32.mrb[0].mxu0
        %v1748 = vadd.f32 0.0, %v1747
        %v1749 = vpop.f32.mrb[0].mxu0
        %v1750 = vadd.f32 0.0, %v1749
        %v1751 = vpop.f32.mrb[0].mxu0
        %v1752 = vadd.f32 0.0, %v1751
        %1753 = vmatprep.mubr.bf16.mxu0 0
        %1754 = vmatmul.mubr.bf16.gmra.mrb[0].mxu0 %v1612
        %v1755 = vpop.f32.mrb[0].mxu0
        %v1756 = vadd.f32 0.0, %v1755
        %v1757 = vpop.f32.mrb[0].mxu0
        %v1758 = vadd.f32 0.0, %v1757
        %v1759 = vpop.f32.mrb[0].mxu0
        %v1760 = vadd.f32 0.0, %v1759
        %v1761 = vpop.f32.mrb[0].mxu0
        %v1762 = vadd.f32 0.0, %v1761
        %1763 = vmatprep.mubr.bf16.mxu0 0
        %1764 = vmatmul.mubr.bf16.gmra.mrb[0].mxu0 %v1615
        %v1765 = vpop.f32.mrb[0].mxu0
        %v1766 = vadd.f32 0.0, %v1765
        %v1767 = vpop.f32.mrb[0].mxu0
        %v1768 = vadd.f32 0.0, %v1767
        %v1769 = vpop.f32.mrb[0].mxu0
        %v1770 = vadd.f32 0.0, %v1769
        %v1771 = vpop.f32.mrb[0].mxu0
        %v1772 = vadd.f32 0.0, %v1771
        %1773 = vmatprep.mubr.bf16.mxu0 0
        %1774 = vmatmul.mubr.bf16.gmra.mrb[0].mxu0 %v1618
        %v1775 = vpop.f32.mrb[0].mxu0
        %v1776 = vadd.f32 0.0, %v1775
        %v1777 = vpop.f32.mrb[0].mxu0
        %v1778 = vadd.f32 0.0, %v1777
        %v1779 = vpop.f32.mrb[0].mxu0
        %v1780 = vadd.f32 0.0, %v1779
        %v1781 = vpop.f32.mrb[0].mxu0
        %v1782 = vadd.f32 0.0, %v1781
        %1783 = vmatprep.mubr.bf16.mxu0 0
        %1784 = vmatmul.mubr.bf16.gmra.mrb[0].mxu0 %v1621
        %v1785 = vpop.f32.mrb[0].mxu0
        %v1786 = vadd.f32 0.0, %v1785
        %v1787 = vpop.f32.mrb[0].mxu0
        %v1788 = vadd.f32 0.0, %v1787
        %v1789 = vpop.f32.mrb[0].mxu0
        %v1790 = vadd.f32 0.0, %v1789
        %v1791 = vpop.f32.mrb[0].mxu0
        %v1792 = vadd.f32 0.0, %v1791
        %1793 = vmatprep.mubr.bf16.mxu0 0
        %1794 = vmatmul.mubr.bf16.gmra.mrb[0].mxu0 %v1624
        %v1795 = vpop.f32.mrb[0].mxu0
        %v1796 = vadd.f32 0.0, %v1795
        %v1797 = vpop.f32.mrb[0].mxu0
        %v1798 = vadd.f32 0.0, %v1797
        %v1799 = vpop.f32.mrb[0].mxu0
        %v1800 = vadd.f32 0.0, %v1799
        %v1801 = vpop.f32.mrb[0].mxu0
        %v1802 = vadd.f32 0.0, %v1801
        %1803 = vmatprep.mubr.bf16.mxu0 0
        %1804 = vmatmul.mubr.bf16.gmra.mrb[0].mxu0 %v1627
        %v1805 = vpop.f32.mrb[0].mxu0
        %v1806 = vadd.f32 0.0, %v1805
        %v1807 = vpop.f32.mrb[0].mxu0
        %v1808 = vadd.f32 0.0, %v1807
        %v1809 = vpop.f32.mrb[0].mxu0
        %v1810 = vadd.f32 0.0, %v1809
        %v1811 = vpop.f32.mrb[0].mxu0
        %v1812 = vadd.f32 0.0, %v1811
        %1813 = vmatprep.mubr.bf16.mxu0 0
        %1814 = vmatmul.mubr.bf16.gmra.mrb[0].mxu0 %v1630
        %v1815 = vpop.f32.mrb[0].mxu0
        %v1816 = vadd.f32 0.0, %v1815
        %v1817 = vpop.f32.mrb[0].mxu0
        %v1818 = vadd.f32 0.0, %v1817
        %v1819 = vpop.f32.mrb[0].mxu0
        %v1820 = vadd.f32 0.0, %v1819
        %v1821 = vpop.f32.mrb[0].mxu0
        %v1822 = vadd.f32 0.0, %v1821
        %1823 = vmatprep.mubr.bf16.mxu0 0
        %1824 = vmatmul.mubr.bf16.gmra.mrb[0].mxu0 %v1633
        %v1825 = vpop.f32.mrb[0].mxu0
        %v1826 = vadd.f32 0.0, %v1825
        %v1827 = vpop.f32.mrb[0].mxu0
        %v1828 = vadd.f32 0.0, %v1827
        %v1829 = vpop.f32.mrb[0].mxu0
        %v1830 = vadd.f32 0.0, %v1829
        %v1831 = vpop.f32.mrb[0].mxu0
        %v1832 = vadd.f32 0.0, %v1831
        %1833 = vdwg.mxu0
        %v1834 = vmax.f32 %v1676, %v1678
        %1835 = vmax.xlane.f32.xlu0 %v1834
        %v1836 = vpop.xlane.xlu0 %1835
        %v1837 = vmax.f32 %v1680, %v1682
        %1838 = vmax.xlane.f32.xlu0 %v1837
        %v1839 = vpop.xlane.xlu0 %1838
        %v1840 = vmax.f32 %v1686, %v1688
        %1841 = vmax.xlane.f32.xlu0 %v1840
        %v1842 = vpop.xlane.xlu0 %1841
        %v1843 = vmax.f32 %v1690, %v1692
        %1844 = vmax.xlane.f32.xlu0 %v1843
        %v1845 = vpop.xlane.xlu0 %1844
        %v1846 = vmax.f32 %v1696, %v1698
        %1847 = vmax.xlane.f32.xlu0 %v1846
        %v1848 = vpop.xlane.xlu0 %1847
        %v1849 = vmax.f32 %v1700, %v1702
        %1850 = vmax.xlane.f32.xlu0 %v1849
        %v1851 = vpop.xlane.xlu0 %1850
        %v1852 = vmax.f32 %v1706, %v1708
        %1853 = vmax.xlane.f32.xlu0 %v1852
        %v1854 = vpop.xlane.xlu0 %1853
        %v1855 = vmax.f32 %v1710, %v1712
        %1856 = vmax.xlane.f32.xlu0 %v1855
        %v1857 = vpop.xlane.xlu0 %1856
        %v1858 = vmax.f32 %v1716, %v1718
        %1859 = vmax.xlane.f32.xlu0 %v1858
        %v1860 = vpop.xlane.xlu0 %1859
        %v1861 = vmax.f32 %v1720, %v1722
        %1862 = vmax.xlane.f32.xlu0 %v1861
        %v1863 = vpop.xlane.xlu0 %1862
        %v1864 = vmax.f32 %v1726, %v1728
        %1865 = vmax.xlane.f32.xlu0 %v1864
        %v1866 = vpop.xlane.xlu0 %1865
        %v1867 = vmax.f32 %v1730, %v1732
        %1868 = vmax.xlane.f32.xlu0 %v1867
        %v1869 = vpop.xlane.xlu0 %1868
        %v1870 = vmax.f32 %v1736, %v1738
        %1871 = vmax.xlane.f32.xlu0 %v1870
        %v1872 = vpop.xlane.xlu0 %1871
        %v1873 = vmax.f32 %v1740, %v1742
        %1874 = vmax.xlane.f32.xlu0 %v1873
        %v1875 = vpop.xlane.xlu0 %1874
        %v1876 = vmax.f32 %v1746, %v1748
        %1877 = vmax.xlane.f32.xlu0 %v1876
        %v1878 = vpop.xlane.xlu0 %1877
        %v1879 = vmax.f32 %v1750, %v1752
        %1880 = vmax.xlane.f32.xlu0 %v1879
        %v1881 = vpop.xlane.xlu0 %1880
        %v1882 = vmax.f32 %v1756, %v1758
        %1883 = vmax.xlane.f32.xlu0 %v1882
        %v1884 = vpop.xlane.xlu0 %1883
        %v1885 = vmax.f32 %v1760, %v1762
        %1886 = vmax.xlane.f32.xlu0 %v1885
        %v1887 = vpop.xlane.xlu0 %1886
        %v1888 = vmax.f32 %v1766, %v1768
        %1889 = vmax.xlane.f32.xlu0 %v1888
        %v1890 = vpop.xlane.xlu0 %1889
        %v1891 = vmax.f32 %v1770, %v1772
        %1892 = vmax.xlane.f32.xlu0 %v1891
        %v1893 = vpop.xlane.xlu0 %1892
        %v1894 = vmax.f32 %v1776, %v1778
        %1895 = vmax.xlane.f32.xlu0 %v1894
        %v1896 = vpop.xlane.xlu0 %1895
        %v1897 = vmax.f32 %v1780, %v1782
        %1898 = vmax.xlane.f32.xlu0 %v1897
        %v1899 = vpop.xlane.xlu0 %1898
        %v1900 = vmax.f32 %v1786, %v1788
        %1901 = vmax.xlane.f32.xlu0 %v1900
        %v1902 = vpop.xlane.xlu0 %1901
        %v1903 = vmax.f32 %v1790, %v1792
        %1904 = vmax.xlane.f32.xlu0 %v1903
        %v1905 = vpop.xlane.xlu0 %1904
        %v1906 = vmax.f32 %v1796, %v1798
        %1907 = vmax.xlane.f32.xlu0 %v1906
        %v1908 = vpop.xlane.xlu0 %1907
        %v1909 = vmax.f32 %v1800, %v1802
        %1910 = vmax.xlane.f32.xlu0 %v1909
        %v1911 = vpop.xlane.xlu0 %1910
        %v1912 = vmax.f32 %v1806, %v1808
        %1913 = vmax.xlane.f32.xlu0 %v1912
        %v1914 = vpop.xlane.xlu0 %1913
        %v1915 = vmax.f32 %v1810, %v1812
        %1916 = vmax.xlane.f32.xlu0 %v1915
        %v1917 = vpop.xlane.xlu0 %1916
        %v1918 = vmax.f32 %v1816, %v1818
        %1919 = vmax.xlane.f32.xlu0 %v1918
        %v1920 = vpop.xlane.xlu0 %1919
        %v1921 = vmax.f32 %v1820, %v1822
        %1922 = vmax.xlane.f32.xlu0 %v1921
        %v1923 = vpop.xlane.xlu0 %1922
        %v1924 = vmax.f32 %v1826, %v1828
        %1925 = vmax.xlane.f32.xlu0 %v1924
        %v1926 = vpop.xlane.xlu0 %1925
        %v1927 = vmax.f32 %v1830, %v1832
        %1928 = vmax.xlane.f32.xlu0 %v1927
        %v1929 = vpop.xlane.xlu0 %1928
        %v1930 = vsub.f32 %v1676, %v1836
        %v1931 = vsub.f32 %v1678, %v1836
        %v1932 = vsub.f32 %v1680, %v1839
        %v1933 = vsub.f32 %v1682, %v1839
        %v1934 = vsub.f32 %v1686, %v1842
        %v1935 = vsub.f32 %v1688, %v1842
        %v1936 = vsub.f32 %v1690, %v1845
        %v1937 = vsub.f32 %v1692, %v1845
        %v1938 = vsub.f32 %v1696, %v1848
        %v1939 = vsub.f32 %v1698, %v1848
        %v1940 = vsub.f32 %v1700, %v1851
        %v1941 = vsub.f32 %v1702, %v1851
        %v1942 = vsub.f32 %v1706, %v1854
        %v1943 = vsub.f32 %v1708, %v1854
        %v1944 = vsub.f32 %v1710, %v1857
        %v1945 = vsub.f32 %v1712, %v1857
        %v1946 = vsub.f32 %v1716, %v1860
        %v1947 = vsub.f32 %v1718, %v1860
        %v1948 = vsub.f32 %v1720, %v1863
        %v1949 = vsub.f32 %v1722, %v1863
        %v1950 = vsub.f32 %v1726, %v1866
        %v1951 = vsub.f32 %v1728, %v1866
        %v1952 = vsub.f32 %v1730, %v1869
        %v1953 = vsub.f32 %v1732, %v1869
        %v1954 = vsub.f32 %v1736, %v1872
        %v1955 = vsub.f32 %v1738, %v1872
        %v1956 = vsub.f32 %v1740, %v1875
        %v1957 = vsub.f32 %v1742, %v1875
        %v1958 = vsub.f32 %v1746, %v1878
        %v1959 = vsub.f32 %v1748, %v1878
        %v1960 = vsub.f32 %v1750, %v1881
        %v1961 = vsub.f32 %v1752, %v1881
        %v1962 = vsub.f32 %v1756, %v1884
        %v1963 = vsub.f32 %v1758, %v1884
        %v1964 = vsub.f32 %v1760, %v1887
        %v1965 = vsub.f32 %v1762, %v1887
        %v1966 = vsub.f32 %v1766, %v1890
        %v1967 = vsub.f32 %v1768, %v1890
        %v1968 = vsub.f32 %v1770, %v1893
        %v1969 = vsub.f32 %v1772, %v1893
        %v1970 = vsub.f32 %v1776, %v1896
        %v1971 = vsub.f32 %v1778, %v1896
        %v1972 = vsub.f32 %v1780, %v1899
        %v1973 = vsub.f32 %v1782, %v1899
        %v1974 = vsub.f32 %v1786, %v1902
        %v1975 = vsub.f32 %v1788, %v1902
        %v1976 = vsub.f32 %v1790, %v1905
        %v1977 = vsub.f32 %v1792, %v1905
        %v1978 = vsub.f32 %v1796, %v1908
        %v1979 = vsub.f32 %v1798, %v1908
        %v1980 = vsub.f32 %v1800, %v1911
        %v1981 = vsub.f32 %v1802, %v1911
        %v1982 = vsub.f32 %v1806, %v1914
        %v1983 = vsub.f32 %v1808, %v1914
        %v1984 = vsub.f32 %v1810, %v1917
        %v1985 = vsub.f32 %v1812, %v1917
        %v1986 = vsub.f32 %v1816, %v1920
        %v1987 = vsub.f32 %v1818, %v1920
        %v1988 = vsub.f32 %v1820, %v1923
        %v1989 = vsub.f32 %v1822, %v1923
        %v1990 = vsub.f32 %v1826, %v1926
        %v1991 = vsub.f32 %v1828, %v1926
        %v1992 = vsub.f32 %v1830, %v1929
        %v1993 = vsub.f32 %v1832, %v1929
        %v1994 = vmul.f32 %v1930, 1.442695
        %v1995 = vpow.pop %v1994
        %v1996 = vmul.f32 %v1931, 1.442695
        %v1997 = vpow.pop %v1996
        %v1998 = vmul.f32 %v1932, 1.442695
        %v1999 = vpow.pop %v1998
        %v2000 = vmul.f32 %v1933, 1.442695
        %v2001 = vpow.pop %v2000
        %v2002 = vmul.f32 %v1934, 1.442695
        %v2003 = vpow.pop %v2002
        %v2004 = vmul.f32 %v1935, 1.442695
        %v2005 = vpow.pop %v2004
        %v2006 = vmul.f32 %v1936, 1.442695
        %v2007 = vpow.pop %v2006
        %v2008 = vmul.f32 %v1937, 1.442695
        %v2009 = vpow.pop %v2008
        %v2010 = vmul.f32 %v1938, 1.442695
        %v2011 = vpow.pop %v2010
        %v2012 = vmul.f32 %v1939, 1.442695
        %v2013 = vpow.pop %v2012
        %v2014 = vmul.f32 %v1940, 1.442695
        %v2015 = vpow.pop %v2014
        %v2016 = vmul.f32 %v1941, 1.442695
        %v2017 = vpow.pop %v2016
        %v2018 = vmul.f32 %v1942, 1.442695
        %v2019 = vpow.pop %v2018
        %v2020 = vmul.f32 %v1943, 1.442695
        %v2021 = vpow.pop %v2020
        %v2022 = vmul.f32 %v1944, 1.442695
        %v2023 = vpow.pop %v2022
        %v2024 = vmul.f32 %v1945, 1.442695
        %v2025 = vpow.pop %v2024
        %v2026 = vmul.f32 %v1946, 1.442695
        %v2027 = vpow.pop %v2026
        %v2028 = vmul.f32 %v1947, 1.442695
        %v2029 = vpow.pop %v2028
        %v2030 = vmul.f32 %v1948, 1.442695
        %v2031 = vpow.pop %v2030
        %v2032 = vmul.f32 %v1949, 1.442695
        %v2033 = vpow.pop %v2032
        %v2034 = vmul.f32 %v1950, 1.442695
        %v2035 = vpow.pop %v2034
        %v2036 = vmul.f32 %v1951, 1.442695
        %v2037 = vpow.pop %v2036
        %v2038 = vmul.f32 %v1952, 1.442695
        %v2039 = vpow.pop %v2038
        %v2040 = vmul.f32 %v1953, 1.442695
        %v2041 = vpow.pop %v2040
        %v2042 = vmul.f32 %v1954, 1.442695
        %v2043 = vpow.pop %v2042
        %v2044 = vmul.f32 %v1955, 1.442695
        %v2045 = vpow.pop %v2044
        %v2046 = vmul.f32 %v1956, 1.442695
        %v2047 = vpow.pop %v2046
        %v2048 = vmul.f32 %v1957, 1.442695
        %v2049 = vpow.pop %v2048
        %v2050 = vmul.f32 %v1958, 1.442695
        %v2051 = vpow.pop %v2050
        %v2052 = vmul.f32 %v1959, 1.442695
        %v2053 = vpow.pop %v2052
        %v2054 = vmul.f32 %v1960, 1.442695
        %v2055 = vpow.pop %v2054
        %v2056 = vmul.f32 %v1961, 1.442695
        %v2057 = vpow.pop %v2056
        %v2058 = vmul.f32 %v1962, 1.442695
        %v2059 = vpow.pop %v2058
        %v2060 = vmul.f32 %v1963, 1.442695
        %v2061 = vpow.pop %v2060
        %v2062 = vmul.f32 %v1964, 1.442695
        %v2063 = vpow.pop %v2062
        %v2064 = vmul.f32 %v1965, 1.442695
        %v2065 = vpow.pop %v2064
        %v2066 = vmul.f32 %v1966, 1.442695
        %v2067 = vpow.pop %v2066
        %v2068 = vmul.f32 %v1967, 1.442695
        %v2069 = vpow.pop %v2068
        %v2070 = vmul.f32 %v1968, 1.442695
        %v2071 = vpow.pop %v2070
        %v2072 = vmul.f32 %v1969, 1.442695
        %v2073 = vpow.pop %v2072
        %v2074 = vmul.f32 %v1970, 1.442695
        %v2075 = vpow.pop %v2074
        %v2076 = vmul.f32 %v1971, 1.442695
        %v2077 = vpow.pop %v2076
        %v2078 = vmul.f32 %v1972, 1.442695
        %v2079 = vpow.pop %v2078
        %v2080 = vmul.f32 %v1973, 1.442695
        %v2081 = vpow.pop %v2080
        %v2082 = vmul.f32 %v1974, 1.442695
        %v2083 = vpow.pop %v2082
        %v2084 = vmul.f32 %v1975, 1.442695
        %v2085 = vpow.pop %v2084
        %v2086 = vmul.f32 %v1976, 1.442695
        %v2087 = vpow.pop %v2086
        %v2088 = vmul.f32 %v1977, 1.442695
        %v2089 = vpow.pop %v2088
        %v2090 = vmul.f32 %v1978, 1.442695
        %v2091 = vpow.pop %v2090
        %v2092 = vmul.f32 %v1979, 1.442695
        %v2093 = vpow.pop %v2092
        %v2094 = vmul.f32 %v1980, 1.442695
        %v2095 = vpow.pop %v2094
        %v2096 = vmul.f32 %v1981, 1.442695
        %v2097 = vpow.pop %v2096
        %v2098 = vmul.f32 %v1982, 1.442695
        %v2099 = vpow.pop %v2098
        %v2100 = vmul.f32 %v1983, 1.442695
        %v2101 = vpow.pop %v2100
        %v2102 = vmul.f32 %v1984, 1.442695
        %v2103 = vpow.pop %v2102
        %v2104 = vmul.f32 %v1985, 1.442695
        %v2105 = vpow.pop %v2104
        %v2106 = vmul.f32 %v1986, 1.442695
        %v2107 = vpow.pop %v2106
        %v2108 = vmul.f32 %v1987, 1.442695
        %v2109 = vpow.pop %v2108
        %v2110 = vmul.f32 %v1988, 1.442695
        %v2111 = vpow.pop %v2110
        %v2112 = vmul.f32 %v1989, 1.442695
        %v2113 = vpow.pop %v2112
        %v2114 = vmul.f32 %v1990, 1.442695
        %v2115 = vpow.pop %v2114
        %v2116 = vmul.f32 %v1991, 1.442695
        %v2117 = vpow.pop %v2116
        %v2118 = vmul.f32 %v1992, 1.442695
        %v2119 = vpow.pop %v2118
        %v2120 = vmul.f32 %v1993, 1.442695
        %v2121 = vpow.pop %v2120
        %v2122 = vadd.f32 %v1995, %v1997
        %2123 = vadd.xlane.f32.xlu0 %v2122
        %v2124 = vpop.xlane.xlu0 %2123
        %v2125 = vadd.f32 %v1999, %v2001
        %2126 = vadd.xlane.f32.xlu0 %v2125
        %v2127 = vpop.xlane.xlu0 %2126
        %v2128 = vadd.f32 %v2003, %v2005
        %2129 = vadd.xlane.f32.xlu0 %v2128
        %v2130 = vpop.xlane.xlu0 %2129
        %v2131 = vadd.f32 %v2007, %v2009
        %2132 = vadd.xlane.f32.xlu0 %v2131
        %v2133 = vpop.xlane.xlu0 %2132
        %v2134 = vadd.f32 %v2011, %v2013
        %2135 = vadd.xlane.f32.xlu0 %v2134
        %v2136 = vpop.xlane.xlu0 %2135
        %v2137 = vadd.f32 %v2015, %v2017
        %2138 = vadd.xlane.f32.xlu0 %v2137
        %v2139 = vpop.xlane.xlu0 %2138
        %v2140 = vadd.f32 %v2019, %v2021
        %2141 = vadd.xlane.f32.xlu0 %v2140
        %v2142 = vpop.xlane.xlu0 %2141
        %v2143 = vadd.f32 %v2023, %v2025
        %2144 = vadd.xlane.f32.xlu0 %v2143
        %v2145 = vpop.xlane.xlu0 %2144
        %v2146 = vadd.f32 %v2027, %v2029
        %2147 = vadd.xlane.f32.xlu0 %v2146
        %v2148 = vpop.xlane.xlu0 %2147
        %v2149 = vadd.f32 %v2031, %v2033
        %2150 = vadd.xlane.f32.xlu0 %v2149
        %v2151 = vpop.xlane.xlu0 %2150
        %v2152 = vadd.f32 %v2035, %v2037
        %2153 = vadd.xlane.f32.xlu0 %v2152
        %v2154 = vpop.xlane.xlu0 %2153
        %v2155 = vadd.f32 %v2039, %v2041
        %2156 = vadd.xlane.f32.xlu0 %v2155
        %v2157 = vpop.xlane.xlu0 %2156
        %v2158 = vadd.f32 %v2043, %v2045
        %2159 = vadd.xlane.f32.xlu0 %v2158
        %v2160 = vpop.xlane.xlu0 %2159
        %v2161 = vadd.f32 %v2047, %v2049
        %2162 = vadd.xlane.f32.xlu0 %v2161
        %v2163 = vpop.xlane.xlu0 %2162
        %v2164 = vadd.f32 %v2051, %v2053
        %2165 = vadd.xlane.f32.xlu0 %v2164
        %v2166 = vpop.xlane.xlu0 %2165
        %v2167 = vadd.f32 %v2055, %v2057
        %2168 = vadd.xlane.f32.xlu0 %v2167
        %v2169 = vpop.xlane.xlu0 %2168
        %v2170 = vadd.f32 %v2059, %v2061
        %2171 = vadd.xlane.f32.xlu0 %v2170
        %v2172 = vpop.xlane.xlu0 %2171
        %v2173 = vadd.f32 %v2063, %v2065
        %2174 = vadd.xlane.f32.xlu0 %v2173
        %v2175 = vpop.xlane.xlu0 %2174
        %v2176 = vadd.f32 %v2067, %v2069
        %2177 = vadd.xlane.f32.xlu0 %v2176
        %v2178 = vpop.xlane.xlu0 %2177
        %v2179 = vadd.f32 %v2071, %v2073
        %2180 = vadd.xlane.f32.xlu0 %v2179
        %v2181 = vpop.xlane.xlu0 %2180
        %v2182 = vadd.f32 %v2075, %v2077
        %2183 = vadd.xlane.f32.xlu0 %v2182
        %v2184 = vpop.xlane.xlu0 %2183
        %v2185 = vadd.f32 %v2079, %v2081
        %2186 = vadd.xlane.f32.xlu0 %v2185
        %v2187 = vpop.xlane.xlu0 %2186
        %v2188 = vadd.f32 %v2083, %v2085
        %2189 = vadd.xlane.f32.xlu0 %v2188
        %v2190 = vpop.xlane.xlu0 %2189
        %v2191 = vadd.f32 %v2087, %v2089
        %2192 = vadd.xlane.f32.xlu0 %v2191
        %v2193 = vpop.xlane.xlu0 %2192
        %v2194 = vadd.f32 %v2091, %v2093
        %2195 = vadd.xlane.f32.xlu0 %v2194
        %v2196 = vpop.xlane.xlu0 %2195
        %v2197 = vadd.f32 %v2095, %v2097
        %2198 = vadd.xlane.f32.xlu0 %v2197
        %v2199 = vpop.xlane.xlu0 %2198
        %v2200 = vadd.f32 %v2099, %v2101
        %2201 = vadd.xlane.f32.xlu0 %v2200
        %v2202 = vpop.xlane.xlu0 %2201
        %v2203 = vadd.f32 %v2103, %v2105
        %2204 = vadd.xlane.f32.xlu0 %v2203
        %v2205 = vpop.xlane.xlu0 %2204
        %v2206 = vadd.f32 %v2107, %v2109
        %2207 = vadd.xlane.f32.xlu0 %v2206
        %v2208 = vpop.xlane.xlu0 %2207
        %v2209 = vadd.f32 %v2111, %v2113
        %2210 = vadd.xlane.f32.xlu0 %v2209
        %v2211 = vpop.xlane.xlu0 %2210
        %v2212 = vadd.f32 %v2115, %v2117
        %2213 = vadd.xlane.f32.xlu0 %v2212
        %v2214 = vpop.xlane.xlu0 %2213
        %v2215 = vadd.f32 %v2119, %v2121
        %2216 = vadd.xlane.f32.xlu0 %v2215
        %v2217 = vpop.xlane.xlu0 %2216
        %v2218 = vrcp.pop %v2124
        %v2219 = vrcp.pop %v2127
        %v2220 = vrcp.pop %v2130
        %v2221 = vrcp.pop %v2133
        %v2222 = vrcp.pop %v2136
        %v2223 = vrcp.pop %v2139
        %v2224 = vrcp.pop %v2142
        %v2225 = vrcp.pop %v2145
        %v2226 = vrcp.pop %v2148
        %v2227 = vrcp.pop %v2151
        %v2228 = vrcp.pop %v2154
        %v2229 = vrcp.pop %v2157
        %v2230 = vrcp.pop %v2160
        %v2231 = vrcp.pop %v2163
        %v2232 = vrcp.pop %v2166
        %v2233 = vrcp.pop %v2169
        %v2234 = vrcp.pop %v2172
        %v2235 = vrcp.pop %v2175
        %v2236 = vrcp.pop %v2178
        %v2237 = vrcp.pop %v2181
        %v2238 = vrcp.pop %v2184
        %v2239 = vrcp.pop %v2187
        %v2240 = vrcp.pop %v2190
        %v2241 = vrcp.pop %v2193
        %v2242 = vrcp.pop %v2196
        %v2243 = vrcp.pop %v2199
        %v2244 = vrcp.pop %v2202
        %v2245 = vrcp.pop %v2205
        %v2246 = vrcp.pop %v2208
        %v2247 = vrcp.pop %v2211
        %v2248 = vrcp.pop %v2214
        %v2249 = vrcp.pop %v2217
        %v2250 = vmul.f32 %v1995, %v2218
        %v2251 = vmul.f32 %v1997, %v2218
        %v2252 = vmul.f32 %v1999, %v2219
        %v2253 = vmul.f32 %v2001, %v2219
        %v2254 = vmul.f32 %v2003, %v2220
        %v2255 = vmul.f32 %v2005, %v2220
        %v2256 = vmul.f32 %v2007, %v2221
        %v2257 = vmul.f32 %v2009, %v2221
        %v2258 = vmul.f32 %v2011, %v2222
        %v2259 = vmul.f32 %v2013, %v2222
        %v2260 = vmul.f32 %v2015, %v2223
        %v2261 = vmul.f32 %v2017, %v2223
        %v2262 = vmul.f32 %v2019, %v2224
        %v2263 = vmul.f32 %v2021, %v2224
        %v2264 = vmul.f32 %v2023, %v2225
        %v2265 = vmul.f32 %v2025, %v2225
        %v2266 = vmul.f32 %v2027, %v2226
        %v2267 = vmul.f32 %v2029, %v2226
        %v2268 = vmul.f32 %v2031, %v2227
        %v2269 = vmul.f32 %v2033, %v2227
        %v2270 = vmul.f32 %v2035, %v2228
        %v2271 = vmul.f32 %v2037, %v2228
        %v2272 = vmul.f32 %v2039, %v2229
        %v2273 = vmul.f32 %v2041, %v2229
        %v2274 = vmul.f32 %v2043, %v2230
        %v2275 = vmul.f32 %v2045, %v2230
        %v2276 = vmul.f32 %v2047, %v2231
        %v2277 = vmul.f32 %v2049, %v2231
        %v2278 = vmul.f32 %v2051, %v2232
        %v2279 = vmul.f32 %v2053, %v2232
        %v2280 = vmul.f32 %v2055, %v2233
        %v2281 = vmul.f32 %v2057, %v2233
        %v2282 = vmul.f32 %v2059, %v2234
        %v2283 = vmul.f32 %v2061, %v2234
        %v2284 = vmul.f32 %v2063, %v2235
        %v2285 = vmul.f32 %v2065, %v2235
        %v2286 = vmul.f32 %v2067, %v2236
        %v2287 = vmul.f32 %v2069, %v2236
        %v2288 = vmul.f32 %v2071, %v2237
        %v2289 = vmul.f32 %v2073, %v2237
        %v2290 = vmul.f32 %v2075, %v2238
        %v2291 = vmul.f32 %v2077, %v2238
        %v2292 = vmul.f32 %v2079, %v2239
        %v2293 = vmul.f32 %v2081, %v2239
        %v2294 = vmul.f32 %v2083, %v2240
        %v2295 = vmul.f32 %v2085, %v2240
        %v2296 = vmul.f32 %v2087, %v2241
        %v2297 = vmul.f32 %v2089, %v2241
        %v2298 = vmul.f32 %v2091, %v2242
        %v2299 = vmul.f32 %v2093, %v2242
        %v2300 = vmul.f32 %v2095, %v2243
        %v2301 = vmul.f32 %v2097, %v2243
        %v2302 = vmul.f32 %v2099, %v2244
        %v2303 = vmul.f32 %v2101, %v2244
        %v2304 = vmul.f32 %v2103, %v2245
        %v2305 = vmul.f32 %v2105, %v2245
        %v2306 = vmul.f32 %v2107, %v2246
        %v2307 = vmul.f32 %v2109, %v2246
        %v2308 = vmul.f32 %v2111, %v2247
        %v2309 = vmul.f32 %v2113, %v2247
        %v2310 = vmul.f32 %v2115, %v2248
        %v2311 = vmul.f32 %v2117, %v2248
        %v2312 = vmul.f32 %v2119, %v2249
        %v2313 = vmul.f32 %v2121, %v2249
        %v2314 = vpack.c.bf16 %v2252, %v2250
        %v2315 = vpack.c.bf16 %v2253, %v2251
        %v2316 = vpack.c.bf16 %v2256, %v2254
        %v2317 = vpack.c.bf16 %v2257, %v2255
        %v2318 = vpack.c.bf16 %v2260, %v2258
        %v2319 = vpack.c.bf16 %v2261, %v2259
        %v2320 = vpack.c.bf16 %v2264, %v2262
        %v2321 = vpack.c.bf16 %v2265, %v2263
        %v2322 = vpack.c.bf16 %v2268, %v2266
        %v2323 = vpack.c.bf16 %v2269, %v2267
        %v2324 = vpack.c.bf16 %v2272, %v2270
        %v2325 = vpack.c.bf16 %v2273, %v2271
        %v2326 = vpack.c.bf16 %v2276, %v2274
        %v2327 = vpack.c.bf16 %v2277, %v2275
        %v2328 = vpack.c.bf16 %v2280, %v2278
        %v2329 = vpack.c.bf16 %v2281, %v2279
        %v2330 = vpack.c.bf16 %v2284, %v2282
        %v2331 = vpack.c.bf16 %v2285, %v2283
        %v2332 = vpack.c.bf16 %v2288, %v2286
        %v2333 = vpack.c.bf16 %v2289, %v2287
        %v2334 = vpack.c.bf16 %v2292, %v2290
        %v2335 = vpack.c.bf16 %v2293, %v2291
        %v2336 = vpack.c.bf16 %v2296, %v2294
        %v2337 = vpack.c.bf16 %v2297, %v2295
        %v2338 = vpack.c.bf16 %v2300, %v2298
        %v2339 = vpack.c.bf16 %v2301, %v2299
        %v2340 = vpack.c.bf16 %v2304, %v2302
        %v2341 = vpack.c.bf16 %v2305, %v2303
        %v2342 = vpack.c.bf16 %v2308, %v2306
        %v2343 = vpack.c.bf16 %v2309, %v2307
        %v2344 = vpack.c.bf16 %v2312, %v2310
        %v2345 = vpack.c.bf16 %v2313, %v2311
        %2346 = vmatprep.subr.bf16.mxu0 %v2315
        %2347 = vmatpush1.bf16.xpose.msra.mxu0 %v2314
        %2348 = vmatprep.subr.bf16.mxu0 %v2317
        %2349 = vmatpush1.bf16.xpose.msra.mxu0 %v2316
        %2350 = vmatprep.subr.bf16.mxu0 %v2319
        %2351 = vmatpush1.bf16.xpose.msra.mxu0 %v2318
        %2352 = vmatprep.subr.bf16.mxu0 %v2321
        %2353 = vmatpush1.bf16.xpose.msra.mxu0 %v2320
        %2354 = vmatprep.subr.bf16.mxu0 %v2323
        %2355 = vmatpush1.bf16.xpose.msra.mxu0 %v2322
        %2356 = vmatprep.subr.bf16.mxu0 %v2325
        %2357 = vmatpush1.bf16.xpose.msra.mxu0 %v2324
        %2358 = vmatprep.subr.bf16.mxu0 %v2327
        %2359 = vmatpush1.bf16.xpose.msra.mxu0 %v2326
        %2360 = vmatprep.subr.bf16.mxu0 %v2329
        %2361 = vmatpush1.bf16.xpose.msra.mxu0 %v2328
        %2362 = vmatprep.subr.bf16.mxu0 %v2331
        %2363 = vmatpush1.bf16.xpose.msra.mxu0 %v2330
        %2364 = vmatprep.subr.bf16.mxu0 %v2333
        %2365 = vmatpush1.bf16.xpose.msra.mxu0 %v2332
        %2366 = vmatprep.subr.bf16.mxu0 %v2335
        %2367 = vmatpush1.bf16.xpose.msra.mxu0 %v2334
        %2368 = vmatprep.subr.bf16.mxu0 %v2337
        %2369 = vmatpush1.bf16.xpose.msra.mxu0 %v2336
        %2370 = vmatprep.subr.bf16.mxu0 %v2339
        %2371 = vmatpush1.bf16.xpose.msra.mxu0 %v2338
        %2372 = vmatprep.subr.bf16.mxu0 %v2341
        %2373 = vmatpush1.bf16.xpose.msra.mxu0 %v2340
        %2374 = vmatprep.subr.bf16.mxu0 %v2343
        %2375 = vmatpush1.bf16.xpose.msra.mxu0 %v2342
        %2376 = vmatprep.subr.bf16.mxu0 %v2345
        %2377 = vmatpush1.bf16.xpose.msra.mxu0 %v2344
        %2378 = vmatprep.mubr.bf16.mxu0 %v1554
        %2379 = vmatmul.mubr.bf16.gmra.mrb[0].mxu0 %v1553
        %v2380 = vpop.f32.mrb[0].mxu0
        %v2381 = vadd.f32 0.0, %v2380
        %v2382 = vpop.f32.mrb[0].mxu0
        %v2383 = vadd.f32 0.0, %v2382
        %v2384 = vpop.f32.mrb[0].mxu0
        %v2385 = vpop.f32.mrb[0].mxu0
        %2386 = vdwg.mxu0
        %2387 = vst [vmem:[#allocation3 + $0x10] sm:$0xff] %v2381
        %2388 = vst [vmem:[#allocation3 + $0x18] sm:$0xff] %v2383
        %v2389 = vpack.c.bf16 %v671, %v671
        %v2390 = vpack.c.bf16 %v673, %v673
        %v2391 = vld [vmem:[#allocation2 + $0x20] sm:$0xff]
        %v2392 = vld [vmem:[#allocation2 + $0x28] sm:$0xff]
        %v2393 = vpack.c.bf16 %v2391, %v2391
        %v2394 = vpack.c.bf16 %v2392, %v2392
        %v2395 = vld [vmem:[#allocation2 + $0xa0] sm:$0xff]
        %v2396 = vld [vmem:[#allocation2 + $0xa8] sm:$0xff]
        %v2397 = vpack.c.bf16 %v2395, %v2395
        %v2398 = vpack.c.bf16 %v2396, %v2396
        %2399 = vxpose.xlu0.c.b16.start [1/8] %v2389, 128
        %2400 = vxpose.xlu0.c.b16.cont [2/8] 0, 128
        %2401 = vxpose.xlu0.c.b16.cont [3/8] 0, 128
        %2402 = vxpose.xlu0.c.b16.cont [4/8] 0, 128
        %2403 = vxpose.xlu0.c.b16.cont [5/8] 0, 128
        %2404 = vxpose.xlu0.c.b16.cont [6/8] 0, 128
        %2405 = vxpose.xlu0.c.b16.cont [7/8] 0, 128
        %2406 = vxpose.xlu0.c.b16.end [8/8] 0, 128
        %v2407 = vpop.trf.xlu0
        %v2408 = vpop.trf.xlu0
        %v2409 = vpop.trf.xlu0
        %v2410 = vpop.trf.xlu0
        %v2411 = vpop.trf.xlu0
        %v2412 = vpop.trf.xlu0
        %v2413 = vpop.trf.xlu0
        %v2414 = vpop.trf.xlu0
        %2415 = vxpose.xlu0.c.b16.start [1/8] %v2390, 128
        %2416 = vxpose.xlu0.c.b16.cont [2/8] 0, 128
        %2417 = vxpose.xlu0.c.b16.cont [3/8] 0, 128
        %2418 = vxpose.xlu0.c.b16.cont [4/8] 0, 128
        %2419 = vxpose.xlu0.c.b16.cont [5/8] 0, 128
        %2420 = vxpose.xlu0.c.b16.cont [6/8] 0, 128
        %2421 = vxpose.xlu0.c.b16.cont [7/8] 0, 128
        %2422 = vxpose.xlu0.c.b16.end [8/8] 0, 128
        %v2423 = vpop.trf.xlu0
        %v2424 = vpop.trf.xlu0
        %v2425 = vpop.trf.xlu0
        %v2426 = vpop.trf.xlu0
        %v2427 = vpop.trf.xlu0
        %v2428 = vpop.trf.xlu0
        %v2429 = vpop.trf.xlu0
        %v2430 = vpop.trf.xlu0
        %v2432 = vsel %vm741, %v2407, 0
        %v2435 = vsel %vm741, %v2408, 0
        %v2438 = vsel %vm741, %v2409, 0
        %v2441 = vsel %vm741, %v2410, 0
        %v2444 = vsel %vm741, %v2411, 0
        %v2447 = vsel %vm741, %v2412, 0
        %v2450 = vsel %vm741, %v2413, 0
        %v2453 = vsel %vm741, %v2414, 0
        %v2456 = vsel %vm741, %v2423, 0
        %v2459 = vsel %vm741, %v2424, 0
        %v2462 = vsel %vm741, %v2425, 0
        %v2465 = vsel %vm741, %v2426, 0
        %v2468 = vsel %vm741, %v2427, 0
        %v2471 = vsel %vm741, %v2428, 0
        %v2474 = vsel %vm741, %v2429, 0
        %v2477 = vsel %vm741, %v2430, 0
        %v2480 = vsel %vm790, %v2393, 0
        %v2483 = vsel %vm790, %v2394, 0
        %2485 = vmatprep.subr.bf16.mxu0 %v2483
        %2486 = vmatpush1.bf16.msra.mxu0 %v2480
        %2487 = vmatprep.subr.bf16.mxu0 0
        %2488 = vmatpush1.bf16.msra.mxu0 0
        %2489 = vmatprep.subr.bf16.mxu0 0
        %2490 = vmatpush1.bf16.msra.mxu0 0
        %2491 = vmatprep.subr.bf16.mxu0 0
        %2492 = vmatpush1.bf16.msra.mxu0 0
        %2493 = vmatprep.subr.bf16.mxu0 0
        %2494 = vmatpush1.bf16.msra.mxu0 0
        %2495 = vmatprep.subr.bf16.mxu0 0
        %2496 = vmatpush1.bf16.msra.mxu0 0
        %2497 = vmatprep.subr.bf16.mxu0 0
        %2498 = vmatpush1.bf16.msra.mxu0 0
        %2499 = vmatprep.subr.bf16.mxu0 0
        %2500 = vmatpush1.bf16.msra.mxu0 0
        %2501 = vmatprep.subr.bf16.mxu0 0
        %2502 = vmatpush1.bf16.msra.mxu0 0
        %2503 = vmatprep.subr.bf16.mxu0 0
        %2504 = vmatpush1.bf16.msra.mxu0 0
        %2505 = vmatprep.subr.bf16.mxu0 0
        %2506 = vmatpush1.bf16.msra.mxu0 0
        %2507 = vmatprep.subr.bf16.mxu0 0
        %2508 = vmatpush1.bf16.msra.mxu0 0
        %2509 = vmatprep.subr.bf16.mxu0 0
        %2510 = vmatpush1.bf16.msra.mxu0 0
        %2511 = vmatprep.subr.bf16.mxu0 0
        %2512 = vmatpush1.bf16.msra.mxu0 0
        %2513 = vmatprep.subr.bf16.mxu0 0
        %2514 = vmatpush1.bf16.msra.mxu0 0
        %2515 = vmatprep.subr.bf16.mxu0 0
        %2516 = vmatpush1.bf16.msra.mxu0 0
        %2517 = vmatprep.mubr.bf16.mxu0 0
        %2518 = vmatmul.mubr.bf16.gmra.mrb[0].mxu0 %v2432
        %v2519 = vpop.f32.mrb[0].mxu0
        %v2520 = vadd.f32 0.0, %v2519
        %v2521 = vpop.f32.mrb[0].mxu0
        %v2522 = vadd.f32 0.0, %v2521
        %v2523 = vpop.f32.mrb[0].mxu0
        %v2524 = vadd.f32 0.0, %v2523
        %v2525 = vpop.f32.mrb[0].mxu0
        %v2526 = vadd.f32 0.0, %v2525
        %2527 = vmatprep.mubr.bf16.mxu0 0
        %2528 = vmatmul.mubr.bf16.gmra.mrb[0].mxu0 %v2435
        %v2529 = vpop.f32.mrb[0].mxu0
        %v2530 = vadd.f32 0.0, %v2529
        %v2531 = vpop.f32.mrb[0].mxu0
        %v2532 = vadd.f32 0.0, %v2531
        %v2533 = vpop.f32.mrb[0].mxu0
        %v2534 = vadd.f32 0.0, %v2533
        %v2535 = vpop.f32.mrb[0].mxu0
        %v2536 = vadd.f32 0.0, %v2535
        %2537 = vmatprep.mubr.bf16.mxu0 0
        %2538 = vmatmul.mubr.bf16.gmra.mrb[0].mxu0 %v2438
        %v2539 = vpop.f32.mrb[0].mxu0
        %v2540 = vadd.f32 0.0, %v2539
        %v2541 = vpop.f32.mrb[0].mxu0
        %v2542 = vadd.f32 0.0, %v2541
        %v2543 = vpop.f32.mrb[0].mxu0
        %v2544 = vadd.f32 0.0, %v2543
        %v2545 = vpop.f32.mrb[0].mxu0
        %v2546 = vadd.f32 0.0, %v2545
        %2547 = vmatprep.mubr.bf16.mxu0 0
        %2548 = vmatmul.mubr.bf16.gmra.mrb[0].mxu0 %v2441
        %v2549 = vpop.f32.mrb[0].mxu0
        %v2550 = vadd.f32 0.0, %v2549
        %v2551 = vpop.f32.mrb[0].mxu0
        %v2552 = vadd.f32 0.0, %v2551
        %v2553 = vpop.f32.mrb[0].mxu0
        %v2554 = vadd.f32 0.0, %v2553
        %v2555 = vpop.f32.mrb[0].mxu0
        %v2556 = vadd.f32 0.0, %v2555
        %2557 = vmatprep.mubr.bf16.mxu0 0
        %2558 = vmatmul.mubr.bf16.gmra.mrb[0].mxu0 %v2444
        %v2559 = vpop.f32.mrb[0].mxu0
        %v2560 = vadd.f32 0.0, %v2559
        %v2561 = vpop.f32.mrb[0].mxu0
        %v2562 = vadd.f32 0.0, %v2561
        %v2563 = vpop.f32.mrb[0].mxu0
        %v2564 = vadd.f32 0.0, %v2563
        %v2565 = vpop.f32.mrb[0].mxu0
        %v2566 = vadd.f32 0.0, %v2565
        %2567 = vmatprep.mubr.bf16.mxu0 0
        %2568 = vmatmul.mubr.bf16.gmra.mrb[0].mxu0 %v2447
        %v2569 = vpop.f32.mrb[0].mxu0
        %v2570 = vadd.f32 0.0, %v2569
        %v2571 = vpop.f32.mrb[0].mxu0
        %v2572 = vadd.f32 0.0, %v2571
        %v2573 = vpop.f32.mrb[0].mxu0
        %v2574 = vadd.f32 0.0, %v2573
        %v2575 = vpop.f32.mrb[0].mxu0
        %v2576 = vadd.f32 0.0, %v2575
        %2577 = vmatprep.mubr.bf16.mxu0 0
        %2578 = vmatmul.mubr.bf16.gmra.mrb[0].mxu0 %v2450
        %v2579 = vpop.f32.mrb[0].mxu0
        %v2580 = vadd.f32 0.0, %v2579
        %v2581 = vpop.f32.mrb[0].mxu0
        %v2582 = vadd.f32 0.0, %v2581
        %v2583 = vpop.f32.mrb[0].mxu0
        %v2584 = vadd.f32 0.0, %v2583
        %v2585 = vpop.f32.mrb[0].mxu0
        %v2586 = vadd.f32 0.0, %v2585
        %2587 = vmatprep.mubr.bf16.mxu0 0
        %2588 = vmatmul.mubr.bf16.gmra.mrb[0].mxu0 %v2453
        %v2589 = vpop.f32.mrb[0].mxu0
        %v2590 = vadd.f32 0.0, %v2589
        %v2591 = vpop.f32.mrb[0].mxu0
        %v2592 = vadd.f32 0.0, %v2591
        %v2593 = vpop.f32.mrb[0].mxu0
        %v2594 = vadd.f32 0.0, %v2593
        %v2595 = vpop.f32.mrb[0].mxu0
        %v2596 = vadd.f32 0.0, %v2595
        %2597 = vmatprep.mubr.bf16.mxu0 0
        %2598 = vmatmul.mubr.bf16.gmra.mrb[0].mxu0 %v2456
        %v2599 = vpop.f32.mrb[0].mxu0
        %v2600 = vadd.f32 0.0, %v2599
        %v2601 = vpop.f32.mrb[0].mxu0
        %v2602 = vadd.f32 0.0, %v2601
        %v2603 = vpop.f32.mrb[0].mxu0
        %v2604 = vadd.f32 0.0, %v2603
        %v2605 = vpop.f32.mrb[0].mxu0
        %v2606 = vadd.f32 0.0, %v2605
        %2607 = vmatprep.mubr.bf16.mxu0 0
        %2608 = vmatmul.mubr.bf16.gmra.mrb[0].mxu0 %v2459
        %v2609 = vpop.f32.mrb[0].mxu0
        %v2610 = vadd.f32 0.0, %v2609
        %v2611 = vpop.f32.mrb[0].mxu0
        %v2612 = vadd.f32 0.0, %v2611
        %v2613 = vpop.f32.mrb[0].mxu0
        %v2614 = vadd.f32 0.0, %v2613
        %v2615 = vpop.f32.mrb[0].mxu0
        %v2616 = vadd.f32 0.0, %v2615
        %2617 = vmatprep.mubr.bf16.mxu0 0
        %2618 = vmatmul.mubr.bf16.gmra.mrb[0].mxu0 %v2462
        %v2619 = vpop.f32.mrb[0].mxu0
        %v2620 = vadd.f32 0.0, %v2619
        %v2621 = vpop.f32.mrb[0].mxu0
        %v2622 = vadd.f32 0.0, %v2621
        %v2623 = vpop.f32.mrb[0].mxu0
        %v2624 = vadd.f32 0.0, %v2623
        %v2625 = vpop.f32.mrb[0].mxu0
        %v2626 = vadd.f32 0.0, %v2625
        %2627 = vmatprep.mubr.bf16.mxu0 0
        %2628 = vmatmul.mubr.bf16.gmra.mrb[0].mxu0 %v2465
        %v2629 = vpop.f32.mrb[0].mxu0
        %v2630 = vadd.f32 0.0, %v2629
        %v2631 = vpop.f32.mrb[0].mxu0
        %v2632 = vadd.f32 0.0, %v2631
        %v2633 = vpop.f32.mrb[0].mxu0
        %v2634 = vadd.f32 0.0, %v2633
        %v2635 = vpop.f32.mrb[0].mxu0
        %v2636 = vadd.f32 0.0, %v2635
        %2637 = vmatprep.mubr.bf16.mxu0 0
        %2638 = vmatmul.mubr.bf16.gmra.mrb[0].mxu0 %v2468
        %v2639 = vpop.f32.mrb[0].mxu0
        %v2640 = vadd.f32 0.0, %v2639
        %v2641 = vpop.f32.mrb[0].mxu0
        %v2642 = vadd.f32 0.0, %v2641
        %v2643 = vpop.f32.mrb[0].mxu0
        %v2644 = vadd.f32 0.0, %v2643
        %v2645 = vpop.f32.mrb[0].mxu0
        %v2646 = vadd.f32 0.0, %v2645
        %2647 = vmatprep.mubr.bf16.mxu0 0
        %2648 = vmatmul.mubr.bf16.gmra.mrb[0].mxu0 %v2471
        %v2649 = vpop.f32.mrb[0].mxu0
        %v2650 = vadd.f32 0.0, %v2649
        %v2651 = vpop.f32.mrb[0].mxu0
        %v2652 = vadd.f32 0.0, %v2651
        %v2653 = vpop.f32.mrb[0].mxu0
        %v2654 = vadd.f32 0.0, %v2653
        %v2655 = vpop.f32.mrb[0].mxu0
        %v2656 = vadd.f32 0.0, %v2655
        %2657 = vmatprep.mubr.bf16.mxu0 0
        %2658 = vmatmul.mubr.bf16.gmra.mrb[0].mxu0 %v2474
        %v2659 = vpop.f32.mrb[0].mxu0
        %v2660 = vadd.f32 0.0, %v2659
        %v2661 = vpop.f32.mrb[0].mxu0
        %v2662 = vadd.f32 0.0, %v2661
        %v2663 = vpop.f32.mrb[0].mxu0
        %v2664 = vadd.f32 0.0, %v2663
        %v2665 = vpop.f32.mrb[0].mxu0
        %v2666 = vadd.f32 0.0, %v2665
        %2667 = vmatprep.mubr.bf16.mxu0 0
        %2668 = vmatmul.mubr.bf16.gmra.mrb[0].mxu0 %v2477
        %v2669 = vpop.f32.mrb[0].mxu0
        %v2670 = vadd.f32 0.0, %v2669
        %v2671 = vpop.f32.mrb[0].mxu0
        %v2672 = vadd.f32 0.0, %v2671
        %v2673 = vpop.f32.mrb[0].mxu0
        %v2674 = vadd.f32 0.0, %v2673
        %v2675 = vpop.f32.mrb[0].mxu0
        %v2676 = vadd.f32 0.0, %v2675
        %2677 = vdwg.mxu0
        %v2678 = vmax.f32 %v2520, %v2522
        %2679 = vmax.xlane.f32.xlu0 %v2678
        %v2680 = vpop.xlane.xlu0 %2679
        %v2681 = vmax.f32 %v2524, %v2526
        %2682 = vmax.xlane.f32.xlu0 %v2681
        %v2683 = vpop.xlane.xlu0 %2682
        %v2684 = vmax.f32 %v2530, %v2532
        %2685 = vmax.xlane.f32.xlu0 %v2684
        %v2686 = vpop.xlane.xlu0 %2685
        %v2687 = vmax.f32 %v2534, %v2536
        %2688 = vmax.xlane.f32.xlu0 %v2687
        %v2689 = vpop.xlane.xlu0 %2688
        %v2690 = vmax.f32 %v2540, %v2542
        %2691 = vmax.xlane.f32.xlu0 %v2690
        %v2692 = vpop.xlane.xlu0 %2691
        %v2693 = vmax.f32 %v2544, %v2546
        %2694 = vmax.xlane.f32.xlu0 %v2693
        %v2695 = vpop.xlane.xlu0 %2694
        %v2696 = vmax.f32 %v2550, %v2552
        %2697 = vmax.xlane.f32.xlu0 %v2696
        %v2698 = vpop.xlane.xlu0 %2697
        %v2699 = vmax.f32 %v2554, %v2556
        %2700 = vmax.xlane.f32.xlu0 %v2699
        %v2701 = vpop.xlane.xlu0 %2700
        %v2702 = vmax.f32 %v2560, %v2562
        %2703 = vmax.xlane.f32.xlu0 %v2702
        %v2704 = vpop.xlane.xlu0 %2703
        %v2705 = vmax.f32 %v2564, %v2566
        %2706 = vmax.xlane.f32.xlu0 %v2705
        %v2707 = vpop.xlane.xlu0 %2706
        %v2708 = vmax.f32 %v2570, %v2572
        %2709 = vmax.xlane.f32.xlu0 %v2708
        %v2710 = vpop.xlane.xlu0 %2709
        %v2711 = vmax.f32 %v2574, %v2576
        %2712 = vmax.xlane.f32.xlu0 %v2711
        %v2713 = vpop.xlane.xlu0 %2712
        %v2714 = vmax.f32 %v2580, %v2582
        %2715 = vmax.xlane.f32.xlu0 %v2714
        %v2716 = vpop.xlane.xlu0 %2715
        %v2717 = vmax.f32 %v2584, %v2586
        %2718 = vmax.xlane.f32.xlu0 %v2717
        %v2719 = vpop.xlane.xlu0 %2718
        %v2720 = vmax.f32 %v2590, %v2592
        %2721 = vmax.xlane.f32.xlu0 %v2720
        %v2722 = vpop.xlane.xlu0 %2721
        %v2723 = vmax.f32 %v2594, %v2596
        %2724 = vmax.xlane.f32.xlu0 %v2723
        %v2725 = vpop.xlane.xlu0 %2724
        %v2726 = vmax.f32 %v2600, %v2602
        %2727 = vmax.xlane.f32.xlu0 %v2726
        %v2728 = vpop.xlane.xlu0 %2727
        %v2729 = vmax.f32 %v2604, %v2606
        %2730 = vmax.xlane.f32.xlu0 %v2729
        %v2731 = vpop.xlane.xlu0 %2730
        %v2732 = vmax.f32 %v2610, %v2612
        %2733 = vmax.xlane.f32.xlu0 %v2732
        %v2734 = vpop.xlane.xlu0 %2733
        %v2735 = vmax.f32 %v2614, %v2616
        %2736 = vmax.xlane.f32.xlu0 %v2735
        %v2737 = vpop.xlane.xlu0 %2736
        %v2738 = vmax.f32 %v2620, %v2622
        %2739 = vmax.xlane.f32.xlu0 %v2738
        %v2740 = vpop.xlane.xlu0 %2739
        %v2741 = vmax.f32 %v2624, %v2626
        %2742 = vmax.xlane.f32.xlu0 %v2741
        %v2743 = vpop.xlane.xlu0 %2742
        %v2744 = vmax.f32 %v2630, %v2632
        %2745 = vmax.xlane.f32.xlu0 %v2744
        %v2746 = vpop.xlane.xlu0 %2745
        %v2747 = vmax.f32 %v2634, %v2636
        %2748 = vmax.xlane.f32.xlu0 %v2747
        %v2749 = vpop.xlane.xlu0 %2748
        %v2750 = vmax.f32 %v2640, %v2642
        %2751 = vmax.xlane.f32.xlu0 %v2750
        %v2752 = vpop.xlane.xlu0 %2751
        %v2753 = vmax.f32 %v2644, %v2646
        %2754 = vmax.xlane.f32.xlu0 %v2753
        %v2755 = vpop.xlane.xlu0 %2754
        %v2756 = vmax.f32 %v2650, %v2652
        %2757 = vmax.xlane.f32.xlu0 %v2756
        %v2758 = vpop.xlane.xlu0 %2757
        %v2759 = vmax.f32 %v2654, %v2656
        %2760 = vmax.xlane.f32.xlu0 %v2759
        %v2761 = vpop.xlane.xlu0 %2760
        %v2762 = vmax.f32 %v2660, %v2662
        %2763 = vmax.xlane.f32.xlu0 %v2762
        %v2764 = vpop.xlane.xlu0 %2763
        %v2765 = vmax.f32 %v2664, %v2666
        %2766 = vmax.xlane.f32.xlu0 %v2765
        %v2767 = vpop.xlane.xlu0 %2766
        %v2768 = vmax.f32 %v2670, %v2672
        %2769 = vmax.xlane.f32.xlu0 %v2768
        %v2770 = vpop.xlane.xlu0 %2769
        %v2771 = vmax.f32 %v2674, %v2676
        %2772 = vmax.xlane.f32.xlu0 %v2771
        %v2773 = vpop.xlane.xlu0 %2772
        %v2774 = vsub.f32 %v2520, %v2680
        %v2775 = vsub.f32 %v2522, %v2680
        %v2776 = vsub.f32 %v2524, %v2683
        %v2777 = vsub.f32 %v2526, %v2683
        %v2778 = vsub.f32 %v2530, %v2686
        %v2779 = vsub.f32 %v2532, %v2686
        %v2780 = vsub.f32 %v2534, %v2689
        %v2781 = vsub.f32 %v2536, %v2689
        %v2782 = vsub.f32 %v2540, %v2692
        %v2783 = vsub.f32 %v2542, %v2692
        %v2784 = vsub.f32 %v2544, %v2695
        %v2785 = vsub.f32 %v2546, %v2695
        %v2786 = vsub.f32 %v2550, %v2698
        %v2787 = vsub.f32 %v2552, %v2698
        %v2788 = vsub.f32 %v2554, %v2701
        %v2789 = vsub.f32 %v2556, %v2701
        %v2790 = vsub.f32 %v2560, %v2704
        %v2791 = vsub.f32 %v2562, %v2704
        %v2792 = vsub.f32 %v2564, %v2707
        %v2793 = vsub.f32 %v2566, %v2707
        %v2794 = vsub.f32 %v2570, %v2710
        %v2795 = vsub.f32 %v2572, %v2710
        %v2796 = vsub.f32 %v2574, %v2713
        %v2797 = vsub.f32 %v2576, %v2713
        %v2798 = vsub.f32 %v2580, %v2716
        %v2799 = vsub.f32 %v2582, %v2716
        %v2800 = vsub.f32 %v2584, %v2719
        %v2801 = vsub.f32 %v2586, %v2719
        %v2802 = vsub.f32 %v2590, %v2722
        %v2803 = vsub.f32 %v2592, %v2722
        %v2804 = vsub.f32 %v2594, %v2725
        %v2805 = vsub.f32 %v2596, %v2725
        %v2806 = vsub.f32 %v2600, %v2728
        %v2807 = vsub.f32 %v2602, %v2728
        %v2808 = vsub.f32 %v2604, %v2731
        %v2809 = vsub.f32 %v2606, %v2731
        %v2810 = vsub.f32 %v2610, %v2734
        %v2811 = vsub.f32 %v2612, %v2734
        %v2812 = vsub.f32 %v2614, %v2737
        %v2813 = vsub.f32 %v2616, %v2737
        %v2814 = vsub.f32 %v2620, %v2740
        %v2815 = vsub.f32 %v2622, %v2740
        %v2816 = vsub.f32 %v2624, %v2743
        %v2817 = vsub.f32 %v2626, %v2743
        %v2818 = vsub.f32 %v2630, %v2746
        %v2819 = vsub.f32 %v2632, %v2746
        %v2820 = vsub.f32 %v2634, %v2749
        %v2821 = vsub.f32 %v2636, %v2749
        %v2822 = vsub.f32 %v2640, %v2752
        %v2823 = vsub.f32 %v2642, %v2752
        %v2824 = vsub.f32 %v2644, %v2755
        %v2825 = vsub.f32 %v2646, %v2755
        %v2826 = vsub.f32 %v2650, %v2758
        %v2827 = vsub.f32 %v2652, %v2758
        %v2828 = vsub.f32 %v2654, %v2761
        %v2829 = vsub.f32 %v2656, %v2761
        %v2830 = vsub.f32 %v2660, %v2764
        %v2831 = vsub.f32 %v2662, %v2764
        %v2832 = vsub.f32 %v2664, %v2767
        %v2833 = vsub.f32 %v2666, %v2767
        %v2834 = vsub.f32 %v2670, %v2770
        %v2835 = vsub.f32 %v2672, %v2770
        %v2836 = vsub.f32 %v2674, %v2773
        %v2837 = vsub.f32 %v2676, %v2773
        %v2838 = vmul.f32 %v2774, 1.442695
        %v2839 = vpow.pop %v2838
        %v2840 = vmul.f32 %v2775, 1.442695
        %v2841 = vpow.pop %v2840
        %v2842 = vmul.f32 %v2776, 1.442695
        %v2843 = vpow.pop %v2842
        %v2844 = vmul.f32 %v2777, 1.442695
        %v2845 = vpow.pop %v2844
        %v2846 = vmul.f32 %v2778, 1.442695
        %v2847 = vpow.pop %v2846
        %v2848 = vmul.f32 %v2779, 1.442695
        %v2849 = vpow.pop %v2848
        %v2850 = vmul.f32 %v2780, 1.442695
        %v2851 = vpow.pop %v2850
        %v2852 = vmul.f32 %v2781, 1.442695
        %v2853 = vpow.pop %v2852
        %v2854 = vmul.f32 %v2782, 1.442695
        %v2855 = vpow.pop %v2854
        %v2856 = vmul.f32 %v2783, 1.442695
        %v2857 = vpow.pop %v2856
        %v2858 = vmul.f32 %v2784, 1.442695
        %v2859 = vpow.pop %v2858
        %v2860 = vmul.f32 %v2785, 1.442695
        %v2861 = vpow.pop %v2860
        %v2862 = vmul.f32 %v2786, 1.442695
        %v2863 = vpow.pop %v2862
        %v2864 = vmul.f32 %v2787, 1.442695
        %v2865 = vpow.pop %v2864
        %v2866 = vmul.f32 %v2788, 1.442695
        %v2867 = vpow.pop %v2866
        %v2868 = vmul.f32 %v2789, 1.442695
        %v2869 = vpow.pop %v2868
        %v2870 = vmul.f32 %v2790, 1.442695
        %v2871 = vpow.pop %v2870
        %v2872 = vmul.f32 %v2791, 1.442695
        %v2873 = vpow.pop %v2872
        %v2874 = vmul.f32 %v2792, 1.442695
        %v2875 = vpow.pop %v2874
        %v2876 = vmul.f32 %v2793, 1.442695
        %v2877 = vpow.pop %v2876
        %v2878 = vmul.f32 %v2794, 1.442695
        %v2879 = vpow.pop %v2878
        %v2880 = vmul.f32 %v2795, 1.442695
        %v2881 = vpow.pop %v2880
        %v2882 = vmul.f32 %v2796, 1.442695
        %v2883 = vpow.pop %v2882
        %v2884 = vmul.f32 %v2797, 1.442695
        %v2885 = vpow.pop %v2884
        %v2886 = vmul.f32 %v2798, 1.442695
        %v2887 = vpow.pop %v2886
        %v2888 = vmul.f32 %v2799, 1.442695
        %v2889 = vpow.pop %v2888
        %v2890 = vmul.f32 %v2800, 1.442695
        %v2891 = vpow.pop %v2890
        %v2892 = vmul.f32 %v2801, 1.442695
        %v2893 = vpow.pop %v2892
        %v2894 = vmul.f32 %v2802, 1.442695
        %v2895 = vpow.pop %v2894
        %v2896 = vmul.f32 %v2803, 1.442695
        %v2897 = vpow.pop %v2896
        %v2898 = vmul.f32 %v2804, 1.442695
        %v2899 = vpow.pop %v2898
        %v2900 = vmul.f32 %v2805, 1.442695
        %v2901 = vpow.pop %v2900
        %v2902 = vmul.f32 %v2806, 1.442695
        %v2903 = vpow.pop %v2902
        %v2904 = vmul.f32 %v2807, 1.442695
        %v2905 = vpow.pop %v2904
        %v2906 = vmul.f32 %v2808, 1.442695
        %v2907 = vpow.pop %v2906
        %v2908 = vmul.f32 %v2809, 1.442695
        %v2909 = vpow.pop %v2908
        %v2910 = vmul.f32 %v2810, 1.442695
        %v2911 = vpow.pop %v2910
        %v2912 = vmul.f32 %v2811, 1.442695
        %v2913 = vpow.pop %v2912
        %v2914 = vmul.f32 %v2812, 1.442695
        %v2915 = vpow.pop %v2914
        %v2916 = vmul.f32 %v2813, 1.442695
        %v2917 = vpow.pop %v2916
        %v2918 = vmul.f32 %v2814, 1.442695
        %v2919 = vpow.pop %v2918
        %v2920 = vmul.f32 %v2815, 1.442695
        %v2921 = vpow.pop %v2920
        %v2922 = vmul.f32 %v2816, 1.442695
        %v2923 = vpow.pop %v2922
        %v2924 = vmul.f32 %v2817, 1.442695
        %v2925 = vpow.pop %v2924
        %v2926 = vmul.f32 %v2818, 1.442695
        %v2927 = vpow.pop %v2926
        %v2928 = vmul.f32 %v2819, 1.442695
        %v2929 = vpow.pop %v2928
        %v2930 = vmul.f32 %v2820, 1.442695
        %v2931 = vpow.pop %v2930
        %v2932 = vmul.f32 %v2821, 1.442695
        %v2933 = vpow.pop %v2932
        %v2934 = vmul.f32 %v2822, 1.442695
        %v2935 = vpow.pop %v2934
        %v2936 = vmul.f32 %v2823, 1.442695
        %v2937 = vpow.pop %v2936
        %v2938 = vmul.f32 %v2824, 1.442695
        %v2939 = vpow.pop %v2938
        %v2940 = vmul.f32 %v2825, 1.442695
        %v2941 = vpow.pop %v2940
        %v2942 = vmul.f32 %v2826, 1.442695
        %v2943 = vpow.pop %v2942
        %v2944 = vmul.f32 %v2827, 1.442695
        %v2945 = vpow.pop %v2944
        %v2946 = vmul.f32 %v2828, 1.442695
        %v2947 = vpow.pop %v2946
        %v2948 = vmul.f32 %v2829, 1.442695
        %v2949 = vpow.pop %v2948
        %v2950 = vmul.f32 %v2830, 1.442695
        %v2951 = vpow.pop %v2950
        %v2952 = vmul.f32 %v2831, 1.442695
        %v2953 = vpow.pop %v2952
        %v2954 = vmul.f32 %v2832, 1.442695
        %v2955 = vpow.pop %v2954
        %v2956 = vmul.f32 %v2833, 1.442695
        %v2957 = vpow.pop %v2956
        %v2958 = vmul.f32 %v2834, 1.442695
        %v2959 = vpow.pop %v2958
        %v2960 = vmul.f32 %v2835, 1.442695
        %v2961 = vpow.pop %v2960
        %v2962 = vmul.f32 %v2836, 1.442695
        %v2963 = vpow.pop %v2962
        %v2964 = vmul.f32 %v2837, 1.442695
        %v2965 = vpow.pop %v2964
        %v2966 = vadd.f32 %v2839, %v2841
        %2967 = vadd.xlane.f32.xlu0 %v2966
        %v2968 = vpop.xlane.xlu0 %2967
        %v2969 = vadd.f32 %v2843, %v2845
        %2970 = vadd.xlane.f32.xlu0 %v2969
        %v2971 = vpop.xlane.xlu0 %2970
        %v2972 = vadd.f32 %v2847, %v2849
        %2973 = vadd.xlane.f32.xlu0 %v2972
        %v2974 = vpop.xlane.xlu0 %2973
        %v2975 = vadd.f32 %v2851, %v2853
        %2976 = vadd.xlane.f32.xlu0 %v2975
        %v2977 = vpop.xlane.xlu0 %2976
        %v2978 = vadd.f32 %v2855, %v2857
        %2979 = vadd.xlane.f32.xlu0 %v2978
        %v2980 = vpop.xlane.xlu0 %2979
        %v2981 = vadd.f32 %v2859, %v2861
        %2982 = vadd.xlane.f32.xlu0 %v2981
        %v2983 = vpop.xlane.xlu0 %2982
        %v2984 = vadd.f32 %v2863, %v2865
        %2985 = vadd.xlane.f32.xlu0 %v2984
        %v2986 = vpop.xlane.xlu0 %2985
        %v2987 = vadd.f32 %v2867, %v2869
        %2988 = vadd.xlane.f32.xlu0 %v2987
        %v2989 = vpop.xlane.xlu0 %2988
        %v2990 = vadd.f32 %v2871, %v2873
        %2991 = vadd.xlane.f32.xlu0 %v2990
        %v2992 = vpop.xlane.xlu0 %2991
        %v2993 = vadd.f32 %v2875, %v2877
        %2994 = vadd.xlane.f32.xlu0 %v2993
        %v2995 = vpop.xlane.xlu0 %2994
        %v2996 = vadd.f32 %v2879, %v2881
        %2997 = vadd.xlane.f32.xlu0 %v2996
        %v2998 = vpop.xlane.xlu0 %2997
        %v2999 = vadd.f32 %v2883, %v2885
        %3000 = vadd.xlane.f32.xlu0 %v2999
        %v3001 = vpop.xlane.xlu0 %3000
        %v3002 = vadd.f32 %v2887, %v2889
        %3003 = vadd.xlane.f32.xlu0 %v3002
        %v3004 = vpop.xlane.xlu0 %3003
        %v3005 = vadd.f32 %v2891, %v2893
        %3006 = vadd.xlane.f32.xlu0 %v3005
        %v3007 = vpop.xlane.xlu0 %3006
        %v3008 = vadd.f32 %v2895, %v2897
        %3009 = vadd.xlane.f32.xlu0 %v3008
        %v3010 = vpop.xlane.xlu0 %3009
        %v3011 = vadd.f32 %v2899, %v2901
        %3012 = vadd.xlane.f32.xlu0 %v3011
        %v3013 = vpop.xlane.xlu0 %3012
        %v3014 = vadd.f32 %v2903, %v2905
        %3015 = vadd.xlane.f32.xlu0 %v3014
        %v3016 = vpop.xlane.xlu0 %3015
        %v3017 = vadd.f32 %v2907, %v2909
        %3018 = vadd.xlane.f32.xlu0 %v3017
        %v3019 = vpop.xlane.xlu0 %3018
        %v3020 = vadd.f32 %v2911, %v2913
        %3021 = vadd.xlane.f32.xlu0 %v3020
        %v3022 = vpop.xlane.xlu0 %3021
        %v3023 = vadd.f32 %v2915, %v2917
        %3024 = vadd.xlane.f32.xlu0 %v3023
        %v3025 = vpop.xlane.xlu0 %3024
        %v3026 = vadd.f32 %v2919, %v2921
        %3027 = vadd.xlane.f32.xlu0 %v3026
        %v3028 = vpop.xlane.xlu0 %3027
        %v3029 = vadd.f32 %v2923, %v2925
        %3030 = vadd.xlane.f32.xlu0 %v3029
        %v3031 = vpop.xlane.xlu0 %3030
        %v3032 = vadd.f32 %v2927, %v2929
        %3033 = vadd.xlane.f32.xlu0 %v3032
        %v3034 = vpop.xlane.xlu0 %3033
        %v3035 = vadd.f32 %v2931, %v2933
        %3036 = vadd.xlane.f32.xlu0 %v3035
        %v3037 = vpop.xlane.xlu0 %3036
        %v3038 = vadd.f32 %v2935, %v2937
        %3039 = vadd.xlane.f32.xlu0 %v3038
        %v3040 = vpop.xlane.xlu0 %3039
        %v3041 = vadd.f32 %v2939, %v2941
        %3042 = vadd.xlane.f32.xlu0 %v3041
        %v3043 = vpop.xlane.xlu0 %3042
        %v3044 = vadd.f32 %v2943, %v2945
        %3045 = vadd.xlane.f32.xlu0 %v3044
        %v3046 = vpop.xlane.xlu0 %3045
        %v3047 = vadd.f32 %v2947, %v2949
        %3048 = vadd.xlane.f32.xlu0 %v3047
        %v3049 = vpop.xlane.xlu0 %3048
        %v3050 = vadd.f32 %v2951, %v2953
        %3051 = vadd.xlane.f32.xlu0 %v3050
        %v3052 = vpop.xlane.xlu0 %3051
        %v3053 = vadd.f32 %v2955, %v2957
        %3054 = vadd.xlane.f32.xlu0 %v3053
        %v3055 = vpop.xlane.xlu0 %3054
        %v3056 = vadd.f32 %v2959, %v2961
        %3057 = vadd.xlane.f32.xlu0 %v3056
        %v3058 = vpop.xlane.xlu0 %3057
        %v3059 = vadd.f32 %v2963, %v2965
        %3060 = vadd.xlane.f32.xlu0 %v3059
        %v3061 = vpop.xlane.xlu0 %3060
        %v3062 = vrcp.pop %v2968
        %v3063 = vrcp.pop %v2971
        %v3064 = vrcp.pop %v2974
        %v3065 = vrcp.pop %v2977
        %v3066 = vrcp.pop %v2980
        %v3067 = vrcp.pop %v2983
        %v3068 = vrcp.pop %v2986
        %v3069 = vrcp.pop %v2989
        %v3070 = vrcp.pop %v2992
        %v3071 = vrcp.pop %v2995
        %v3072 = vrcp.pop %v2998
        %v3073 = vrcp.pop %v3001
        %v3074 = vrcp.pop %v3004
        %v3075 = vrcp.pop %v3007
        %v3076 = vrcp.pop %v3010
        %v3077 = vrcp.pop %v3013
        %v3078 = vrcp.pop %v3016
        %v3079 = vrcp.pop %v3019
        %v3080 = vrcp.pop %v3022
        %v3081 = vrcp.pop %v3025
        %v3082 = vrcp.pop %v3028
        %v3083 = vrcp.pop %v3031
        %v3084 = vrcp.pop %v3034
        %v3085 = vrcp.pop %v3037
        %v3086 = vrcp.pop %v3040
        %v3087 = vrcp.pop %v3043
        %v3088 = vrcp.pop %v3046
        %v3089 = vrcp.pop %v3049
        %v3090 = vrcp.pop %v3052
        %v3091 = vrcp.pop %v3055
        %v3092 = vrcp.pop %v3058
        %v3093 = vrcp.pop %v3061
        %v3094 = vmul.f32 %v2839, %v3062
        %v3095 = vmul.f32 %v2841, %v3062
        %v3096 = vmul.f32 %v2843, %v3063
        %v3097 = vmul.f32 %v2845, %v3063
        %v3098 = vmul.f32 %v2847, %v3064
        %v3099 = vmul.f32 %v2849, %v3064
        %v3100 = vmul.f32 %v2851, %v3065
        %v3101 = vmul.f32 %v2853, %v3065
        %v3102 = vmul.f32 %v2855, %v3066
        %v3103 = vmul.f32 %v2857, %v3066
        %v3104 = vmul.f32 %v2859, %v3067
        %v3105 = vmul.f32 %v2861, %v3067
        %v3106 = vmul.f32 %v2863, %v3068
        %v3107 = vmul.f32 %v2865, %v3068
        %v3108 = vmul.f32 %v2867, %v3069
        %v3109 = vmul.f32 %v2869, %v3069
        %v3110 = vmul.f32 %v2871, %v3070
        %v3111 = vmul.f32 %v2873, %v3070
        %v3112 = vmul.f32 %v2875, %v3071
        %v3113 = vmul.f32 %v2877, %v3071
        %v3114 = vmul.f32 %v2879, %v3072
        %v3115 = vmul.f32 %v2881, %v3072
        %v3116 = vmul.f32 %v2883, %v3073
        %v3117 = vmul.f32 %v2885, %v3073
        %v3118 = vmul.f32 %v2887, %v3074
        %v3119 = vmul.f32 %v2889, %v3074
        %v3120 = vmul.f32 %v2891, %v3075
        %v3121 = vmul.f32 %v2893, %v3075
        %v3122 = vmul.f32 %v2895, %v3076
        %v3123 = vmul.f32 %v2897, %v3076
        %v3124 = vmul.f32 %v2899, %v3077
        %v3125 = vmul.f32 %v2901, %v3077
        %v3126 = vmul.f32 %v2903, %v3078
        %v3127 = vmul.f32 %v2905, %v3078
        %v3128 = vmul.f32 %v2907, %v3079
        %v3129 = vmul.f32 %v2909, %v3079
        %v3130 = vmul.f32 %v2911, %v3080
        %v3131 = vmul.f32 %v2913, %v3080
        %v3132 = vmul.f32 %v2915, %v3081
        %v3133 = vmul.f32 %v2917, %v3081
        %v3134 = vmul.f32 %v2919, %v3082
        %v3135 = vmul.f32 %v2921, %v3082
        %v3136 = vmul.f32 %v2923, %v3083
        %v3137 = vmul.f32 %v2925, %v3083
        %v3138 = vmul.f32 %v2927, %v3084
        %v3139 = vmul.f32 %v2929, %v3084
        %v3140 = vmul.f32 %v2931, %v3085
        %v3141 = vmul.f32 %v2933, %v3085
        %v3142 = vmul.f32 %v2935, %v3086
        %v3143 = vmul.f32 %v2937, %v3086
        %v3144 = vmul.f32 %v2939, %v3087
        %v3145 = vmul.f32 %v2941, %v3087
        %v3146 = vmul.f32 %v2943, %v3088
        %v3147 = vmul.f32 %v2945, %v3088
        %v3148 = vmul.f32 %v2947, %v3089
        %v3149 = vmul.f32 %v2949, %v3089
        %v3150 = vmul.f32 %v2951, %v3090
        %v3151 = vmul.f32 %v2953, %v3090
        %v3152 = vmul.f32 %v2955, %v3091
        %v3153 = vmul.f32 %v2957, %v3091
        %v3154 = vmul.f32 %v2959, %v3092
        %v3155 = vmul.f32 %v2961, %v3092
        %v3156 = vmul.f32 %v2963, %v3093
        %v3157 = vmul.f32 %v2965, %v3093
        %v3158 = vpack.c.bf16 %v3096, %v3094
        %v3159 = vpack.c.bf16 %v3097, %v3095
        %v3160 = vpack.c.bf16 %v3100, %v3098
        %v3161 = vpack.c.bf16 %v3101, %v3099
        %v3162 = vpack.c.bf16 %v3104, %v3102
        %v3163 = vpack.c.bf16 %v3105, %v3103
        %v3164 = vpack.c.bf16 %v3108, %v3106
        %v3165 = vpack.c.bf16 %v3109, %v3107
        %v3166 = vpack.c.bf16 %v3112, %v3110
        %v3167 = vpack.c.bf16 %v3113, %v3111
        %v3168 = vpack.c.bf16 %v3116, %v3114
        %v3169 = vpack.c.bf16 %v3117, %v3115
        %v3170 = vpack.c.bf16 %v3120, %v3118
        %v3171 = vpack.c.bf16 %v3121, %v3119
        %v3172 = vpack.c.bf16 %v3124, %v3122
        %v3173 = vpack.c.bf16 %v3125, %v3123
        %v3174 = vpack.c.bf16 %v3128, %v3126
        %v3175 = vpack.c.bf16 %v3129, %v3127
        %v3176 = vpack.c.bf16 %v3132, %v3130
        %v3177 = vpack.c.bf16 %v3133, %v3131
        %v3178 = vpack.c.bf16 %v3136, %v3134
        %v3179 = vpack.c.bf16 %v3137, %v3135
        %v3180 = vpack.c.bf16 %v3140, %v3138
        %v3181 = vpack.c.bf16 %v3141, %v3139
        %v3182 = vpack.c.bf16 %v3144, %v3142
        %v3183 = vpack.c.bf16 %v3145, %v3143
        %v3184 = vpack.c.bf16 %v3148, %v3146
        %v3185 = vpack.c.bf16 %v3149, %v3147
        %v3186 = vpack.c.bf16 %v3152, %v3150
        %v3187 = vpack.c.bf16 %v3153, %v3151
        %v3188 = vpack.c.bf16 %v3156, %v3154
        %v3189 = vpack.c.bf16 %v3157, %v3155
        %3190 = vmatprep.subr.bf16.mxu0 %v3159
        %3191 = vmatpush1.bf16.xpose.msra.mxu0 %v3158
        %3192 = vmatprep.subr.bf16.mxu0 %v3161
        %3193 = vmatpush1.bf16.xpose.msra.mxu0 %v3160
        %3194 = vmatprep.subr.bf16.mxu0 %v3163
        %3195 = vmatpush1.bf16.xpose.msra.mxu0 %v3162
        %3196 = vmatprep.subr.bf16.mxu0 %v3165
        %3197 = vmatpush1.bf16.xpose.msra.mxu0 %v3164
        %3198 = vmatprep.subr.bf16.mxu0 %v3167
        %3199 = vmatpush1.bf16.xpose.msra.mxu0 %v3166
        %3200 = vmatprep.subr.bf16.mxu0 %v3169
        %3201 = vmatpush1.bf16.xpose.msra.mxu0 %v3168
        %3202 = vmatprep.subr.bf16.mxu0 %v3171
        %3203 = vmatpush1.bf16.xpose.msra.mxu0 %v3170
        %3204 = vmatprep.subr.bf16.mxu0 %v3173
        %3205 = vmatpush1.bf16.xpose.msra.mxu0 %v3172
        %3206 = vmatprep.subr.bf16.mxu0 %v3175
        %3207 = vmatpush1.bf16.xpose.msra.mxu0 %v3174
        %3208 = vmatprep.subr.bf16.mxu0 %v3177
        %3209 = vmatpush1.bf16.xpose.msra.mxu0 %v3176
        %3210 = vmatprep.subr.bf16.mxu0 %v3179
        %3211 = vmatpush1.bf16.xpose.msra.mxu0 %v3178
        %3212 = vmatprep.subr.bf16.mxu0 %v3181
        %3213 = vmatpush1.bf16.xpose.msra.mxu0 %v3180
        %3214 = vmatprep.subr.bf16.mxu0 %v3183
        %3215 = vmatpush1.bf16.xpose.msra.mxu0 %v3182
        %3216 = vmatprep.subr.bf16.mxu0 %v3185
        %3217 = vmatpush1.bf16.xpose.msra.mxu0 %v3184
        %3218 = vmatprep.subr.bf16.mxu0 %v3187
        %3219 = vmatpush1.bf16.xpose.msra.mxu0 %v3186
        %3220 = vmatprep.subr.bf16.mxu0 %v3189
        %3221 = vmatpush1.bf16.xpose.msra.mxu0 %v3188
        %3222 = vmatprep.mubr.bf16.mxu0 %v2398
        %3223 = vmatmul.mubr.bf16.gmra.mrb[0].mxu0 %v2397
        %v3224 = vpop.f32.mrb[0].mxu0
        %v3225 = vadd.f32 0.0, %v3224
        %v3226 = vpop.f32.mrb[0].mxu0
        %v3227 = vadd.f32 0.0, %v3226
        %v3228 = vpop.f32.mrb[0].mxu0
        %v3229 = vpop.f32.mrb[0].mxu0
        %3230 = vdwg.mxu0
        %3231 = vst [vmem:[#allocation3 + $0x20] sm:$0xff] %v3225
        %3232 = vst [vmem:[#allocation3 + $0x28] sm:$0xff] %v3227
        %v3233 = vpack.c.bf16 %v675, %v675
        %v3234 = vpack.c.bf16 %v677, %v677
        %v3235 = vld [vmem:[#allocation2 + $0x30] sm:$0xff]
        %v3236 = vld [vmem:[#allocation2 + $0x38] sm:$0xff]
        %v3237 = vpack.c.bf16 %v3235, %v3235
        %v3238 = vpack.c.bf16 %v3236, %v3236
        %v3239 = vld [vmem:[#allocation2 + $0xb0] sm:$0xff]
        %v3240 = vld [vmem:[#allocation2 + $0xb8] sm:$0xff]
        %v3241 = vpack.c.bf16 %v3239, %v3239
        %v3242 = vpack.c.bf16 %v3240, %v3240
        %3243 = vxpose.xlu0.c.b16.start [1/8] %v3233, 128
        %3244 = vxpose.xlu0.c.b16.cont [2/8] 0, 128
        %3245 = vxpose.xlu0.c.b16.cont [3/8] 0, 128
        %3246 = vxpose.xlu0.c.b16.cont [4/8] 0, 128
        %3247 = vxpose.xlu0.c.b16.cont [5/8] 0, 128
        %3248 = vxpose.xlu0.c.b16.cont [6/8] 0, 128
        %3249 = vxpose.xlu0.c.b16.cont [7/8] 0, 128
        %3250 = vxpose.xlu0.c.b16.end [8/8] 0, 128
        %v3251 = vpop.trf.xlu0
        %v3252 = vpop.trf.xlu0
        %v3253 = vpop.trf.xlu0
        %v3254 = vpop.trf.xlu0
        %v3255 = vpop.trf.xlu0
        %v3256 = vpop.trf.xlu0
        %v3257 = vpop.trf.xlu0
        %v3258 = vpop.trf.xlu0
        %3259 = vxpose.xlu0.c.b16.start [1/8] %v3234, 128
        %3260 = vxpose.xlu0.c.b16.cont [2/8] 0, 128
        %3261 = vxpose.xlu0.c.b16.cont [3/8] 0, 128
        %3262 = vxpose.xlu0.c.b16.cont [4/8] 0, 128
        %3263 = vxpose.xlu0.c.b16.cont [5/8] 0, 128
        %3264 = vxpose.xlu0.c.b16.cont [6/8] 0, 128
        %3265 = vxpose.xlu0.c.b16.cont [7/8] 0, 128
        %3266 = vxpose.xlu0.c.b16.end [8/8] 0, 128
        %v3267 = vpop.trf.xlu0
        %v3268 = vpop.trf.xlu0
        %v3269 = vpop.trf.xlu0
        %v3270 = vpop.trf.xlu0
        %v3271 = vpop.trf.xlu0
        %v3272 = vpop.trf.xlu0
        %v3273 = vpop.trf.xlu0
        %v3274 = vpop.trf.xlu0
        %v3276 = vsel %vm741, %v3251, 0
        %v3279 = vsel %vm741, %v3252, 0
        %v3282 = vsel %vm741, %v3253, 0
        %v3285 = vsel %vm741, %v3254, 0
        %v3288 = vsel %vm741, %v3255, 0
        %v3291 = vsel %vm741, %v3256, 0
        %v3294 = vsel %vm741, %v3257, 0
        %v3297 = vsel %vm741, %v3258, 0
        %v3300 = vsel %vm741, %v3267, 0
        %v3303 = vsel %vm741, %v3268, 0
        %v3306 = vsel %vm741, %v3269, 0
        %v3309 = vsel %vm741, %v3270, 0
        %v3312 = vsel %vm741, %v3271, 0
        %v3315 = vsel %vm741, %v3272, 0
        %v3318 = vsel %vm741, %v3273, 0
        %v3321 = vsel %vm741, %v3274, 0
        %v3324 = vsel %vm790, %v3237, 0
        %v3327 = vsel %vm790, %v3238, 0
        %3329 = vmatprep.subr.bf16.mxu0 %v3327
        %3330 = vmatpush1.bf16.msra.mxu0 %v3324
        %3331 = vmatprep.subr.bf16.mxu0 0
        %3332 = vmatpush1.bf16.msra.mxu0 0
        %3333 = vmatprep.subr.bf16.mxu0 0
        %3334 = vmatpush1.bf16.msra.mxu0 0
        %3335 = vmatprep.subr.bf16.mxu0 0
        %3336 = vmatpush1.bf16.msra.mxu0 0
        %3337 = vmatprep.subr.bf16.mxu0 0
        %3338 = vmatpush1.bf16.msra.mxu0 0
        %3339 = vmatprep.subr.bf16.mxu0 0
        %3340 = vmatpush1.bf16.msra.mxu0 0
        %3341 = vmatprep.subr.bf16.mxu0 0
        %3342 = vmatpush1.bf16.msra.mxu0 0
        %3343 = vmatprep.subr.bf16.mxu0 0
        %3344 = vmatpush1.bf16.msra.mxu0 0
        %3345 = vmatprep.subr.bf16.mxu0 0
        %3346 = vmatpush1.bf16.msra.mxu0 0
        %3347 = vmatprep.subr.bf16.mxu0 0
        %3348 = vmatpush1.bf16.msra.mxu0 0
        %3349 = vmatprep.subr.bf16.mxu0 0
        %3350 = vmatpush1.bf16.msra.mxu0 0
        %3351 = vmatprep.subr.bf16.mxu0 0
        %3352 = vmatpush1.bf16.msra.mxu0 0
        %3353 = vmatprep.subr.bf16.mxu0 0
        %3354 = vmatpush1.bf16.msra.mxu0 0
        %3355 = vmatprep.subr.bf16.mxu0 0
        %3356 = vmatpush1.bf16.msra.mxu0 0
        %3357 = vmatprep.subr.bf16.mxu0 0
        %3358 = vmatpush1.bf16.msra.mxu0 0
        %3359 = vmatprep.subr.bf16.mxu0 0
        %3360 = vmatpush1.bf16.msra.mxu0 0
        %3361 = vmatprep.mubr.bf16.mxu0 0
        %3362 = vmatmul.mubr.bf16.gmra.mrb[0].mxu0 %v3276
        %v3363 = vpop.f32.mrb[0].mxu0
        %v3364 = vadd.f32 0.0, %v3363
        %v3365 = vpop.f32.mrb[0].mxu0
        %v3366 = vadd.f32 0.0, %v3365
        %v3367 = vpop.f32.mrb[0].mxu0
        %v3368 = vadd.f32 0.0, %v3367
        %v3369 = vpop.f32.mrb[0].mxu0
        %v3370 = vadd.f32 0.0, %v3369
        %3371 = vmatprep.mubr.bf16.mxu0 0
        %3372 = vmatmul.mubr.bf16.gmra.mrb[0].mxu0 %v3279
        %v3373 = vpop.f32.mrb[0].mxu0
        %v3374 = vadd.f32 0.0, %v3373
        %v3375 = vpop.f32.mrb[0].mxu0
        %v3376 = vadd.f32 0.0, %v3375
        %v3377 = vpop.f32.mrb[0].mxu0
        %v3378 = vadd.f32 0.0, %v3377
        %v3379 = vpop.f32.mrb[0].mxu0
        %v3380 = vadd.f32 0.0, %v3379
        %3381 = vmatprep.mubr.bf16.mxu0 0
        %3382 = vmatmul.mubr.bf16.gmra.mrb[0].mxu0 %v3282
        %v3383 = vpop.f32.mrb[0].mxu0
        %v3384 = vadd.f32 0.0, %v3383
        %v3385 = vpop.f32.mrb[0].mxu0
        %v3386 = vadd.f32 0.0, %v3385
        %v3387 = vpop.f32.mrb[0].mxu0
        %v3388 = vadd.f32 0.0, %v3387
        %v3389 = vpop.f32.mrb[0].mxu0
        %v3390 = vadd.f32 0.0, %v3389
        %3391 = vmatprep.mubr.bf16.mxu0 0
        %3392 = vmatmul.mubr.bf16.gmra.mrb[0].mxu0 %v3285
        %v3393 = vpop.f32.mrb[0].mxu0
        %v3394 = vadd.f32 0.0, %v3393
        %v3395 = vpop.f32.mrb[0].mxu0
        %v3396 = vadd.f32 0.0, %v3395
        %v3397 = vpop.f32.mrb[0].mxu0
        %v3398 = vadd.f32 0.0, %v3397
        %v3399 = vpop.f32.mrb[0].mxu0
        %v3400 = vadd.f32 0.0, %v3399
        %3401 = vmatprep.mubr.bf16.mxu0 0
        %3402 = vmatmul.mubr.bf16.gmra.mrb[0].mxu0 %v3288
        %v3403 = vpop.f32.mrb[0].mxu0
        %v3404 = vadd.f32 0.0, %v3403
        %v3405 = vpop.f32.mrb[0].mxu0
        %v3406 = vadd.f32 0.0, %v3405
        %v3407 = vpop.f32.mrb[0].mxu0
        %v3408 = vadd.f32 0.0, %v3407
        %v3409 = vpop.f32.mrb[0].mxu0
        %v3410 = vadd.f32 0.0, %v3409
        %3411 = vmatprep.mubr.bf16.mxu0 0
        %3412 = vmatmul.mubr.bf16.gmra.mrb[0].mxu0 %v3291
        %v3413 = vpop.f32.mrb[0].mxu0
        %v3414 = vadd.f32 0.0, %v3413
        %v3415 = vpop.f32.mrb[0].mxu0
        %v3416 = vadd.f32 0.0, %v3415
        %v3417 = vpop.f32.mrb[0].mxu0
        %v3418 = vadd.f32 0.0, %v3417
        %v3419 = vpop.f32.mrb[0].mxu0
        %v3420 = vadd.f32 0.0, %v3419
        %3421 = vmatprep.mubr.bf16.mxu0 0
        %3422 = vmatmul.mubr.bf16.gmra.mrb[0].mxu0 %v3294
        %v3423 = vpop.f32.mrb[0].mxu0
        %v3424 = vadd.f32 0.0, %v3423
        %v3425 = vpop.f32.mrb[0].mxu0
        %v3426 = vadd.f32 0.0, %v3425
        %v3427 = vpop.f32.mrb[0].mxu0
        %v3428 = vadd.f32 0.0, %v3427
        %v3429 = vpop.f32.mrb[0].mxu0
        %v3430 = vadd.f32 0.0, %v3429
        %3431 = vmatprep.mubr.bf16.mxu0 0
        %3432 = vmatmul.mubr.bf16.gmra.mrb[0].mxu0 %v3297
        %v3433 = vpop.f32.mrb[0].mxu0
        %v3434 = vadd.f32 0.0, %v3433
        %v3435 = vpop.f32.mrb[0].mxu0
        %v3436 = vadd.f32 0.0, %v3435
        %v3437 = vpop.f32.mrb[0].mxu0
        %v3438 = vadd.f32 0.0, %v3437
        %v3439 = vpop.f32.mrb[0].mxu0
        %v3440 = vadd.f32 0.0, %v3439
        %3441 = vmatprep.mubr.bf16.mxu0 0
        %3442 = vmatmul.mubr.bf16.gmra.mrb[0].mxu0 %v3300
        %v3443 = vpop.f32.mrb[0].mxu0
        %v3444 = vadd.f32 0.0, %v3443
        %v3445 = vpop.f32.mrb[0].mxu0
        %v3446 = vadd.f32 0.0, %v3445
        %v3447 = vpop.f32.mrb[0].mxu0
        %v3448 = vadd.f32 0.0, %v3447
        %v3449 = vpop.f32.mrb[0].mxu0
        %v3450 = vadd.f32 0.0, %v3449
        %3451 = vmatprep.mubr.bf16.mxu0 0
        %3452 = vmatmul.mubr.bf16.gmra.mrb[0].mxu0 %v3303
        %v3453 = vpop.f32.mrb[0].mxu0
        %v3454 = vadd.f32 0.0, %v3453
        %v3455 = vpop.f32.mrb[0].mxu0
        %v3456 = vadd.f32 0.0, %v3455
        %v3457 = vpop.f32.mrb[0].mxu0
        %v3458 = vadd.f32 0.0, %v3457
        %v3459 = vpop.f32.mrb[0].mxu0
        %v3460 = vadd.f32 0.0, %v3459
        %3461 = vmatprep.mubr.bf16.mxu0 0
        %3462 = vmatmul.mubr.bf16.gmra.mrb[0].mxu0 %v3306
        %v3463 = vpop.f32.mrb[0].mxu0
        %v3464 = vadd.f32 0.0, %v3463
        %v3465 = vpop.f32.mrb[0].mxu0
        %v3466 = vadd.f32 0.0, %v3465
        %v3467 = vpop.f32.mrb[0].mxu0
        %v3468 = vadd.f32 0.0, %v3467
        %v3469 = vpop.f32.mrb[0].mxu0
        %v3470 = vadd.f32 0.0, %v3469
        %3471 = vmatprep.mubr.bf16.mxu0 0
        %3472 = vmatmul.mubr.bf16.gmra.mrb[0].mxu0 %v3309
        %v3473 = vpop.f32.mrb[0].mxu0
        %v3474 = vadd.f32 0.0, %v3473
        %v3475 = vpop.f32.mrb[0].mxu0
        %v3476 = vadd.f32 0.0, %v3475
        %v3477 = vpop.f32.mrb[0].mxu0
        %v3478 = vadd.f32 0.0, %v3477
        %v3479 = vpop.f32.mrb[0].mxu0
        %v3480 = vadd.f32 0.0, %v3479
        %3481 = vmatprep.mubr.bf16.mxu0 0
        %3482 = vmatmul.mubr.bf16.gmra.mrb[0].mxu0 %v3312
        %v3483 = vpop.f32.mrb[0].mxu0
        %v3484 = vadd.f32 0.0, %v3483
        %v3485 = vpop.f32.mrb[0].mxu0
        %v3486 = vadd.f32 0.0, %v3485
        %v3487 = vpop.f32.mrb[0].mxu0
        %v3488 = vadd.f32 0.0, %v3487
        %v3489 = vpop.f32.mrb[0].mxu0
        %v3490 = vadd.f32 0.0, %v3489
        %3491 = vmatprep.mubr.bf16.mxu0 0
        %3492 = vmatmul.mubr.bf16.gmra.mrb[0].mxu0 %v3315
        %v3493 = vpop.f32.mrb[0].mxu0
        %v3494 = vadd.f32 0.0, %v3493
        %v3495 = vpop.f32.mrb[0].mxu0
        %v3496 = vadd.f32 0.0, %v3495
        %v3497 = vpop.f32.mrb[0].mxu0
        %v3498 = vadd.f32 0.0, %v3497
        %v3499 = vpop.f32.mrb[0].mxu0
        %v3500 = vadd.f32 0.0, %v3499
        %3501 = vmatprep.mubr.bf16.mxu0 0
        %3502 = vmatmul.mubr.bf16.gmra.mrb[0].mxu0 %v3318
        %v3503 = vpop.f32.mrb[0].mxu0
        %v3504 = vadd.f32 0.0, %v3503
        %v3505 = vpop.f32.mrb[0].mxu0
        %v3506 = vadd.f32 0.0, %v3505
        %v3507 = vpop.f32.mrb[0].mxu0
        %v3508 = vadd.f32 0.0, %v3507
        %v3509 = vpop.f32.mrb[0].mxu0
        %v3510 = vadd.f32 0.0, %v3509
        %3511 = vmatprep.mubr.bf16.mxu0 0
        %3512 = vmatmul.mubr.bf16.gmra.mrb[0].mxu0 %v3321
        %v3513 = vpop.f32.mrb[0].mxu0
        %v3514 = vadd.f32 0.0, %v3513
        %v3515 = vpop.f32.mrb[0].mxu0
        %v3516 = vadd.f32 0.0, %v3515
        %v3517 = vpop.f32.mrb[0].mxu0
        %v3518 = vadd.f32 0.0, %v3517
        %v3519 = vpop.f32.mrb[0].mxu0
        %v3520 = vadd.f32 0.0, %v3519
        %3521 = vdwg.mxu0
        %v3522 = vmax.f32 %v3364, %v3366
        %3523 = vmax.xlane.f32.xlu0 %v3522
        %v3524 = vpop.xlane.xlu0 %3523
        %v3525 = vmax.f32 %v3368, %v3370
        %3526 = vmax.xlane.f32.xlu0 %v3525
        %v3527 = vpop.xlane.xlu0 %3526
        %v3528 = vmax.f32 %v3374, %v3376
        %3529 = vmax.xlane.f32.xlu0 %v3528
        %v3530 = vpop.xlane.xlu0 %3529
        %v3531 = vmax.f32 %v3378, %v3380
        %3532 = vmax.xlane.f32.xlu0 %v3531
        %v3533 = vpop.xlane.xlu0 %3532
        %v3534 = vmax.f32 %v3384, %v3386
        %3535 = vmax.xlane.f32.xlu0 %v3534
        %v3536 = vpop.xlane.xlu0 %3535
        %v3537 = vmax.f32 %v3388, %v3390
        %3538 = vmax.xlane.f32.xlu0 %v3537
        %v3539 = vpop.xlane.xlu0 %3538
        %v3540 = vmax.f32 %v3394, %v3396
        %3541 = vmax.xlane.f32.xlu0 %v3540
        %v3542 = vpop.xlane.xlu0 %3541
        %v3543 = vmax.f32 %v3398, %v3400
        %3544 = vmax.xlane.f32.xlu0 %v3543
        %v3545 = vpop.xlane.xlu0 %3544
        %v3546 = vmax.f32 %v3404, %v3406
        %3547 = vmax.xlane.f32.xlu0 %v3546
        %v3548 = vpop.xlane.xlu0 %3547
        %v3549 = vmax.f32 %v3408, %v3410
        %3550 = vmax.xlane.f32.xlu0 %v3549
        %v3551 = vpop.xlane.xlu0 %3550
        %v3552 = vmax.f32 %v3414, %v3416
        %3553 = vmax.xlane.f32.xlu0 %v3552
        %v3554 = vpop.xlane.xlu0 %3553
        %v3555 = vmax.f32 %v3418, %v3420
        %3556 = vmax.xlane.f32.xlu0 %v3555
        %v3557 = vpop.xlane.xlu0 %3556
        %v3558 = vmax.f32 %v3424, %v3426
        %3559 = vmax.xlane.f32.xlu0 %v3558
        %v3560 = vpop.xlane.xlu0 %3559
        %v3561 = vmax.f32 %v3428, %v3430
        %3562 = vmax.xlane.f32.xlu0 %v3561
        %v3563 = vpop.xlane.xlu0 %3562
        %v3564 = vmax.f32 %v3434, %v3436
        %3565 = vmax.xlane.f32.xlu0 %v3564
        %v3566 = vpop.xlane.xlu0 %3565
        %v3567 = vmax.f32 %v3438, %v3440
        %3568 = vmax.xlane.f32.xlu0 %v3567
        %v3569 = vpop.xlane.xlu0 %3568
        %v3570 = vmax.f32 %v3444, %v3446
        %3571 = vmax.xlane.f32.xlu0 %v3570
        %v3572 = vpop.xlane.xlu0 %3571
        %v3573 = vmax.f32 %v3448, %v3450
        %3574 = vmax.xlane.f32.xlu0 %v3573
        %v3575 = vpop.xlane.xlu0 %3574
        %v3576 = vmax.f32 %v3454, %v3456
        %3577 = vmax.xlane.f32.xlu0 %v3576
        %v3578 = vpop.xlane.xlu0 %3577
        %v3579 = vmax.f32 %v3458, %v3460
        %3580 = vmax.xlane.f32.xlu0 %v3579
        %v3581 = vpop.xlane.xlu0 %3580
        %v3582 = vmax.f32 %v3464, %v3466
        %3583 = vmax.xlane.f32.xlu0 %v3582
        %v3584 = vpop.xlane.xlu0 %3583
        %v3585 = vmax.f32 %v3468, %v3470
        %3586 = vmax.xlane.f32.xlu0 %v3585
        %v3587 = vpop.xlane.xlu0 %3586
        %v3588 = vmax.f32 %v3474, %v3476
        %3589 = vmax.xlane.f32.xlu0 %v3588
        %v3590 = vpop.xlane.xlu0 %3589
        %v3591 = vmax.f32 %v3478, %v3480
        %3592 = vmax.xlane.f32.xlu0 %v3591
        %v3593 = vpop.xlane.xlu0 %3592
        %v3594 = vmax.f32 %v3484, %v3486
        %3595 = vmax.xlane.f32.xlu0 %v3594
        %v3596 = vpop.xlane.xlu0 %3595
        %v3597 = vmax.f32 %v3488, %v3490
        %3598 = vmax.xlane.f32.xlu0 %v3597
        %v3599 = vpop.xlane.xlu0 %3598
        %v3600 = vmax.f32 %v3494, %v3496
        %3601 = vmax.xlane.f32.xlu0 %v3600
        %v3602 = vpop.xlane.xlu0 %3601
        %v3603 = vmax.f32 %v3498, %v3500
        %3604 = vmax.xlane.f32.xlu0 %v3603
        %v3605 = vpop.xlane.xlu0 %3604
        %v3606 = vmax.f32 %v3504, %v3506
        %3607 = vmax.xlane.f32.xlu0 %v3606
        %v3608 = vpop.xlane.xlu0 %3607
        %v3609 = vmax.f32 %v3508, %v3510
        %3610 = vmax.xlane.f32.xlu0 %v3609
        %v3611 = vpop.xlane.xlu0 %3610
        %v3612 = vmax.f32 %v3514, %v3516
        %3613 = vmax.xlane.f32.xlu0 %v3612
        %v3614 = vpop.xlane.xlu0 %3613
        %v3615 = vmax.f32 %v3518, %v3520
        %3616 = vmax.xlane.f32.xlu0 %v3615
        %v3617 = vpop.xlane.xlu0 %3616
        %v3618 = vsub.f32 %v3364, %v3524
        %v3619 = vsub.f32 %v3366, %v3524
        %v3620 = vsub.f32 %v3368, %v3527
        %v3621 = vsub.f32 %v3370, %v3527
        %v3622 = vsub.f32 %v3374, %v3530
        %v3623 = vsub.f32 %v3376, %v3530
        %v3624 = vsub.f32 %v3378, %v3533
        %v3625 = vsub.f32 %v3380, %v3533
        %v3626 = vsub.f32 %v3384, %v3536
        %v3627 = vsub.f32 %v3386, %v3536
        %v3628 = vsub.f32 %v3388, %v3539
        %v3629 = vsub.f32 %v3390, %v3539
        %v3630 = vsub.f32 %v3394, %v3542
        %v3631 = vsub.f32 %v3396, %v3542
        %v3632 = vsub.f32 %v3398, %v3545
        %v3633 = vsub.f32 %v3400, %v3545
        %v3634 = vsub.f32 %v3404, %v3548
        %v3635 = vsub.f32 %v3406, %v3548
        %v3636 = vsub.f32 %v3408, %v3551
        %v3637 = vsub.f32 %v3410, %v3551
        %v3638 = vsub.f32 %v3414, %v3554
        %v3639 = vsub.f32 %v3416, %v3554
        %v3640 = vsub.f32 %v3418, %v3557
        %v3641 = vsub.f32 %v3420, %v3557
        %v3642 = vsub.f32 %v3424, %v3560
        %v3643 = vsub.f32 %v3426, %v3560
        %v3644 = vsub.f32 %v3428, %v3563
        %v3645 = vsub.f32 %v3430, %v3563
        %v3646 = vsub.f32 %v3434, %v3566
        %v3647 = vsub.f32 %v3436, %v3566
        %v3648 = vsub.f32 %v3438, %v3569
        %v3649 = vsub.f32 %v3440, %v3569
        %v3650 = vsub.f32 %v3444, %v3572
        %v3651 = vsub.f32 %v3446, %v3572
        %v3652 = vsub.f32 %v3448, %v3575
        %v3653 = vsub.f32 %v3450, %v3575
        %v3654 = vsub.f32 %v3454, %v3578
        %v3655 = vsub.f32 %v3456, %v3578
        %v3656 = vsub.f32 %v3458, %v3581
        %v3657 = vsub.f32 %v3460, %v3581
        %v3658 = vsub.f32 %v3464, %v3584
        %v3659 = vsub.f32 %v3466, %v3584
        %v3660 = vsub.f32 %v3468, %v3587
        %v3661 = vsub.f32 %v3470, %v3587
        %v3662 = vsub.f32 %v3474, %v3590
        %v3663 = vsub.f32 %v3476, %v3590
        %v3664 = vsub.f32 %v3478, %v3593
        %v3665 = vsub.f32 %v3480, %v3593
        %v3666 = vsub.f32 %v3484, %v3596
        %v3667 = vsub.f32 %v3486, %v3596
        %v3668 = vsub.f32 %v3488, %v3599
        %v3669 = vsub.f32 %v3490, %v3599
        %v3670 = vsub.f32 %v3494, %v3602
        %v3671 = vsub.f32 %v3496, %v3602
        %v3672 = vsub.f32 %v3498, %v3605
        %v3673 = vsub.f32 %v3500, %v3605
        %v3674 = vsub.f32 %v3504, %v3608
        %v3675 = vsub.f32 %v3506, %v3608
        %v3676 = vsub.f32 %v3508, %v3611
        %v3677 = vsub.f32 %v3510, %v3611
        %v3678 = vsub.f32 %v3514, %v3614
        %v3679 = vsub.f32 %v3516, %v3614
        %v3680 = vsub.f32 %v3518, %v3617
        %v3681 = vsub.f32 %v3520, %v3617
        %v3682 = vmul.f32 %v3618, 1.442695
        %v3683 = vpow.pop %v3682
        %v3684 = vmul.f32 %v3619, 1.442695
        %v3685 = vpow.pop %v3684
        %v3686 = vmul.f32 %v3620, 1.442695
        %v3687 = vpow.pop %v3686
        %v3688 = vmul.f32 %v3621, 1.442695
        %v3689 = vpow.pop %v3688
        %v3690 = vmul.f32 %v3622, 1.442695
        %v3691 = vpow.pop %v3690
        %v3692 = vmul.f32 %v3623, 1.442695
        %v3693 = vpow.pop %v3692
        %v3694 = vmul.f32 %v3624, 1.442695
        %v3695 = vpow.pop %v3694
        %v3696 = vmul.f32 %v3625, 1.442695
        %v3697 = vpow.pop %v3696
        %v3698 = vmul.f32 %v3626, 1.442695
        %v3699 = vpow.pop %v3698
        %v3700 = vmul.f32 %v3627, 1.442695
        %v3701 = vpow.pop %v3700
        %v3702 = vmul.f32 %v3628, 1.442695
        %v3703 = vpow.pop %v3702
        %v3704 = vmul.f32 %v3629, 1.442695
        %v3705 = vpow.pop %v3704
        %v3706 = vmul.f32 %v3630, 1.442695
        %v3707 = vpow.pop %v3706
        %v3708 = vmul.f32 %v3631, 1.442695
        %v3709 = vpow.pop %v3708
        %v3710 = vmul.f32 %v3632, 1.442695
        %v3711 = vpow.pop %v3710
        %v3712 = vmul.f32 %v3633, 1.442695
        %v3713 = vpow.pop %v3712
        %v3714 = vmul.f32 %v3634, 1.442695
        %v3715 = vpow.pop %v3714
        %v3716 = vmul.f32 %v3635, 1.442695
        %v3717 = vpow.pop %v3716
        %v3718 = vmul.f32 %v3636, 1.442695
        %v3719 = vpow.pop %v3718
        %v3720 = vmul.f32 %v3637, 1.442695
        %v3721 = vpow.pop %v3720
        %v3722 = vmul.f32 %v3638, 1.442695
        %v3723 = vpow.pop %v3722
        %v3724 = vmul.f32 %v3639, 1.442695
        %v3725 = vpow.pop %v3724
        %v3726 = vmul.f32 %v3640, 1.442695
        %v3727 = vpow.pop %v3726
        %v3728 = vmul.f32 %v3641, 1.442695
        %v3729 = vpow.pop %v3728
        %v3730 = vmul.f32 %v3642, 1.442695
        %v3731 = vpow.pop %v3730
        %v3732 = vmul.f32 %v3643, 1.442695
        %v3733 = vpow.pop %v3732
        %v3734 = vmul.f32 %v3644, 1.442695
        %v3735 = vpow.pop %v3734
        %v3736 = vmul.f32 %v3645, 1.442695
        %v3737 = vpow.pop %v3736
        %v3738 = vmul.f32 %v3646, 1.442695
        %v3739 = vpow.pop %v3738
        %v3740 = vmul.f32 %v3647, 1.442695
        %v3741 = vpow.pop %v3740
        %v3742 = vmul.f32 %v3648, 1.442695
        %v3743 = vpow.pop %v3742
        %v3744 = vmul.f32 %v3649, 1.442695
        %v3745 = vpow.pop %v3744
        %v3746 = vmul.f32 %v3650, 1.442695
        %v3747 = vpow.pop %v3746
        %v3748 = vmul.f32 %v3651, 1.442695
        %v3749 = vpow.pop %v3748
        %v3750 = vmul.f32 %v3652, 1.442695
        %v3751 = vpow.pop %v3750
        %v3752 = vmul.f32 %v3653, 1.442695
        %v3753 = vpow.pop %v3752
        %v3754 = vmul.f32 %v3654, 1.442695
        %v3755 = vpow.pop %v3754
        %v3756 = vmul.f32 %v3655, 1.442695
        %v3757 = vpow.pop %v3756
        %v3758 = vmul.f32 %v3656, 1.442695
        %v3759 = vpow.pop %v3758
        %v3760 = vmul.f32 %v3657, 1.442695
        %v3761 = vpow.pop %v3760
        %v3762 = vmul.f32 %v3658, 1.442695
        %v3763 = vpow.pop %v3762
        %v3764 = vmul.f32 %v3659, 1.442695
        %v3765 = vpow.pop %v3764
        %v3766 = vmul.f32 %v3660, 1.442695
        %v3767 = vpow.pop %v3766
        %v3768 = vmul.f32 %v3661, 1.442695
        %v3769 = vpow.pop %v3768
        %v3770 = vmul.f32 %v3662, 1.442695
        %v3771 = vpow.pop %v3770
        %v3772 = vmul.f32 %v3663, 1.442695
        %v3773 = vpow.pop %v3772
        %v3774 = vmul.f32 %v3664, 1.442695
        %v3775 = vpow.pop %v3774
        %v3776 = vmul.f32 %v3665, 1.442695
        %v3777 = vpow.pop %v3776
        %v3778 = vmul.f32 %v3666, 1.442695
        %v3779 = vpow.pop %v3778
        %v3780 = vmul.f32 %v3667, 1.442695
        %v3781 = vpow.pop %v3780
        %v3782 = vmul.f32 %v3668, 1.442695
        %v3783 = vpow.pop %v3782
        %v3784 = vmul.f32 %v3669, 1.442695
        %v3785 = vpow.pop %v3784
        %v3786 = vmul.f32 %v3670, 1.442695
        %v3787 = vpow.pop %v3786
        %v3788 = vmul.f32 %v3671, 1.442695
        %v3789 = vpow.pop %v3788
        %v3790 = vmul.f32 %v3672, 1.442695
        %v3791 = vpow.pop %v3790
        %v3792 = vmul.f32 %v3673, 1.442695
        %v3793 = vpow.pop %v3792
        %v3794 = vmul.f32 %v3674, 1.442695
        %v3795 = vpow.pop %v3794
        %v3796 = vmul.f32 %v3675, 1.442695
        %v3797 = vpow.pop %v3796
        %v3798 = vmul.f32 %v3676, 1.442695
        %v3799 = vpow.pop %v3798
        %v3800 = vmul.f32 %v3677, 1.442695
        %v3801 = vpow.pop %v3800
        %v3802 = vmul.f32 %v3678, 1.442695
        %v3803 = vpow.pop %v3802
        %v3804 = vmul.f32 %v3679, 1.442695
        %v3805 = vpow.pop %v3804
        %v3806 = vmul.f32 %v3680, 1.442695
        %v3807 = vpow.pop %v3806
        %v3808 = vmul.f32 %v3681, 1.442695
        %v3809 = vpow.pop %v3808
        %v3810 = vadd.f32 %v3683, %v3685
        %3811 = vadd.xlane.f32.xlu0 %v3810
        %v3812 = vpop.xlane.xlu0 %3811
        %v3813 = vadd.f32 %v3687, %v3689
        %3814 = vadd.xlane.f32.xlu0 %v3813
        %v3815 = vpop.xlane.xlu0 %3814
        %v3816 = vadd.f32 %v3691, %v3693
        %3817 = vadd.xlane.f32.xlu0 %v3816
        %v3818 = vpop.xlane.xlu0 %3817
        %v3819 = vadd.f32 %v3695, %v3697
        %3820 = vadd.xlane.f32.xlu0 %v3819
        %v3821 = vpop.xlane.xlu0 %3820
        %v3822 = vadd.f32 %v3699, %v3701
        %3823 = vadd.xlane.f32.xlu0 %v3822
        %v3824 = vpop.xlane.xlu0 %3823
        %v3825 = vadd.f32 %v3703, %v3705
        %3826 = vadd.xlane.f32.xlu0 %v3825
        %v3827 = vpop.xlane.xlu0 %3826
        %v3828 = vadd.f32 %v3707, %v3709
        %3829 = vadd.xlane.f32.xlu0 %v3828
        %v3830 = vpop.xlane.xlu0 %3829
        %v3831 = vadd.f32 %v3711, %v3713
        %3832 = vadd.xlane.f32.xlu0 %v3831
        %v3833 = vpop.xlane.xlu0 %3832
        %v3834 = vadd.f32 %v3715, %v3717
        %3835 = vadd.xlane.f32.xlu0 %v3834
        %v3836 = vpop.xlane.xlu0 %3835
        %v3837 = vadd.f32 %v3719, %v3721
        %3838 = vadd.xlane.f32.xlu0 %v3837
        %v3839 = vpop.xlane.xlu0 %3838
        %v3840 = vadd.f32 %v3723, %v3725
        %3841 = vadd.xlane.f32.xlu0 %v3840
        %v3842 = vpop.xlane.xlu0 %3841
        %v3843 = vadd.f32 %v3727, %v3729
        %3844 = vadd.xlane.f32.xlu0 %v3843
        %v3845 = vpop.xlane.xlu0 %3844
        %v3846 = vadd.f32 %v3731, %v3733
        %3847 = vadd.xlane.f32.xlu0 %v3846
        %v3848 = vpop.xlane.xlu0 %3847
        %v3849 = vadd.f32 %v3735, %v3737
        %3850 = vadd.xlane.f32.xlu0 %v3849
        %v3851 = vpop.xlane.xlu0 %3850
        %v3852 = vadd.f32 %v3739, %v3741
        %3853 = vadd.xlane.f32.xlu0 %v3852
        %v3854 = vpop.xlane.xlu0 %3853
        %v3855 = vadd.f32 %v3743, %v3745
        %3856 = vadd.xlane.f32.xlu0 %v3855
        %v3857 = vpop.xlane.xlu0 %3856
        %v3858 = vadd.f32 %v3747, %v3749
        %3859 = vadd.xlane.f32.xlu0 %v3858
        %v3860 = vpop.xlane.xlu0 %3859
        %v3861 = vadd.f32 %v3751, %v3753
        %3862 = vadd.xlane.f32.xlu0 %v3861
        %v3863 = vpop.xlane.xlu0 %3862
        %v3864 = vadd.f32 %v3755, %v3757
        %3865 = vadd.xlane.f32.xlu0 %v3864
        %v3866 = vpop.xlane.xlu0 %3865
        %v3867 = vadd.f32 %v3759, %v3761
        %3868 = vadd.xlane.f32.xlu0 %v3867
        %v3869 = vpop.xlane.xlu0 %3868
        %v3870 = vadd.f32 %v3763, %v3765
        %3871 = vadd.xlane.f32.xlu0 %v3870
        %v3872 = vpop.xlane.xlu0 %3871
        %v3873 = vadd.f32 %v3767, %v3769
        %3874 = vadd.xlane.f32.xlu0 %v3873
        %v3875 = vpop.xlane.xlu0 %3874
        %v3876 = vadd.f32 %v3771, %v3773
        %3877 = vadd.xlane.f32.xlu0 %v3876
        %v3878 = vpop.xlane.xlu0 %3877
        %v3879 = vadd.f32 %v3775, %v3777
        %3880 = vadd.xlane.f32.xlu0 %v3879
        %v3881 = vpop.xlane.xlu0 %3880
        %v3882 = vadd.f32 %v3779, %v3781
        %3883 = vadd.xlane.f32.xlu0 %v3882
        %v3884 = vpop.xlane.xlu0 %3883
        %v3885 = vadd.f32 %v3783, %v3785
        %3886 = vadd.xlane.f32.xlu0 %v3885
        %v3887 = vpop.xlane.xlu0 %3886
        %v3888 = vadd.f32 %v3787, %v3789
        %3889 = vadd.xlane.f32.xlu0 %v3888
        %v3890 = vpop.xlane.xlu0 %3889
        %v3891 = vadd.f32 %v3791, %v3793
        %3892 = vadd.xlane.f32.xlu0 %v3891
        %v3893 = vpop.xlane.xlu0 %3892
        %v3894 = vadd.f32 %v3795, %v3797
        %3895 = vadd.xlane.f32.xlu0 %v3894
        %v3896 = vpop.xlane.xlu0 %3895
        %v3897 = vadd.f32 %v3799, %v3801
        %3898 = vadd.xlane.f32.xlu0 %v3897
        %v3899 = vpop.xlane.xlu0 %3898
        %v3900 = vadd.f32 %v3803, %v3805
        %3901 = vadd.xlane.f32.xlu0 %v3900
        %v3902 = vpop.xlane.xlu0 %3901
        %v3903 = vadd.f32 %v3807, %v3809
        %3904 = vadd.xlane.f32.xlu0 %v3903
        %v3905 = vpop.xlane.xlu0 %3904
        %v3906 = vrcp.pop %v3812
        %v3907 = vrcp.pop %v3815
        %v3908 = vrcp.pop %v3818
        %v3909 = vrcp.pop %v3821
        %v3910 = vrcp.pop %v3824
        %v3911 = vrcp.pop %v3827
        %v3912 = vrcp.pop %v3830
        %v3913 = vrcp.pop %v3833
        %v3914 = vrcp.pop %v3836
        %v3915 = vrcp.pop %v3839
        %v3916 = vrcp.pop %v3842
        %v3917 = vrcp.pop %v3845
        %v3918 = vrcp.pop %v3848
        %v3919 = vrcp.pop %v3851
        %v3920 = vrcp.pop %v3854
        %v3921 = vrcp.pop %v3857
        %v3922 = vrcp.pop %v3860
        %v3923 = vrcp.pop %v3863
        %v3924 = vrcp.pop %v3866
        %v3925 = vrcp.pop %v3869
        %v3926 = vrcp.pop %v3872
        %v3927 = vrcp.pop %v3875
        %v3928 = vrcp.pop %v3878
        %v3929 = vrcp.pop %v3881
        %v3930 = vrcp.pop %v3884
        %v3931 = vrcp.pop %v3887
        %v3932 = vrcp.pop %v3890
        %v3933 = vrcp.pop %v3893
        %v3934 = vrcp.pop %v3896
        %v3935 = vrcp.pop %v3899
        %v3936 = vrcp.pop %v3902
        %v3937 = vrcp.pop %v3905
        %v3938 = vmul.f32 %v3683, %v3906
        %v3939 = vmul.f32 %v3685, %v3906
        %v3940 = vmul.f32 %v3687, %v3907
        %v3941 = vmul.f32 %v3689, %v3907
        %v3942 = vmul.f32 %v3691, %v3908
        %v3943 = vmul.f32 %v3693, %v3908
        %v3944 = vmul.f32 %v3695, %v3909
        %v3945 = vmul.f32 %v3697, %v3909
        %v3946 = vmul.f32 %v3699, %v3910
        %v3947 = vmul.f32 %v3701, %v3910
        %v3948 = vmul.f32 %v3703, %v3911
        %v3949 = vmul.f32 %v3705, %v3911
        %v3950 = vmul.f32 %v3707, %v3912
        %v3951 = vmul.f32 %v3709, %v3912
        %v3952 = vmul.f32 %v3711, %v3913
        %v3953 = vmul.f32 %v3713, %v3913
        %v3954 = vmul.f32 %v3715, %v3914
        %v3955 = vmul.f32 %v3717, %v3914
        %v3956 = vmul.f32 %v3719, %v3915
        %v3957 = vmul.f32 %v3721, %v3915
        %v3958 = vmul.f32 %v3723, %v3916
        %v3959 = vmul.f32 %v3725, %v3916
        %v3960 = vmul.f32 %v3727, %v3917
        %v3961 = vmul.f32 %v3729, %v3917
        %v3962 = vmul.f32 %v3731, %v3918
        %v3963 = vmul.f32 %v3733, %v3918
        %v3964 = vmul.f32 %v3735, %v3919
        %v3965 = vmul.f32 %v3737, %v3919
        %v3966 = vmul.f32 %v3739, %v3920
        %v3967 = vmul.f32 %v3741, %v3920
        %v3968 = vmul.f32 %v3743, %v3921
        %v3969 = vmul.f32 %v3745, %v3921
        %v3970 = vmul.f32 %v3747, %v3922
        %v3971 = vmul.f32 %v3749, %v3922
        %v3972 = vmul.f32 %v3751, %v3923
        %v3973 = vmul.f32 %v3753, %v3923
        %v3974 = vmul.f32 %v3755, %v3924
        %v3975 = vmul.f32 %v3757, %v3924
        %v3976 = vmul.f32 %v3759, %v3925
        %v3977 = vmul.f32 %v3761, %v3925
        %v3978 = vmul.f32 %v3763, %v3926
        %v3979 = vmul.f32 %v3765, %v3926
        %v3980 = vmul.f32 %v3767, %v3927
        %v3981 = vmul.f32 %v3769, %v3927
        %v3982 = vmul.f32 %v3771, %v3928
        %v3983 = vmul.f32 %v3773, %v3928
        %v3984 = vmul.f32 %v3775, %v3929
        %v3985 = vmul.f32 %v3777, %v3929
        %v3986 = vmul.f32 %v3779, %v3930
        %v3987 = vmul.f32 %v3781, %v3930
        %v3988 = vmul.f32 %v3783, %v3931
        %v3989 = vmul.f32 %v3785, %v3931
        %v3990 = vmul.f32 %v3787, %v3932
        %v3991 = vmul.f32 %v3789, %v3932
        %v3992 = vmul.f32 %v3791, %v3933
        %v3993 = vmul.f32 %v3793, %v3933
        %v3994 = vmul.f32 %v3795, %v3934
        %v3995 = vmul.f32 %v3797, %v3934
        %v3996 = vmul.f32 %v3799, %v3935
        %v3997 = vmul.f32 %v3801, %v3935
        %v3998 = vmul.f32 %v3803, %v3936
        %v3999 = vmul.f32 %v3805, %v3936
        %v4000 = vmul.f32 %v3807, %v3937
        %v4001 = vmul.f32 %v3809, %v3937
        %v4002 = vpack.c.bf16 %v3940, %v3938
        %v4003 = vpack.c.bf16 %v3941, %v3939
        %v4004 = vpack.c.bf16 %v3944, %v3942
        %v4005 = vpack.c.bf16 %v3945, %v3943
        %v4006 = vpack.c.bf16 %v3948, %v3946
        %v4007 = vpack.c.bf16 %v3949, %v3947
        %v4008 = vpack.c.bf16 %v3952, %v3950
        %v4009 = vpack.c.bf16 %v3953, %v3951
        %v4010 = vpack.c.bf16 %v3956, %v3954
        %v4011 = vpack.c.bf16 %v3957, %v3955
        %v4012 = vpack.c.bf16 %v3960, %v3958
        %v4013 = vpack.c.bf16 %v3961, %v3959
        %v4014 = vpack.c.bf16 %v3964, %v3962
        %v4015 = vpack.c.bf16 %v3965, %v3963
        %v4016 = vpack.c.bf16 %v3968, %v3966
        %v4017 = vpack.c.bf16 %v3969, %v3967
        %v4018 = vpack.c.bf16 %v3972, %v3970
        %v4019 = vpack.c.bf16 %v3973, %v3971
        %v4020 = vpack.c.bf16 %v3976, %v3974
        %v4021 = vpack.c.bf16 %v3977, %v3975
        %v4022 = vpack.c.bf16 %v3980, %v3978
        %v4023 = vpack.c.bf16 %v3981, %v3979
        %v4024 = vpack.c.bf16 %v3984, %v3982
        %v4025 = vpack.c.bf16 %v3985, %v3983
        %v4026 = vpack.c.bf16 %v3988, %v3986
        %v4027 = vpack.c.bf16 %v3989, %v3987
        %v4028 = vpack.c.bf16 %v3992, %v3990
        %v4029 = vpack.c.bf16 %v3993, %v3991
        %v4030 = vpack.c.bf16 %v3996, %v3994
        %v4031 = vpack.c.bf16 %v3997, %v3995
        %v4032 = vpack.c.bf16 %v4000, %v3998
        %v4033 = vpack.c.bf16 %v4001, %v3999
        %4034 = vmatprep.subr.bf16.mxu0 %v4003
        %4035 = vmatpush1.bf16.xpose.msra.mxu0 %v4002
        %4036 = vmatprep.subr.bf16.mxu0 %v4005
        %4037 = vmatpush1.bf16.xpose.msra.mxu0 %v4004
        %4038 = vmatprep.subr.bf16.mxu0 %v4007
        %4039 = vmatpush1.bf16.xpose.msra.mxu0 %v4006
        %4040 = vmatprep.subr.bf16.mxu0 %v4009
        %4041 = vmatpush1.bf16.xpose.msra.mxu0 %v4008
        %4042 = vmatprep.subr.bf16.mxu0 %v4011
        %4043 = vmatpush1.bf16.xpose.msra.mxu0 %v4010
        %4044 = vmatprep.subr.bf16.mxu0 %v4013
        %4045 = vmatpush1.bf16.xpose.msra.mxu0 %v4012
        %4046 = vmatprep.subr.bf16.mxu0 %v4015
        %4047 = vmatpush1.bf16.xpose.msra.mxu0 %v4014
        %4048 = vmatprep.subr.bf16.mxu0 %v4017
        %4049 = vmatpush1.bf16.xpose.msra.mxu0 %v4016
        %4050 = vmatprep.subr.bf16.mxu0 %v4019
        %4051 = vmatpush1.bf16.xpose.msra.mxu0 %v4018
        %4052 = vmatprep.subr.bf16.mxu0 %v4021
        %4053 = vmatpush1.bf16.xpose.msra.mxu0 %v4020
        %4054 = vmatprep.subr.bf16.mxu0 %v4023
        %4055 = vmatpush1.bf16.xpose.msra.mxu0 %v4022
        %4056 = vmatprep.subr.bf16.mxu0 %v4025
        %4057 = vmatpush1.bf16.xpose.msra.mxu0 %v4024
        %4058 = vmatprep.subr.bf16.mxu0 %v4027
        %4059 = vmatpush1.bf16.xpose.msra.mxu0 %v4026
        %4060 = vmatprep.subr.bf16.mxu0 %v4029
        %4061 = vmatpush1.bf16.xpose.msra.mxu0 %v4028
        %4062 = vmatprep.subr.bf16.mxu0 %v4031
        %4063 = vmatpush1.bf16.xpose.msra.mxu0 %v4030
        %4064 = vmatprep.subr.bf16.mxu0 %v4033
        %4065 = vmatpush1.bf16.xpose.msra.mxu0 %v4032
        %4066 = vmatprep.mubr.bf16.mxu0 %v3242
        %4067 = vmatmul.mubr.bf16.gmra.mrb[0].mxu0 %v3241
        %v4068 = vpop.f32.mrb[0].mxu0
        %v4069 = vadd.f32 0.0, %v4068
        %v4070 = vpop.f32.mrb[0].mxu0
        %v4071 = vadd.f32 0.0, %v4070
        %v4072 = vpop.f32.mrb[0].mxu0
        %v4073 = vpop.f32.mrb[0].mxu0
        %4074 = vdwg.mxu0
        %4075 = vst [vmem:[#allocation3 + $0x30] sm:$0xff] %v4069
        %4076 = vst [vmem:[#allocation3 + $0x38] sm:$0xff] %v4071
        %v4077 = vpack.c.bf16 %v681, %v681
        %v4078 = vpack.c.bf16 %v683, %v683
        %v4079 = vld [vmem:[#allocation2 + $0x40] sm:$0xff]
        %v4080 = vld [vmem:[#allocation2 + $0x48] sm:$0xff]
        %v4081 = vpack.c.bf16 %v4079, %v4079
        %v4082 = vpack.c.bf16 %v4080, %v4080
        %v4083 = vld [vmem:[#allocation2 + $0xc0] sm:$0xff]
        %v4084 = vld [vmem:[#allocation2 + $0xc8] sm:$0xff]
        %v4085 = vpack.c.bf16 %v4083, %v4083
        %v4086 = vpack.c.bf16 %v4084, %v4084
        %4087 = vxpose.xlu0.c.b16.start [1/8] %v4077, 128
        %4088 = vxpose.xlu0.c.b16.cont [2/8] 0, 128
        %4089 = vxpose.xlu0.c.b16.cont [3/8] 0, 128
        %4090 = vxpose.xlu0.c.b16.cont [4/8] 0, 128
        %4091 = vxpose.xlu0.c.b16.cont [5/8] 0, 128
        %4092 = vxpose.xlu0.c.b16.cont [6/8] 0, 128
        %4093 = vxpose.xlu0.c.b16.cont [7/8] 0, 128
        %4094 = vxpose.xlu0.c.b16.end [8/8] 0, 128
        %v4095 = vpop.trf.xlu0
        %v4096 = vpop.trf.xlu0
        %v4097 = vpop.trf.xlu0
        %v4098 = vpop.trf.xlu0
        %v4099 = vpop.trf.xlu0
        %v4100 = vpop.trf.xlu0
        %v4101 = vpop.trf.xlu0
        %v4102 = vpop.trf.xlu0
        %4103 = vxpose.xlu0.c.b16.start [1/8] %v4078, 128
        %4104 = vxpose.xlu0.c.b16.cont [2/8] 0, 128
        %4105 = vxpose.xlu0.c.b16.cont [3/8] 0, 128
        %4106 = vxpose.xlu0.c.b16.cont [4/8] 0, 128
        %4107 = vxpose.xlu0.c.b16.cont [5/8] 0, 128
        %4108 = vxpose.xlu0.c.b16.cont [6/8] 0, 128
        %4109 = vxpose.xlu0.c.b16.cont [7/8] 0, 128
        %4110 = vxpose.xlu0.c.b16.end [8/8] 0, 128
        %v4111 = vpop.trf.xlu0
        %v4112 = vpop.trf.xlu0
        %v4113 = vpop.trf.xlu0
        %v4114 = vpop.trf.xlu0
        %v4115 = vpop.trf.xlu0
        %v4116 = vpop.trf.xlu0
        %v4117 = vpop.trf.xlu0
        %v4118 = vpop.trf.xlu0
        %v4120 = vsel %vm741, %v4095, 0
        %v4123 = vsel %vm741, %v4096, 0
        %v4126 = vsel %vm741, %v4097, 0
        %v4129 = vsel %vm741, %v4098, 0
        %v4132 = vsel %vm741, %v4099, 0
        %v4135 = vsel %vm741, %v4100, 0
        %v4138 = vsel %vm741, %v4101, 0
        %v4141 = vsel %vm741, %v4102, 0
        %v4144 = vsel %vm741, %v4111, 0
        %v4147 = vsel %vm741, %v4112, 0
        %v4150 = vsel %vm741, %v4113, 0
        %v4153 = vsel %vm741, %v4114, 0
        %v4156 = vsel %vm741, %v4115, 0
        %v4159 = vsel %vm741, %v4116, 0
        %v4162 = vsel %vm741, %v4117, 0
        %v4165 = vsel %vm741, %v4118, 0
        %v4168 = vsel %vm790, %v4081, 0
        %v4171 = vsel %vm790, %v4082, 0
        %4173 = vmatprep.subr.bf16.mxu0 %v4171
        %4174 = vmatpush1.bf16.msra.mxu0 %v4168
        %4175 = vmatprep.subr.bf16.mxu0 0
        %4176 = vmatpush1.bf16.msra.mxu0 0
        %4177 = vmatprep.subr.bf16.mxu0 0
        %4178 = vmatpush1.bf16.msra.mxu0 0
        %4179 = vmatprep.subr.bf16.mxu0 0
        %4180 = vmatpush1.bf16.msra.mxu0 0
        %4181 = vmatprep.subr.bf16.mxu0 0
        %4182 = vmatpush1.bf16.msra.mxu0 0
        %4183 = vmatprep.subr.bf16.mxu0 0
        %4184 = vmatpush1.bf16.msra.mxu0 0
        %4185 = vmatprep.subr.bf16.mxu0 0
        %4186 = vmatpush1.bf16.msra.mxu0 0
        %4187 = vmatprep.subr.bf16.mxu0 0
        %4188 = vmatpush1.bf16.msra.mxu0 0
        %4189 = vmatprep.subr.bf16.mxu0 0
        %4190 = vmatpush1.bf16.msra.mxu0 0
        %4191 = vmatprep.subr.bf16.mxu0 0
        %4192 = vmatpush1.bf16.msra.mxu0 0
        %4193 = vmatprep.subr.bf16.mxu0 0
        %4194 = vmatpush1.bf16.msra.mxu0 0
        %4195 = vmatprep.subr.bf16.mxu0 0
        %4196 = vmatpush1.bf16.msra.mxu0 0
        %4197 = vmatprep.subr.bf16.mxu0 0
        %4198 = vmatpush1.bf16.msra.mxu0 0
        %4199 = vmatprep.subr.bf16.mxu0 0
        %4200 = vmatpush1.bf16.msra.mxu0 0
        %4201 = vmatprep.subr.bf16.mxu0 0
        %4202 = vmatpush1.bf16.msra.mxu0 0
        %4203 = vmatprep.subr.bf16.mxu0 0
        %4204 = vmatpush1.bf16.msra.mxu0 0
        %4205 = vmatprep.mubr.bf16.mxu0 0
        %4206 = vmatmul.mubr.bf16.gmra.mrb[0].mxu0 %v4120
        %v4207 = vpop.f32.mrb[0].mxu0
        %v4208 = vadd.f32 0.0, %v4207
        %v4209 = vpop.f32.mrb[0].mxu0
        %v4210 = vadd.f32 0.0, %v4209
        %v4211 = vpop.f32.mrb[0].mxu0
        %v4212 = vadd.f32 0.0, %v4211
        %v4213 = vpop.f32.mrb[0].mxu0
        %v4214 = vadd.f32 0.0, %v4213
        %4215 = vmatprep.mubr.bf16.mxu0 0
        %4216 = vmatmul.mubr.bf16.gmra.mrb[0].mxu0 %v4123
        %v4217 = vpop.f32.mrb[0].mxu0
        %v4218 = vadd.f32 0.0, %v4217
        %v4219 = vpop.f32.mrb[0].mxu0
        %v4220 = vadd.f32 0.0, %v4219
        %v4221 = vpop.f32.mrb[0].mxu0
        %v4222 = vadd.f32 0.0, %v4221
        %v4223 = vpop.f32.mrb[0].mxu0
        %v4224 = vadd.f32 0.0, %v4223
        %4225 = vmatprep.mubr.bf16.mxu0 0
        %4226 = vmatmul.mubr.bf16.gmra.mrb[0].mxu0 %v4126
        %v4227 = vpop.f32.mrb[0].mxu0
        %v4228 = vadd.f32 0.0, %v4227
        %v4229 = vpop.f32.mrb[0].mxu0
        %v4230 = vadd.f32 0.0, %v4229
        %v4231 = vpop.f32.mrb[0].mxu0
        %v4232 = vadd.f32 0.0, %v4231
        %v4233 = vpop.f32.mrb[0].mxu0
        %v4234 = vadd.f32 0.0, %v4233
        %4235 = vmatprep.mubr.bf16.mxu0 0
        %4236 = vmatmul.mubr.bf16.gmra.mrb[0].mxu0 %v4129
        %v4237 = vpop.f32.mrb[0].mxu0
        %v4238 = vadd.f32 0.0, %v4237
        %v4239 = vpop.f32.mrb[0].mxu0
        %v4240 = vadd.f32 0.0, %v4239
        %v4241 = vpop.f32.mrb[0].mxu0
        %v4242 = vadd.f32 0.0, %v4241
        %v4243 = vpop.f32.mrb[0].mxu0
        %v4244 = vadd.f32 0.0, %v4243
        %4245 = vmatprep.mubr.bf16.mxu0 0
        %4246 = vmatmul.mubr.bf16.gmra.mrb[0].mxu0 %v4132
        %v4247 = vpop.f32.mrb[0].mxu0
        %v4248 = vadd.f32 0.0, %v4247
        %v4249 = vpop.f32.mrb[0].mxu0
        %v4250 = vadd.f32 0.0, %v4249
        %v4251 = vpop.f32.mrb[0].mxu0
        %v4252 = vadd.f32 0.0, %v4251
        %v4253 = vpop.f32.mrb[0].mxu0
        %v4254 = vadd.f32 0.0, %v4253
        %4255 = vmatprep.mubr.bf16.mxu0 0
        %4256 = vmatmul.mubr.bf16.gmra.mrb[0].mxu0 %v4135
        %v4257 = vpop.f32.mrb[0].mxu0
        %v4258 = vadd.f32 0.0, %v4257
        %v4259 = vpop.f32.mrb[0].mxu0
        %v4260 = vadd.f32 0.0, %v4259
        %v4261 = vpop.f32.mrb[0].mxu0
        %v4262 = vadd.f32 0.0, %v4261
        %v4263 = vpop.f32.mrb[0].mxu0
        %v4264 = vadd.f32 0.0, %v4263
        %4265 = vmatprep.mubr.bf16.mxu0 0
        %4266 = vmatmul.mubr.bf16.gmra.mrb[0].mxu0 %v4138
        %v4267 = vpop.f32.mrb[0].mxu0
        %v4268 = vadd.f32 0.0, %v4267
        %v4269 = vpop.f32.mrb[0].mxu0
        %v4270 = vadd.f32 0.0, %v4269
        %v4271 = vpop.f32.mrb[0].mxu0
        %v4272 = vadd.f32 0.0, %v4271
        %v4273 = vpop.f32.mrb[0].mxu0
        %v4274 = vadd.f32 0.0, %v4273
        %4275 = vmatprep.mubr.bf16.mxu0 0
        %4276 = vmatmul.mubr.bf16.gmra.mrb[0].mxu0 %v4141
        %v4277 = vpop.f32.mrb[0].mxu0
        %v4278 = vadd.f32 0.0, %v4277
        %v4279 = vpop.f32.mrb[0].mxu0
        %v4280 = vadd.f32 0.0, %v4279
        %v4281 = vpop.f32.mrb[0].mxu0
        %v4282 = vadd.f32 0.0, %v4281
        %v4283 = vpop.f32.mrb[0].mxu0
        %v4284 = vadd.f32 0.0, %v4283
        %4285 = vmatprep.mubr.bf16.mxu0 0
        %4286 = vmatmul.mubr.bf16.gmra.mrb[0].mxu0 %v4144
        %v4287 = vpop.f32.mrb[0].mxu0
        %v4288 = vadd.f32 0.0, %v4287
        %v4289 = vpop.f32.mrb[0].mxu0
        %v4290 = vadd.f32 0.0, %v4289
        %v4291 = vpop.f32.mrb[0].mxu0
        %v4292 = vadd.f32 0.0, %v4291
        %v4293 = vpop.f32.mrb[0].mxu0
        %v4294 = vadd.f32 0.0, %v4293
        %4295 = vmatprep.mubr.bf16.mxu0 0
        %4296 = vmatmul.mubr.bf16.gmra.mrb[0].mxu0 %v4147
        %v4297 = vpop.f32.mrb[0].mxu0
        %v4298 = vadd.f32 0.0, %v4297
        %v4299 = vpop.f32.mrb[0].mxu0
        %v4300 = vadd.f32 0.0, %v4299
        %v4301 = vpop.f32.mrb[0].mxu0
        %v4302 = vadd.f32 0.0, %v4301
        %v4303 = vpop.f32.mrb[0].mxu0
        %v4304 = vadd.f32 0.0, %v4303
        %4305 = vmatprep.mubr.bf16.mxu0 0
        %4306 = vmatmul.mubr.bf16.gmra.mrb[0].mxu0 %v4150
        %v4307 = vpop.f32.mrb[0].mxu0
        %v4308 = vadd.f32 0.0, %v4307
        %v4309 = vpop.f32.mrb[0].mxu0
        %v4310 = vadd.f32 0.0, %v4309
        %v4311 = vpop.f32.mrb[0].mxu0
        %v4312 = vadd.f32 0.0, %v4311
        %v4313 = vpop.f32.mrb[0].mxu0
        %v4314 = vadd.f32 0.0, %v4313
        %4315 = vmatprep.mubr.bf16.mxu0 0
        %4316 = vmatmul.mubr.bf16.gmra.mrb[0].mxu0 %v4153
        %v4317 = vpop.f32.mrb[0].mxu0
        %v4318 = vadd.f32 0.0, %v4317
        %v4319 = vpop.f32.mrb[0].mxu0
        %v4320 = vadd.f32 0.0, %v4319
        %v4321 = vpop.f32.mrb[0].mxu0
        %v4322 = vadd.f32 0.0, %v4321
        %v4323 = vpop.f32.mrb[0].mxu0
        %v4324 = vadd.f32 0.0, %v4323
        %4325 = vmatprep.mubr.bf16.mxu0 0
        %4326 = vmatmul.mubr.bf16.gmra.mrb[0].mxu0 %v4156
        %v4327 = vpop.f32.mrb[0].mxu0
        %v4328 = vadd.f32 0.0, %v4327
        %v4329 = vpop.f32.mrb[0].mxu0
        %v4330 = vadd.f32 0.0, %v4329
        %v4331 = vpop.f32.mrb[0].mxu0
        %v4332 = vadd.f32 0.0, %v4331
        %v4333 = vpop.f32.mrb[0].mxu0
        %v4334 = vadd.f32 0.0, %v4333
        %4335 = vmatprep.mubr.bf16.mxu0 0
        %4336 = vmatmul.mubr.bf16.gmra.mrb[0].mxu0 %v4159
        %v4337 = vpop.f32.mrb[0].mxu0
        %v4338 = vadd.f32 0.0, %v4337
        %v4339 = vpop.f32.mrb[0].mxu0
        %v4340 = vadd.f32 0.0, %v4339
        %v4341 = vpop.f32.mrb[0].mxu0
        %v4342 = vadd.f32 0.0, %v4341
        %v4343 = vpop.f32.mrb[0].mxu0
        %v4344 = vadd.f32 0.0, %v4343
        %4345 = vmatprep.mubr.bf16.mxu0 0
        %4346 = vmatmul.mubr.bf16.gmra.mrb[0].mxu0 %v4162
        %v4347 = vpop.f32.mrb[0].mxu0
        %v4348 = vadd.f32 0.0, %v4347
        %v4349 = vpop.f32.mrb[0].mxu0
        %v4350 = vadd.f32 0.0, %v4349
        %v4351 = vpop.f32.mrb[0].mxu0
        %v4352 = vadd.f32 0.0, %v4351
        %v4353 = vpop.f32.mrb[0].mxu0
        %v4354 = vadd.f32 0.0, %v4353
        %4355 = vmatprep.mubr.bf16.mxu0 0
        %4356 = vmatmul.mubr.bf16.gmra.mrb[0].mxu0 %v4165
        %v4357 = vpop.f32.mrb[0].mxu0
        %v4358 = vadd.f32 0.0, %v4357
        %v4359 = vpop.f32.mrb[0].mxu0
        %v4360 = vadd.f32 0.0, %v4359
        %v4361 = vpop.f32.mrb[0].mxu0
        %v4362 = vadd.f32 0.0, %v4361
        %v4363 = vpop.f32.mrb[0].mxu0
        %v4364 = vadd.f32 0.0, %v4363
        %4365 = vdwg.mxu0
        %v4366 = vmax.f32 %v4208, %v4210
        %4367 = vmax.xlane.f32.xlu0 %v4366
        %v4368 = vpop.xlane.xlu0 %4367
        %v4369 = vmax.f32 %v4212, %v4214
        %4370 = vmax.xlane.f32.xlu0 %v4369
        %v4371 = vpop.xlane.xlu0 %4370
        %v4372 = vmax.f32 %v4218, %v4220
        %4373 = vmax.xlane.f32.xlu0 %v4372
        %v4374 = vpop.xlane.xlu0 %4373
        %v4375 = vmax.f32 %v4222, %v4224
        %4376 = vmax.xlane.f32.xlu0 %v4375
        %v4377 = vpop.xlane.xlu0 %4376
        %v4378 = vmax.f32 %v4228, %v4230
        %4379 = vmax.xlane.f32.xlu0 %v4378
        %v4380 = vpop.xlane.xlu0 %4379
        %v4381 = vmax.f32 %v4232, %v4234
        %4382 = vmax.xlane.f32.xlu0 %v4381
        %v4383 = vpop.xlane.xlu0 %4382
        %v4384 = vmax.f32 %v4238, %v4240
        %4385 = vmax.xlane.f32.xlu0 %v4384
        %v4386 = vpop.xlane.xlu0 %4385
        %v4387 = vmax.f32 %v4242, %v4244
        %4388 = vmax.xlane.f32.xlu0 %v4387
        %v4389 = vpop.xlane.xlu0 %4388
        %v4390 = vmax.f32 %v4248, %v4250
        %4391 = vmax.xlane.f32.xlu0 %v4390
        %v4392 = vpop.xlane.xlu0 %4391
        %v4393 = vmax.f32 %v4252, %v4254
        %4394 = vmax.xlane.f32.xlu0 %v4393
        %v4395 = vpop.xlane.xlu0 %4394
        %v4396 = vmax.f32 %v4258, %v4260
        %4397 = vmax.xlane.f32.xlu0 %v4396
        %v4398 = vpop.xlane.xlu0 %4397
        %v4399 = vmax.f32 %v4262, %v4264
        %4400 = vmax.xlane.f32.xlu0 %v4399
        %v4401 = vpop.xlane.xlu0 %4400
        %v4402 = vmax.f32 %v4268, %v4270
        %4403 = vmax.xlane.f32.xlu0 %v4402
        %v4404 = vpop.xlane.xlu0 %4403
        %v4405 = vmax.f32 %v4272, %v4274
        %4406 = vmax.xlane.f32.xlu0 %v4405
        %v4407 = vpop.xlane.xlu0 %4406
        %v4408 = vmax.f32 %v4278, %v4280
        %4409 = vmax.xlane.f32.xlu0 %v4408
        %v4410 = vpop.xlane.xlu0 %4409
        %v4411 = vmax.f32 %v4282, %v4284
        %4412 = vmax.xlane.f32.xlu0 %v4411
        %v4413 = vpop.xlane.xlu0 %4412
        %v4414 = vmax.f32 %v4288, %v4290
        %4415 = vmax.xlane.f32.xlu0 %v4414
        %v4416 = vpop.xlane.xlu0 %4415
        %v4417 = vmax.f32 %v4292, %v4294
        %4418 = vmax.xlane.f32.xlu0 %v4417
        %v4419 = vpop.xlane.xlu0 %4418
        %v4420 = vmax.f32 %v4298, %v4300
        %4421 = vmax.xlane.f32.xlu0 %v4420
        %v4422 = vpop.xlane.xlu0 %4421
        %v4423 = vmax.f32 %v4302, %v4304
        %4424 = vmax.xlane.f32.xlu0 %v4423
        %v4425 = vpop.xlane.xlu0 %4424
        %v4426 = vmax.f32 %v4308, %v4310
        %4427 = vmax.xlane.f32.xlu0 %v4426
        %v4428 = vpop.xlane.xlu0 %4427
        %v4429 = vmax.f32 %v4312, %v4314
        %4430 = vmax.xlane.f32.xlu0 %v4429
        %v4431 = vpop.xlane.xlu0 %4430
        %v4432 = vmax.f32 %v4318, %v4320
        %4433 = vmax.xlane.f32.xlu0 %v4432
        %v4434 = vpop.xlane.xlu0 %4433
        %v4435 = vmax.f32 %v4322, %v4324
        %4436 = vmax.xlane.f32.xlu0 %v4435
        %v4437 = vpop.xlane.xlu0 %4436
        %v4438 = vmax.f32 %v4328, %v4330
        %4439 = vmax.xlane.f32.xlu0 %v4438
        %v4440 = vpop.xlane.xlu0 %4439
        %v4441 = vmax.f32 %v4332, %v4334
        %4442 = vmax.xlane.f32.xlu0 %v4441
        %v4443 = vpop.xlane.xlu0 %4442
        %v4444 = vmax.f32 %v4338, %v4340
        %4445 = vmax.xlane.f32.xlu0 %v4444
        %v4446 = vpop.xlane.xlu0 %4445
        %v4447 = vmax.f32 %v4342, %v4344
        %4448 = vmax.xlane.f32.xlu0 %v4447
        %v4449 = vpop.xlane.xlu0 %4448
        %v4450 = vmax.f32 %v4348, %v4350
        %4451 = vmax.xlane.f32.xlu0 %v4450
        %v4452 = vpop.xlane.xlu0 %4451
        %v4453 = vmax.f32 %v4352, %v4354
        %4454 = vmax.xlane.f32.xlu0 %v4453
        %v4455 = vpop.xlane.xlu0 %4454
        %v4456 = vmax.f32 %v4358, %v4360
        %4457 = vmax.xlane.f32.xlu0 %v4456
        %v4458 = vpop.xlane.xlu0 %4457
        %v4459 = vmax.f32 %v4362, %v4364
        %4460 = vmax.xlane.f32.xlu0 %v4459
        %v4461 = vpop.xlane.xlu0 %4460
        %v4462 = vsub.f32 %v4208, %v4368
        %v4463 = vsub.f32 %v4210, %v4368
        %v4464 = vsub.f32 %v4212, %v4371
        %v4465 = vsub.f32 %v4214, %v4371
        %v4466 = vsub.f32 %v4218, %v4374
        %v4467 = vsub.f32 %v4220, %v4374
        %v4468 = vsub.f32 %v4222, %v4377
        %v4469 = vsub.f32 %v4224, %v4377
        %v4470 = vsub.f32 %v4228, %v4380
        %v4471 = vsub.f32 %v4230, %v4380
        %v4472 = vsub.f32 %v4232, %v4383
        %v4473 = vsub.f32 %v4234, %v4383
        %v4474 = vsub.f32 %v4238, %v4386
        %v4475 = vsub.f32 %v4240, %v4386
        %v4476 = vsub.f32 %v4242, %v4389
        %v4477 = vsub.f32 %v4244, %v4389
        %v4478 = vsub.f32 %v4248, %v4392
        %v4479 = vsub.f32 %v4250, %v4392
        %v4480 = vsub.f32 %v4252, %v4395
        %v4481 = vsub.f32 %v4254, %v4395
        %v4482 = vsub.f32 %v4258, %v4398
        %v4483 = vsub.f32 %v4260, %v4398
        %v4484 = vsub.f32 %v4262, %v4401
        %v4485 = vsub.f32 %v4264, %v4401
        %v4486 = vsub.f32 %v4268, %v4404
        %v4487 = vsub.f32 %v4270, %v4404
        %v4488 = vsub.f32 %v4272, %v4407
        %v4489 = vsub.f32 %v4274, %v4407
        %v4490 = vsub.f32 %v4278, %v4410
        %v4491 = vsub.f32 %v4280, %v4410
        %v4492 = vsub.f32 %v4282, %v4413
        %v4493 = vsub.f32 %v4284, %v4413
        %v4494 = vsub.f32 %v4288, %v4416
        %v4495 = vsub.f32 %v4290, %v4416
        %v4496 = vsub.f32 %v4292, %v4419
        %v4497 = vsub.f32 %v4294, %v4419
        %v4498 = vsub.f32 %v4298, %v4422
        %v4499 = vsub.f32 %v4300, %v4422
        %v4500 = vsub.f32 %v4302, %v4425
        %v4501 = vsub.f32 %v4304, %v4425
        %v4502 = vsub.f32 %v4308, %v4428
        %v4503 = vsub.f32 %v4310, %v4428
        %v4504 = vsub.f32 %v4312, %v4431
        %v4505 = vsub.f32 %v4314, %v4431
        %v4506 = vsub.f32 %v4318, %v4434
        %v4507 = vsub.f32 %v4320, %v4434
        %v4508 = vsub.f32 %v4322, %v4437
        %v4509 = vsub.f32 %v4324, %v4437
        %v4510 = vsub.f32 %v4328, %v4440
        %v4511 = vsub.f32 %v4330, %v4440
        %v4512 = vsub.f32 %v4332, %v4443
        %v4513 = vsub.f32 %v4334, %v4443
        %v4514 = vsub.f32 %v4338, %v4446
        %v4515 = vsub.f32 %v4340, %v4446
        %v4516 = vsub.f32 %v4342, %v4449
        %v4517 = vsub.f32 %v4344, %v4449
        %v4518 = vsub.f32 %v4348, %v4452
        %v4519 = vsub.f32 %v4350, %v4452
        %v4520 = vsub.f32 %v4352, %v4455
        %v4521 = vsub.f32 %v4354, %v4455
        %v4522 = vsub.f32 %v4358, %v4458
        %v4523 = vsub.f32 %v4360, %v4458
        %v4524 = vsub.f32 %v4362, %v4461
        %v4525 = vsub.f32 %v4364, %v4461
        %v4526 = vmul.f32 %v4462, 1.442695
        %v4527 = vpow.pop %v4526
        %v4528 = vmul.f32 %v4463, 1.442695
        %v4529 = vpow.pop %v4528
        %v4530 = vmul.f32 %v4464, 1.442695
        %v4531 = vpow.pop %v4530
        %v4532 = vmul.f32 %v4465, 1.442695
        %v4533 = vpow.pop %v4532
        %v4534 = vmul.f32 %v4466, 1.442695
        %v4535 = vpow.pop %v4534
        %v4536 = vmul.f32 %v4467, 1.442695
        %v4537 = vpow.pop %v4536
        %v4538 = vmul.f32 %v4468, 1.442695
        %v4539 = vpow.pop %v4538
        %v4540 = vmul.f32 %v4469, 1.442695
        %v4541 = vpow.pop %v4540
        %v4542 = vmul.f32 %v4470, 1.442695
        %v4543 = vpow.pop %v4542
        %v4544 = vmul.f32 %v4471, 1.442695
        %v4545 = vpow.pop %v4544
        %v4546 = vmul.f32 %v4472, 1.442695
        %v4547 = vpow.pop %v4546
        %v4548 = vmul.f32 %v4473, 1.442695
        %v4549 = vpow.pop %v4548
        %v4550 = vmul.f32 %v4474, 1.442695
        %v4551 = vpow.pop %v4550
        %v4552 = vmul.f32 %v4475, 1.442695
        %v4553 = vpow.pop %v4552
        %v4554 = vmul.f32 %v4476, 1.442695
        %v4555 = vpow.pop %v4554
        %v4556 = vmul.f32 %v4477, 1.442695
        %v4557 = vpow.pop %v4556
        %v4558 = vmul.f32 %v4478, 1.442695
        %v4559 = vpow.pop %v4558
        %v4560 = vmul.f32 %v4479, 1.442695
        %v4561 = vpow.pop %v4560
        %v4562 = vmul.f32 %v4480, 1.442695
        %v4563 = vpow.pop %v4562
        %v4564 = vmul.f32 %v4481, 1.442695
        %v4565 = vpow.pop %v4564
        %v4566 = vmul.f32 %v4482, 1.442695
        %v4567 = vpow.pop %v4566
        %v4568 = vmul.f32 %v4483, 1.442695
        %v4569 = vpow.pop %v4568
        %v4570 = vmul.f32 %v4484, 1.442695
        %v4571 = vpow.pop %v4570
        %v4572 = vmul.f32 %v4485, 1.442695
        %v4573 = vpow.pop %v4572
        %v4574 = vmul.f32 %v4486, 1.442695
        %v4575 = vpow.pop %v4574
        %v4576 = vmul.f32 %v4487, 1.442695
        %v4577 = vpow.pop %v4576
        %v4578 = vmul.f32 %v4488, 1.442695
        %v4579 = vpow.pop %v4578
        %v4580 = vmul.f32 %v4489, 1.442695
        %v4581 = vpow.pop %v4580
        %v4582 = vmul.f32 %v4490, 1.442695
        %v4583 = vpow.pop %v4582
        %v4584 = vmul.f32 %v4491, 1.442695
        %v4585 = vpow.pop %v4584
        %v4586 = vmul.f32 %v4492, 1.442695
        %v4587 = vpow.pop %v4586
        %v4588 = vmul.f32 %v4493, 1.442695
        %v4589 = vpow.pop %v4588
        %v4590 = vmul.f32 %v4494, 1.442695
        %v4591 = vpow.pop %v4590
        %v4592 = vmul.f32 %v4495, 1.442695
        %v4593 = vpow.pop %v4592
        %v4594 = vmul.f32 %v4496, 1.442695
        %v4595 = vpow.pop %v4594
        %v4596 = vmul.f32 %v4497, 1.442695
        %v4597 = vpow.pop %v4596
        %v4598 = vmul.f32 %v4498, 1.442695
        %v4599 = vpow.pop %v4598
        %v4600 = vmul.f32 %v4499, 1.442695
        %v4601 = vpow.pop %v4600
        %v4602 = vmul.f32 %v4500, 1.442695
        %v4603 = vpow.pop %v4602
        %v4604 = vmul.f32 %v4501, 1.442695
        %v4605 = vpow.pop %v4604
        %v4606 = vmul.f32 %v4502, 1.442695
        %v4607 = vpow.pop %v4606
        %v4608 = vmul.f32 %v4503, 1.442695
        %v4609 = vpow.pop %v4608
        %v4610 = vmul.f32 %v4504, 1.442695
        %v4611 = vpow.pop %v4610
        %v4612 = vmul.f32 %v4505, 1.442695
        %v4613 = vpow.pop %v4612
        %v4614 = vmul.f32 %v4506, 1.442695
        %v4615 = vpow.pop %v4614
        %v4616 = vmul.f32 %v4507, 1.442695
        %v4617 = vpow.pop %v4616
        %v4618 = vmul.f32 %v4508, 1.442695
        %v4619 = vpow.pop %v4618
        %v4620 = vmul.f32 %v4509, 1.442695
        %v4621 = vpow.pop %v4620
        %v4622 = vmul.f32 %v4510, 1.442695
        %v4623 = vpow.pop %v4622
        %v4624 = vmul.f32 %v4511, 1.442695
        %v4625 = vpow.pop %v4624
        %v4626 = vmul.f32 %v4512, 1.442695
        %v4627 = vpow.pop %v4626
        %v4628 = vmul.f32 %v4513, 1.442695
        %v4629 = vpow.pop %v4628
        %v4630 = vmul.f32 %v4514, 1.442695
        %v4631 = vpow.pop %v4630
        %v4632 = vmul.f32 %v4515, 1.442695
        %v4633 = vpow.pop %v4632
        %v4634 = vmul.f32 %v4516, 1.442695
        %v4635 = vpow.pop %v4634
        %v4636 = vmul.f32 %v4517, 1.442695
        %v4637 = vpow.pop %v4636
        %v4638 = vmul.f32 %v4518, 1.442695
        %v4639 = vpow.pop %v4638
        %v4640 = vmul.f32 %v4519, 1.442695
        %v4641 = vpow.pop %v4640
        %v4642 = vmul.f32 %v4520, 1.442695
        %v4643 = vpow.pop %v4642
        %v4644 = vmul.f32 %v4521, 1.442695
        %v4645 = vpow.pop %v4644
        %v4646 = vmul.f32 %v4522, 1.442695
        %v4647 = vpow.pop %v4646
        %v4648 = vmul.f32 %v4523, 1.442695
        %v4649 = vpow.pop %v4648
        %v4650 = vmul.f32 %v4524, 1.442695
        %v4651 = vpow.pop %v4650
        %v4652 = vmul.f32 %v4525, 1.442695
        %v4653 = vpow.pop %v4652
        %v4654 = vadd.f32 %v4527, %v4529
        %4655 = vadd.xlane.f32.xlu0 %v4654
        %v4656 = vpop.xlane.xlu0 %4655
        %v4657 = vadd.f32 %v4531, %v4533
        %4658 = vadd.xlane.f32.xlu0 %v4657
        %v4659 = vpop.xlane.xlu0 %4658
        %v4660 = vadd.f32 %v4535, %v4537
        %4661 = vadd.xlane.f32.xlu0 %v4660
        %v4662 = vpop.xlane.xlu0 %4661
        %v4663 = vadd.f32 %v4539, %v4541
        %4664 = vadd.xlane.f32.xlu0 %v4663
        %v4665 = vpop.xlane.xlu0 %4664
        %v4666 = vadd.f32 %v4543, %v4545
        %4667 = vadd.xlane.f32.xlu0 %v4666
        %v4668 = vpop.xlane.xlu0 %4667
        %v4669 = vadd.f32 %v4547, %v4549
        %4670 = vadd.xlane.f32.xlu0 %v4669
        %v4671 = vpop.xlane.xlu0 %4670
        %v4672 = vadd.f32 %v4551, %v4553
        %4673 = vadd.xlane.f32.xlu0 %v4672
        %v4674 = vpop.xlane.xlu0 %4673
        %v4675 = vadd.f32 %v4555, %v4557
        %4676 = vadd.xlane.f32.xlu0 %v4675
        %v4677 = vpop.xlane.xlu0 %4676
        %v4678 = vadd.f32 %v4559, %v4561
        %4679 = vadd.xlane.f32.xlu0 %v4678
        %v4680 = vpop.xlane.xlu0 %4679
        %v4681 = vadd.f32 %v4563, %v4565
        %4682 = vadd.xlane.f32.xlu0 %v4681
        %v4683 = vpop.xlane.xlu0 %4682
        %v4684 = vadd.f32 %v4567, %v4569
        %4685 = vadd.xlane.f32.xlu0 %v4684
        %v4686 = vpop.xlane.xlu0 %4685
        %v4687 = vadd.f32 %v4571, %v4573
        %4688 = vadd.xlane.f32.xlu0 %v4687
        %v4689 = vpop.xlane.xlu0 %4688
        %v4690 = vadd.f32 %v4575, %v4577
        %4691 = vadd.xlane.f32.xlu0 %v4690
        %v4692 = vpop.xlane.xlu0 %4691
        %v4693 = vadd.f32 %v4579, %v4581
        %4694 = vadd.xlane.f32.xlu0 %v4693
        %v4695 = vpop.xlane.xlu0 %4694
        %v4696 = vadd.f32 %v4583, %v4585
        %4697 = vadd.xlane.f32.xlu0 %v4696
        %v4698 = vpop.xlane.xlu0 %4697
        %v4699 = vadd.f32 %v4587, %v4589
        %4700 = vadd.xlane.f32.xlu0 %v4699
        %v4701 = vpop.xlane.xlu0 %4700
        %v4702 = vadd.f32 %v4591, %v4593
        %4703 = vadd.xlane.f32.xlu0 %v4702
        %v4704 = vpop.xlane.xlu0 %4703
        %v4705 = vadd.f32 %v4595, %v4597
        %4706 = vadd.xlane.f32.xlu0 %v4705
        %v4707 = vpop.xlane.xlu0 %4706
        %v4708 = vadd.f32 %v4599, %v4601
        %4709 = vadd.xlane.f32.xlu0 %v4708
        %v4710 = vpop.xlane.xlu0 %4709
        %v4711 = vadd.f32 %v4603, %v4605
        %4712 = vadd.xlane.f32.xlu0 %v4711
        %v4713 = vpop.xlane.xlu0 %4712
        %v4714 = vadd.f32 %v4607, %v4609
        %4715 = vadd.xlane.f32.xlu0 %v4714
        %v4716 = vpop.xlane.xlu0 %4715
        %v4717 = vadd.f32 %v4611, %v4613
        %4718 = vadd.xlane.f32.xlu0 %v4717
        %v4719 = vpop.xlane.xlu0 %4718
        %v4720 = vadd.f32 %v4615, %v4617
        %4721 = vadd.xlane.f32.xlu0 %v4720
        %v4722 = vpop.xlane.xlu0 %4721
        %v4723 = vadd.f32 %v4619, %v4621
        %4724 = vadd.xlane.f32.xlu0 %v4723
        %v4725 = vpop.xlane.xlu0 %4724
        %v4726 = vadd.f32 %v4623, %v4625
        %4727 = vadd.xlane.f32.xlu0 %v4726
        %v4728 = vpop.xlane.xlu0 %4727
        %v4729 = vadd.f32 %v4627, %v4629
        %4730 = vadd.xlane.f32.xlu0 %v4729
        %v4731 = vpop.xlane.xlu0 %4730
        %v4732 = vadd.f32 %v4631, %v4633
        %4733 = vadd.xlane.f32.xlu0 %v4732
        %v4734 = vpop.xlane.xlu0 %4733
        %v4735 = vadd.f32 %v4635, %v4637
        %4736 = vadd.xlane.f32.xlu0 %v4735
        %v4737 = vpop.xlane.xlu0 %4736
        %v4738 = vadd.f32 %v4639, %v4641
        %4739 = vadd.xlane.f32.xlu0 %v4738
        %v4740 = vpop.xlane.xlu0 %4739
        %v4741 = vadd.f32 %v4643, %v4645
        %4742 = vadd.xlane.f32.xlu0 %v4741
        %v4743 = vpop.xlane.xlu0 %4742
        %v4744 = vadd.f32 %v4647, %v4649
        %4745 = vadd.xlane.f32.xlu0 %v4744
        %v4746 = vpop.xlane.xlu0 %4745
        %v4747 = vadd.f32 %v4651, %v4653
        %4748 = vadd.xlane.f32.xlu0 %v4747
        %v4749 = vpop.xlane.xlu0 %4748
        %v4750 = vrcp.pop %v4656
        %v4751 = vrcp.pop %v4659
        %v4752 = vrcp.pop %v4662
        %v4753 = vrcp.pop %v4665
        %v4754 = vrcp.pop %v4668
        %v4755 = vrcp.pop %v4671
        %v4756 = vrcp.pop %v4674
        %v4757 = vrcp.pop %v4677
        %v4758 = vrcp.pop %v4680
        %v4759 = vrcp.pop %v4683
        %v4760 = vrcp.pop %v4686
        %v4761 = vrcp.pop %v4689
        %v4762 = vrcp.pop %v4692
        %v4763 = vrcp.pop %v4695
        %v4764 = vrcp.pop %v4698
        %v4765 = vrcp.pop %v4701
        %v4766 = vrcp.pop %v4704
        %v4767 = vrcp.pop %v4707
        %v4768 = vrcp.pop %v4710
        %v4769 = vrcp.pop %v4713
        %v4770 = vrcp.pop %v4716
        %v4771 = vrcp.pop %v4719
        %v4772 = vrcp.pop %v4722
        %v4773 = vrcp.pop %v4725
        %v4774 = vrcp.pop %v4728
        %v4775 = vrcp.pop %v4731
        %v4776 = vrcp.pop %v4734
        %v4777 = vrcp.pop %v4737
        %v4778 = vrcp.pop %v4740
        %v4779 = vrcp.pop %v4743
        %v4780 = vrcp.pop %v4746
        %v4781 = vrcp.pop %v4749
        %v4782 = vmul.f32 %v4527, %v4750
        %v4783 = vmul.f32 %v4529, %v4750
        %v4784 = vmul.f32 %v4531, %v4751
        %v4785 = vmul.f32 %v4533, %v4751
        %v4786 = vmul.f32 %v4535, %v4752
        %v4787 = vmul.f32 %v4537, %v4752
        %v4788 = vmul.f32 %v4539, %v4753
        %v4789 = vmul.f32 %v4541, %v4753
        %v4790 = vmul.f32 %v4543, %v4754
        %v4791 = vmul.f32 %v4545, %v4754
        %v4792 = vmul.f32 %v4547, %v4755
        %v4793 = vmul.f32 %v4549, %v4755
        %v4794 = vmul.f32 %v4551, %v4756
        %v4795 = vmul.f32 %v4553, %v4756
        %v4796 = vmul.f32 %v4555, %v4757
        %v4797 = vmul.f32 %v4557, %v4757
        %v4798 = vmul.f32 %v4559, %v4758
        %v4799 = vmul.f32 %v4561, %v4758
        %v4800 = vmul.f32 %v4563, %v4759
        %v4801 = vmul.f32 %v4565, %v4759
        %v4802 = vmul.f32 %v4567, %v4760
        %v4803 = vmul.f32 %v4569, %v4760
        %v4804 = vmul.f32 %v4571, %v4761
        %v4805 = vmul.f32 %v4573, %v4761
        %v4806 = vmul.f32 %v4575, %v4762
        %v4807 = vmul.f32 %v4577, %v4762
        %v4808 = vmul.f32 %v4579, %v4763
        %v4809 = vmul.f32 %v4581, %v4763
        %v4810 = vmul.f32 %v4583, %v4764
        %v4811 = vmul.f32 %v4585, %v4764
        %v4812 = vmul.f32 %v4587, %v4765
        %v4813 = vmul.f32 %v4589, %v4765
        %v4814 = vmul.f32 %v4591, %v4766
        %v4815 = vmul.f32 %v4593, %v4766
        %v4816 = vmul.f32 %v4595, %v4767
        %v4817 = vmul.f32 %v4597, %v4767
        %v4818 = vmul.f32 %v4599, %v4768
        %v4819 = vmul.f32 %v4601, %v4768
        %v4820 = vmul.f32 %v4603, %v4769
        %v4821 = vmul.f32 %v4605, %v4769
        %v4822 = vmul.f32 %v4607, %v4770
        %v4823 = vmul.f32 %v4609, %v4770
        %v4824 = vmul.f32 %v4611, %v4771
        %v4825 = vmul.f32 %v4613, %v4771
        %v4826 = vmul.f32 %v4615, %v4772
        %v4827 = vmul.f32 %v4617, %v4772
        %v4828 = vmul.f32 %v4619, %v4773
        %v4829 = vmul.f32 %v4621, %v4773
        %v4830 = vmul.f32 %v4623, %v4774
        %v4831 = vmul.f32 %v4625, %v4774
        %v4832 = vmul.f32 %v4627, %v4775
        %v4833 = vmul.f32 %v4629, %v4775
        %v4834 = vmul.f32 %v4631, %v4776
        %v4835 = vmul.f32 %v4633, %v4776
        %v4836 = vmul.f32 %v4635, %v4777
        %v4837 = vmul.f32 %v4637, %v4777
        %v4838 = vmul.f32 %v4639, %v4778
        %v4839 = vmul.f32 %v4641, %v4778
        %v4840 = vmul.f32 %v4643, %v4779
        %v4841 = vmul.f32 %v4645, %v4779
        %v4842 = vmul.f32 %v4647, %v4780
        %v4843 = vmul.f32 %v4649, %v4780
        %v4844 = vmul.f32 %v4651, %v4781
        %v4845 = vmul.f32 %v4653, %v4781
        %v4846 = vpack.c.bf16 %v4784, %v4782
        %v4847 = vpack.c.bf16 %v4785, %v4783
        %v4848 = vpack.c.bf16 %v4788, %v4786
        %v4849 = vpack.c.bf16 %v4789, %v4787
        %v4850 = vpack.c.bf16 %v4792, %v4790
        %v4851 = vpack.c.bf16 %v4793, %v4791
        %v4852 = vpack.c.bf16 %v4796, %v4794
        %v4853 = vpack.c.bf16 %v4797, %v4795
        %v4854 = vpack.c.bf16 %v4800, %v4798
        %v4855 = vpack.c.bf16 %v4801, %v4799
        %v4856 = vpack.c.bf16 %v4804, %v4802
        %v4857 = vpack.c.bf16 %v4805, %v4803
        %v4858 = vpack.c.bf16 %v4808, %v4806
        %v4859 = vpack.c.bf16 %v4809, %v4807
        %v4860 = vpack.c.bf16 %v4812, %v4810
        %v4861 = vpack.c.bf16 %v4813, %v4811
        %v4862 = vpack.c.bf16 %v4816, %v4814
        %v4863 = vpack.c.bf16 %v4817, %v4815
        %v4864 = vpack.c.bf16 %v4820, %v4818
        %v4865 = vpack.c.bf16 %v4821, %v4819
        %v4866 = vpack.c.bf16 %v4824, %v4822
        %v4867 = vpack.c.bf16 %v4825, %v4823
        %v4868 = vpack.c.bf16 %v4828, %v4826
        %v4869 = vpack.c.bf16 %v4829, %v4827
        %v4870 = vpack.c.bf16 %v4832, %v4830
        %v4871 = vpack.c.bf16 %v4833, %v4831
        %v4872 = vpack.c.bf16 %v4836, %v4834
        %v4873 = vpack.c.bf16 %v4837, %v4835
        %v4874 = vpack.c.bf16 %v4840, %v4838
        %v4875 = vpack.c.bf16 %v4841, %v4839
        %v4876 = vpack.c.bf16 %v4844, %v4842
        %v4877 = vpack.c.bf16 %v4845, %v4843
        %4878 = vmatprep.subr.bf16.mxu0 %v4847
        %4879 = vmatpush1.bf16.xpose.msra.mxu0 %v4846
        %4880 = vmatprep.subr.bf16.mxu0 %v4849
        %4881 = vmatpush1.bf16.xpose.msra.mxu0 %v4848
        %4882 = vmatprep.subr.bf16.mxu0 %v4851
        %4883 = vmatpush1.bf16.xpose.msra.mxu0 %v4850
        %4884 = vmatprep.subr.bf16.mxu0 %v4853
        %4885 = vmatpush1.bf16.xpose.msra.mxu0 %v4852
        %4886 = vmatprep.subr.bf16.mxu0 %v4855
        %4887 = vmatpush1.bf16.xpose.msra.mxu0 %v4854
        %4888 = vmatprep.subr.bf16.mxu0 %v4857
        %4889 = vmatpush1.bf16.xpose.msra.mxu0 %v4856
        %4890 = vmatprep.subr.bf16.mxu0 %v4859
        %4891 = vmatpush1.bf16.xpose.msra.mxu0 %v4858
        %4892 = vmatprep.subr.bf16.mxu0 %v4861
        %4893 = vmatpush1.bf16.xpose.msra.mxu0 %v4860
        %4894 = vmatprep.subr.bf16.mxu0 %v4863
        %4895 = vmatpush1.bf16.xpose.msra.mxu0 %v4862
        %4896 = vmatprep.subr.bf16.mxu0 %v4865
        %4897 = vmatpush1.bf16.xpose.msra.mxu0 %v4864
        %4898 = vmatprep.subr.bf16.mxu0 %v4867
        %4899 = vmatpush1.bf16.xpose.msra.mxu0 %v4866
        %4900 = vmatprep.subr.bf16.mxu0 %v4869
        %4901 = vmatpush1.bf16.xpose.msra.mxu0 %v4868
        %4902 = vmatprep.subr.bf16.mxu0 %v4871
        %4903 = vmatpush1.bf16.xpose.msra.mxu0 %v4870
        %4904 = vmatprep.subr.bf16.mxu0 %v4873
        %4905 = vmatpush1.bf16.xpose.msra.mxu0 %v4872
        %4906 = vmatprep.subr.bf16.mxu0 %v4875
        %4907 = vmatpush1.bf16.xpose.msra.mxu0 %v4874
        %4908 = vmatprep.subr.bf16.mxu0 %v4877
        %4909 = vmatpush1.bf16.xpose.msra.mxu0 %v4876
        %4910 = vmatprep.mubr.bf16.mxu0 %v4086
        %4911 = vmatmul.mubr.bf16.gmra.mrb[0].mxu0 %v4085
        %v4912 = vpop.f32.mrb[0].mxu0
        %v4913 = vadd.f32 0.0, %v4912
        %v4914 = vpop.f32.mrb[0].mxu0
        %v4915 = vadd.f32 0.0, %v4914
        %v4916 = vpop.f32.mrb[0].mxu0
        %v4917 = vpop.f32.mrb[0].mxu0
        %4918 = vdwg.mxu0
        %4919 = vst [vmem:[#allocation3 + $0x40] sm:$0xff] %v4913
        %4920 = vst [vmem:[#allocation3 + $0x48] sm:$0xff] %v4915
        %v4921 = vpack.c.bf16 %v685, %v685
        %v4922 = vpack.c.bf16 %v687, %v687
        %v4923 = vld [vmem:[#allocation2 + $0x50] sm:$0xff]
        %v4924 = vld [vmem:[#allocation2 + $0x58] sm:$0xff]
        %v4925 = vpack.c.bf16 %v4923, %v4923
        %v4926 = vpack.c.bf16 %v4924, %v4924
        %v4927 = vld [vmem:[#allocation2 + $0xd0] sm:$0xff]
        %v4928 = vld [vmem:[#allocation2 + $0xd8] sm:$0xff]
        %v4929 = vpack.c.bf16 %v4927, %v4927
        %v4930 = vpack.c.bf16 %v4928, %v4928
        %4931 = vxpose.xlu0.c.b16.start [1/8] %v4921, 128
        %4932 = vxpose.xlu0.c.b16.cont [2/8] 0, 128
        %4933 = vxpose.xlu0.c.b16.cont [3/8] 0, 128
        %4934 = vxpose.xlu0.c.b16.cont [4/8] 0, 128
        %4935 = vxpose.xlu0.c.b16.cont [5/8] 0, 128
        %4936 = vxpose.xlu0.c.b16.cont [6/8] 0, 128
        %4937 = vxpose.xlu0.c.b16.cont [7/8] 0, 128
        %4938 = vxpose.xlu0.c.b16.end [8/8] 0, 128
        %v4939 = vpop.trf.xlu0
        %v4940 = vpop.trf.xlu0
        %v4941 = vpop.trf.xlu0
        %v4942 = vpop.trf.xlu0
        %v4943 = vpop.trf.xlu0
        %v4944 = vpop.trf.xlu0
        %v4945 = vpop.trf.xlu0
        %v4946 = vpop.trf.xlu0
        %4947 = vxpose.xlu0.c.b16.start [1/8] %v4922, 128
        %4948 = vxpose.xlu0.c.b16.cont [2/8] 0, 128
        %4949 = vxpose.xlu0.c.b16.cont [3/8] 0, 128
        %4950 = vxpose.xlu0.c.b16.cont [4/8] 0, 128
        %4951 = vxpose.xlu0.c.b16.cont [5/8] 0, 128
        %4952 = vxpose.xlu0.c.b16.cont [6/8] 0, 128
        %4953 = vxpose.xlu0.c.b16.cont [7/8] 0, 128
        %4954 = vxpose.xlu0.c.b16.end [8/8] 0, 128
        %v4955 = vpop.trf.xlu0
        %v4956 = vpop.trf.xlu0
        %v4957 = vpop.trf.xlu0
        %v4958 = vpop.trf.xlu0
        %v4959 = vpop.trf.xlu0
        %v4960 = vpop.trf.xlu0
        %v4961 = vpop.trf.xlu0
        %v4962 = vpop.trf.xlu0
        %v4964 = vsel %vm741, %v4939, 0
        %v4967 = vsel %vm741, %v4940, 0
        %v4970 = vsel %vm741, %v4941, 0
        %v4973 = vsel %vm741, %v4942, 0
        %v4976 = vsel %vm741, %v4943, 0
        %v4979 = vsel %vm741, %v4944, 0
        %v4982 = vsel %vm741, %v4945, 0
        %v4985 = vsel %vm741, %v4946, 0
        %v4988 = vsel %vm741, %v4955, 0
        %v4991 = vsel %vm741, %v4956, 0
        %v4994 = vsel %vm741, %v4957, 0
        %v4997 = vsel %vm741, %v4958, 0
        %v5000 = vsel %vm741, %v4959, 0
        %v5003 = vsel %vm741, %v4960, 0
        %v5006 = vsel %vm741, %v4961, 0
        %v5009 = vsel %vm741, %v4962, 0
        %v5012 = vsel %vm790, %v4925, 0
        %v5015 = vsel %vm790, %v4926, 0
        %5017 = vmatprep.subr.bf16.mxu0 %v5015
        %5018 = vmatpush1.bf16.msra.mxu0 %v5012
        %5019 = vmatprep.subr.bf16.mxu0 0
        %5020 = vmatpush1.bf16.msra.mxu0 0
        %5021 = vmatprep.subr.bf16.mxu0 0
        %5022 = vmatpush1.bf16.msra.mxu0 0
        %5023 = vmatprep.subr.bf16.mxu0 0
        %5024 = vmatpush1.bf16.msra.mxu0 0
        %5025 = vmatprep.subr.bf16.mxu0 0
        %5026 = vmatpush1.bf16.msra.mxu0 0
        %5027 = vmatprep.subr.bf16.mxu0 0
        %5028 = vmatpush1.bf16.msra.mxu0 0
        %5029 = vmatprep.subr.bf16.mxu0 0
        %5030 = vmatpush1.bf16.msra.mxu0 0
        %5031 = vmatprep.subr.bf16.mxu0 0
        %5032 = vmatpush1.bf16.msra.mxu0 0
        %5033 = vmatprep.subr.bf16.mxu0 0
        %5034 = vmatpush1.bf16.msra.mxu0 0
        %5035 = vmatprep.subr.bf16.mxu0 0
        %5036 = vmatpush1.bf16.msra.mxu0 0
        %5037 = vmatprep.subr.bf16.mxu0 0
        %5038 = vmatpush1.bf16.msra.mxu0 0
        %5039 = vmatprep.subr.bf16.mxu0 0
        %5040 = vmatpush1.bf16.msra.mxu0 0
        %5041 = vmatprep.subr.bf16.mxu0 0
        %5042 = vmatpush1.bf16.msra.mxu0 0
        %5043 = vmatprep.subr.bf16.mxu0 0
        %5044 = vmatpush1.bf16.msra.mxu0 0
        %5045 = vmatprep.subr.bf16.mxu0 0
        %5046 = vmatpush1.bf16.msra.mxu0 0
        %5047 = vmatprep.subr.bf16.mxu0 0
        %5048 = vmatpush1.bf16.msra.mxu0 0
        %5049 = vmatprep.mubr.bf16.mxu0 0
        %5050 = vmatmul.mubr.bf16.gmra.mrb[0].mxu0 %v4964
        %v5051 = vpop.f32.mrb[0].mxu0
        %v5052 = vadd.f32 0.0, %v5051
        %v5053 = vpop.f32.mrb[0].mxu0
        %v5054 = vadd.f32 0.0, %v5053
        %v5055 = vpop.f32.mrb[0].mxu0
        %v5056 = vadd.f32 0.0, %v5055
        %v5057 = vpop.f32.mrb[0].mxu0
        %v5058 = vadd.f32 0.0, %v5057
        %5059 = vmatprep.mubr.bf16.mxu0 0
        %5060 = vmatmul.mubr.bf16.gmra.mrb[0].mxu0 %v4967
        %v5061 = vpop.f32.mrb[0].mxu0
        %v5062 = vadd.f32 0.0, %v5061
        %v5063 = vpop.f32.mrb[0].mxu0
        %v5064 = vadd.f32 0.0, %v5063
        %v5065 = vpop.f32.mrb[0].mxu0
        %v5066 = vadd.f32 0.0, %v5065
        %v5067 = vpop.f32.mrb[0].mxu0
        %v5068 = vadd.f32 0.0, %v5067
        %5069 = vmatprep.mubr.bf16.mxu0 0
        %5070 = vmatmul.mubr.bf16.gmra.mrb[0].mxu0 %v4970
        %v5071 = vpop.f32.mrb[0].mxu0
        %v5072 = vadd.f32 0.0, %v5071
        %v5073 = vpop.f32.mrb[0].mxu0
        %v5074 = vadd.f32 0.0, %v5073
        %v5075 = vpop.f32.mrb[0].mxu0
        %v5076 = vadd.f32 0.0, %v5075
        %v5077 = vpop.f32.mrb[0].mxu0
        %v5078 = vadd.f32 0.0, %v5077
        %5079 = vmatprep.mubr.bf16.mxu0 0
        %5080 = vmatmul.mubr.bf16.gmra.mrb[0].mxu0 %v4973
        %v5081 = vpop.f32.mrb[0].mxu0
        %v5082 = vadd.f32 0.0, %v5081
        %v5083 = vpop.f32.mrb[0].mxu0
        %v5084 = vadd.f32 0.0, %v5083
        %v5085 = vpop.f32.mrb[0].mxu0
        %v5086 = vadd.f32 0.0, %v5085
        %v5087 = vpop.f32.mrb[0].mxu0
        %v5088 = vadd.f32 0.0, %v5087
        %5089 = vmatprep.mubr.bf16.mxu0 0
        %5090 = vmatmul.mubr.bf16.gmra.mrb[0].mxu0 %v4976
        %v5091 = vpop.f32.mrb[0].mxu0
        %v5092 = vadd.f32 0.0, %v5091
        %v5093 = vpop.f32.mrb[0].mxu0
        %v5094 = vadd.f32 0.0, %v5093
        %v5095 = vpop.f32.mrb[0].mxu0
        %v5096 = vadd.f32 0.0, %v5095
        %v5097 = vpop.f32.mrb[0].mxu0
        %v5098 = vadd.f32 0.0, %v5097
        %5099 = vmatprep.mubr.bf16.mxu0 0
        %5100 = vmatmul.mubr.bf16.gmra.mrb[0].mxu0 %v4979
        %v5101 = vpop.f32.mrb[0].mxu0
        %v5102 = vadd.f32 0.0, %v5101
        %v5103 = vpop.f32.mrb[0].mxu0
        %v5104 = vadd.f32 0.0, %v5103
        %v5105 = vpop.f32.mrb[0].mxu0
        %v5106 = vadd.f32 0.0, %v5105
        %v5107 = vpop.f32.mrb[0].mxu0
        %v5108 = vadd.f32 0.0, %v5107
        %5109 = vmatprep.mubr.bf16.mxu0 0
        %5110 = vmatmul.mubr.bf16.gmra.mrb[0].mxu0 %v4982
        %v5111 = vpop.f32.mrb[0].mxu0
        %v5112 = vadd.f32 0.0, %v5111
        %v5113 = vpop.f32.mrb[0].mxu0
        %v5114 = vadd.f32 0.0, %v5113
        %v5115 = vpop.f32.mrb[0].mxu0
        %v5116 = vadd.f32 0.0, %v5115
        %v5117 = vpop.f32.mrb[0].mxu0
        %v5118 = vadd.f32 0.0, %v5117
        %5119 = vmatprep.mubr.bf16.mxu0 0
        %5120 = vmatmul.mubr.bf16.gmra.mrb[0].mxu0 %v4985
        %v5121 = vpop.f32.mrb[0].mxu0
        %v5122 = vadd.f32 0.0, %v5121
        %v5123 = vpop.f32.mrb[0].mxu0
        %v5124 = vadd.f32 0.0, %v5123
        %v5125 = vpop.f32.mrb[0].mxu0
        %v5126 = vadd.f32 0.0, %v5125
        %v5127 = vpop.f32.mrb[0].mxu0
        %v5128 = vadd.f32 0.0, %v5127
        %5129 = vmatprep.mubr.bf16.mxu0 0
        %5130 = vmatmul.mubr.bf16.gmra.mrb[0].mxu0 %v4988
        %v5131 = vpop.f32.mrb[0].mxu0
        %v5132 = vadd.f32 0.0, %v5131
        %v5133 = vpop.f32.mrb[0].mxu0
        %v5134 = vadd.f32 0.0, %v5133
        %v5135 = vpop.f32.mrb[0].mxu0
        %v5136 = vadd.f32 0.0, %v5135
        %v5137 = vpop.f32.mrb[0].mxu0
        %v5138 = vadd.f32 0.0, %v5137
        %5139 = vmatprep.mubr.bf16.mxu0 0
        %5140 = vmatmul.mubr.bf16.gmra.mrb[0].mxu0 %v4991
        %v5141 = vpop.f32.mrb[0].mxu0
        %v5142 = vadd.f32 0.0, %v5141
        %v5143 = vpop.f32.mrb[0].mxu0
        %v5144 = vadd.f32 0.0, %v5143
        %v5145 = vpop.f32.mrb[0].mxu0
        %v5146 = vadd.f32 0.0, %v5145
        %v5147 = vpop.f32.mrb[0].mxu0
        %v5148 = vadd.f32 0.0, %v5147
        %5149 = vmatprep.mubr.bf16.mxu0 0
        %5150 = vmatmul.mubr.bf16.gmra.mrb[0].mxu0 %v4994
        %v5151 = vpop.f32.mrb[0].mxu0
        %v5152 = vadd.f32 0.0, %v5151
        %v5153 = vpop.f32.mrb[0].mxu0
        %v5154 = vadd.f32 0.0, %v5153
        %v5155 = vpop.f32.mrb[0].mxu0
        %v5156 = vadd.f32 0.0, %v5155
        %v5157 = vpop.f32.mrb[0].mxu0
        %v5158 = vadd.f32 0.0, %v5157
        %5159 = vmatprep.mubr.bf16.mxu0 0
        %5160 = vmatmul.mubr.bf16.gmra.mrb[0].mxu0 %v4997
        %v5161 = vpop.f32.mrb[0].mxu0
        %v5162 = vadd.f32 0.0, %v5161
        %v5163 = vpop.f32.mrb[0].mxu0
        %v5164 = vadd.f32 0.0, %v5163
        %v5165 = vpop.f32.mrb[0].mxu0
        %v5166 = vadd.f32 0.0, %v5165
        %v5167 = vpop.f32.mrb[0].mxu0
        %v5168 = vadd.f32 0.0, %v5167
        %5169 = vmatprep.mubr.bf16.mxu0 0
        %5170 = vmatmul.mubr.bf16.gmra.mrb[0].mxu0 %v5000
        %v5171 = vpop.f32.mrb[0].mxu0
        %v5172 = vadd.f32 0.0, %v5171
        %v5173 = vpop.f32.mrb[0].mxu0
        %v5174 = vadd.f32 0.0, %v5173
        %v5175 = vpop.f32.mrb[0].mxu0
        %v5176 = vadd.f32 0.0, %v5175
        %v5177 = vpop.f32.mrb[0].mxu0
        %v5178 = vadd.f32 0.0, %v5177
        %5179 = vmatprep.mubr.bf16.mxu0 0
        %5180 = vmatmul.mubr.bf16.gmra.mrb[0].mxu0 %v5003
        %v5181 = vpop.f32.mrb[0].mxu0
        %v5182 = vadd.f32 0.0, %v5181
        %v5183 = vpop.f32.mrb[0].mxu0
        %v5184 = vadd.f32 0.0, %v5183
        %v5185 = vpop.f32.mrb[0].mxu0
        %v5186 = vadd.f32 0.0, %v5185
        %v5187 = vpop.f32.mrb[0].mxu0
        %v5188 = vadd.f32 0.0, %v5187
        %5189 = vmatprep.mubr.bf16.mxu0 0
        %5190 = vmatmul.mubr.bf16.gmra.mrb[0].mxu0 %v5006
        %v5191 = vpop.f32.mrb[0].mxu0
        %v5192 = vadd.f32 0.0, %v5191
        %v5193 = vpop.f32.mrb[0].mxu0
        %v5194 = vadd.f32 0.0, %v5193
        %v5195 = vpop.f32.mrb[0].mxu0
        %v5196 = vadd.f32 0.0, %v5195
        %v5197 = vpop.f32.mrb[0].mxu0
        %v5198 = vadd.f32 0.0, %v5197
        %5199 = vmatprep.mubr.bf16.mxu0 0
        %5200 = vmatmul.mubr.bf16.gmra.mrb[0].mxu0 %v5009
        %v5201 = vpop.f32.mrb[0].mxu0
        %v5202 = vadd.f32 0.0, %v5201
        %v5203 = vpop.f32.mrb[0].mxu0
        %v5204 = vadd.f32 0.0, %v5203
        %v5205 = vpop.f32.mrb[0].mxu0
        %v5206 = vadd.f32 0.0, %v5205
        %v5207 = vpop.f32.mrb[0].mxu0
        %v5208 = vadd.f32 0.0, %v5207
        %5209 = vdwg.mxu0
        %v5210 = vmax.f32 %v5052, %v5054
        %5211 = vmax.xlane.f32.xlu0 %v5210
        %v5212 = vpop.xlane.xlu0 %5211
        %v5213 = vmax.f32 %v5056, %v5058
        %5214 = vmax.xlane.f32.xlu0 %v5213
        %v5215 = vpop.xlane.xlu0 %5214
        %v5216 = vmax.f32 %v5062, %v5064
        %5217 = vmax.xlane.f32.xlu0 %v5216
        %v5218 = vpop.xlane.xlu0 %5217
        %v5219 = vmax.f32 %v5066, %v5068
        %5220 = vmax.xlane.f32.xlu0 %v5219
        %v5221 = vpop.xlane.xlu0 %5220
        %v5222 = vmax.f32 %v5072, %v5074
        %5223 = vmax.xlane.f32.xlu0 %v5222
        %v5224 = vpop.xlane.xlu0 %5223
        %v5225 = vmax.f32 %v5076, %v5078
        %5226 = vmax.xlane.f32.xlu0 %v5225
        %v5227 = vpop.xlane.xlu0 %5226
        %v5228 = vmax.f32 %v5082, %v5084
        %5229 = vmax.xlane.f32.xlu0 %v5228
        %v5230 = vpop.xlane.xlu0 %5229
        %v5231 = vmax.f32 %v5086, %v5088
        %5232 = vmax.xlane.f32.xlu0 %v5231
        %v5233 = vpop.xlane.xlu0 %5232
        %v5234 = vmax.f32 %v5092, %v5094
        %5235 = vmax.xlane.f32.xlu0 %v5234
        %v5236 = vpop.xlane.xlu0 %5235
        %v5237 = vmax.f32 %v5096, %v5098
        %5238 = vmax.xlane.f32.xlu0 %v5237
        %v5239 = vpop.xlane.xlu0 %5238
        %v5240 = vmax.f32 %v5102, %v5104
        %5241 = vmax.xlane.f32.xlu0 %v5240
        %v5242 = vpop.xlane.xlu0 %5241
        %v5243 = vmax.f32 %v5106, %v5108
        %5244 = vmax.xlane.f32.xlu0 %v5243
        %v5245 = vpop.xlane.xlu0 %5244
        %v5246 = vmax.f32 %v5112, %v5114
        %5247 = vmax.xlane.f32.xlu0 %v5246
        %v5248 = vpop.xlane.xlu0 %5247
        %v5249 = vmax.f32 %v5116, %v5118
        %5250 = vmax.xlane.f32.xlu0 %v5249
        %v5251 = vpop.xlane.xlu0 %5250
        %v5252 = vmax.f32 %v5122, %v5124
        %5253 = vmax.xlane.f32.xlu0 %v5252
        %v5254 = vpop.xlane.xlu0 %5253
        %v5255 = vmax.f32 %v5126, %v5128
        %5256 = vmax.xlane.f32.xlu0 %v5255
        %v5257 = vpop.xlane.xlu0 %5256
        %v5258 = vmax.f32 %v5132, %v5134
        %5259 = vmax.xlane.f32.xlu0 %v5258
        %v5260 = vpop.xlane.xlu0 %5259
        %v5261 = vmax.f32 %v5136, %v5138
        %5262 = vmax.xlane.f32.xlu0 %v5261
        %v5263 = vpop.xlane.xlu0 %5262
        %v5264 = vmax.f32 %v5142, %v5144
        %5265 = vmax.xlane.f32.xlu0 %v5264
        %v5266 = vpop.xlane.xlu0 %5265
        %v5267 = vmax.f32 %v5146, %v5148
        %5268 = vmax.xlane.f32.xlu0 %v5267
        %v5269 = vpop.xlane.xlu0 %5268
        %v5270 = vmax.f32 %v5152, %v5154
        %5271 = vmax.xlane.f32.xlu0 %v5270
        %v5272 = vpop.xlane.xlu0 %5271
        %v5273 = vmax.f32 %v5156, %v5158
        %5274 = vmax.xlane.f32.xlu0 %v5273
        %v5275 = vpop.xlane.xlu0 %5274
        %v5276 = vmax.f32 %v5162, %v5164
        %5277 = vmax.xlane.f32.xlu0 %v5276
        %v5278 = vpop.xlane.xlu0 %5277
        %v5279 = vmax.f32 %v5166, %v5168
        %5280 = vmax.xlane.f32.xlu0 %v5279
        %v5281 = vpop.xlane.xlu0 %5280
        %v5282 = vmax.f32 %v5172, %v5174
        %5283 = vmax.xlane.f32.xlu0 %v5282
        %v5284 = vpop.xlane.xlu0 %5283
        %v5285 = vmax.f32 %v5176, %v5178
        %5286 = vmax.xlane.f32.xlu0 %v5285
        %v5287 = vpop.xlane.xlu0 %5286
        %v5288 = vmax.f32 %v5182, %v5184
        %5289 = vmax.xlane.f32.xlu0 %v5288
        %v5290 = vpop.xlane.xlu0 %5289
        %v5291 = vmax.f32 %v5186, %v5188
        %5292 = vmax.xlane.f32.xlu0 %v5291
        %v5293 = vpop.xlane.xlu0 %5292
        %v5294 = vmax.f32 %v5192, %v5194
        %5295 = vmax.xlane.f32.xlu0 %v5294
        %v5296 = vpop.xlane.xlu0 %5295
        %v5297 = vmax.f32 %v5196, %v5198
        %5298 = vmax.xlane.f32.xlu0 %v5297
        %v5299 = vpop.xlane.xlu0 %5298
        %v5300 = vmax.f32 %v5202, %v5204
        %5301 = vmax.xlane.f32.xlu0 %v5300
        %v5302 = vpop.xlane.xlu0 %5301
        %v5303 = vmax.f32 %v5206, %v5208
        %5304 = vmax.xlane.f32.xlu0 %v5303
        %v5305 = vpop.xlane.xlu0 %5304
        %v5306 = vsub.f32 %v5052, %v5212
        %v5307 = vsub.f32 %v5054, %v5212
        %v5308 = vsub.f32 %v5056, %v5215
        %v5309 = vsub.f32 %v5058, %v5215
        %v5310 = vsub.f32 %v5062, %v5218
        %v5311 = vsub.f32 %v5064, %v5218
        %v5312 = vsub.f32 %v5066, %v5221
        %v5313 = vsub.f32 %v5068, %v5221
        %v5314 = vsub.f32 %v5072, %v5224
        %v5315 = vsub.f32 %v5074, %v5224
        %v5316 = vsub.f32 %v5076, %v5227
        %v5317 = vsub.f32 %v5078, %v5227
        %v5318 = vsub.f32 %v5082, %v5230
        %v5319 = vsub.f32 %v5084, %v5230
        %v5320 = vsub.f32 %v5086, %v5233
        %v5321 = vsub.f32 %v5088, %v5233
        %v5322 = vsub.f32 %v5092, %v5236
        %v5323 = vsub.f32 %v5094, %v5236
        %v5324 = vsub.f32 %v5096, %v5239
        %v5325 = vsub.f32 %v5098, %v5239
        %v5326 = vsub.f32 %v5102, %v5242
        %v5327 = vsub.f32 %v5104, %v5242
        %v5328 = vsub.f32 %v5106, %v5245
        %v5329 = vsub.f32 %v5108, %v5245
        %v5330 = vsub.f32 %v5112, %v5248
        %v5331 = vsub.f32 %v5114, %v5248
        %v5332 = vsub.f32 %v5116, %v5251
        %v5333 = vsub.f32 %v5118, %v5251
        %v5334 = vsub.f32 %v5122, %v5254
        %v5335 = vsub.f32 %v5124, %v5254
        %v5336 = vsub.f32 %v5126, %v5257
        %v5337 = vsub.f32 %v5128, %v5257
        %v5338 = vsub.f32 %v5132, %v5260
        %v5339 = vsub.f32 %v5134, %v5260
        %v5340 = vsub.f32 %v5136, %v5263
        %v5341 = vsub.f32 %v5138, %v5263
        %v5342 = vsub.f32 %v5142, %v5266
        %v5343 = vsub.f32 %v5144, %v5266
        %v5344 = vsub.f32 %v5146, %v5269
        %v5345 = vsub.f32 %v5148, %v5269
        %v5346 = vsub.f32 %v5152, %v5272
        %v5347 = vsub.f32 %v5154, %v5272
        %v5348 = vsub.f32 %v5156, %v5275
        %v5349 = vsub.f32 %v5158, %v5275
        %v5350 = vsub.f32 %v5162, %v5278
        %v5351 = vsub.f32 %v5164, %v5278
        %v5352 = vsub.f32 %v5166, %v5281
        %v5353 = vsub.f32 %v5168, %v5281
        %v5354 = vsub.f32 %v5172, %v5284
        %v5355 = vsub.f32 %v5174, %v5284
        %v5356 = vsub.f32 %v5176, %v5287
        %v5357 = vsub.f32 %v5178, %v5287
        %v5358 = vsub.f32 %v5182, %v5290
        %v5359 = vsub.f32 %v5184, %v5290
        %v5360 = vsub.f32 %v5186, %v5293
        %v5361 = vsub.f32 %v5188, %v5293
        %v5362 = vsub.f32 %v5192, %v5296
        %v5363 = vsub.f32 %v5194, %v5296
        %v5364 = vsub.f32 %v5196, %v5299
        %v5365 = vsub.f32 %v5198, %v5299
        %v5366 = vsub.f32 %v5202, %v5302
        %v5367 = vsub.f32 %v5204, %v5302
        %v5368 = vsub.f32 %v5206, %v5305
        %v5369 = vsub.f32 %v5208, %v5305
        %v5370 = vmul.f32 %v5306, 1.442695
        %v5371 = vpow.pop %v5370
        %v5372 = vmul.f32 %v5307, 1.442695
        %v5373 = vpow.pop %v5372
        %v5374 = vmul.f32 %v5308, 1.442695
        %v5375 = vpow.pop %v5374
        %v5376 = vmul.f32 %v5309, 1.442695
        %v5377 = vpow.pop %v5376
        %v5378 = vmul.f32 %v5310, 1.442695
        %v5379 = vpow.pop %v5378
        %v5380 = vmul.f32 %v5311, 1.442695
        %v5381 = vpow.pop %v5380
        %v5382 = vmul.f32 %v5312, 1.442695
        %v5383 = vpow.pop %v5382
        %v5384 = vmul.f32 %v5313, 1.442695
        %v5385 = vpow.pop %v5384
        %v5386 = vmul.f32 %v5314, 1.442695
        %v5387 = vpow.pop %v5386
        %v5388 = vmul.f32 %v5315, 1.442695
        %v5389 = vpow.pop %v5388
        %v5390 = vmul.f32 %v5316, 1.442695
        %v5391 = vpow.pop %v5390
        %v5392 = vmul.f32 %v5317, 1.442695
        %v5393 = vpow.pop %v5392
        %v5394 = vmul.f32 %v5318, 1.442695
        %v5395 = vpow.pop %v5394
        %v5396 = vmul.f32 %v5319, 1.442695
        %v5397 = vpow.pop %v5396
        %v5398 = vmul.f32 %v5320, 1.442695
        %v5399 = vpow.pop %v5398
        %v5400 = vmul.f32 %v5321, 1.442695
        %v5401 = vpow.pop %v5400
        %v5402 = vmul.f32 %v5322, 1.442695
        %v5403 = vpow.pop %v5402
        %v5404 = vmul.f32 %v5323, 1.442695
        %v5405 = vpow.pop %v5404
        %v5406 = vmul.f32 %v5324, 1.442695
        %v5407 = vpow.pop %v5406
        %v5408 = vmul.f32 %v5325, 1.442695
        %v5409 = vpow.pop %v5408
        %v5410 = vmul.f32 %v5326, 1.442695
        %v5411 = vpow.pop %v5410
        %v5412 = vmul.f32 %v5327, 1.442695
        %v5413 = vpow.pop %v5412
        %v5414 = vmul.f32 %v5328, 1.442695
        %v5415 = vpow.pop %v5414
        %v5416 = vmul.f32 %v5329, 1.442695
        %v5417 = vpow.pop %v5416
        %v5418 = vmul.f32 %v5330, 1.442695
        %v5419 = vpow.pop %v5418
        %v5420 = vmul.f32 %v5331, 1.442695
        %v5421 = vpow.pop %v5420
        %v5422 = vmul.f32 %v5332, 1.442695
        %v5423 = vpow.pop %v5422
        %v5424 = vmul.f32 %v5333, 1.442695
        %v5425 = vpow.pop %v5424
        %v5426 = vmul.f32 %v5334, 1.442695
        %v5427 = vpow.pop %v5426
        %v5428 = vmul.f32 %v5335, 1.442695
        %v5429 = vpow.pop %v5428
        %v5430 = vmul.f32 %v5336, 1.442695
        %v5431 = vpow.pop %v5430
        %v5432 = vmul.f32 %v5337, 1.442695
        %v5433 = vpow.pop %v5432
        %v5434 = vmul.f32 %v5338, 1.442695
        %v5435 = vpow.pop %v5434
        %v5436 = vmul.f32 %v5339, 1.442695
        %v5437 = vpow.pop %v5436
        %v5438 = vmul.f32 %v5340, 1.442695
        %v5439 = vpow.pop %v5438
        %v5440 = vmul.f32 %v5341, 1.442695
        %v5441 = vpow.pop %v5440
        %v5442 = vmul.f32 %v5342, 1.442695
        %v5443 = vpow.pop %v5442
        %v5444 = vmul.f32 %v5343, 1.442695
        %v5445 = vpow.pop %v5444
        %v5446 = vmul.f32 %v5344, 1.442695
        %v5447 = vpow.pop %v5446
        %v5448 = vmul.f32 %v5345, 1.442695
        %v5449 = vpow.pop %v5448
        %v5450 = vmul.f32 %v5346, 1.442695
        %v5451 = vpow.pop %v5450
        %v5452 = vmul.f32 %v5347, 1.442695
        %v5453 = vpow.pop %v5452
        %v5454 = vmul.f32 %v5348, 1.442695
        %v5455 = vpow.pop %v5454
        %v5456 = vmul.f32 %v5349, 1.442695
        %v5457 = vpow.pop %v5456
        %v5458 = vmul.f32 %v5350, 1.442695
        %v5459 = vpow.pop %v5458
        %v5460 = vmul.f32 %v5351, 1.442695
        %v5461 = vpow.pop %v5460
        %v5462 = vmul.f32 %v5352, 1.442695
        %v5463 = vpow.pop %v5462
        %v5464 = vmul.f32 %v5353, 1.442695
        %v5465 = vpow.pop %v5464
        %v5466 = vmul.f32 %v5354, 1.442695
        %v5467 = vpow.pop %v5466
        %v5468 = vmul.f32 %v5355, 1.442695
        %v5469 = vpow.pop %v5468
        %v5470 = vmul.f32 %v5356, 1.442695
        %v5471 = vpow.pop %v5470
        %v5472 = vmul.f32 %v5357, 1.442695
        %v5473 = vpow.pop %v5472
        %v5474 = vmul.f32 %v5358, 1.442695
        %v5475 = vpow.pop %v5474
        %v5476 = vmul.f32 %v5359, 1.442695
        %v5477 = vpow.pop %v5476
        %v5478 = vmul.f32 %v5360, 1.442695
        %v5479 = vpow.pop %v5478
        %v5480 = vmul.f32 %v5361, 1.442695
        %v5481 = vpow.pop %v5480
        %v5482 = vmul.f32 %v5362, 1.442695
        %v5483 = vpow.pop %v5482
        %v5484 = vmul.f32 %v5363, 1.442695
        %v5485 = vpow.pop %v5484
        %v5486 = vmul.f32 %v5364, 1.442695
        %v5487 = vpow.pop %v5486
        %v5488 = vmul.f32 %v5365, 1.442695
        %v5489 = vpow.pop %v5488
        %v5490 = vmul.f32 %v5366, 1.442695
        %v5491 = vpow.pop %v5490
        %v5492 = vmul.f32 %v5367, 1.442695
        %v5493 = vpow.pop %v5492
        %v5494 = vmul.f32 %v5368, 1.442695
        %v5495 = vpow.pop %v5494
        %v5496 = vmul.f32 %v5369, 1.442695
        %v5497 = vpow.pop %v5496
        %v5498 = vadd.f32 %v5371, %v5373
        %5499 = vadd.xlane.f32.xlu0 %v5498
        %v5500 = vpop.xlane.xlu0 %5499
        %v5501 = vadd.f32 %v5375, %v5377
        %5502 = vadd.xlane.f32.xlu0 %v5501
        %v5503 = vpop.xlane.xlu0 %5502
        %v5504 = vadd.f32 %v5379, %v5381
        %5505 = vadd.xlane.f32.xlu0 %v5504
        %v5506 = vpop.xlane.xlu0 %5505
        %v5507 = vadd.f32 %v5383, %v5385
        %5508 = vadd.xlane.f32.xlu0 %v5507
        %v5509 = vpop.xlane.xlu0 %5508
        %v5510 = vadd.f32 %v5387, %v5389
        %5511 = vadd.xlane.f32.xlu0 %v5510
        %v5512 = vpop.xlane.xlu0 %5511
        %v5513 = vadd.f32 %v5391, %v5393
        %5514 = vadd.xlane.f32.xlu0 %v5513
        %v5515 = vpop.xlane.xlu0 %5514
        %v5516 = vadd.f32 %v5395, %v5397
        %5517 = vadd.xlane.f32.xlu0 %v5516
        %v5518 = vpop.xlane.xlu0 %5517
        %v5519 = vadd.f32 %v5399, %v5401
        %5520 = vadd.xlane.f32.xlu0 %v5519
        %v5521 = vpop.xlane.xlu0 %5520
        %v5522 = vadd.f32 %v5403, %v5405
        %5523 = vadd.xlane.f32.xlu0 %v5522
        %v5524 = vpop.xlane.xlu0 %5523
        %v5525 = vadd.f32 %v5407, %v5409
        %5526 = vadd.xlane.f32.xlu0 %v5525
        %v5527 = vpop.xlane.xlu0 %5526
        %v5528 = vadd.f32 %v5411, %v5413
        %5529 = vadd.xlane.f32.xlu0 %v5528
        %v5530 = vpop.xlane.xlu0 %5529
        %v5531 = vadd.f32 %v5415, %v5417
        %5532 = vadd.xlane.f32.xlu0 %v5531
        %v5533 = vpop.xlane.xlu0 %5532
        %v5534 = vadd.f32 %v5419, %v5421
        %5535 = vadd.xlane.f32.xlu0 %v5534
        %v5536 = vpop.xlane.xlu0 %5535
        %v5537 = vadd.f32 %v5423, %v5425
        %5538 = vadd.xlane.f32.xlu0 %v5537
        %v5539 = vpop.xlane.xlu0 %5538
        %v5540 = vadd.f32 %v5427, %v5429
        %5541 = vadd.xlane.f32.xlu0 %v5540
        %v5542 = vpop.xlane.xlu0 %5541
        %v5543 = vadd.f32 %v5431, %v5433
        %5544 = vadd.xlane.f32.xlu0 %v5543
        %v5545 = vpop.xlane.xlu0 %5544
        %v5546 = vadd.f32 %v5435, %v5437
        %5547 = vadd.xlane.f32.xlu0 %v5546
        %v5548 = vpop.xlane.xlu0 %5547
        %v5549 = vadd.f32 %v5439, %v5441
        %5550 = vadd.xlane.f32.xlu0 %v5549
        %v5551 = vpop.xlane.xlu0 %5550
        %v5552 = vadd.f32 %v5443, %v5445
        %5553 = vadd.xlane.f32.xlu0 %v5552
        %v5554 = vpop.xlane.xlu0 %5553
        %v5555 = vadd.f32 %v5447, %v5449
        %5556 = vadd.xlane.f32.xlu0 %v5555
        %v5557 = vpop.xlane.xlu0 %5556
        %v5558 = vadd.f32 %v5451, %v5453
        %5559 = vadd.xlane.f32.xlu0 %v5558
        %v5560 = vpop.xlane.xlu0 %5559
        %v5561 = vadd.f32 %v5455, %v5457
        %5562 = vadd.xlane.f32.xlu0 %v5561
        %v5563 = vpop.xlane.xlu0 %5562
        %v5564 = vadd.f32 %v5459, %v5461
        %5565 = vadd.xlane.f32.xlu0 %v5564
        %v5566 = vpop.xlane.xlu0 %5565
        %v5567 = vadd.f32 %v5463, %v5465
        %5568 = vadd.xlane.f32.xlu0 %v5567
        %v5569 = vpop.xlane.xlu0 %5568
        %v5570 = vadd.f32 %v5467, %v5469
        %5571 = vadd.xlane.f32.xlu0 %v5570
        %v5572 = vpop.xlane.xlu0 %5571
        %v5573 = vadd.f32 %v5471, %v5473
        %5574 = vadd.xlane.f32.xlu0 %v5573
        %v5575 = vpop.xlane.xlu0 %5574
        %v5576 = vadd.f32 %v5475, %v5477
        %5577 = vadd.xlane.f32.xlu0 %v5576
        %v5578 = vpop.xlane.xlu0 %5577
        %v5579 = vadd.f32 %v5479, %v5481
        %5580 = vadd.xlane.f32.xlu0 %v5579
        %v5581 = vpop.xlane.xlu0 %5580
        %v5582 = vadd.f32 %v5483, %v5485
        %5583 = vadd.xlane.f32.xlu0 %v5582
        %v5584 = vpop.xlane.xlu0 %5583
        %v5585 = vadd.f32 %v5487, %v5489
        %5586 = vadd.xlane.f32.xlu0 %v5585
        %v5587 = vpop.xlane.xlu0 %5586
        %v5588 = vadd.f32 %v5491, %v5493
        %5589 = vadd.xlane.f32.xlu0 %v5588
        %v5590 = vpop.xlane.xlu0 %5589
        %v5591 = vadd.f32 %v5495, %v5497
        %5592 = vadd.xlane.f32.xlu0 %v5591
        %v5593 = vpop.xlane.xlu0 %5592
        %v5594 = vrcp.pop %v5500
        %v5595 = vrcp.pop %v5503
        %v5596 = vrcp.pop %v5506
        %v5597 = vrcp.pop %v5509
        %v5598 = vrcp.pop %v5512
        %v5599 = vrcp.pop %v5515
        %v5600 = vrcp.pop %v5518
        %v5601 = vrcp.pop %v5521
        %v5602 = vrcp.pop %v5524
        %v5603 = vrcp.pop %v5527
        %v5604 = vrcp.pop %v5530
        %v5605 = vrcp.pop %v5533
        %v5606 = vrcp.pop %v5536
        %v5607 = vrcp.pop %v5539
        %v5608 = vrcp.pop %v5542
        %v5609 = vrcp.pop %v5545
        %v5610 = vrcp.pop %v5548
        %v5611 = vrcp.pop %v5551
        %v5612 = vrcp.pop %v5554
        %v5613 = vrcp.pop %v5557
        %v5614 = vrcp.pop %v5560
        %v5615 = vrcp.pop %v5563
        %v5616 = vrcp.pop %v5566
        %v5617 = vrcp.pop %v5569
        %v5618 = vrcp.pop %v5572
        %v5619 = vrcp.pop %v5575
        %v5620 = vrcp.pop %v5578
        %v5621 = vrcp.pop %v5581
        %v5622 = vrcp.pop %v5584
        %v5623 = vrcp.pop %v5587
        %v5624 = vrcp.pop %v5590
        %v5625 = vrcp.pop %v5593
        %v5626 = vmul.f32 %v5371, %v5594
        %v5627 = vmul.f32 %v5373, %v5594
        %v5628 = vmul.f32 %v5375, %v5595
        %v5629 = vmul.f32 %v5377, %v5595
        %v5630 = vmul.f32 %v5379, %v5596
        %v5631 = vmul.f32 %v5381, %v5596
        %v5632 = vmul.f32 %v5383, %v5597
        %v5633 = vmul.f32 %v5385, %v5597
        %v5634 = vmul.f32 %v5387, %v5598
        %v5635 = vmul.f32 %v5389, %v5598
        %v5636 = vmul.f32 %v5391, %v5599
        %v5637 = vmul.f32 %v5393, %v5599
        %v5638 = vmul.f32 %v5395, %v5600
        %v5639 = vmul.f32 %v5397, %v5600
        %v5640 = vmul.f32 %v5399, %v5601
        %v5641 = vmul.f32 %v5401, %v5601
        %v5642 = vmul.f32 %v5403, %v5602
        %v5643 = vmul.f32 %v5405, %v5602
        %v5644 = vmul.f32 %v5407, %v5603
        %v5645 = vmul.f32 %v5409, %v5603
        %v5646 = vmul.f32 %v5411, %v5604
        %v5647 = vmul.f32 %v5413, %v5604
        %v5648 = vmul.f32 %v5415, %v5605
        %v5649 = vmul.f32 %v5417, %v5605
        %v5650 = vmul.f32 %v5419, %v5606
        %v5651 = vmul.f32 %v5421, %v5606
        %v5652 = vmul.f32 %v5423, %v5607
        %v5653 = vmul.f32 %v5425, %v5607
        %v5654 = vmul.f32 %v5427, %v5608
        %v5655 = vmul.f32 %v5429, %v5608
        %v5656 = vmul.f32 %v5431, %v5609
        %v5657 = vmul.f32 %v5433, %v5609
        %v5658 = vmul.f32 %v5435, %v5610
        %v5659 = vmul.f32 %v5437, %v5610
        %v5660 = vmul.f32 %v5439, %v5611
        %v5661 = vmul.f32 %v5441, %v5611
        %v5662 = vmul.f32 %v5443, %v5612
        %v5663 = vmul.f32 %v5445, %v5612
        %v5664 = vmul.f32 %v5447, %v5613
        %v5665 = vmul.f32 %v5449, %v5613
        %v5666 = vmul.f32 %v5451, %v5614
        %v5667 = vmul.f32 %v5453, %v5614
        %v5668 = vmul.f32 %v5455, %v5615
        %v5669 = vmul.f32 %v5457, %v5615
        %v5670 = vmul.f32 %v5459, %v5616
        %v5671 = vmul.f32 %v5461, %v5616
        %v5672 = vmul.f32 %v5463, %v5617
        %v5673 = vmul.f32 %v5465, %v5617
        %v5674 = vmul.f32 %v5467, %v5618
        %v5675 = vmul.f32 %v5469, %v5618
        %v5676 = vmul.f32 %v5471, %v5619
        %v5677 = vmul.f32 %v5473, %v5619
        %v5678 = vmul.f32 %v5475, %v5620
        %v5679 = vmul.f32 %v5477, %v5620
        %v5680 = vmul.f32 %v5479, %v5621
        %v5681 = vmul.f32 %v5481, %v5621
        %v5682 = vmul.f32 %v5483, %v5622
        %v5683 = vmul.f32 %v5485, %v5622
        %v5684 = vmul.f32 %v5487, %v5623
        %v5685 = vmul.f32 %v5489, %v5623
        %v5686 = vmul.f32 %v5491, %v5624
        %v5687 = vmul.f32 %v5493, %v5624
        %v5688 = vmul.f32 %v5495, %v5625
        %v5689 = vmul.f32 %v5497, %v5625
        %v5690 = vpack.c.bf16 %v5628, %v5626
        %v5691 = vpack.c.bf16 %v5629, %v5627
        %v5692 = vpack.c.bf16 %v5632, %v5630
        %v5693 = vpack.c.bf16 %v5633, %v5631
        %v5694 = vpack.c.bf16 %v5636, %v5634
        %v5695 = vpack.c.bf16 %v5637, %v5635
        %v5696 = vpack.c.bf16 %v5640, %v5638
        %v5697 = vpack.c.bf16 %v5641, %v5639
        %v5698 = vpack.c.bf16 %v5644, %v5642
        %v5699 = vpack.c.bf16 %v5645, %v5643
        %v5700 = vpack.c.bf16 %v5648, %v5646
        %v5701 = vpack.c.bf16 %v5649, %v5647
        %v5702 = vpack.c.bf16 %v5652, %v5650
        %v5703 = vpack.c.bf16 %v5653, %v5651
        %v5704 = vpack.c.bf16 %v5656, %v5654
        %v5705 = vpack.c.bf16 %v5657, %v5655
        %v5706 = vpack.c.bf16 %v5660, %v5658
        %v5707 = vpack.c.bf16 %v5661, %v5659
        %v5708 = vpack.c.bf16 %v5664, %v5662
        %v5709 = vpack.c.bf16 %v5665, %v5663
        %v5710 = vpack.c.bf16 %v5668, %v5666
        %v5711 = vpack.c.bf16 %v5669, %v5667
        %v5712 = vpack.c.bf16 %v5672, %v5670
        %v5713 = vpack.c.bf16 %v5673, %v5671
        %v5714 = vpack.c.bf16 %v5676, %v5674
        %v5715 = vpack.c.bf16 %v5677, %v5675
        %v5716 = vpack.c.bf16 %v5680, %v5678
        %v5717 = vpack.c.bf16 %v5681, %v5679
        %v5718 = vpack.c.bf16 %v5684, %v5682
        %v5719 = vpack.c.bf16 %v5685, %v5683
        %v5720 = vpack.c.bf16 %v5688, %v5686
        %v5721 = vpack.c.bf16 %v5689, %v5687
        %5722 = vmatprep.subr.bf16.mxu0 %v5691
        %5723 = vmatpush1.bf16.xpose.msra.mxu0 %v5690
        %5724 = vmatprep.subr.bf16.mxu0 %v5693
        %5725 = vmatpush1.bf16.xpose.msra.mxu0 %v5692
        %5726 = vmatprep.subr.bf16.mxu0 %v5695
        %5727 = vmatpush1.bf16.xpose.msra.mxu0 %v5694
        %5728 = vmatprep.subr.bf16.mxu0 %v5697
        %5729 = vmatpush1.bf16.xpose.msra.mxu0 %v5696
        %5730 = vmatprep.subr.bf16.mxu0 %v5699
        %5731 = vmatpush1.bf16.xpose.msra.mxu0 %v5698
        %5732 = vmatprep.subr.bf16.mxu0 %v5701
        %5733 = vmatpush1.bf16.xpose.msra.mxu0 %v5700
        %5734 = vmatprep.subr.bf16.mxu0 %v5703
        %5735 = vmatpush1.bf16.xpose.msra.mxu0 %v5702
        %5736 = vmatprep.subr.bf16.mxu0 %v5705
        %5737 = vmatpush1.bf16.xpose.msra.mxu0 %v5704
        %5738 = vmatprep.subr.bf16.mxu0 %v5707
        %5739 = vmatpush1.bf16.xpose.msra.mxu0 %v5706
        %5740 = vmatprep.subr.bf16.mxu0 %v5709
        %5741 = vmatpush1.bf16.xpose.msra.mxu0 %v5708
        %5742 = vmatprep.subr.bf16.mxu0 %v5711
        %5743 = vmatpush1.bf16.xpose.msra.mxu0 %v5710
        %5744 = vmatprep.subr.bf16.mxu0 %v5713
        %5745 = vmatpush1.bf16.xpose.msra.mxu0 %v5712
        %5746 = vmatprep.subr.bf16.mxu0 %v5715
        %5747 = vmatpush1.bf16.xpose.msra.mxu0 %v5714
        %5748 = vmatprep.subr.bf16.mxu0 %v5717
        %5749 = vmatpush1.bf16.xpose.msra.mxu0 %v5716
        %5750 = vmatprep.subr.bf16.mxu0 %v5719
        %5751 = vmatpush1.bf16.xpose.msra.mxu0 %v5718
        %5752 = vmatprep.subr.bf16.mxu0 %v5721
        %5753 = vmatpush1.bf16.xpose.msra.mxu0 %v5720
        %5754 = vmatprep.mubr.bf16.mxu0 %v4930
        %5755 = vmatmul.mubr.bf16.gmra.mrb[0].mxu0 %v4929
        %v5756 = vpop.f32.mrb[0].mxu0
        %v5757 = vadd.f32 0.0, %v5756
        %v5758 = vpop.f32.mrb[0].mxu0
        %v5759 = vadd.f32 0.0, %v5758
        %v5760 = vpop.f32.mrb[0].mxu0
        %v5761 = vpop.f32.mrb[0].mxu0
        %5762 = vdwg.mxu0
        %5763 = vst [vmem:[#allocation3 + $0x50] sm:$0xff] %v5757
        %5764 = vst [vmem:[#allocation3 + $0x58] sm:$0xff] %v5759
        %v5765 = vpack.c.bf16 %v691, %v691
        %v5766 = vpack.c.bf16 %v693, %v693
        %v5767 = vld [vmem:[#allocation2 + $0x60] sm:$0xff]
        %v5768 = vld [vmem:[#allocation2 + $0x68] sm:$0xff]
        %v5769 = vpack.c.bf16 %v5767, %v5767
        %v5770 = vpack.c.bf16 %v5768, %v5768
        %v5771 = vld [vmem:[#allocation2 + $0xe0] sm:$0xff]
        %v5772 = vld [vmem:[#allocation2 + $0xe8] sm:$0xff]
        %v5773 = vpack.c.bf16 %v5771, %v5771
        %v5774 = vpack.c.bf16 %v5772, %v5772
        %5775 = vxpose.xlu0.c.b16.start [1/8] %v5765, 128
        %5776 = vxpose.xlu0.c.b16.cont [2/8] 0, 128
        %5777 = vxpose.xlu0.c.b16.cont [3/8] 0, 128
        %5778 = vxpose.xlu0.c.b16.cont [4/8] 0, 128
        %5779 = vxpose.xlu0.c.b16.cont [5/8] 0, 128
        %5780 = vxpose.xlu0.c.b16.cont [6/8] 0, 128
        %5781 = vxpose.xlu0.c.b16.cont [7/8] 0, 128
        %5782 = vxpose.xlu0.c.b16.end [8/8] 0, 128
        %v5783 = vpop.trf.xlu0
        %v5784 = vpop.trf.xlu0
        %v5785 = vpop.trf.xlu0
        %v5786 = vpop.trf.xlu0
        %v5787 = vpop.trf.xlu0
        %v5788 = vpop.trf.xlu0
        %v5789 = vpop.trf.xlu0
        %v5790 = vpop.trf.xlu0
        %5791 = vxpose.xlu0.c.b16.start [1/8] %v5766, 128
        %5792 = vxpose.xlu0.c.b16.cont [2/8] 0, 128
        %5793 = vxpose.xlu0.c.b16.cont [3/8] 0, 128
        %5794 = vxpose.xlu0.c.b16.cont [4/8] 0, 128
        %5795 = vxpose.xlu0.c.b16.cont [5/8] 0, 128
        %5796 = vxpose.xlu0.c.b16.cont [6/8] 0, 128
        %5797 = vxpose.xlu0.c.b16.cont [7/8] 0, 128
        %5798 = vxpose.xlu0.c.b16.end [8/8] 0, 128
        %v5799 = vpop.trf.xlu0
        %v5800 = vpop.trf.xlu0
        %v5801 = vpop.trf.xlu0
        %v5802 = vpop.trf.xlu0
        %v5803 = vpop.trf.xlu0
        %v5804 = vpop.trf.xlu0
        %v5805 = vpop.trf.xlu0
        %v5806 = vpop.trf.xlu0
        %v5808 = vsel %vm741, %v5783, 0
        %v5811 = vsel %vm741, %v5784, 0
        %v5814 = vsel %vm741, %v5785, 0
        %v5817 = vsel %vm741, %v5786, 0
        %v5820 = vsel %vm741, %v5787, 0
        %v5823 = vsel %vm741, %v5788, 0
        %v5826 = vsel %vm741, %v5789, 0
        %v5829 = vsel %vm741, %v5790, 0
        %v5832 = vsel %vm741, %v5799, 0
        %v5835 = vsel %vm741, %v5800, 0
        %v5838 = vsel %vm741, %v5801, 0
        %v5841 = vsel %vm741, %v5802, 0
        %v5844 = vsel %vm741, %v5803, 0
        %v5847 = vsel %vm741, %v5804, 0
        %v5850 = vsel %vm741, %v5805, 0
        %v5853 = vsel %vm741, %v5806, 0
        %v5856 = vsel %vm790, %v5769, 0
        %v5859 = vsel %vm790, %v5770, 0
        %5861 = vmatprep.subr.bf16.mxu0 %v5859
        %5862 = vmatpush1.bf16.msra.mxu0 %v5856
        %5863 = vmatprep.subr.bf16.mxu0 0
        %5864 = vmatpush1.bf16.msra.mxu0 0
        %5865 = vmatprep.subr.bf16.mxu0 0
        %5866 = vmatpush1.bf16.msra.mxu0 0
        %5867 = vmatprep.subr.bf16.mxu0 0
        %5868 = vmatpush1.bf16.msra.mxu0 0
        %5869 = vmatprep.subr.bf16.mxu0 0
        %5870 = vmatpush1.bf16.msra.mxu0 0
        %5871 = vmatprep.subr.bf16.mxu0 0
        %5872 = vmatpush1.bf16.msra.mxu0 0
        %5873 = vmatprep.subr.bf16.mxu0 0
        %5874 = vmatpush1.bf16.msra.mxu0 0
        %5875 = vmatprep.subr.bf16.mxu0 0
        %5876 = vmatpush1.bf16.msra.mxu0 0
        %5877 = vmatprep.subr.bf16.mxu0 0
        %5878 = vmatpush1.bf16.msra.mxu0 0
        %5879 = vmatprep.subr.bf16.mxu0 0
        %5880 = vmatpush1.bf16.msra.mxu0 0
        %5881 = vmatprep.subr.bf16.mxu0 0
        %5882 = vmatpush1.bf16.msra.mxu0 0
        %5883 = vmatprep.subr.bf16.mxu0 0
        %5884 = vmatpush1.bf16.msra.mxu0 0
        %5885 = vmatprep.subr.bf16.mxu0 0
        %5886 = vmatpush1.bf16.msra.mxu0 0
        %5887 = vmatprep.subr.bf16.mxu0 0
        %5888 = vmatpush1.bf16.msra.mxu0 0
        %5889 = vmatprep.subr.bf16.mxu0 0
        %5890 = vmatpush1.bf16.msra.mxu0 0
        %5891 = vmatprep.subr.bf16.mxu0 0
        %5892 = vmatpush1.bf16.msra.mxu0 0
        %5893 = vmatprep.mubr.bf16.mxu0 0
        %5894 = vmatmul.mubr.bf16.gmra.mrb[0].mxu0 %v5808
        %v5895 = vpop.f32.mrb[0].mxu0
        %v5896 = vadd.f32 0.0, %v5895
        %v5897 = vpop.f32.mrb[0].mxu0
        %v5898 = vadd.f32 0.0, %v5897
        %v5899 = vpop.f32.mrb[0].mxu0
        %v5900 = vadd.f32 0.0, %v5899
        %v5901 = vpop.f32.mrb[0].mxu0
        %v5902 = vadd.f32 0.0, %v5901
        %5903 = vmatprep.mubr.bf16.mxu0 0
        %5904 = vmatmul.mubr.bf16.gmra.mrb[0].mxu0 %v5811
        %v5905 = vpop.f32.mrb[0].mxu0
        %v5906 = vadd.f32 0.0, %v5905
        %v5907 = vpop.f32.mrb[0].mxu0
        %v5908 = vadd.f32 0.0, %v5907
        %v5909 = vpop.f32.mrb[0].mxu0
        %v5910 = vadd.f32 0.0, %v5909
        %v5911 = vpop.f32.mrb[0].mxu0
        %v5912 = vadd.f32 0.0, %v5911
        %5913 = vmatprep.mubr.bf16.mxu0 0
        %5914 = vmatmul.mubr.bf16.gmra.mrb[0].mxu0 %v5814
        %v5915 = vpop.f32.mrb[0].mxu0
        %v5916 = vadd.f32 0.0, %v5915
        %v5917 = vpop.f32.mrb[0].mxu0
        %v5918 = vadd.f32 0.0, %v5917
        %v5919 = vpop.f32.mrb[0].mxu0
        %v5920 = vadd.f32 0.0, %v5919
        %v5921 = vpop.f32.mrb[0].mxu0
        %v5922 = vadd.f32 0.0, %v5921
        %5923 = vmatprep.mubr.bf16.mxu0 0
        %5924 = vmatmul.mubr.bf16.gmra.mrb[0].mxu0 %v5817
        %v5925 = vpop.f32.mrb[0].mxu0
        %v5926 = vadd.f32 0.0, %v5925
        %v5927 = vpop.f32.mrb[0].mxu0
        %v5928 = vadd.f32 0.0, %v5927
        %v5929 = vpop.f32.mrb[0].mxu0
        %v5930 = vadd.f32 0.0, %v5929
        %v5931 = vpop.f32.mrb[0].mxu0
        %v5932 = vadd.f32 0.0, %v5931
        %5933 = vmatprep.mubr.bf16.mxu0 0
        %5934 = vmatmul.mubr.bf16.gmra.mrb[0].mxu0 %v5820
        %v5935 = vpop.f32.mrb[0].mxu0
        %v5936 = vadd.f32 0.0, %v5935
        %v5937 = vpop.f32.mrb[0].mxu0
        %v5938 = vadd.f32 0.0, %v5937
        %v5939 = vpop.f32.mrb[0].mxu0
        %v5940 = vadd.f32 0.0, %v5939
        %v5941 = vpop.f32.mrb[0].mxu0
        %v5942 = vadd.f32 0.0, %v5941
        %5943 = vmatprep.mubr.bf16.mxu0 0
        %5944 = vmatmul.mubr.bf16.gmra.mrb[0].mxu0 %v5823
        %v5945 = vpop.f32.mrb[0].mxu0
        %v5946 = vadd.f32 0.0, %v5945
        %v5947 = vpop.f32.mrb[0].mxu0
        %v5948 = vadd.f32 0.0, %v5947
        %v5949 = vpop.f32.mrb[0].mxu0
        %v5950 = vadd.f32 0.0, %v5949
        %v5951 = vpop.f32.mrb[0].mxu0
        %v5952 = vadd.f32 0.0, %v5951
        %5953 = vmatprep.mubr.bf16.mxu0 0
        %5954 = vmatmul.mubr.bf16.gmra.mrb[0].mxu0 %v5826
        %v5955 = vpop.f32.mrb[0].mxu0
        %v5956 = vadd.f32 0.0, %v5955
        %v5957 = vpop.f32.mrb[0].mxu0
        %v5958 = vadd.f32 0.0, %v5957
        %v5959 = vpop.f32.mrb[0].mxu0
        %v5960 = vadd.f32 0.0, %v5959
        %v5961 = vpop.f32.mrb[0].mxu0
        %v5962 = vadd.f32 0.0, %v5961
        %5963 = vmatprep.mubr.bf16.mxu0 0
        %5964 = vmatmul.mubr.bf16.gmra.mrb[0].mxu0 %v5829
        %v5965 = vpop.f32.mrb[0].mxu0
        %v5966 = vadd.f32 0.0, %v5965
        %v5967 = vpop.f32.mrb[0].mxu0
        %v5968 = vadd.f32 0.0, %v5967
        %v5969 = vpop.f32.mrb[0].mxu0
        %v5970 = vadd.f32 0.0, %v5969
        %v5971 = vpop.f32.mrb[0].mxu0
        %v5972 = vadd.f32 0.0, %v5971
        %5973 = vmatprep.mubr.bf16.mxu0 0
        %5974 = vmatmul.mubr.bf16.gmra.mrb[0].mxu0 %v5832
        %v5975 = vpop.f32.mrb[0].mxu0
        %v5976 = vadd.f32 0.0, %v5975
        %v5977 = vpop.f32.mrb[0].mxu0
        %v5978 = vadd.f32 0.0, %v5977
        %v5979 = vpop.f32.mrb[0].mxu0
        %v5980 = vadd.f32 0.0, %v5979
        %v5981 = vpop.f32.mrb[0].mxu0
        %v5982 = vadd.f32 0.0, %v5981
        %5983 = vmatprep.mubr.bf16.mxu0 0
        %5984 = vmatmul.mubr.bf16.gmra.mrb[0].mxu0 %v5835
        %v5985 = vpop.f32.mrb[0].mxu0
        %v5986 = vadd.f32 0.0, %v5985
        %v5987 = vpop.f32.mrb[0].mxu0
        %v5988 = vadd.f32 0.0, %v5987
        %v5989 = vpop.f32.mrb[0].mxu0
        %v5990 = vadd.f32 0.0, %v5989
        %v5991 = vpop.f32.mrb[0].mxu0
        %v5992 = vadd.f32 0.0, %v5991
        %5993 = vmatprep.mubr.bf16.mxu0 0
        %5994 = vmatmul.mubr.bf16.gmra.mrb[0].mxu0 %v5838
        %v5995 = vpop.f32.mrb[0].mxu0
        %v5996 = vadd.f32 0.0, %v5995
        %v5997 = vpop.f32.mrb[0].mxu0
        %v5998 = vadd.f32 0.0, %v5997
        %v5999 = vpop.f32.mrb[0].mxu0
        %v6000 = vadd.f32 0.0, %v5999
        %v6001 = vpop.f32.mrb[0].mxu0
        %v6002 = vadd.f32 0.0, %v6001
        %6003 = vmatprep.mubr.bf16.mxu0 0
        %6004 = vmatmul.mubr.bf16.gmra.mrb[0].mxu0 %v5841
        %v6005 = vpop.f32.mrb[0].mxu0
        %v6006 = vadd.f32 0.0, %v6005
        %v6007 = vpop.f32.mrb[0].mxu0
        %v6008 = vadd.f32 0.0, %v6007
        %v6009 = vpop.f32.mrb[0].mxu0
        %v6010 = vadd.f32 0.0, %v6009
        %v6011 = vpop.f32.mrb[0].mxu0
        %v6012 = vadd.f32 0.0, %v6011
        %6013 = vmatprep.mubr.bf16.mxu0 0
        %6014 = vmatmul.mubr.bf16.gmra.mrb[0].mxu0 %v5844
        %v6015 = vpop.f32.mrb[0].mxu0
        %v6016 = vadd.f32 0.0, %v6015
        %v6017 = vpop.f32.mrb[0].mxu0
        %v6018 = vadd.f32 0.0, %v6017
        %v6019 = vpop.f32.mrb[0].mxu0
        %v6020 = vadd.f32 0.0, %v6019
        %v6021 = vpop.f32.mrb[0].mxu0
        %v6022 = vadd.f32 0.0, %v6021
        %6023 = vmatprep.mubr.bf16.mxu0 0
        %6024 = vmatmul.mubr.bf16.gmra.mrb[0].mxu0 %v5847
        %v6025 = vpop.f32.mrb[0].mxu0
        %v6026 = vadd.f32 0.0, %v6025
        %v6027 = vpop.f32.mrb[0].mxu0
        %v6028 = vadd.f32 0.0, %v6027
        %v6029 = vpop.f32.mrb[0].mxu0
        %v6030 = vadd.f32 0.0, %v6029
        %v6031 = vpop.f32.mrb[0].mxu0
        %v6032 = vadd.f32 0.0, %v6031
        %6033 = vmatprep.mubr.bf16.mxu0 0
        %6034 = vmatmul.mubr.bf16.gmra.mrb[0].mxu0 %v5850
        %v6035 = vpop.f32.mrb[0].mxu0
        %v6036 = vadd.f32 0.0, %v6035
        %v6037 = vpop.f32.mrb[0].mxu0
        %v6038 = vadd.f32 0.0, %v6037
        %v6039 = vpop.f32.mrb[0].mxu0
        %v6040 = vadd.f32 0.0, %v6039
        %v6041 = vpop.f32.mrb[0].mxu0
        %v6042 = vadd.f32 0.0, %v6041
        %6043 = vmatprep.mubr.bf16.mxu0 0
        %6044 = vmatmul.mubr.bf16.gmra.mrb[0].mxu0 %v5853
        %v6045 = vpop.f32.mrb[0].mxu0
        %v6046 = vadd.f32 0.0, %v6045
        %v6047 = vpop.f32.mrb[0].mxu0
        %v6048 = vadd.f32 0.0, %v6047
        %v6049 = vpop.f32.mrb[0].mxu0
        %v6050 = vadd.f32 0.0, %v6049
        %v6051 = vpop.f32.mrb[0].mxu0
        %v6052 = vadd.f32 0.0, %v6051
        %6053 = vdwg.mxu0
        %v6054 = vmax.f32 %v5896, %v5898
        %6055 = vmax.xlane.f32.xlu0 %v6054
        %v6056 = vpop.xlane.xlu0 %6055
        %v6057 = vmax.f32 %v5900, %v5902
        %6058 = vmax.xlane.f32.xlu0 %v6057
        %v6059 = vpop.xlane.xlu0 %6058
        %v6060 = vmax.f32 %v5906, %v5908
        %6061 = vmax.xlane.f32.xlu0 %v6060
        %v6062 = vpop.xlane.xlu0 %6061
        %v6063 = vmax.f32 %v5910, %v5912
        %6064 = vmax.xlane.f32.xlu0 %v6063
        %v6065 = vpop.xlane.xlu0 %6064
        %v6066 = vmax.f32 %v5916, %v5918
        %6067 = vmax.xlane.f32.xlu0 %v6066
        %v6068 = vpop.xlane.xlu0 %6067
        %v6069 = vmax.f32 %v5920, %v5922
        %6070 = vmax.xlane.f32.xlu0 %v6069
        %v6071 = vpop.xlane.xlu0 %6070
        %v6072 = vmax.f32 %v5926, %v5928
        %6073 = vmax.xlane.f32.xlu0 %v6072
        %v6074 = vpop.xlane.xlu0 %6073
        %v6075 = vmax.f32 %v5930, %v5932
        %6076 = vmax.xlane.f32.xlu0 %v6075
        %v6077 = vpop.xlane.xlu0 %6076
        %v6078 = vmax.f32 %v5936, %v5938
        %6079 = vmax.xlane.f32.xlu0 %v6078
        %v6080 = vpop.xlane.xlu0 %6079
        %v6081 = vmax.f32 %v5940, %v5942
        %6082 = vmax.xlane.f32.xlu0 %v6081
        %v6083 = vpop.xlane.xlu0 %6082
        %v6084 = vmax.f32 %v5946, %v5948
        %6085 = vmax.xlane.f32.xlu0 %v6084
        %v6086 = vpop.xlane.xlu0 %6085
        %v6087 = vmax.f32 %v5950, %v5952
        %6088 = vmax.xlane.f32.xlu0 %v6087
        %v6089 = vpop.xlane.xlu0 %6088
        %v6090 = vmax.f32 %v5956, %v5958
        %6091 = vmax.xlane.f32.xlu0 %v6090
        %v6092 = vpop.xlane.xlu0 %6091
        %v6093 = vmax.f32 %v5960, %v5962
        %6094 = vmax.xlane.f32.xlu0 %v6093
        %v6095 = vpop.xlane.xlu0 %6094
        %v6096 = vmax.f32 %v5966, %v5968
        %6097 = vmax.xlane.f32.xlu0 %v6096
        %v6098 = vpop.xlane.xlu0 %6097
        %v6099 = vmax.f32 %v5970, %v5972
        %6100 = vmax.xlane.f32.xlu0 %v6099
        %v6101 = vpop.xlane.xlu0 %6100
        %v6102 = vmax.f32 %v5976, %v5978
        %6103 = vmax.xlane.f32.xlu0 %v6102
        %v6104 = vpop.xlane.xlu0 %6103
        %v6105 = vmax.f32 %v5980, %v5982
        %6106 = vmax.xlane.f32.xlu0 %v6105
        %v6107 = vpop.xlane.xlu0 %6106
        %v6108 = vmax.f32 %v5986, %v5988
        %6109 = vmax.xlane.f32.xlu0 %v6108
        %v6110 = vpop.xlane.xlu0 %6109
        %v6111 = vmax.f32 %v5990, %v5992
        %6112 = vmax.xlane.f32.xlu0 %v6111
        %v6113 = vpop.xlane.xlu0 %6112
        %v6114 = vmax.f32 %v5996, %v5998
        %6115 = vmax.xlane.f32.xlu0 %v6114
        %v6116 = vpop.xlane.xlu0 %6115
        %v6117 = vmax.f32 %v6000, %v6002
        %6118 = vmax.xlane.f32.xlu0 %v6117
        %v6119 = vpop.xlane.xlu0 %6118
        %v6120 = vmax.f32 %v6006, %v6008
        %6121 = vmax.xlane.f32.xlu0 %v6120
        %v6122 = vpop.xlane.xlu0 %6121
        %v6123 = vmax.f32 %v6010, %v6012
        %6124 = vmax.xlane.f32.xlu0 %v6123
        %v6125 = vpop.xlane.xlu0 %6124
        %v6126 = vmax.f32 %v6016, %v6018
        %6127 = vmax.xlane.f32.xlu0 %v6126
        %v6128 = vpop.xlane.xlu0 %6127
        %v6129 = vmax.f32 %v6020, %v6022
        %6130 = vmax.xlane.f32.xlu0 %v6129
        %v6131 = vpop.xlane.xlu0 %6130
        %v6132 = vmax.f32 %v6026, %v6028
        %6133 = vmax.xlane.f32.xlu0 %v6132
        %v6134 = vpop.xlane.xlu0 %6133
        %v6135 = vmax.f32 %v6030, %v6032
        %6136 = vmax.xlane.f32.xlu0 %v6135
        %v6137 = vpop.xlane.xlu0 %6136
        %v6138 = vmax.f32 %v6036, %v6038
        %6139 = vmax.xlane.f32.xlu0 %v6138
        %v6140 = vpop.xlane.xlu0 %6139
        %v6141 = vmax.f32 %v6040, %v6042
        %6142 = vmax.xlane.f32.xlu0 %v6141
        %v6143 = vpop.xlane.xlu0 %6142
        %v6144 = vmax.f32 %v6046, %v6048
        %6145 = vmax.xlane.f32.xlu0 %v6144
        %v6146 = vpop.xlane.xlu0 %6145
        %v6147 = vmax.f32 %v6050, %v6052
        %6148 = vmax.xlane.f32.xlu0 %v6147
        %v6149 = vpop.xlane.xlu0 %6148
        %v6150 = vsub.f32 %v5896, %v6056
        %v6151 = vsub.f32 %v5898, %v6056
        %v6152 = vsub.f32 %v5900, %v6059
        %v6153 = vsub.f32 %v5902, %v6059
        %v6154 = vsub.f32 %v5906, %v6062
        %v6155 = vsub.f32 %v5908, %v6062
        %v6156 = vsub.f32 %v5910, %v6065
        %v6157 = vsub.f32 %v5912, %v6065
        %v6158 = vsub.f32 %v5916, %v6068
        %v6159 = vsub.f32 %v5918, %v6068
        %v6160 = vsub.f32 %v5920, %v6071
        %v6161 = vsub.f32 %v5922, %v6071
        %v6162 = vsub.f32 %v5926, %v6074
        %v6163 = vsub.f32 %v5928, %v6074
        %v6164 = vsub.f32 %v5930, %v6077
        %v6165 = vsub.f32 %v5932, %v6077
        %v6166 = vsub.f32 %v5936, %v6080
        %v6167 = vsub.f32 %v5938, %v6080
        %v6168 = vsub.f32 %v5940, %v6083
        %v6169 = vsub.f32 %v5942, %v6083
        %v6170 = vsub.f32 %v5946, %v6086
        %v6171 = vsub.f32 %v5948, %v6086
        %v6172 = vsub.f32 %v5950, %v6089
        %v6173 = vsub.f32 %v5952, %v6089
        %v6174 = vsub.f32 %v5956, %v6092
        %v6175 = vsub.f32 %v5958, %v6092
        %v6176 = vsub.f32 %v5960, %v6095
        %v6177 = vsub.f32 %v5962, %v6095
        %v6178 = vsub.f32 %v5966, %v6098
        %v6179 = vsub.f32 %v5968, %v6098
        %v6180 = vsub.f32 %v5970, %v6101
        %v6181 = vsub.f32 %v5972, %v6101
        %v6182 = vsub.f32 %v5976, %v6104
        %v6183 = vsub.f32 %v5978, %v6104
        %v6184 = vsub.f32 %v5980, %v6107
        %v6185 = vsub.f32 %v5982, %v6107
        %v6186 = vsub.f32 %v5986, %v6110
        %v6187 = vsub.f32 %v5988, %v6110
        %v6188 = vsub.f32 %v5990, %v6113
        %v6189 = vsub.f32 %v5992, %v6113
        %v6190 = vsub.f32 %v5996, %v6116
        %v6191 = vsub.f32 %v5998, %v6116
        %v6192 = vsub.f32 %v6000, %v6119
        %v6193 = vsub.f32 %v6002, %v6119
        %v6194 = vsub.f32 %v6006, %v6122
        %v6195 = vsub.f32 %v6008, %v6122
        %v6196 = vsub.f32 %v6010, %v6125
        %v6197 = vsub.f32 %v6012, %v6125
        %v6198 = vsub.f32 %v6016, %v6128
        %v6199 = vsub.f32 %v6018, %v6128
        %v6200 = vsub.f32 %v6020, %v6131
        %v6201 = vsub.f32 %v6022, %v6131
        %v6202 = vsub.f32 %v6026, %v6134
        %v6203 = vsub.f32 %v6028, %v6134
        %v6204 = vsub.f32 %v6030, %v6137
        %v6205 = vsub.f32 %v6032, %v6137
        %v6206 = vsub.f32 %v6036, %v6140
        %v6207 = vsub.f32 %v6038, %v6140
        %v6208 = vsub.f32 %v6040, %v6143
        %v6209 = vsub.f32 %v6042, %v6143
        %v6210 = vsub.f32 %v6046, %v6146
        %v6211 = vsub.f32 %v6048, %v6146
        %v6212 = vsub.f32 %v6050, %v6149
        %v6213 = vsub.f32 %v6052, %v6149
        %v6214 = vmul.f32 %v6150, 1.442695
        %v6215 = vpow.pop %v6214
        %v6216 = vmul.f32 %v6151, 1.442695
        %v6217 = vpow.pop %v6216
        %v6218 = vmul.f32 %v6152, 1.442695
        %v6219 = vpow.pop %v6218
        %v6220 = vmul.f32 %v6153, 1.442695
        %v6221 = vpow.pop %v6220
        %v6222 = vmul.f32 %v6154, 1.442695
        %v6223 = vpow.pop %v6222
        %v6224 = vmul.f32 %v6155, 1.442695
        %v6225 = vpow.pop %v6224
        %v6226 = vmul.f32 %v6156, 1.442695
        %v6227 = vpow.pop %v6226
        %v6228 = vmul.f32 %v6157, 1.442695
        %v6229 = vpow.pop %v6228
        %v6230 = vmul.f32 %v6158, 1.442695
        %v6231 = vpow.pop %v6230
        %v6232 = vmul.f32 %v6159, 1.442695
        %v6233 = vpow.pop %v6232
        %v6234 = vmul.f32 %v6160, 1.442695
        %v6235 = vpow.pop %v6234
        %v6236 = vmul.f32 %v6161, 1.442695
        %v6237 = vpow.pop %v6236
        %v6238 = vmul.f32 %v6162, 1.442695
        %v6239 = vpow.pop %v6238
        %v6240 = vmul.f32 %v6163, 1.442695
        %v6241 = vpow.pop %v6240
        %v6242 = vmul.f32 %v6164, 1.442695
        %v6243 = vpow.pop %v6242
        %v6244 = vmul.f32 %v6165, 1.442695
        %v6245 = vpow.pop %v6244
        %v6246 = vmul.f32 %v6166, 1.442695
        %v6247 = vpow.pop %v6246
        %v6248 = vmul.f32 %v6167, 1.442695
        %v6249 = vpow.pop %v6248
        %v6250 = vmul.f32 %v6168, 1.442695
        %v6251 = vpow.pop %v6250
        %v6252 = vmul.f32 %v6169, 1.442695
        %v6253 = vpow.pop %v6252
        %v6254 = vmul.f32 %v6170, 1.442695
        %v6255 = vpow.pop %v6254
        %v6256 = vmul.f32 %v6171, 1.442695
        %v6257 = vpow.pop %v6256
        %v6258 = vmul.f32 %v6172, 1.442695
        %v6259 = vpow.pop %v6258
        %v6260 = vmul.f32 %v6173, 1.442695
        %v6261 = vpow.pop %v6260
        %v6262 = vmul.f32 %v6174, 1.442695
        %v6263 = vpow.pop %v6262
        %v6264 = vmul.f32 %v6175, 1.442695
        %v6265 = vpow.pop %v6264
        %v6266 = vmul.f32 %v6176, 1.442695
        %v6267 = vpow.pop %v6266
        %v6268 = vmul.f32 %v6177, 1.442695
        %v6269 = vpow.pop %v6268
        %v6270 = vmul.f32 %v6178, 1.442695
        %v6271 = vpow.pop %v6270
        %v6272 = vmul.f32 %v6179, 1.442695
        %v6273 = vpow.pop %v6272
        %v6274 = vmul.f32 %v6180, 1.442695
        %v6275 = vpow.pop %v6274
        %v6276 = vmul.f32 %v6181, 1.442695
        %v6277 = vpow.pop %v6276
        %v6278 = vmul.f32 %v6182, 1.442695
        %v6279 = vpow.pop %v6278
        %v6280 = vmul.f32 %v6183, 1.442695
        %v6281 = vpow.pop %v6280
        %v6282 = vmul.f32 %v6184, 1.442695
        %v6283 = vpow.pop %v6282
        %v6284 = vmul.f32 %v6185, 1.442695
        %v6285 = vpow.pop %v6284
        %v6286 = vmul.f32 %v6186, 1.442695
        %v6287 = vpow.pop %v6286
        %v6288 = vmul.f32 %v6187, 1.442695
        %v6289 = vpow.pop %v6288
        %v6290 = vmul.f32 %v6188, 1.442695
        %v6291 = vpow.pop %v6290
        %v6292 = vmul.f32 %v6189, 1.442695
        %v6293 = vpow.pop %v6292
        %v6294 = vmul.f32 %v6190, 1.442695
        %v6295 = vpow.pop %v6294
        %v6296 = vmul.f32 %v6191, 1.442695
        %v6297 = vpow.pop %v6296
        %v6298 = vmul.f32 %v6192, 1.442695
        %v6299 = vpow.pop %v6298
        %v6300 = vmul.f32 %v6193, 1.442695
        %v6301 = vpow.pop %v6300
        %v6302 = vmul.f32 %v6194, 1.442695
        %v6303 = vpow.pop %v6302
        %v6304 = vmul.f32 %v6195, 1.442695
        %v6305 = vpow.pop %v6304
        %v6306 = vmul.f32 %v6196, 1.442695
        %v6307 = vpow.pop %v6306
        %v6308 = vmul.f32 %v6197, 1.442695
        %v6309 = vpow.pop %v6308
        %v6310 = vmul.f32 %v6198, 1.442695
        %v6311 = vpow.pop %v6310
        %v6312 = vmul.f32 %v6199, 1.442695
        %v6313 = vpow.pop %v6312
        %v6314 = vmul.f32 %v6200, 1.442695
        %v6315 = vpow.pop %v6314
        %v6316 = vmul.f32 %v6201, 1.442695
        %v6317 = vpow.pop %v6316
        %v6318 = vmul.f32 %v6202, 1.442695
        %v6319 = vpow.pop %v6318
        %v6320 = vmul.f32 %v6203, 1.442695
        %v6321 = vpow.pop %v6320
        %v6322 = vmul.f32 %v6204, 1.442695
        %v6323 = vpow.pop %v6322
        %v6324 = vmul.f32 %v6205, 1.442695
        %v6325 = vpow.pop %v6324
        %v6326 = vmul.f32 %v6206, 1.442695
        %v6327 = vpow.pop %v6326
        %v6328 = vmul.f32 %v6207, 1.442695
        %v6329 = vpow.pop %v6328
        %v6330 = vmul.f32 %v6208, 1.442695
        %v6331 = vpow.pop %v6330
        %v6332 = vmul.f32 %v6209, 1.442695
        %v6333 = vpow.pop %v6332
        %v6334 = vmul.f32 %v6210, 1.442695
        %v6335 = vpow.pop %v6334
        %v6336 = vmul.f32 %v6211, 1.442695
        %v6337 = vpow.pop %v6336
        %v6338 = vmul.f32 %v6212, 1.442695
        %v6339 = vpow.pop %v6338
        %v6340 = vmul.f32 %v6213, 1.442695
        %v6341 = vpow.pop %v6340
        %v6342 = vadd.f32 %v6215, %v6217
        %6343 = vadd.xlane.f32.xlu0 %v6342
        %v6344 = vpop.xlane.xlu0 %6343
        %v6345 = vadd.f32 %v6219, %v6221
        %6346 = vadd.xlane.f32.xlu0 %v6345
        %v6347 = vpop.xlane.xlu0 %6346
        %v6348 = vadd.f32 %v6223, %v6225
        %6349 = vadd.xlane.f32.xlu0 %v6348
        %v6350 = vpop.xlane.xlu0 %6349
        %v6351 = vadd.f32 %v6227, %v6229
        %6352 = vadd.xlane.f32.xlu0 %v6351
        %v6353 = vpop.xlane.xlu0 %6352
        %v6354 = vadd.f32 %v6231, %v6233
        %6355 = vadd.xlane.f32.xlu0 %v6354
        %v6356 = vpop.xlane.xlu0 %6355
        %v6357 = vadd.f32 %v6235, %v6237
        %6358 = vadd.xlane.f32.xlu0 %v6357
        %v6359 = vpop.xlane.xlu0 %6358
        %v6360 = vadd.f32 %v6239, %v6241
        %6361 = vadd.xlane.f32.xlu0 %v6360
        %v6362 = vpop.xlane.xlu0 %6361
        %v6363 = vadd.f32 %v6243, %v6245
        %6364 = vadd.xlane.f32.xlu0 %v6363
        %v6365 = vpop.xlane.xlu0 %6364
        %v6366 = vadd.f32 %v6247, %v6249
        %6367 = vadd.xlane.f32.xlu0 %v6366
        %v6368 = vpop.xlane.xlu0 %6367
        %v6369 = vadd.f32 %v6251, %v6253
        %6370 = vadd.xlane.f32.xlu0 %v6369
        %v6371 = vpop.xlane.xlu0 %6370
        %v6372 = vadd.f32 %v6255, %v6257
        %6373 = vadd.xlane.f32.xlu0 %v6372
        %v6374 = vpop.xlane.xlu0 %6373
        %v6375 = vadd.f32 %v6259, %v6261
        %6376 = vadd.xlane.f32.xlu0 %v6375
        %v6377 = vpop.xlane.xlu0 %6376
        %v6378 = vadd.f32 %v6263, %v6265
        %6379 = vadd.xlane.f32.xlu0 %v6378
        %v6380 = vpop.xlane.xlu0 %6379
        %v6381 = vadd.f32 %v6267, %v6269
        %6382 = vadd.xlane.f32.xlu0 %v6381
        %v6383 = vpop.xlane.xlu0 %6382
        %v6384 = vadd.f32 %v6271, %v6273
        %6385 = vadd.xlane.f32.xlu0 %v6384
        %v6386 = vpop.xlane.xlu0 %6385
        %v6387 = vadd.f32 %v6275, %v6277
        %6388 = vadd.xlane.f32.xlu0 %v6387
        %v6389 = vpop.xlane.xlu0 %6388
        %v6390 = vadd.f32 %v6279, %v6281
        %6391 = vadd.xlane.f32.xlu0 %v6390
        %v6392 = vpop.xlane.xlu0 %6391
        %v6393 = vadd.f32 %v6283, %v6285
        %6394 = vadd.xlane.f32.xlu0 %v6393
        %v6395 = vpop.xlane.xlu0 %6394
        %v6396 = vadd.f32 %v6287, %v6289
        %6397 = vadd.xlane.f32.xlu0 %v6396
        %v6398 = vpop.xlane.xlu0 %6397
        %v6399 = vadd.f32 %v6291, %v6293
        %6400 = vadd.xlane.f32.xlu0 %v6399
        %v6401 = vpop.xlane.xlu0 %6400
        %v6402 = vadd.f32 %v6295, %v6297
        %6403 = vadd.xlane.f32.xlu0 %v6402
        %v6404 = vpop.xlane.xlu0 %6403
        %v6405 = vadd.f32 %v6299, %v6301
        %6406 = vadd.xlane.f32.xlu0 %v6405
        %v6407 = vpop.xlane.xlu0 %6406
        %v6408 = vadd.f32 %v6303, %v6305
        %6409 = vadd.xlane.f32.xlu0 %v6408
        %v6410 = vpop.xlane.xlu0 %6409
        %v6411 = vadd.f32 %v6307, %v6309
        %6412 = vadd.xlane.f32.xlu0 %v6411
        %v6413 = vpop.xlane.xlu0 %6412
        %v6414 = vadd.f32 %v6311, %v6313
        %6415 = vadd.xlane.f32.xlu0 %v6414
        %v6416 = vpop.xlane.xlu0 %6415
        %v6417 = vadd.f32 %v6315, %v6317
        %6418 = vadd.xlane.f32.xlu0 %v6417
        %v6419 = vpop.xlane.xlu0 %6418
        %v6420 = vadd.f32 %v6319, %v6321
        %6421 = vadd.xlane.f32.xlu0 %v6420
        %v6422 = vpop.xlane.xlu0 %6421
        %v6423 = vadd.f32 %v6323, %v6325
        %6424 = vadd.xlane.f32.xlu0 %v6423
        %v6425 = vpop.xlane.xlu0 %6424
        %v6426 = vadd.f32 %v6327, %v6329
        %6427 = vadd.xlane.f32.xlu0 %v6426
        %v6428 = vpop.xlane.xlu0 %6427
        %v6429 = vadd.f32 %v6331, %v6333
        %6430 = vadd.xlane.f32.xlu0 %v6429
        %v6431 = vpop.xlane.xlu0 %6430
        %v6432 = vadd.f32 %v6335, %v6337
        %6433 = vadd.xlane.f32.xlu0 %v6432
        %v6434 = vpop.xlane.xlu0 %6433
        %v6435 = vadd.f32 %v6339, %v6341
        %6436 = vadd.xlane.f32.xlu0 %v6435
        %v6437 = vpop.xlane.xlu0 %6436
        %v6438 = vrcp.pop %v6344
        %v6439 = vrcp.pop %v6347
        %v6440 = vrcp.pop %v6350
        %v6441 = vrcp.pop %v6353
        %v6442 = vrcp.pop %v6356
        %v6443 = vrcp.pop %v6359
        %v6444 = vrcp.pop %v6362
        %v6445 = vrcp.pop %v6365
        %v6446 = vrcp.pop %v6368
        %v6447 = vrcp.pop %v6371
        %v6448 = vrcp.pop %v6374
        %v6449 = vrcp.pop %v6377
        %v6450 = vrcp.pop %v6380
        %v6451 = vrcp.pop %v6383
        %v6452 = vrcp.pop %v6386
        %v6453 = vrcp.pop %v6389
        %v6454 = vrcp.pop %v6392
        %v6455 = vrcp.pop %v6395
        %v6456 = vrcp.pop %v6398
        %v6457 = vrcp.pop %v6401
        %v6458 = vrcp.pop %v6404
        %v6459 = vrcp.pop %v6407
        %v6460 = vrcp.pop %v6410
        %v6461 = vrcp.pop %v6413
        %v6462 = vrcp.pop %v6416
        %v6463 = vrcp.pop %v6419
        %v6464 = vrcp.pop %v6422
        %v6465 = vrcp.pop %v6425
        %v6466 = vrcp.pop %v6428
        %v6467 = vrcp.pop %v6431
        %v6468 = vrcp.pop %v6434
        %v6469 = vrcp.pop %v6437
        %v6470 = vmul.f32 %v6215, %v6438
        %v6471 = vmul.f32 %v6217, %v6438
        %v6472 = vmul.f32 %v6219, %v6439
        %v6473 = vmul.f32 %v6221, %v6439
        %v6474 = vmul.f32 %v6223, %v6440
        %v6475 = vmul.f32 %v6225, %v6440
        %v6476 = vmul.f32 %v6227, %v6441
        %v6477 = vmul.f32 %v6229, %v6441
        %v6478 = vmul.f32 %v6231, %v6442
        %v6479 = vmul.f32 %v6233, %v6442
        %v6480 = vmul.f32 %v6235, %v6443
        %v6481 = vmul.f32 %v6237, %v6443
        %v6482 = vmul.f32 %v6239, %v6444
        %v6483 = vmul.f32 %v6241, %v6444
        %v6484 = vmul.f32 %v6243, %v6445
        %v6485 = vmul.f32 %v6245, %v6445
        %v6486 = vmul.f32 %v6247, %v6446
        %v6487 = vmul.f32 %v6249, %v6446
        %v6488 = vmul.f32 %v6251, %v6447
        %v6489 = vmul.f32 %v6253, %v6447
        %v6490 = vmul.f32 %v6255, %v6448
        %v6491 = vmul.f32 %v6257, %v6448
        %v6492 = vmul.f32 %v6259, %v6449
        %v6493 = vmul.f32 %v6261, %v6449
        %v6494 = vmul.f32 %v6263, %v6450
        %v6495 = vmul.f32 %v6265, %v6450
        %v6496 = vmul.f32 %v6267, %v6451
        %v6497 = vmul.f32 %v6269, %v6451
        %v6498 = vmul.f32 %v6271, %v6452
        %v6499 = vmul.f32 %v6273, %v6452
        %v6500 = vmul.f32 %v6275, %v6453
        %v6501 = vmul.f32 %v6277, %v6453
        %v6502 = vmul.f32 %v6279, %v6454
        %v6503 = vmul.f32 %v6281, %v6454
        %v6504 = vmul.f32 %v6283, %v6455
        %v6505 = vmul.f32 %v6285, %v6455
        %v6506 = vmul.f32 %v6287, %v6456
        %v6507 = vmul.f32 %v6289, %v6456
        %v6508 = vmul.f32 %v6291, %v6457
        %v6509 = vmul.f32 %v6293, %v6457
        %v6510 = vmul.f32 %v6295, %v6458
        %v6511 = vmul.f32 %v6297, %v6458
        %v6512 = vmul.f32 %v6299, %v6459
        %v6513 = vmul.f32 %v6301, %v6459
        %v6514 = vmul.f32 %v6303, %v6460
        %v6515 = vmul.f32 %v6305, %v6460
        %v6516 = vmul.f32 %v6307, %v6461
        %v6517 = vmul.f32 %v6309, %v6461
        %v6518 = vmul.f32 %v6311, %v6462
        %v6519 = vmul.f32 %v6313, %v6462
        %v6520 = vmul.f32 %v6315, %v6463
        %v6521 = vmul.f32 %v6317, %v6463
        %v6522 = vmul.f32 %v6319, %v6464
        %v6523 = vmul.f32 %v6321, %v6464
        %v6524 = vmul.f32 %v6323, %v6465
        %v6525 = vmul.f32 %v6325, %v6465
        %v6526 = vmul.f32 %v6327, %v6466
        %v6527 = vmul.f32 %v6329, %v6466
        %v6528 = vmul.f32 %v6331, %v6467
        %v6529 = vmul.f32 %v6333, %v6467
        %v6530 = vmul.f32 %v6335, %v6468
        %v6531 = vmul.f32 %v6337, %v6468
        %v6532 = vmul.f32 %v6339, %v6469
        %v6533 = vmul.f32 %v6341, %v6469
        %v6534 = vpack.c.bf16 %v6472, %v6470
        %v6535 = vpack.c.bf16 %v6473, %v6471
        %v6536 = vpack.c.bf16 %v6476, %v6474
        %v6537 = vpack.c.bf16 %v6477, %v6475
        %v6538 = vpack.c.bf16 %v6480, %v6478
        %v6539 = vpack.c.bf16 %v6481, %v6479
        %v6540 = vpack.c.bf16 %v6484, %v6482
        %v6541 = vpack.c.bf16 %v6485, %v6483
        %v6542 = vpack.c.bf16 %v6488, %v6486
        %v6543 = vpack.c.bf16 %v6489, %v6487
        %v6544 = vpack.c.bf16 %v6492, %v6490
        %v6545 = vpack.c.bf16 %v6493, %v6491
        %v6546 = vpack.c.bf16 %v6496, %v6494
        %v6547 = vpack.c.bf16 %v6497, %v6495
        %v6548 = vpack.c.bf16 %v6500, %v6498
        %v6549 = vpack.c.bf16 %v6501, %v6499
        %v6550 = vpack.c.bf16 %v6504, %v6502
        %v6551 = vpack.c.bf16 %v6505, %v6503
        %v6552 = vpack.c.bf16 %v6508, %v6506
        %v6553 = vpack.c.bf16 %v6509, %v6507
        %v6554 = vpack.c.bf16 %v6512, %v6510
        %v6555 = vpack.c.bf16 %v6513, %v6511
        %v6556 = vpack.c.bf16 %v6516, %v6514
        %v6557 = vpack.c.bf16 %v6517, %v6515
        %v6558 = vpack.c.bf16 %v6520, %v6518
        %v6559 = vpack.c.bf16 %v6521, %v6519
        %v6560 = vpack.c.bf16 %v6524, %v6522
        %v6561 = vpack.c.bf16 %v6525, %v6523
        %v6562 = vpack.c.bf16 %v6528, %v6526
        %v6563 = vpack.c.bf16 %v6529, %v6527
        %v6564 = vpack.c.bf16 %v6532, %v6530
        %v6565 = vpack.c.bf16 %v6533, %v6531
        %6566 = vmatprep.subr.bf16.mxu0 %v6535
        %6567 = vmatpush1.bf16.xpose.msra.mxu0 %v6534
        %6568 = vmatprep.subr.bf16.mxu0 %v6537
        %6569 = vmatpush1.bf16.xpose.msra.mxu0 %v6536
        %6570 = vmatprep.subr.bf16.mxu0 %v6539
        %6571 = vmatpush1.bf16.xpose.msra.mxu0 %v6538
        %6572 = vmatprep.subr.bf16.mxu0 %v6541
        %6573 = vmatpush1.bf16.xpose.msra.mxu0 %v6540
        %6574 = vmatprep.subr.bf16.mxu0 %v6543
        %6575 = vmatpush1.bf16.xpose.msra.mxu0 %v6542
        %6576 = vmatprep.subr.bf16.mxu0 %v6545
        %6577 = vmatpush1.bf16.xpose.msra.mxu0 %v6544
        %6578 = vmatprep.subr.bf16.mxu0 %v6547
        %6579 = vmatpush1.bf16.xpose.msra.mxu0 %v6546
        %6580 = vmatprep.subr.bf16.mxu0 %v6549
        %6581 = vmatpush1.bf16.xpose.msra.mxu0 %v6548
        %6582 = vmatprep.subr.bf16.mxu0 %v6551
        %6583 = vmatpush1.bf16.xpose.msra.mxu0 %v6550
        %6584 = vmatprep.subr.bf16.mxu0 %v6553
        %6585 = vmatpush1.bf16.xpose.msra.mxu0 %v6552
        %6586 = vmatprep.subr.bf16.mxu0 %v6555
        %6587 = vmatpush1.bf16.xpose.msra.mxu0 %v6554
        %6588 = vmatprep.subr.bf16.mxu0 %v6557
        %6589 = vmatpush1.bf16.xpose.msra.mxu0 %v6556
        %6590 = vmatprep.subr.bf16.mxu0 %v6559
        %6591 = vmatpush1.bf16.xpose.msra.mxu0 %v6558
        %6592 = vmatprep.subr.bf16.mxu0 %v6561
        %6593 = vmatpush1.bf16.xpose.msra.mxu0 %v6560
        %6594 = vmatprep.subr.bf16.mxu0 %v6563
        %6595 = vmatpush1.bf16.xpose.msra.mxu0 %v6562
        %6596 = vmatprep.subr.bf16.mxu0 %v6565
        %6597 = vmatpush1.bf16.xpose.msra.mxu0 %v6564
        %6598 = vmatprep.mubr.bf16.mxu0 %v5774
        %6599 = vmatmul.mubr.bf16.gmra.mrb[0].mxu0 %v5773
        %v6600 = vpop.f32.mrb[0].mxu0
        %v6601 = vadd.f32 0.0, %v6600
        %v6602 = vpop.f32.mrb[0].mxu0
        %v6603 = vadd.f32 0.0, %v6602
        %v6604 = vpop.f32.mrb[0].mxu0
        %v6605 = vpop.f32.mrb[0].mxu0
        %6606 = vdwg.mxu0
        %6607 = vst [vmem:[#allocation3 + $0x60] sm:$0xff] %v6601
        %6608 = vst [vmem:[#allocation3 + $0x68] sm:$0xff] %v6603
        %v6609 = vpack.c.bf16 %v695, %v695
        %v6610 = vpack.c.bf16 %v697, %v697
        %v6611 = vld [vmem:[#allocation2 + $0x70] sm:$0xff]
        %v6612 = vld [vmem:[#allocation2 + $0x78] sm:$0xff]
        %v6613 = vpack.c.bf16 %v6611, %v6611
        %v6614 = vpack.c.bf16 %v6612, %v6612
        %v6615 = vld [vmem:[#allocation2 + $0xf0] sm:$0xff]
        %v6616 = vld [vmem:[#allocation2 + $0xf8] sm:$0xff]
        %v6617 = vpack.c.bf16 %v6615, %v6615
        %v6618 = vpack.c.bf16 %v6616, %v6616
        %6619 = vxpose.xlu0.c.b16.start [1/8] %v6609, 128
        %6620 = vxpose.xlu0.c.b16.cont [2/8] 0, 128
        %6621 = vxpose.xlu0.c.b16.cont [3/8] 0, 128
        %6622 = vxpose.xlu0.c.b16.cont [4/8] 0, 128
        %6623 = vxpose.xlu0.c.b16.cont [5/8] 0, 128
        %6624 = vxpose.xlu0.c.b16.cont [6/8] 0, 128
        %6625 = vxpose.xlu0.c.b16.cont [7/8] 0, 128
        %6626 = vxpose.xlu0.c.b16.end [8/8] 0, 128
        %v6627 = vpop.trf.xlu0
        %v6628 = vpop.trf.xlu0
        %v6629 = vpop.trf.xlu0
        %v6630 = vpop.trf.xlu0
        %v6631 = vpop.trf.xlu0
        %v6632 = vpop.trf.xlu0
        %v6633 = vpop.trf.xlu0
        %v6634 = vpop.trf.xlu0
        %6635 = vxpose.xlu0.c.b16.start [1/8] %v6610, 128
        %6636 = vxpose.xlu0.c.b16.cont [2/8] 0, 128
        %6637 = vxpose.xlu0.c.b16.cont [3/8] 0, 128
        %6638 = vxpose.xlu0.c.b16.cont [4/8] 0, 128
        %6639 = vxpose.xlu0.c.b16.cont [5/8] 0, 128
        %6640 = vxpose.xlu0.c.b16.cont [6/8] 0, 128
        %6641 = vxpose.xlu0.c.b16.cont [7/8] 0, 128
        %6642 = vxpose.xlu0.c.b16.end [8/8] 0, 128
        %v6643 = vpop.trf.xlu0
        %v6644 = vpop.trf.xlu0
        %v6645 = vpop.trf.xlu0
        %v6646 = vpop.trf.xlu0
        %v6647 = vpop.trf.xlu0
        %v6648 = vpop.trf.xlu0
        %v6649 = vpop.trf.xlu0
        %v6650 = vpop.trf.xlu0
        %v6652 = vsel %vm741, %v6627, 0
        %v6655 = vsel %vm741, %v6628, 0
        %v6658 = vsel %vm741, %v6629, 0
        %v6661 = vsel %vm741, %v6630, 0
        %v6664 = vsel %vm741, %v6631, 0
        %v6667 = vsel %vm741, %v6632, 0
        %v6670 = vsel %vm741, %v6633, 0
        %v6673 = vsel %vm741, %v6634, 0
        %v6676 = vsel %vm741, %v6643, 0
        %v6679 = vsel %vm741, %v6644, 0
        %v6682 = vsel %vm741, %v6645, 0
        %v6685 = vsel %vm741, %v6646, 0
        %v6688 = vsel %vm741, %v6647, 0
        %v6691 = vsel %vm741, %v6648, 0
        %v6694 = vsel %vm741, %v6649, 0
        %v6697 = vsel %vm741, %v6650, 0
        %v6700 = vsel %vm790, %v6613, 0
        %v6703 = vsel %vm790, %v6614, 0
        %6705 = vmatprep.subr.bf16.mxu0 %v6703
        %6706 = vmatpush1.bf16.msra.mxu0 %v6700
        %6707 = vmatprep.subr.bf16.mxu0 0
        %6708 = vmatpush1.bf16.msra.mxu0 0
        %6709 = vmatprep.subr.bf16.mxu0 0
        %6710 = vmatpush1.bf16.msra.mxu0 0
        %6711 = vmatprep.subr.bf16.mxu0 0
        %6712 = vmatpush1.bf16.msra.mxu0 0
        %6713 = vmatprep.subr.bf16.mxu0 0
        %6714 = vmatpush1.bf16.msra.mxu0 0
        %6715 = vmatprep.subr.bf16.mxu0 0
        %6716 = vmatpush1.bf16.msra.mxu0 0
        %6717 = vmatprep.subr.bf16.mxu0 0
        %6718 = vmatpush1.bf16.msra.mxu0 0
        %6719 = vmatprep.subr.bf16.mxu0 0
        %6720 = vmatpush1.bf16.msra.mxu0 0
        %6721 = vmatprep.subr.bf16.mxu0 0
        %6722 = vmatpush1.bf16.msra.mxu0 0
        %6723 = vmatprep.subr.bf16.mxu0 0
        %6724 = vmatpush1.bf16.msra.mxu0 0
        %6725 = vmatprep.subr.bf16.mxu0 0
        %6726 = vmatpush1.bf16.msra.mxu0 0
        %6727 = vmatprep.subr.bf16.mxu0 0
        %6728 = vmatpush1.bf16.msra.mxu0 0
        %6729 = vmatprep.subr.bf16.mxu0 0
        %6730 = vmatpush1.bf16.msra.mxu0 0
        %6731 = vmatprep.subr.bf16.mxu0 0
        %6732 = vmatpush1.bf16.msra.mxu0 0
        %6733 = vmatprep.subr.bf16.mxu0 0
        %6734 = vmatpush1.bf16.msra.mxu0 0
        %6735 = vmatprep.subr.bf16.mxu0 0
        %6736 = vmatpush1.bf16.msra.mxu0 0
        %6737 = vmatprep.mubr.bf16.mxu0 0
        %6738 = vmatmul.mubr.bf16.gmra.mrb[0].mxu0 %v6652
        %v6739 = vpop.f32.mrb[0].mxu0
        %v6740 = vadd.f32 0.0, %v6739
        %v6741 = vpop.f32.mrb[0].mxu0
        %v6742 = vadd.f32 0.0, %v6741
        %v6743 = vpop.f32.mrb[0].mxu0
        %v6744 = vadd.f32 0.0, %v6743
        %v6745 = vpop.f32.mrb[0].mxu0
        %v6746 = vadd.f32 0.0, %v6745
        %6747 = vmatprep.mubr.bf16.mxu0 0
        %6748 = vmatmul.mubr.bf16.gmra.mrb[0].mxu0 %v6655
        %v6749 = vpop.f32.mrb[0].mxu0
        %v6750 = vadd.f32 0.0, %v6749
        %v6751 = vpop.f32.mrb[0].mxu0
        %v6752 = vadd.f32 0.0, %v6751
        %v6753 = vpop.f32.mrb[0].mxu0
        %v6754 = vadd.f32 0.0, %v6753
        %v6755 = vpop.f32.mrb[0].mxu0
        %v6756 = vadd.f32 0.0, %v6755
        %6757 = vmatprep.mubr.bf16.mxu0 0
        %6758 = vmatmul.mubr.bf16.gmra.mrb[0].mxu0 %v6658
        %v6759 = vpop.f32.mrb[0].mxu0
        %v6760 = vadd.f32 0.0, %v6759
        %v6761 = vpop.f32.mrb[0].mxu0
        %v6762 = vadd.f32 0.0, %v6761
        %v6763 = vpop.f32.mrb[0].mxu0
        %v6764 = vadd.f32 0.0, %v6763
        %v6765 = vpop.f32.mrb[0].mxu0
        %v6766 = vadd.f32 0.0, %v6765
        %6767 = vmatprep.mubr.bf16.mxu0 0
        %6768 = vmatmul.mubr.bf16.gmra.mrb[0].mxu0 %v6661
        %v6769 = vpop.f32.mrb[0].mxu0
        %v6770 = vadd.f32 0.0, %v6769
        %v6771 = vpop.f32.mrb[0].mxu0
        %v6772 = vadd.f32 0.0, %v6771
        %v6773 = vpop.f32.mrb[0].mxu0
        %v6774 = vadd.f32 0.0, %v6773
        %v6775 = vpop.f32.mrb[0].mxu0
        %v6776 = vadd.f32 0.0, %v6775
        %6777 = vmatprep.mubr.bf16.mxu0 0
        %6778 = vmatmul.mubr.bf16.gmra.mrb[0].mxu0 %v6664
        %v6779 = vpop.f32.mrb[0].mxu0
        %v6780 = vadd.f32 0.0, %v6779
        %v6781 = vpop.f32.mrb[0].mxu0
        %v6782 = vadd.f32 0.0, %v6781
        %v6783 = vpop.f32.mrb[0].mxu0
        %v6784 = vadd.f32 0.0, %v6783
        %v6785 = vpop.f32.mrb[0].mxu0
        %v6786 = vadd.f32 0.0, %v6785
        %6787 = vmatprep.mubr.bf16.mxu0 0
        %6788 = vmatmul.mubr.bf16.gmra.mrb[0].mxu0 %v6667
        %v6789 = vpop.f32.mrb[0].mxu0
        %v6790 = vadd.f32 0.0, %v6789
        %v6791 = vpop.f32.mrb[0].mxu0
        %v6792 = vadd.f32 0.0, %v6791
        %v6793 = vpop.f32.mrb[0].mxu0
        %v6794 = vadd.f32 0.0, %v6793
        %v6795 = vpop.f32.mrb[0].mxu0
        %v6796 = vadd.f32 0.0, %v6795
        %6797 = vmatprep.mubr.bf16.mxu0 0
        %6798 = vmatmul.mubr.bf16.gmra.mrb[0].mxu0 %v6670
        %v6799 = vpop.f32.mrb[0].mxu0
        %v6800 = vadd.f32 0.0, %v6799
        %v6801 = vpop.f32.mrb[0].mxu0
        %v6802 = vadd.f32 0.0, %v6801
        %v6803 = vpop.f32.mrb[0].mxu0
        %v6804 = vadd.f32 0.0, %v6803
        %v6805 = vpop.f32.mrb[0].mxu0
        %v6806 = vadd.f32 0.0, %v6805
        %6807 = vmatprep.mubr.bf16.mxu0 0
        %6808 = vmatmul.mubr.bf16.gmra.mrb[0].mxu0 %v6673
        %v6809 = vpop.f32.mrb[0].mxu0
        %v6810 = vadd.f32 0.0, %v6809
        %v6811 = vpop.f32.mrb[0].mxu0
        %v6812 = vadd.f32 0.0, %v6811
        %v6813 = vpop.f32.mrb[0].mxu0
        %v6814 = vadd.f32 0.0, %v6813
        %v6815 = vpop.f32.mrb[0].mxu0
        %v6816 = vadd.f32 0.0, %v6815
        %6817 = vmatprep.mubr.bf16.mxu0 0
        %6818 = vmatmul.mubr.bf16.gmra.mrb[0].mxu0 %v6676
        %v6819 = vpop.f32.mrb[0].mxu0
        %v6820 = vadd.f32 0.0, %v6819
        %v6821 = vpop.f32.mrb[0].mxu0
        %v6822 = vadd.f32 0.0, %v6821
        %v6823 = vpop.f32.mrb[0].mxu0
        %v6824 = vadd.f32 0.0, %v6823
        %v6825 = vpop.f32.mrb[0].mxu0
        %v6826 = vadd.f32 0.0, %v6825
        %6827 = vmatprep.mubr.bf16.mxu0 0
        %6828 = vmatmul.mubr.bf16.gmra.mrb[0].mxu0 %v6679
        %v6829 = vpop.f32.mrb[0].mxu0
        %v6830 = vadd.f32 0.0, %v6829
        %v6831 = vpop.f32.mrb[0].mxu0
        %v6832 = vadd.f32 0.0, %v6831
        %v6833 = vpop.f32.mrb[0].mxu0
        %v6834 = vadd.f32 0.0, %v6833
        %v6835 = vpop.f32.mrb[0].mxu0
        %v6836 = vadd.f32 0.0, %v6835
        %6837 = vmatprep.mubr.bf16.mxu0 0
        %6838 = vmatmul.mubr.bf16.gmra.mrb[0].mxu0 %v6682
        %v6839 = vpop.f32.mrb[0].mxu0
        %v6840 = vadd.f32 0.0, %v6839
        %v6841 = vpop.f32.mrb[0].mxu0
        %v6842 = vadd.f32 0.0, %v6841
        %v6843 = vpop.f32.mrb[0].mxu0
        %v6844 = vadd.f32 0.0, %v6843
        %v6845 = vpop.f32.mrb[0].mxu0
        %v6846 = vadd.f32 0.0, %v6845
        %6847 = vmatprep.mubr.bf16.mxu0 0
        %6848 = vmatmul.mubr.bf16.gmra.mrb[0].mxu0 %v6685
        %v6849 = vpop.f32.mrb[0].mxu0
        %v6850 = vadd.f32 0.0, %v6849
        %v6851 = vpop.f32.mrb[0].mxu0
        %v6852 = vadd.f32 0.0, %v6851
        %v6853 = vpop.f32.mrb[0].mxu0
        %v6854 = vadd.f32 0.0, %v6853
        %v6855 = vpop.f32.mrb[0].mxu0
        %v6856 = vadd.f32 0.0, %v6855
        %6857 = vmatprep.mubr.bf16.mxu0 0
        %6858 = vmatmul.mubr.bf16.gmra.mrb[0].mxu0 %v6688
        %v6859 = vpop.f32.mrb[0].mxu0
        %v6860 = vadd.f32 0.0, %v6859
        %v6861 = vpop.f32.mrb[0].mxu0
        %v6862 = vadd.f32 0.0, %v6861
        %v6863 = vpop.f32.mrb[0].mxu0
        %v6864 = vadd.f32 0.0, %v6863
        %v6865 = vpop.f32.mrb[0].mxu0
        %v6866 = vadd.f32 0.0, %v6865
        %6867 = vmatprep.mubr.bf16.mxu0 0
        %6868 = vmatmul.mubr.bf16.gmra.mrb[0].mxu0 %v6691
        %v6869 = vpop.f32.mrb[0].mxu0
        %v6870 = vadd.f32 0.0, %v6869
        %v6871 = vpop.f32.mrb[0].mxu0
        %v6872 = vadd.f32 0.0, %v6871
        %v6873 = vpop.f32.mrb[0].mxu0
        %v6874 = vadd.f32 0.0, %v6873
        %v6875 = vpop.f32.mrb[0].mxu0
        %v6876 = vadd.f32 0.0, %v6875
        %6877 = vmatprep.mubr.bf16.mxu0 0
        %6878 = vmatmul.mubr.bf16.gmra.mrb[0].mxu0 %v6694
        %v6879 = vpop.f32.mrb[0].mxu0
        %v6880 = vadd.f32 0.0, %v6879
        %v6881 = vpop.f32.mrb[0].mxu0
        %v6882 = vadd.f32 0.0, %v6881
        %v6883 = vpop.f32.mrb[0].mxu0
        %v6884 = vadd.f32 0.0, %v6883
        %v6885 = vpop.f32.mrb[0].mxu0
        %v6886 = vadd.f32 0.0, %v6885
        %6887 = vmatprep.mubr.bf16.mxu0 0
        %6888 = vmatmul.mubr.bf16.gmra.mrb[0].mxu0 %v6697
        %v6889 = vpop.f32.mrb[0].mxu0
        %v6890 = vadd.f32 0.0, %v6889
        %v6891 = vpop.f32.mrb[0].mxu0
        %v6892 = vadd.f32 0.0, %v6891
        %v6893 = vpop.f32.mrb[0].mxu0
        %v6894 = vadd.f32 0.0, %v6893
        %v6895 = vpop.f32.mrb[0].mxu0
        %v6896 = vadd.f32 0.0, %v6895
        %6897 = vdwg.mxu0
        %v6898 = vmax.f32 %v6740, %v6742
        %6899 = vmax.xlane.f32.xlu0 %v6898
        %v6900 = vpop.xlane.xlu0 %6899
        %v6901 = vmax.f32 %v6744, %v6746
        %6902 = vmax.xlane.f32.xlu0 %v6901
        %v6903 = vpop.xlane.xlu0 %6902
        %v6904 = vmax.f32 %v6750, %v6752
        %6905 = vmax.xlane.f32.xlu0 %v6904
        %v6906 = vpop.xlane.xlu0 %6905
        %v6907 = vmax.f32 %v6754, %v6756
        %6908 = vmax.xlane.f32.xlu0 %v6907
        %v6909 = vpop.xlane.xlu0 %6908
        %v6910 = vmax.f32 %v6760, %v6762
        %6911 = vmax.xlane.f32.xlu0 %v6910
        %v6912 = vpop.xlane.xlu0 %6911
        %v6913 = vmax.f32 %v6764, %v6766
        %6914 = vmax.xlane.f32.xlu0 %v6913
        %v6915 = vpop.xlane.xlu0 %6914
        %v6916 = vmax.f32 %v6770, %v6772
        %6917 = vmax.xlane.f32.xlu0 %v6916
        %v6918 = vpop.xlane.xlu0 %6917
        %v6919 = vmax.f32 %v6774, %v6776
        %6920 = vmax.xlane.f32.xlu0 %v6919
        %v6921 = vpop.xlane.xlu0 %6920
        %v6922 = vmax.f32 %v6780, %v6782
        %6923 = vmax.xlane.f32.xlu0 %v6922
        %v6924 = vpop.xlane.xlu0 %6923
        %v6925 = vmax.f32 %v6784, %v6786
        %6926 = vmax.xlane.f32.xlu0 %v6925
        %v6927 = vpop.xlane.xlu0 %6926
        %v6928 = vmax.f32 %v6790, %v6792
        %6929 = vmax.xlane.f32.xlu0 %v6928
        %v6930 = vpop.xlane.xlu0 %6929
        %v6931 = vmax.f32 %v6794, %v6796
        %6932 = vmax.xlane.f32.xlu0 %v6931
        %v6933 = vpop.xlane.xlu0 %6932
        %v6934 = vmax.f32 %v6800, %v6802
        %6935 = vmax.xlane.f32.xlu0 %v6934
        %v6936 = vpop.xlane.xlu0 %6935
        %v6937 = vmax.f32 %v6804, %v6806
        %6938 = vmax.xlane.f32.xlu0 %v6937
        %v6939 = vpop.xlane.xlu0 %6938
        %v6940 = vmax.f32 %v6810, %v6812
        %6941 = vmax.xlane.f32.xlu0 %v6940
        %v6942 = vpop.xlane.xlu0 %6941
        %v6943 = vmax.f32 %v6814, %v6816
        %6944 = vmax.xlane.f32.xlu0 %v6943
        %v6945 = vpop.xlane.xlu0 %6944
        %v6946 = vmax.f32 %v6820, %v6822
        %6947 = vmax.xlane.f32.xlu0 %v6946
        %v6948 = vpop.xlane.xlu0 %6947
        %v6949 = vmax.f32 %v6824, %v6826
        %6950 = vmax.xlane.f32.xlu0 %v6949
        %v6951 = vpop.xlane.xlu0 %6950
        %v6952 = vmax.f32 %v6830, %v6832
        %6953 = vmax.xlane.f32.xlu0 %v6952
        %v6954 = vpop.xlane.xlu0 %6953
        %v6955 = vmax.f32 %v6834, %v6836
        %6956 = vmax.xlane.f32.xlu0 %v6955
        %v6957 = vpop.xlane.xlu0 %6956
        %v6958 = vmax.f32 %v6840, %v6842
        %6959 = vmax.xlane.f32.xlu0 %v6958
        %v6960 = vpop.xlane.xlu0 %6959
        %v6961 = vmax.f32 %v6844, %v6846
        %6962 = vmax.xlane.f32.xlu0 %v6961
        %v6963 = vpop.xlane.xlu0 %6962
        %v6964 = vmax.f32 %v6850, %v6852
        %6965 = vmax.xlane.f32.xlu0 %v6964
        %v6966 = vpop.xlane.xlu0 %6965
        %v6967 = vmax.f32 %v6854, %v6856
        %6968 = vmax.xlane.f32.xlu0 %v6967
        %v6969 = vpop.xlane.xlu0 %6968
        %v6970 = vmax.f32 %v6860, %v6862
        %6971 = vmax.xlane.f32.xlu0 %v6970
        %v6972 = vpop.xlane.xlu0 %6971
        %v6973 = vmax.f32 %v6864, %v6866
        %6974 = vmax.xlane.f32.xlu0 %v6973
        %v6975 = vpop.xlane.xlu0 %6974
        %v6976 = vmax.f32 %v6870, %v6872
        %6977 = vmax.xlane.f32.xlu0 %v6976
        %v6978 = vpop.xlane.xlu0 %6977
        %v6979 = vmax.f32 %v6874, %v6876
        %6980 = vmax.xlane.f32.xlu0 %v6979
        %v6981 = vpop.xlane.xlu0 %6980
        %v6982 = vmax.f32 %v6880, %v6882
        %6983 = vmax.xlane.f32.xlu0 %v6982
        %v6984 = vpop.xlane.xlu0 %6983
        %v6985 = vmax.f32 %v6884, %v6886
        %6986 = vmax.xlane.f32.xlu0 %v6985
        %v6987 = vpop.xlane.xlu0 %6986
        %v6988 = vmax.f32 %v6890, %v6892
        %6989 = vmax.xlane.f32.xlu0 %v6988
        %v6990 = vpop.xlane.xlu0 %6989
        %v6991 = vmax.f32 %v6894, %v6896
        %6992 = vmax.xlane.f32.xlu0 %v6991
        %v6993 = vpop.xlane.xlu0 %6992
        %v6994 = vsub.f32 %v6740, %v6900
        %v6995 = vsub.f32 %v6742, %v6900
        %v6996 = vsub.f32 %v6744, %v6903
        %v6997 = vsub.f32 %v6746, %v6903
        %v6998 = vsub.f32 %v6750, %v6906
        %v6999 = vsub.f32 %v6752, %v6906
        %v7000 = vsub.f32 %v6754, %v6909
        %v7001 = vsub.f32 %v6756, %v6909
        %v7002 = vsub.f32 %v6760, %v6912
        %v7003 = vsub.f32 %v6762, %v6912
        %v7004 = vsub.f32 %v6764, %v6915
        %v7005 = vsub.f32 %v6766, %v6915
        %v7006 = vsub.f32 %v6770, %v6918
        %v7007 = vsub.f32 %v6772, %v6918
        %v7008 = vsub.f32 %v6774, %v6921
        %v7009 = vsub.f32 %v6776, %v6921
        %v7010 = vsub.f32 %v6780, %v6924
        %v7011 = vsub.f32 %v6782, %v6924
        %v7012 = vsub.f32 %v6784, %v6927
        %v7013 = vsub.f32 %v6786, %v6927
        %v7014 = vsub.f32 %v6790, %v6930
        %v7015 = vsub.f32 %v6792, %v6930
        %v7016 = vsub.f32 %v6794, %v6933
        %v7017 = vsub.f32 %v6796, %v6933
        %v7018 = vsub.f32 %v6800, %v6936
        %v7019 = vsub.f32 %v6802, %v6936
        %v7020 = vsub.f32 %v6804, %v6939
        %v7021 = vsub.f32 %v6806, %v6939
        %v7022 = vsub.f32 %v6810, %v6942
        %v7023 = vsub.f32 %v6812, %v6942
        %v7024 = vsub.f32 %v6814, %v6945
        %v7025 = vsub.f32 %v6816, %v6945
        %v7026 = vsub.f32 %v6820, %v6948
        %v7027 = vsub.f32 %v6822, %v6948
        %v7028 = vsub.f32 %v6824, %v6951
        %v7029 = vsub.f32 %v6826, %v6951
        %v7030 = vsub.f32 %v6830, %v6954
        %v7031 = vsub.f32 %v6832, %v6954
        %v7032 = vsub.f32 %v6834, %v6957
        %v7033 = vsub.f32 %v6836, %v6957
        %v7034 = vsub.f32 %v6840, %v6960
        %v7035 = vsub.f32 %v6842, %v6960
        %v7036 = vsub.f32 %v6844, %v6963
        %v7037 = vsub.f32 %v6846, %v6963
        %v7038 = vsub.f32 %v6850, %v6966
        %v7039 = vsub.f32 %v6852, %v6966
        %v7040 = vsub.f32 %v6854, %v6969
        %v7041 = vsub.f32 %v6856, %v6969
        %v7042 = vsub.f32 %v6860, %v6972
        %v7043 = vsub.f32 %v6862, %v6972
        %v7044 = vsub.f32 %v6864, %v6975
        %v7045 = vsub.f32 %v6866, %v6975
        %v7046 = vsub.f32 %v6870, %v6978
        %v7047 = vsub.f32 %v6872, %v6978
        %v7048 = vsub.f32 %v6874, %v6981
        %v7049 = vsub.f32 %v6876, %v6981
        %v7050 = vsub.f32 %v6880, %v6984
        %v7051 = vsub.f32 %v6882, %v6984
        %v7052 = vsub.f32 %v6884, %v6987
        %v7053 = vsub.f32 %v6886, %v6987
        %v7054 = vsub.f32 %v6890, %v6990
        %v7055 = vsub.f32 %v6892, %v6990
        %v7056 = vsub.f32 %v6894, %v6993
        %v7057 = vsub.f32 %v6896, %v6993
        %v7058 = vmul.f32 %v6994, 1.442695
        %v7059 = vpow.pop %v7058
        %v7060 = vmul.f32 %v6995, 1.442695
        %v7061 = vpow.pop %v7060
        %v7062 = vmul.f32 %v6996, 1.442695
        %v7063 = vpow.pop %v7062
        %v7064 = vmul.f32 %v6997, 1.442695
        %v7065 = vpow.pop %v7064
        %v7066 = vmul.f32 %v6998, 1.442695
        %v7067 = vpow.pop %v7066
        %v7068 = vmul.f32 %v6999, 1.442695
        %v7069 = vpow.pop %v7068
        %v7070 = vmul.f32 %v7000, 1.442695
        %v7071 = vpow.pop %v7070
        %v7072 = vmul.f32 %v7001, 1.442695
        %v7073 = vpow.pop %v7072
        %v7074 = vmul.f32 %v7002, 1.442695
        %v7075 = vpow.pop %v7074
        %v7076 = vmul.f32 %v7003, 1.442695
        %v7077 = vpow.pop %v7076
        %v7078 = vmul.f32 %v7004, 1.442695
        %v7079 = vpow.pop %v7078
        %v7080 = vmul.f32 %v7005, 1.442695
        %v7081 = vpow.pop %v7080
        %v7082 = vmul.f32 %v7006, 1.442695
        %v7083 = vpow.pop %v7082
        %v7084 = vmul.f32 %v7007, 1.442695
        %v7085 = vpow.pop %v7084
        %v7086 = vmul.f32 %v7008, 1.442695
        %v7087 = vpow.pop %v7086
        %v7088 = vmul.f32 %v7009, 1.442695
        %v7089 = vpow.pop %v7088
        %v7090 = vmul.f32 %v7010, 1.442695
        %v7091 = vpow.pop %v7090
        %v7092 = vmul.f32 %v7011, 1.442695
        %v7093 = vpow.pop %v7092
        %v7094 = vmul.f32 %v7012, 1.442695
        %v7095 = vpow.pop %v7094
        %v7096 = vmul.f32 %v7013, 1.442695
        %v7097 = vpow.pop %v7096
        %v7098 = vmul.f32 %v7014, 1.442695
        %v7099 = vpow.pop %v7098
        %v7100 = vmul.f32 %v7015, 1.442695
        %v7101 = vpow.pop %v7100
        %v7102 = vmul.f32 %v7016, 1.442695
        %v7103 = vpow.pop %v7102
        %v7104 = vmul.f32 %v7017, 1.442695
        %v7105 = vpow.pop %v7104
        %v7106 = vmul.f32 %v7018, 1.442695
        %v7107 = vpow.pop %v7106
        %v7108 = vmul.f32 %v7019, 1.442695
        %v7109 = vpow.pop %v7108
        %v7110 = vmul.f32 %v7020, 1.442695
        %v7111 = vpow.pop %v7110
        %v7112 = vmul.f32 %v7021, 1.442695
        %v7113 = vpow.pop %v7112
        %v7114 = vmul.f32 %v7022, 1.442695
        %v7115 = vpow.pop %v7114
        %v7116 = vmul.f32 %v7023, 1.442695
        %v7117 = vpow.pop %v7116
        %v7118 = vmul.f32 %v7024, 1.442695
        %v7119 = vpow.pop %v7118
        %v7120 = vmul.f32 %v7025, 1.442695
        %v7121 = vpow.pop %v7120
        %v7122 = vmul.f32 %v7026, 1.442695
        %v7123 = vpow.pop %v7122
        %v7124 = vmul.f32 %v7027, 1.442695
        %v7125 = vpow.pop %v7124
        %v7126 = vmul.f32 %v7028, 1.442695
        %v7127 = vpow.pop %v7126
        %v7128 = vmul.f32 %v7029, 1.442695
        %v7129 = vpow.pop %v7128
        %v7130 = vmul.f32 %v7030, 1.442695
        %v7131 = vpow.pop %v7130
        %v7132 = vmul.f32 %v7031, 1.442695
        %v7133 = vpow.pop %v7132
        %v7134 = vmul.f32 %v7032, 1.442695
        %v7135 = vpow.pop %v7134
        %v7136 = vmul.f32 %v7033, 1.442695
        %v7137 = vpow.pop %v7136
        %v7138 = vmul.f32 %v7034, 1.442695
        %v7139 = vpow.pop %v7138
        %v7140 = vmul.f32 %v7035, 1.442695
        %v7141 = vpow.pop %v7140
        %v7142 = vmul.f32 %v7036, 1.442695
        %v7143 = vpow.pop %v7142
        %v7144 = vmul.f32 %v7037, 1.442695
        %v7145 = vpow.pop %v7144
        %v7146 = vmul.f32 %v7038, 1.442695
        %v7147 = vpow.pop %v7146
        %v7148 = vmul.f32 %v7039, 1.442695
        %v7149 = vpow.pop %v7148
        %v7150 = vmul.f32 %v7040, 1.442695
        %v7151 = vpow.pop %v7150
        %v7152 = vmul.f32 %v7041, 1.442695
        %v7153 = vpow.pop %v7152
        %v7154 = vmul.f32 %v7042, 1.442695
        %v7155 = vpow.pop %v7154
        %v7156 = vmul.f32 %v7043, 1.442695
        %v7157 = vpow.pop %v7156
        %v7158 = vmul.f32 %v7044, 1.442695
        %v7159 = vpow.pop %v7158
        %v7160 = vmul.f32 %v7045, 1.442695
        %v7161 = vpow.pop %v7160
        %v7162 = vmul.f32 %v7046, 1.442695
        %v7163 = vpow.pop %v7162
        %v7164 = vmul.f32 %v7047, 1.442695
        %v7165 = vpow.pop %v7164
        %v7166 = vmul.f32 %v7048, 1.442695
        %v7167 = vpow.pop %v7166
        %v7168 = vmul.f32 %v7049, 1.442695
        %v7169 = vpow.pop %v7168
        %v7170 = vmul.f32 %v7050, 1.442695
        %v7171 = vpow.pop %v7170
        %v7172 = vmul.f32 %v7051, 1.442695
        %v7173 = vpow.pop %v7172
        %v7174 = vmul.f32 %v7052, 1.442695
        %v7175 = vpow.pop %v7174
        %v7176 = vmul.f32 %v7053, 1.442695
        %v7177 = vpow.pop %v7176
        %v7178 = vmul.f32 %v7054, 1.442695
        %v7179 = vpow.pop %v7178
        %v7180 = vmul.f32 %v7055, 1.442695
        %v7181 = vpow.pop %v7180
        %v7182 = vmul.f32 %v7056, 1.442695
        %v7183 = vpow.pop %v7182
        %v7184 = vmul.f32 %v7057, 1.442695
        %v7185 = vpow.pop %v7184
        %v7186 = vadd.f32 %v7059, %v7061
        %7187 = vadd.xlane.f32.xlu0 %v7186
        %v7188 = vpop.xlane.xlu0 %7187
        %v7189 = vadd.f32 %v7063, %v7065
        %7190 = vadd.xlane.f32.xlu0 %v7189
        %v7191 = vpop.xlane.xlu0 %7190
        %v7192 = vadd.f32 %v7067, %v7069
        %7193 = vadd.xlane.f32.xlu0 %v7192
        %v7194 = vpop.xlane.xlu0 %7193
        %v7195 = vadd.f32 %v7071, %v7073
        %7196 = vadd.xlane.f32.xlu0 %v7195
        %v7197 = vpop.xlane.xlu0 %7196
        %v7198 = vadd.f32 %v7075, %v7077
        %7199 = vadd.xlane.f32.xlu0 %v7198
        %v7200 = vpop.xlane.xlu0 %7199
        %v7201 = vadd.f32 %v7079, %v7081
        %7202 = vadd.xlane.f32.xlu0 %v7201
        %v7203 = vpop.xlane.xlu0 %7202
        %v7204 = vadd.f32 %v7083, %v7085
        %7205 = vadd.xlane.f32.xlu0 %v7204
        %v7206 = vpop.xlane.xlu0 %7205
        %v7207 = vadd.f32 %v7087, %v7089
        %7208 = vadd.xlane.f32.xlu0 %v7207
        %v7209 = vpop.xlane.xlu0 %7208
        %v7210 = vadd.f32 %v7091, %v7093
        %7211 = vadd.xlane.f32.xlu0 %v7210
        %v7212 = vpop.xlane.xlu0 %7211
        %v7213 = vadd.f32 %v7095, %v7097
        %7214 = vadd.xlane.f32.xlu0 %v7213
        %v7215 = vpop.xlane.xlu0 %7214
        %v7216 = vadd.f32 %v7099, %v7101
        %7217 = vadd.xlane.f32.xlu0 %v7216
        %v7218 = vpop.xlane.xlu0 %7217
        %v7219 = vadd.f32 %v7103, %v7105
        %7220 = vadd.xlane.f32.xlu0 %v7219
        %v7221 = vpop.xlane.xlu0 %7220
        %v7222 = vadd.f32 %v7107, %v7109
        %7223 = vadd.xlane.f32.xlu0 %v7222
        %v7224 = vpop.xlane.xlu0 %7223
        %v7225 = vadd.f32 %v7111, %v7113
        %7226 = vadd.xlane.f32.xlu0 %v7225
        %v7227 = vpop.xlane.xlu0 %7226
        %v7228 = vadd.f32 %v7115, %v7117
        %7229 = vadd.xlane.f32.xlu0 %v7228
        %v7230 = vpop.xlane.xlu0 %7229
        %v7231 = vadd.f32 %v7119, %v7121
        %7232 = vadd.xlane.f32.xlu0 %v7231
        %v7233 = vpop.xlane.xlu0 %7232
        %v7234 = vadd.f32 %v7123, %v7125
        %7235 = vadd.xlane.f32.xlu0 %v7234
        %v7236 = vpop.xlane.xlu0 %7235
        %v7237 = vadd.f32 %v7127, %v7129
        %7238 = vadd.xlane.f32.xlu0 %v7237
        %v7239 = vpop.xlane.xlu0 %7238
        %v7240 = vadd.f32 %v7131, %v7133
        %7241 = vadd.xlane.f32.xlu0 %v7240
        %v7242 = vpop.xlane.xlu0 %7241
        %v7243 = vadd.f32 %v7135, %v7137
        %7244 = vadd.xlane.f32.xlu0 %v7243
        %v7245 = vpop.xlane.xlu0 %7244
        %v7246 = vadd.f32 %v7139, %v7141
        %7247 = vadd.xlane.f32.xlu0 %v7246
        %v7248 = vpop.xlane.xlu0 %7247
        %v7249 = vadd.f32 %v7143, %v7145
        %7250 = vadd.xlane.f32.xlu0 %v7249
        %v7251 = vpop.xlane.xlu0 %7250
        %v7252 = vadd.f32 %v7147, %v7149
        %7253 = vadd.xlane.f32.xlu0 %v7252
        %v7254 = vpop.xlane.xlu0 %7253
        %v7255 = vadd.f32 %v7151, %v7153
        %7256 = vadd.xlane.f32.xlu0 %v7255
        %v7257 = vpop.xlane.xlu0 %7256
        %v7258 = vadd.f32 %v7155, %v7157
        %7259 = vadd.xlane.f32.xlu0 %v7258
        %v7260 = vpop.xlane.xlu0 %7259
        %v7261 = vadd.f32 %v7159, %v7161
        %7262 = vadd.xlane.f32.xlu0 %v7261
        %v7263 = vpop.xlane.xlu0 %7262
        %v7264 = vadd.f32 %v7163, %v7165
        %7265 = vadd.xlane.f32.xlu0 %v7264
        %v7266 = vpop.xlane.xlu0 %7265
        %v7267 = vadd.f32 %v7167, %v7169
        %7268 = vadd.xlane.f32.xlu0 %v7267
        %v7269 = vpop.xlane.xlu0 %7268
        %v7270 = vadd.f32 %v7171, %v7173
        %7271 = vadd.xlane.f32.xlu0 %v7270
        %v7272 = vpop.xlane.xlu0 %7271
        %v7273 = vadd.f32 %v7175, %v7177
        %7274 = vadd.xlane.f32.xlu0 %v7273
        %v7275 = vpop.xlane.xlu0 %7274
        %v7276 = vadd.f32 %v7179, %v7181
        %7277 = vadd.xlane.f32.xlu0 %v7276
        %v7278 = vpop.xlane.xlu0 %7277
        %v7279 = vadd.f32 %v7183, %v7185
        %7280 = vadd.xlane.f32.xlu0 %v7279
        %v7281 = vpop.xlane.xlu0 %7280
        %v7282 = vrcp.pop %v7188
        %v7283 = vrcp.pop %v7191
        %v7284 = vrcp.pop %v7194
        %v7285 = vrcp.pop %v7197
        %v7286 = vrcp.pop %v7200
        %v7287 = vrcp.pop %v7203
        %v7288 = vrcp.pop %v7206
        %v7289 = vrcp.pop %v7209
        %v7290 = vrcp.pop %v7212
        %v7291 = vrcp.pop %v7215
        %v7292 = vrcp.pop %v7218
        %v7293 = vrcp.pop %v7221
        %v7294 = vrcp.pop %v7224
        %v7295 = vrcp.pop %v7227
        %v7296 = vrcp.pop %v7230
        %v7297 = vrcp.pop %v7233
        %v7298 = vrcp.pop %v7236
        %v7299 = vrcp.pop %v7239
        %v7300 = vrcp.pop %v7242
        %v7301 = vrcp.pop %v7245
        %v7302 = vrcp.pop %v7248
        %v7303 = vrcp.pop %v7251
        %v7304 = vrcp.pop %v7254
        %v7305 = vrcp.pop %v7257
        %v7306 = vrcp.pop %v7260
        %v7307 = vrcp.pop %v7263
        %v7308 = vrcp.pop %v7266
        %v7309 = vrcp.pop %v7269
        %v7310 = vrcp.pop %v7272
        %v7311 = vrcp.pop %v7275
        %v7312 = vrcp.pop %v7278
        %v7313 = vrcp.pop %v7281
        %v7314 = vmul.f32 %v7059, %v7282
        %v7315 = vmul.f32 %v7061, %v7282
        %v7316 = vmul.f32 %v7063, %v7283
        %v7317 = vmul.f32 %v7065, %v7283
        %v7318 = vmul.f32 %v7067, %v7284
        %v7319 = vmul.f32 %v7069, %v7284
        %v7320 = vmul.f32 %v7071, %v7285
        %v7321 = vmul.f32 %v7073, %v7285
        %v7322 = vmul.f32 %v7075, %v7286
        %v7323 = vmul.f32 %v7077, %v7286
        %v7324 = vmul.f32 %v7079, %v7287
        %v7325 = vmul.f32 %v7081, %v7287
        %v7326 = vmul.f32 %v7083, %v7288
        %v7327 = vmul.f32 %v7085, %v7288
        %v7328 = vmul.f32 %v7087, %v7289
        %v7329 = vmul.f32 %v7089, %v7289
        %v7330 = vmul.f32 %v7091, %v7290
        %v7331 = vmul.f32 %v7093, %v7290
        %v7332 = vmul.f32 %v7095, %v7291
        %v7333 = vmul.f32 %v7097, %v7291
        %v7334 = vmul.f32 %v7099, %v7292
        %v7335 = vmul.f32 %v7101, %v7292
        %v7336 = vmul.f32 %v7103, %v7293
        %v7337 = vmul.f32 %v7105, %v7293
        %v7338 = vmul.f32 %v7107, %v7294
        %v7339 = vmul.f32 %v7109, %v7294
        %v7340 = vmul.f32 %v7111, %v7295
        %v7341 = vmul.f32 %v7113, %v7295
        %v7342 = vmul.f32 %v7115, %v7296
        %v7343 = vmul.f32 %v7117, %v7296
        %v7344 = vmul.f32 %v7119, %v7297
        %v7345 = vmul.f32 %v7121, %v7297
        %v7346 = vmul.f32 %v7123, %v7298
        %v7347 = vmul.f32 %v7125, %v7298
        %v7348 = vmul.f32 %v7127, %v7299
        %v7349 = vmul.f32 %v7129, %v7299
        %v7350 = vmul.f32 %v7131, %v7300
        %v7351 = vmul.f32 %v7133, %v7300
        %v7352 = vmul.f32 %v7135, %v7301
        %v7353 = vmul.f32 %v7137, %v7301
        %v7354 = vmul.f32 %v7139, %v7302
        %v7355 = vmul.f32 %v7141, %v7302
        %v7356 = vmul.f32 %v7143, %v7303
        %v7357 = vmul.f32 %v7145, %v7303
        %v7358 = vmul.f32 %v7147, %v7304
        %v7359 = vmul.f32 %v7149, %v7304
        %v7360 = vmul.f32 %v7151, %v7305
        %v7361 = vmul.f32 %v7153, %v7305
        %v7362 = vmul.f32 %v7155, %v7306
        %v7363 = vmul.f32 %v7157, %v7306
        %v7364 = vmul.f32 %v7159, %v7307
        %v7365 = vmul.f32 %v7161, %v7307
        %v7366 = vmul.f32 %v7163, %v7308
        %v7367 = vmul.f32 %v7165, %v7308
        %v7368 = vmul.f32 %v7167, %v7309
        %v7369 = vmul.f32 %v7169, %v7309
        %v7370 = vmul.f32 %v7171, %v7310
        %v7371 = vmul.f32 %v7173, %v7310
        %v7372 = vmul.f32 %v7175, %v7311
        %v7373 = vmul.f32 %v7177, %v7311
        %v7374 = vmul.f32 %v7179, %v7312
        %v7375 = vmul.f32 %v7181, %v7312
        %v7376 = vmul.f32 %v7183, %v7313
        %v7377 = vmul.f32 %v7185, %v7313
        %v7378 = vpack.c.bf16 %v7316, %v7314
        %v7379 = vpack.c.bf16 %v7317, %v7315
        %v7380 = vpack.c.bf16 %v7320, %v7318
        %v7381 = vpack.c.bf16 %v7321, %v7319
        %v7382 = vpack.c.bf16 %v7324, %v7322
        %v7383 = vpack.c.bf16 %v7325, %v7323
        %v7384 = vpack.c.bf16 %v7328, %v7326
        %v7385 = vpack.c.bf16 %v7329, %v7327
        %v7386 = vpack.c.bf16 %v7332, %v7330
        %v7387 = vpack.c.bf16 %v7333, %v7331
        %v7388 = vpack.c.bf16 %v7336, %v7334
        %v7389 = vpack.c.bf16 %v7337, %v7335
        %v7390 = vpack.c.bf16 %v7340, %v7338
        %v7391 = vpack.c.bf16 %v7341, %v7339
        %v7392 = vpack.c.bf16 %v7344, %v7342
        %v7393 = vpack.c.bf16 %v7345, %v7343
        %v7394 = vpack.c.bf16 %v7348, %v7346
        %v7395 = vpack.c.bf16 %v7349, %v7347
        %v7396 = vpack.c.bf16 %v7352, %v7350
        %v7397 = vpack.c.bf16 %v7353, %v7351
        %v7398 = vpack.c.bf16 %v7356, %v7354
        %v7399 = vpack.c.bf16 %v7357, %v7355
        %v7400 = vpack.c.bf16 %v7360, %v7358
        %v7401 = vpack.c.bf16 %v7361, %v7359
        %v7402 = vpack.c.bf16 %v7364, %v7362
        %v7403 = vpack.c.bf16 %v7365, %v7363
        %v7404 = vpack.c.bf16 %v7368, %v7366
        %v7405 = vpack.c.bf16 %v7369, %v7367
        %v7406 = vpack.c.bf16 %v7372, %v7370
        %v7407 = vpack.c.bf16 %v7373, %v7371
        %v7408 = vpack.c.bf16 %v7376, %v7374
        %v7409 = vpack.c.bf16 %v7377, %v7375
        %7410 = vmatprep.subr.bf16.mxu0 %v7379
        %7411 = vmatpush1.bf16.xpose.msra.mxu0 %v7378
        %7412 = vmatprep.subr.bf16.mxu0 %v7381
        %7413 = vmatpush1.bf16.xpose.msra.mxu0 %v7380
        %7414 = vmatprep.subr.bf16.mxu0 %v7383
        %7415 = vmatpush1.bf16.xpose.msra.mxu0 %v7382
        %7416 = vmatprep.subr.bf16.mxu0 %v7385
        %7417 = vmatpush1.bf16.xpose.msra.mxu0 %v7384
        %7418 = vmatprep.subr.bf16.mxu0 %v7387
        %7419 = vmatpush1.bf16.xpose.msra.mxu0 %v7386
        %7420 = vmatprep.subr.bf16.mxu0 %v7389
        %7421 = vmatpush1.bf16.xpose.msra.mxu0 %v7388
        %7422 = vmatprep.subr.bf16.mxu0 %v7391
        %7423 = vmatpush1.bf16.xpose.msra.mxu0 %v7390
        %7424 = vmatprep.subr.bf16.mxu0 %v7393
        %7425 = vmatpush1.bf16.xpose.msra.mxu0 %v7392
        %7426 = vmatprep.subr.bf16.mxu0 %v7395
        %7427 = vmatpush1.bf16.xpose.msra.mxu0 %v7394
        %7428 = vmatprep.subr.bf16.mxu0 %v7397
        %7429 = vmatpush1.bf16.xpose.msra.mxu0 %v7396
        %7430 = vmatprep.subr.bf16.mxu0 %v7399
        %7431 = vmatpush1.bf16.xpose.msra.mxu0 %v7398
        %7432 = vmatprep.subr.bf16.mxu0 %v7401
        %7433 = vmatpush1.bf16.xpose.msra.mxu0 %v7400
        %7434 = vmatprep.subr.bf16.mxu0 %v7403
        %7435 = vmatpush1.bf16.xpose.msra.mxu0 %v7402
        %7436 = vmatprep.subr.bf16.mxu0 %v7405
        %7437 = vmatpush1.bf16.xpose.msra.mxu0 %v7404
        %7438 = vmatprep.subr.bf16.mxu0 %v7407
        %7439 = vmatpush1.bf16.xpose.msra.mxu0 %v7406
        %7440 = vmatprep.subr.bf16.mxu0 %v7409
        %7441 = vmatpush1.bf16.xpose.msra.mxu0 %v7408
        %7442 = vmatprep.mubr.bf16.mxu0 %v6618
        %7443 = vmatmul.mubr.bf16.gmra.mrb[0].mxu0 %v6617
        %v7444 = vpop.f32.mrb[0].mxu0
        %v7445 = vadd.f32 0.0, %v7444
        %v7446 = vpop.f32.mrb[0].mxu0
        %v7447 = vadd.f32 0.0, %v7446
        %v7448 = vpop.f32.mrb[0].mxu0
        %v7449 = vpop.f32.mrb[0].mxu0
        %7450 = vdwg.mxu0
        %7451 = vst [vmem:[#allocation3 + $0x70] sm:$0xff] %v7445
        %7452 = vst [vmem:[#allocation3 + $0x78] sm:$0xff] %v7447
        %v7453 = vld [vmem:[#allocation3] sm:$0xff]
        %v7454 = vld [vmem:[#allocation3 + $0x8] sm:$0xff]
        %v7455 = vld [vmem:[#allocation3 + $0x10] sm:$0xff]
        %v7456 = vld [vmem:[#allocation3 + $0x18] sm:$0xff]
        %v7457 = vld [vmem:[#allocation3 + $0x20] sm:$0xff]
        %v7458 = vld [vmem:[#allocation3 + $0x28] sm:$0xff]
        %v7459 = vld [vmem:[#allocation3 + $0x30] sm:$0xff]
        %v7460 = vld [vmem:[#allocation3 + $0x38] sm:$0xff]
        %v7461 = vld [vmem:[#allocation3 + $0x40] sm:$0xff]
        %v7462 = vld [vmem:[#allocation3 + $0x48] sm:$0xff]
        %v7463 = vld [vmem:[#allocation3 + $0x50] sm:$0xff]
        %v7464 = vld [vmem:[#allocation3 + $0x58] sm:$0xff]
        %v7465 = vld [vmem:[#allocation3 + $0x60] sm:$0xff]
        %v7466 = vld [vmem:[#allocation3 + $0x68] sm:$0xff]
        %v7467 = vld [vmem:[#allocation3 + $0x70] sm:$0xff]
        %v7468 = vld [vmem:[#allocation3 + $0x78] sm:$0xff]
        %v7469 = vpack.c.bf16 %v7455, %v7453
        %v7470 = vpack.c.bf16 %v7456, %v7454
        %v7471 = vpack.c.bf16 %v7459, %v7457
        %v7472 = vpack.c.bf16 %v7460, %v7458
        %v7473 = vpack.c.bf16 %v7463, %v7461
        %v7474 = vpack.c.bf16 %v7464, %v7462
        %v7475 = vpack.c.bf16 %v7467, %v7465
        %v7476 = vpack.c.bf16 %v7468, %v7466
        %v7477 = vld [vmem:[#allocation4] sm:$0xf]
        %v7478 = vld [vmem:[#allocation4 + $0x4] sm:$0xf]
        %v7479 = vld [vmem:[#allocation4 + $0x8] sm:$0xf]
        %v7480 = vld [vmem:[#allocation4 + $0xc] sm:$0xf]
        %v7481 = vld [vmem:[#allocation4 + $0x10] sm:$0xf]
        %v7482 = vld [vmem:[#allocation4 + $0x14] sm:$0xf]
        %v7483 = vld [vmem:[#allocation4 + $0x18] sm:$0xf]
        %v7484 = vld [vmem:[#allocation4 + $0x1c] sm:$0xf]
        %v7485 = vld [vmem:[%s4] sm:$0xff]
        %v7486 = vld [vmem:[%s4 + $0x8] sm:$0xff]
        %v7487 = vld [vmem:[%s4 + $0x10] sm:$0xff]
        %v7488 = vld [vmem:[%s4 + $0x18] sm:$0xff]
        %v7489 = vld [vmem:[%s4 + $0x20] sm:$0xff]
        %v7490 = vld [vmem:[%s4 + $0x28] sm:$0xff]
        %v7491 = vld [vmem:[%s4 + $0x30] sm:$0xff]
        %v7492 = vld [vmem:[%s4 + $0x38] sm:$0xff]
        %7494 = vset.pattern.permute.xlu0 0
        %7495 = vperm.xlu0 %7494, %v7485
        %v7496 = vpop.permute.xlu0 %7495
        %7499 = vset.pattern.permute.xlu0 0
        %7500 = vperm.xlu0 %7499, %v7486
        %v7501 = vpop.permute.xlu0 %7500
        %7504 = vset.pattern.permute.xlu0 0
        %7505 = vperm.xlu0 %7504, %v7487
        %v7506 = vpop.permute.xlu0 %7505
        %7509 = vset.pattern.permute.xlu0 0
        %7510 = vperm.xlu0 %7509, %v7488
        %v7511 = vpop.permute.xlu0 %7510
        %7514 = vset.pattern.permute.xlu0 0
        %7515 = vperm.xlu0 %7514, %v7489
        %v7516 = vpop.permute.xlu0 %7515
        %7519 = vset.pattern.permute.xlu0 0
        %7520 = vperm.xlu0 %7519, %v7490
        %v7521 = vpop.permute.xlu0 %7520
        %7524 = vset.pattern.permute.xlu0 0
        %7525 = vperm.xlu0 %7524, %v7491
        %v7526 = vpop.permute.xlu0 %7525
        %7529 = vset.pattern.permute.xlu0 0
        %7530 = vperm.xlu0 %7529, %v7492
        %v7531 = vpop.permute.xlu0 %7530
        %v7541 = vunpack.c.l.b16 %v7477
        %v7542 = vunpack.c.l.b16 %v7478
        %v7543 = vunpack.c.l.b16 %v7479
        %v7544 = vunpack.c.l.b16 %v7480
        %v7545 = vunpack.c.l.b16 %v7481
        %v7546 = vunpack.c.l.b16 %v7482
        %v7547 = vunpack.c.l.b16 %v7483
        %v7548 = vunpack.c.l.b16 %v7484
        %v7549 = vpack.c.b16 %v7542, %v7541
        %v7550 = vpack.c.b16 %v7544, %v7543
        %v7551 = vpack.c.b16 %v7546, %v7545
        %v7552 = vpack.c.b16 %v7548, %v7547
        %v7554 = vsel %vm613, %v7549, 0
        %v7557 = vsel %vm613, %v7550, 0
        %v7560 = vsel %vm613, %v7551, 0
        %v7563 = vsel %vm613, %v7552, 0
        %7565 = vmatprep.subr.bf16.mxu0 %v7470
        %7566 = vmatpush1.bf16.msra.mxu0 %v7469
        %7567 = vmatprep.subr.bf16.mxu0 %v7472
        %7568 = vmatpush1.bf16.msra.mxu0 %v7471
        %7569 = vmatprep.subr.bf16.mxu0 %v7474
        %7570 = vmatpush1.bf16.msra.mxu0 %v7473
        %7571 = vmatprep.subr.bf16.mxu0 %v7476
        %7572 = vmatpush1.bf16.msra.mxu0 %v7475
        %7573 = vmatprep.subr.bf16.mxu0 0
        %7574 = vmatpush1.bf16.msra.mxu0 0
        %7575 = vmatprep.subr.bf16.mxu0 0
        %7576 = vmatpush1.bf16.msra.mxu0 0
        %7577 = vmatprep.subr.bf16.mxu0 0
        %7578 = vmatpush1.bf16.msra.mxu0 0
        %7579 = vmatprep.subr.bf16.mxu0 0
        %7580 = vmatpush1.bf16.msra.mxu0 0
        %7581 = vmatprep.subr.bf16.mxu0 0
        %7582 = vmatpush1.bf16.msra.mxu0 0
        %7583 = vmatprep.subr.bf16.mxu0 0
        %7584 = vmatpush1.bf16.msra.mxu0 0
        %7585 = vmatprep.subr.bf16.mxu0 0
        %7586 = vmatpush1.bf16.msra.mxu0 0
        %7587 = vmatprep.subr.bf16.mxu0 0
        %7588 = vmatpush1.bf16.msra.mxu0 0
        %7589 = vmatprep.subr.bf16.mxu0 0
        %7590 = vmatpush1.bf16.msra.mxu0 0
        %7591 = vmatprep.subr.bf16.mxu0 0
        %7592 = vmatpush1.bf16.msra.mxu0 0
        %7593 = vmatprep.subr.bf16.mxu0 0
        %7594 = vmatpush1.bf16.msra.mxu0 0
        %7595 = vmatprep.subr.bf16.mxu0 0
        %7596 = vmatpush1.bf16.msra.mxu0 0
        %7597 = vmatprep.mubr.bf16.mxu0 0
        %7598 = vmatmul.mubr.bf16.gmra.mrb[0].mxu0 %v7554
        %v7599 = vpop.f32.mrb[0].mxu0
        %v7600 = vadd.f32 %v7496, %v7599
        %v7601 = vpop.f32.mrb[0].mxu0
        %v7602 = vadd.f32 %v7496, %v7601
        %v7603 = vpop.f32.mrb[0].mxu0
        %v7604 = vadd.f32 %v7501, %v7603
        %v7605 = vpop.f32.mrb[0].mxu0
        %v7606 = vadd.f32 %v7501, %v7605
        %7607 = vmatprep.mubr.bf16.mxu0 0
        %7608 = vmatmul.mubr.bf16.gmra.mrb[0].mxu0 %v7557
        %v7609 = vpop.f32.mrb[0].mxu0
        %v7610 = vadd.f32 %v7506, %v7609
        %v7611 = vpop.f32.mrb[0].mxu0
        %v7612 = vadd.f32 %v7506, %v7611
        %v7613 = vpop.f32.mrb[0].mxu0
        %v7614 = vadd.f32 %v7511, %v7613
        %v7615 = vpop.f32.mrb[0].mxu0
        %v7616 = vadd.f32 %v7511, %v7615
        %7617 = vmatprep.mubr.bf16.mxu0 0
        %7618 = vmatmul.mubr.bf16.gmra.mrb[0].mxu0 %v7560
        %v7619 = vpop.f32.mrb[0].mxu0
        %v7620 = vadd.f32 %v7516, %v7619
        %v7621 = vpop.f32.mrb[0].mxu0
        %v7622 = vadd.f32 %v7516, %v7621
        %v7623 = vpop.f32.mrb[0].mxu0
        %v7624 = vadd.f32 %v7521, %v7623
        %v7625 = vpop.f32.mrb[0].mxu0
        %v7626 = vadd.f32 %v7521, %v7625
        %7627 = vmatprep.mubr.bf16.mxu0 0
        %7628 = vmatmul.mubr.bf16.gmra.mrb[0].mxu0 %v7563
        %v7629 = vpop.f32.mrb[0].mxu0
        %v7630 = vadd.f32 %v7526, %v7629
        %v7631 = vpop.f32.mrb[0].mxu0
        %v7632 = vadd.f32 %v7526, %v7631
        %v7633 = vpop.f32.mrb[0].mxu0
        %v7634 = vadd.f32 %v7531, %v7633
        %v7635 = vpop.f32.mrb[0].mxu0
        %v7636 = vadd.f32 %v7531, %v7635
        %7637 = vdwg.mxu0
        %7638 = vst [vmem:[%s246] sm:$0xff] %v7600
        %7639 = vst [vmem:[%s246 + $0x8] sm:$0xff] %v7602
        %7640 = vst [vmem:[%s246 + $0x10] sm:$0xff] %v7604
        %7641 = vst [vmem:[%s246 + $0x18] sm:$0xff] %v7606
        %7642 = vst [vmem:[%s246 + $0x20] sm:$0xff] %v7610
        %7643 = vst [vmem:[%s246 + $0x28] sm:$0xff] %v7612
        %7644 = vst [vmem:[%s246 + $0x30] sm:$0xff] %v7614
        %7645 = vst [vmem:[%s246 + $0x38] sm:$0xff] %v7616
        %7646 = vst [vmem:[%s246 + $0x40] sm:$0xff] %v7620
        %7647 = vst [vmem:[%s246 + $0x48] sm:$0xff] %v7622
        %7648 = vst [vmem:[%s246 + $0x50] sm:$0xff] %v7624
        %7649 = vst [vmem:[%s246 + $0x58] sm:$0xff] %v7626
        %7650 = vst [vmem:[%s246 + $0x60] sm:$0xff] %v7630
        %7651 = vst [vmem:[%s246 + $0x68] sm:$0xff] %v7632
        %7652 = vst [vmem:[%s246 + $0x70] sm:$0xff] %v7634
        %7653 = vst [vmem:[%s246 + $0x78] sm:$0xff] %v7636
        %s7654 = sand.u32 %s152, 1
        %s7655 = scalar_lea.sflag [#allocation6], %s7654
        %s7656 = sand.u32 %s152, 1
        %s7657 = smul.addr %s7656, 128
        %s7658 = scalar_lea.vmem [#allocation7], %s7657
        // Predicated region
        $region49: #{tpu_custom_call.1} parent=39 // pred_check
          %p7659 = pneg %p162
        $region50: #{tpu_custom_call.1} parent=39 // pred_check_branch
          %7661 = sbr.rel (%p7659) target = $region52
        $region51: #{tpu_custom_call.1} parent=39 // pred_region
          %s7662 = smul.u32 2, %s25
          %s7664 = ssub.s32 2048, 2048
          %7665 = vsyncadd %s7655, %s7664
          %s7666 = smul.addr %s24, 16
          %s7667 = sadd.s32 %s7662, %s7666
          %s7668 = smul.addr %s7667, 128
          %s7669 = scalar_lea.hbm %s5, %s7668
          %s7670 = sshll.u32 %s7658, 4
          %s7671 = int_to_ptr.vmem [resolvable:$true] %s7670
          %7676 = dma.vmem_to_hbm [thread:$0]  %s7671, 2048, %s7669, %s7655, 256, 256, 16
        $region52: #{tpu_custom_call.1} parent=39 // pred_fallthru
          _
      $region40: #{tpu_custom_call.1} parent=5 // pred_fallthru
        _
      %p7677 = scmp.le.s32.totalorder 2, %s15
      // Predicated region
      $region53: #{tpu_custom_call.1} parent=5 // pred_check
        %p7678 = pneg %p7677
      $region54: #{tpu_custom_call.1} parent=5 // pred_check_branch
        %7680 = sbr.rel (%p7678) target = $region56
      $region55: #{tpu_custom_call.1} parent=5 // pred_region
        %s7681 = ssub.s32 %s15, 2
        // Predicated region
        $region57: #{tpu_custom_call.1} parent=55 // pred_check
          %p7682 = pneg %p168
        $region58: #{tpu_custom_call.1} parent=55 // pred_check_branch
          %7684 = sbr.rel (%p7682) target = $region60
        $region59: #{tpu_custom_call.1} parent=55 // pred_region
          %s7685 = sand.u32 %s153, 1
          %s7686 = scalar_lea.sflag [#allocation6], %s7685
          %s7687 = sand.u32 %s153, 1
          %s7688 = smul.addr %s7687, 128
          %s7689 = scalar_lea.vmem [#allocation7], %s7688
          %7690 = dma.done %s7686, 2048
        $region60: #{tpu_custom_call.1} parent=55 // pred_fallthru
          _
      $region56: #{tpu_custom_call.1} parent=5 // pred_fallthru
        _
    $region6: #{tpu_custom_call.1} parent=1 // loop_footer
      %s19 = sadd.s32 1, %s15
    $region7: #{tpu_custom_call.1} parent=1 // loop_footer_branch
      %14 = sbr.rel target = $region3
    $region8: #{tpu_custom_call.1} parent=1 // loop_exit
      _
    %7691 = vsyncpa [#allocation5], 1
    %s7692 = scalar_lea.sflag [#allocation5], 1
    %7693 = vsyncpa %s7692, 1
    %7694 = vsyncpa [#allocation6], 1
    %s7695 = scalar_lea.sflag [#allocation6], 1
    %7696 = vsyncpa %s7695, 1

</llo_original>
